<compile_context>
chip_gen: v7x
topology: tpu7x:2x2x1
jax: 0.10.0
libtpu: 0.0.40
codegen_flags: <defaults>
</compile_context>

<pallas_src>
import functools
import math

import jax
import jax.numpy as jnp
from jax import lax
from jax.experimental import pallas as pl
from jax.experimental.pallas import tpu as pltpu


_CONV_RELU = (True, True, False, True, True)        # 3rd conv has no ReLU
_POOLS = ((2, 2), (2, 2), (2, 2), (2, 2), (3, 1))   # (kernel, stride) per MaxPool
_STATIC_UNROLL_ROWS = 8                             # unroll stages with few pool rows


def _plan(h, w, out_chans):
    """Static per-stage geometry of the conv/pool stack."""
    cfgs = []
    for oc, relu, (k, s) in zip(out_chans, _CONV_RELU, _POOLS):
        oh, ow = h - 2, w - 2                           # conv 3x3, padding=0
        ph, pw = (oh - k) // s + 1, (ow - k) // s + 1   # maxpool, floor mode
        assert ph >= 1 and pw >= 1, "input spatial size too small for the stack"
        cfgs.append(dict(ow=ow, oc=oc, relu=relu, k=k, s=s, ph=ph, pw=pw))
        h, w = ph, pw
    return cfgs, (h, w)


# ---------------------------------------------------------------------------
# In-kernel building blocks (everything lives in VMEM).
# ---------------------------------------------------------------------------
def _tap_loader(ref, has_batch_dim, ow):
    """load(r, dj) -> (1, ow, Cin) window tap from a VMEM ref."""
    if has_batch_dim:
        return lambda r, dj: ref[0, pl.ds(r, 1), pl.ds(dj, ow), :]
    return lambda r, dj: ref[pl.ds(r, 1), pl.ds(dj, ow), :]


def _conv_pool_stage(load_tap, w_ref, b_ref, act_ref, row_ref, *,
                     ow, oc, relu, k, s, ph, pw):
    """Conv3x3(valid) + bias + optional ReLU + MaxPool(k, s): VMEM -> VMEM."""
    del oc  # implied by the weight/bias shapes
    wmat = w_ref[...]                      # (9*Cin, OC) bf16, resident
    bias = b_ref[...]                      # (1, OC) f32

    def pool_row(q):
        r0 = q * s
        # --- the k conv rows feeding pool row q: implicit im2col + MXU dot ---
        vmax = None
        for dk in range(k):
            taps = []
            for di in range(3):
                for dj in range(3):
                    taps.append(load_tap(r0 + dk + di, dj))       # (1, ow, Cin)
            patches = jnp.concatenate(taps, axis=-1)[0]           # (ow, 9*Cin)
            row = jnp.dot(patches, wmat,
                          preferred_element_type=jnp.float32) + bias  # (ow, OC)
            if relu:
                row = jnp.maximum(row, 0.0)
            vmax = row if vmax is None else jnp.maximum(vmax, row)    # vertical max
        row_ref[...] = vmax
        # --- horizontal max-pool via strided scratch reads --------------------
        hmax = None
        for kj in range(k):
            idx = pl.ds(kj, pw, s) if s != 1 else pl.ds(kj, pw)
            win = row_ref[idx, :]                                  # (pw, OC)
            hmax = win if hmax is None else jnp.maximum(hmax, win)
        act_ref[pl.ds(q, 1), :, :] = hmax[None].astype(act_ref.dtype)

    if ph <= _STATIC_UNROLL_ROWS:
        for q in range(ph):
            pool_row(q)
    else:
        def body(q, carry):
            pool_row(q)
            return carry
        lax.fori_loop(0, ph, body, 0)


def _network_kernel(*refs, cfgs, flat):
    n_conv = len(cfgs)
    x_ref = refs[0]
    conv_wb = refs[1:1 + 2 * n_conv]                       # w1,b1,w2,b2,...
    wf1_ref, bf1_ref, wf2_ref, bf2_ref = refs[1 + 2 * n_conv:5 + 2 * n_conv]
    o_ref = refs[5 + 2 * n_conv]
    acts = refs[6 + 2 * n_conv:6 + 3 * n_conv]             # pooled activations (bf16)
    rows = refs[6 + 3 * n_conv:6 + 4 * n_conv]             # one f32 conv row / stage

    # ----- conv / pool stack, entirely in VMEM -------------------------------
    src, has_batch = x_ref, True
    for i, cfg in enumerate(cfgs):
        load_tap = _tap_loader(src, has_batch, cfg["ow"])
        _conv_pool_stage(load_tap, conv_wb[2 * i], conv_wb[2 * i + 1],
                         acts[i], rows[i], **cfg)
        src, has_batch = acts[i], False

    # ----- Dropout: identity at inference.  Flatten (1x1 spatial) ------------
    feat = acts[-1][...].reshape(1, flat).astype(jnp.float32)       # (1, flat)

    # ----- FC head: Linear -> ReLU -> Linear -> Sigmoid ----------------------
    hid = jnp.dot(feat, wf1_ref[...],
                  preferred_element_type=jnp.float32) + bf1_ref[...]
    hid = jnp.maximum(hid, 0.0)
    logit = jnp.dot(hid, wf2_ref[...],
                    preferred_element_type=jnp.float32) + bf2_ref[...]
    prob = jax.nn.sigmoid(logit)                                    # (1, 1)
    o_ref[...] = jnp.broadcast_to(prob.reshape(1, 1, 1), o_ref.shape)


# ---------------------------------------------------------------------------
# Wrapper: one pallas_call for the whole forward pass.
# ---------------------------------------------------------------------------
def neural_network_forward(params, x_nchw):
    """x_nchw: (N, 3, H, W) f32  ->  (N, 1) f32 probabilities."""
    x = jnp.transpose(x_nchw, (0, 2, 3, 1)).astype(jnp.bfloat16)    # NCHW -> NHWC
    n, h, wd, cin = x.shape
    out_chans = tuple(w.shape[1] for (w, _) in params["convs"])
    cfgs, (fh, fw) = _plan(h, wd, out_chans)
    # TODO(synk): a final feature map larger than 1x1 would need an in-kernel
    # NHWC->NCHW reorder before flattening; the reference model (224x224, and
    # the 112x112 example below) always ends at 1x1.
    assert fh == 1 and fw == 1, "fused kernel assumes the conv stack ends at 1x1"
    flat = out_chans[-1] * fh * fw

    w1, b1 = params["fc1"]
    w2, b2 = params["fc2"]

    operands = [x]
    in_specs = [pl.BlockSpec((1, h, wd, cin), lambda b: (b, 0, 0, 0))]
    for (wc, bc) in params["convs"]:
        operands += [wc, bc]
        in_specs += [pl.BlockSpec(wc.shape, lambda b: (0, 0)),
                     pl.BlockSpec(bc.shape, lambda b: (0, 0))]
    operands += [w1, b1.reshape(1, -1), w2, b2.reshape(1, 1)]
    in_specs += [pl.BlockSpec(w1.shape, lambda b: (0, 0)),
                 pl.BlockSpec((1, w1.shape[1]), lambda b: (0, 0)),
                 pl.BlockSpec(w2.shape, lambda b: (0, 0)),
                 pl.BlockSpec((1, 1), lambda b: (0, 0))]

    # On-chip intermediates: pooled activations (bf16) + one f32 conv row/stage.
    scratch = ([pltpu.VMEM((c["ph"], c["pw"], c["oc"]), jnp.bfloat16) for c in cfgs]
               + [pltpu.VMEM((c["ow"], c["oc"]), jnp.float32) for c in cfgs])

    kern = functools.partial(_network_kernel, cfgs=tuple(cfgs), flat=flat)
    out = pl.pallas_call(
        kern,
        out_shape=jax.ShapeDtypeStruct((n, 1, 128), jnp.float32),
        grid=(n,),
        in_specs=in_specs,
        out_specs=pl.BlockSpec((1, 1, 128), lambda b: (b, 0, 0)),
        scratch_shapes=scratch,
        compiler_params=pltpu.CompilerParams(dimension_semantics=("parallel",)),
    )(*operands)
    return out[:, 0, :1]                                            # (N, 1)


# ---------------------------------------------------------------------------
# Parameter init (torch-default-style uniform bounds) and a pure-JAX reference.
# ---------------------------------------------------------------------------
def init_params(key, test_channels, spatial, in_ch=3):
    chans = (in_ch,) + tuple(test_channels)
    n_conv = len(test_channels)
    keys = jax.random.split(key, 2 * n_conv + 4)
    convs = []
    for i in range(n_conv):
        ci, co = chans[i], chans[i + 1]
        bound = 1.0 / math.sqrt(ci * 9)
        w = jax.random.uniform(keys[2 * i], (3, 3, ci, co), jnp.float32, -bound, bound)
        b = jax.random.uniform(keys[2 * i + 1], (co,), jnp.float32, -bound, bound)
        # (3,3,ci,co) -> (9*ci, co): row order (kh, kw, ci) matches the in-kernel
        # im2col tap order; stored bf16 for the MXU.
        convs.append((w.reshape(9 * ci, co).astype(jnp.bfloat16),
                      b.reshape(1, co).astype(jnp.float32)))
    _, (fh, fw) = _plan(spatial, spatial, tuple(test_channels))
    flattened = test_channels[-1] * fh * fw
    kb = 2 * n_conv
    b1 = 1.0 / math.sqrt(flattened)
    w_fc1 = jax.random.uniform(keys[kb + 0], (flattened, 512), jnp.float32, -b1, b1)
    b_fc1 = jax.random.uniform(keys[kb + 1], (512,), jnp.float32, -b1, b1)
    b2 = 1.0 / math.sqrt(512)
    w_fc2 = jax.random.uniform(keys[kb + 2], (512, 1), jnp.float32, -b2, b2)
    b_fc2 = jax.random.uniform(keys[kb + 3], (1,), jnp.float32, -b2, b2)
    return {"convs": convs, "fc1": (w_fc1, b_fc1), "fc2": (w_fc2, b_fc2)}


def reference_forward(params, x_nchw):
    """Pure-JAX/XLA reference (f32 everywhere) of the torch forward pass."""
    x = jnp.transpose(x_nchw, (0, 2, 3, 1)).astype(jnp.float32)
    for (w2d, b), relu, (pk, ps) in zip(params["convs"], _CONV_RELU, _POOLS):
        ci = x.shape[-1]
        w4 = w2d.astype(jnp.float32).reshape(3, 3, ci, -1)           # HWIO
        x = lax.conv_general_dilated(x, w4, (1, 1), "VALID",
                                     dimension_numbers=("NHWC", "HWIO", "NHWC"))
        x = x + b.astype(jnp.float32).reshape(1, 1, 1, -1)
        if relu:
            x = jnp.maximum(x, 0.0)
        x = lax.reduce_window(x, -jnp.inf, lax.max,
                              (1, pk, pk, 1), (1, ps, ps, 1), "VALID")
    x = jnp.transpose(x, (0, 3, 1, 2)).reshape(x.shape[0], -1)       # NCHW flatten
    w1, b1 = params["fc1"]
    w2, b2 = params["fc2"]
    h = jnp.maximum(x @ w1 + b1, 0.0)
    return jax.nn.sigmoid(h @ w2 + b2)


if __name__ == "__main__":
    test_channels = (4, 8, 8, 16, 16)   # the `test` channel list of the torch module
    spatial = 112                       # smallest size the 5-stage stack admits
                                        # (real model uses 224; both end at 1x1)
    key = jax.random.PRNGKey(0)
    kp, kx = jax.random.split(key)
    params = init_params(kp, test_channels, spatial)
    x = jax.random.normal(kx, (2, 3, spatial, spatial), jnp.float32)

    out = jax.jit(neural_network_forward)(params, x)
    out = jax.block_until_ready(out)
    assert out.shape == (2, 1), out.shape
    assert bool(jnp.all(jnp.isfinite(out)))
    assert bool(jnp.all((out >= 0.0) & (out <= 1.0))), out

    ref = jax.block_until_ready(jax.jit(reference_forward)(params, x))
    assert bool(jnp.max(jnp.abs(out - ref)) < 5e-2), (out, ref)
    print("KERNEL_OK")
</pallas_src>

<mosaic_0001>
module attributes {stable_mosaic.version = 11 : i64} {
  func.func @_network_kernel(%arg0: i32, %arg1: memref<1x112x112x3xbf16, #tpu.memory_space<vmem>>, %arg2: memref<27x4xbf16, #tpu.memory_space<vmem>>, %arg3: memref<1x4xf32, #tpu.memory_space<vmem>>, %arg4: memref<36x8xbf16, #tpu.memory_space<vmem>>, %arg5: memref<1x8xf32, #tpu.memory_space<vmem>>, %arg6: memref<72x8xbf16, #tpu.memory_space<vmem>>, %arg7: memref<1x8xf32, #tpu.memory_space<vmem>>, %arg8: memref<72x16xbf16, #tpu.memory_space<vmem>>, %arg9: memref<1x16xf32, #tpu.memory_space<vmem>>, %arg10: memref<144x16xbf16, #tpu.memory_space<vmem>>, %arg11: memref<1x16xf32, #tpu.memory_space<vmem>>, %arg12: memref<16x512xf32, #tpu.memory_space<vmem>>, %arg13: memref<1x512xf32, #tpu.memory_space<vmem>>, %arg14: memref<512x1xf32, #tpu.memory_space<vmem>>, %arg15: memref<1x1xf32, #tpu.memory_space<vmem>>, %arg16: memref<1x1x128xf32, #tpu.memory_space<vmem>>, %arg17: memref<55x55x4xbf16, #tpu.memory_space<vmem>>, %arg18: memref<26x26x8xbf16, #tpu.memory_space<vmem>>, %arg19: memref<12x12x8xbf16, #tpu.memory_space<vmem>>, %arg20: memref<5x5x16xbf16, #tpu.memory_space<vmem>>, %arg21: memref<1x1x16xbf16, #tpu.memory_space<vmem>>, %arg22: memref<110x4xf32, #tpu.memory_space<vmem>>, %arg23: memref<53x8xf32, #tpu.memory_space<vmem>>, %arg24: memref<24x8xf32, #tpu.memory_space<vmem>>, %arg25: memref<10x16xf32, #tpu.memory_space<vmem>>, %arg26: memref<3x16xf32, #tpu.memory_space<vmem>>) attributes {dimension_semantics = [#tpu.dimension_semantics<parallel>], iteration_bounds = array<i64: 2>, scalar_prefetch = 0 : i64, scratch_operands = 10 : i64, tpu.core_type = #tpu.core_type<tc>, window_params = [{transform_indices = @transform_0, window_bounds = array<i64: 1, 112, 112, 3>}, {pipeline_mode = #tpu.pipeline_mode<synchronous>, transform_indices = @transform_1, window_bounds = array<i64: 27, 4>}, {pipeline_mode = #tpu.pipeline_mode<synchronous>, transform_indices = @transform_2, window_bounds = array<i64: 1, 4>}, {pipeline_mode = #tpu.pipeline_mode<synchronous>, transform_indices = @transform_3, window_bounds = array<i64: 36, 8>}, {pipeline_mode = #tpu.pipeline_mode<synchronous>, transform_indices = @transform_4, window_bounds = array<i64: 1, 8>}, {pipeline_mode = #tpu.pipeline_mode<synchronous>, transform_indices = @transform_5, window_bounds = array<i64: 72, 8>}, {pipeline_mode = #tpu.pipeline_mode<synchronous>, transform_indices = @transform_6, window_bounds = array<i64: 1, 8>}, {pipeline_mode = #tpu.pipeline_mode<synchronous>, transform_indices = @transform_7, window_bounds = array<i64: 72, 16>}, {pipeline_mode = #tpu.pipeline_mode<synchronous>, transform_indices = @transform_8, window_bounds = array<i64: 1, 16>}, {pipeline_mode = #tpu.pipeline_mode<synchronous>, transform_indices = @transform_9, window_bounds = array<i64: 144, 16>}, {pipeline_mode = #tpu.pipeline_mode<synchronous>, transform_indices = @transform_10, window_bounds = array<i64: 1, 16>}, {pipeline_mode = #tpu.pipeline_mode<synchronous>, transform_indices = @transform_11, window_bounds = array<i64: 16, 512>}, {pipeline_mode = #tpu.pipeline_mode<synchronous>, transform_indices = @transform_12, window_bounds = array<i64: 1, 512>}, {pipeline_mode = #tpu.pipeline_mode<synchronous>, transform_indices = @transform_13, window_bounds = array<i64: 512, 1>}, {pipeline_mode = #tpu.pipeline_mode<synchronous>, transform_indices = @transform_14, window_bounds = array<i64: 1, 1>}, {transform_indices = @transform_15, window_bounds = array<i64: 1, 1, 128>}]} {
    %c0 = arith.constant 0 : index
    %c0_0 = arith.constant 0 : index
    %0 = vector.load %arg2[%c0, %c0_0] : memref<27x4xbf16, #tpu.memory_space<vmem>>, vector<27x4xbf16>
    %c0_1 = arith.constant 0 : index
    %c0_2 = arith.constant 0 : index
    %1 = vector.load %arg3[%c0_1, %c0_2] : memref<1x4xf32, #tpu.memory_space<vmem>>, vector<1x4xf32>
    %c0_i32 = arith.constant 0 : i32
    %c55_i32 = arith.constant 55 : i32
    %2 = arith.addi %c0_i32, %c55_i32 : i32
    %c1_i32 = arith.constant 1 : i32
    scf.for %arg27 = %c0_i32 to %2 step %c1_i32  : i32 {
      %c2_i32 = arith.constant 2 : i32
      %294 = arith.muli %arg27, %c2_i32 : i32
      %c0_i32_465 = arith.constant 0 : i32
      %295 = arith.addi %294, %c0_i32_465 : i32
      %c0_i32_466 = arith.constant 0 : i32
      %296 = arith.addi %295, %c0_i32_466 : i32
      %c0_467 = arith.constant 0 : index
      %297 = arith.index_cast %296 : i32 to index
      %c0_468 = arith.constant 0 : index
      %c0_469 = arith.constant 0 : index
      %298 = vector.load %arg1[%c0_467, %297, %c0_468, %c0_469] : memref<1x112x112x3xbf16, #tpu.memory_space<vmem>>, vector<1x1x110x3xbf16>
      %299 = vector.shape_cast %298 : vector<1x1x110x3xbf16> to vector<1x110x3xbf16>
      %c0_i32_470 = arith.constant 0 : i32
      %300 = arith.addi %294, %c0_i32_470 : i32
      %c0_i32_471 = arith.constant 0 : i32
      %301 = arith.addi %300, %c0_i32_471 : i32
      %c0_472 = arith.constant 0 : index
      %302 = arith.index_cast %301 : i32 to index
      %c1_473 = arith.constant 1 : index
      %c0_474 = arith.constant 0 : index
      %303 = vector.load %arg1[%c0_472, %302, %c1_473, %c0_474] : memref<1x112x112x3xbf16, #tpu.memory_space<vmem>>, vector<1x1x110x3xbf16>
      %304 = vector.shape_cast %303 : vector<1x1x110x3xbf16> to vector<1x110x3xbf16>
      %c0_i32_475 = arith.constant 0 : i32
      %305 = arith.addi %294, %c0_i32_475 : i32
      %c0_i32_476 = arith.constant 0 : i32
      %306 = arith.addi %305, %c0_i32_476 : i32
      %c0_477 = arith.constant 0 : index
      %307 = arith.index_cast %306 : i32 to index
      %c2_478 = arith.constant 2 : index
      %c0_479 = arith.constant 0 : index
      %308 = vector.load %arg1[%c0_477, %307, %c2_478, %c0_479] : memref<1x112x112x3xbf16, #tpu.memory_space<vmem>>, vector<1x1x110x3xbf16>
      %309 = vector.shape_cast %308 : vector<1x1x110x3xbf16> to vector<1x110x3xbf16>
      %c0_i32_480 = arith.constant 0 : i32
      %310 = arith.addi %294, %c0_i32_480 : i32
      %c1_i32_481 = arith.constant 1 : i32
      %311 = arith.addi %310, %c1_i32_481 : i32
      %c0_482 = arith.constant 0 : index
      %312 = arith.index_cast %311 : i32 to index
      %c0_483 = arith.constant 0 : index
      %c0_484 = arith.constant 0 : index
      %313 = vector.load %arg1[%c0_482, %312, %c0_483, %c0_484] : memref<1x112x112x3xbf16, #tpu.memory_space<vmem>>, vector<1x1x110x3xbf16>
      %314 = vector.shape_cast %313 : vector<1x1x110x3xbf16> to vector<1x110x3xbf16>
      %c0_i32_485 = arith.constant 0 : i32
      %315 = arith.addi %294, %c0_i32_485 : i32
      %c1_i32_486 = arith.constant 1 : i32
      %316 = arith.addi %315, %c1_i32_486 : i32
      %c0_487 = arith.constant 0 : index
      %317 = arith.index_cast %316 : i32 to index
      %c1_488 = arith.constant 1 : index
      %c0_489 = arith.constant 0 : index
      %318 = vector.load %arg1[%c0_487, %317, %c1_488, %c0_489] : memref<1x112x112x3xbf16, #tpu.memory_space<vmem>>, vector<1x1x110x3xbf16>
      %319 = vector.shape_cast %318 : vector<1x1x110x3xbf16> to vector<1x110x3xbf16>
      %c0_i32_490 = arith.constant 0 : i32
      %320 = arith.addi %294, %c0_i32_490 : i32
      %c1_i32_491 = arith.constant 1 : i32
      %321 = arith.addi %320, %c1_i32_491 : i32
      %c0_492 = arith.constant 0 : index
      %322 = arith.index_cast %321 : i32 to index
      %c2_493 = arith.constant 2 : index
      %c0_494 = arith.constant 0 : index
      %323 = vector.load %arg1[%c0_492, %322, %c2_493, %c0_494] : memref<1x112x112x3xbf16, #tpu.memory_space<vmem>>, vector<1x1x110x3xbf16>
      %324 = vector.shape_cast %323 : vector<1x1x110x3xbf16> to vector<1x110x3xbf16>
      %c0_i32_495 = arith.constant 0 : i32
      %325 = arith.addi %294, %c0_i32_495 : i32
      %c2_i32_496 = arith.constant 2 : i32
      %326 = arith.addi %325, %c2_i32_496 : i32
      %c0_497 = arith.constant 0 : index
      %327 = arith.index_cast %326 : i32 to index
      %c0_498 = arith.constant 0 : index
      %c0_499 = arith.constant 0 : index
      %328 = vector.load %arg1[%c0_497, %327, %c0_498, %c0_499] : memref<1x112x112x3xbf16, #tpu.memory_space<vmem>>, vector<1x1x110x3xbf16>
      %329 = vector.shape_cast %328 : vector<1x1x110x3xbf16> to vector<1x110x3xbf16>
      %c0_i32_500 = arith.constant 0 : i32
      %330 = arith.addi %294, %c0_i32_500 : i32
      %c2_i32_501 = arith.constant 2 : i32
      %331 = arith.addi %330, %c2_i32_501 : i32
      %c0_502 = arith.constant 0 : index
      %332 = arith.index_cast %331 : i32 to index
      %c1_503 = arith.constant 1 : index
      %c0_504 = arith.constant 0 : index
      %333 = vector.load %arg1[%c0_502, %332, %c1_503, %c0_504] : memref<1x112x112x3xbf16, #tpu.memory_space<vmem>>, vector<1x1x110x3xbf16>
      %334 = vector.shape_cast %333 : vector<1x1x110x3xbf16> to vector<1x110x3xbf16>
      %c0_i32_505 = arith.constant 0 : i32
      %335 = arith.addi %294, %c0_i32_505 : i32
      %c2_i32_506 = arith.constant 2 : i32
      %336 = arith.addi %335, %c2_i32_506 : i32
      %c0_507 = arith.constant 0 : index
      %337 = arith.index_cast %336 : i32 to index
      %c2_508 = arith.constant 2 : index
      %c0_509 = arith.constant 0 : index
      %338 = vector.load %arg1[%c0_507, %337, %c2_508, %c0_509] : memref<1x112x112x3xbf16, #tpu.memory_space<vmem>>, vector<1x1x110x3xbf16>
      %339 = vector.shape_cast %338 : vector<1x1x110x3xbf16> to vector<1x110x3xbf16>
      %340 = tpu.concatenate %299, %304, %309, %314, %319, %324, %329, %334, %339 in 2 : vector<1x110x3xbf16>, vector<1x110x3xbf16>, vector<1x110x3xbf16>, vector<1x110x3xbf16>, vector<1x110x3xbf16>, vector<1x110x3xbf16>, vector<1x110x3xbf16>, vector<1x110x3xbf16>, vector<1x110x3xbf16> -> vector<1x110x27xbf16>
      %341 = vector.shape_cast %340 : vector<1x110x27xbf16> to vector<110x27xbf16>
      %cst_510 = arith.constant dense<0.000000e+00> : vector<110x4xf32>
      %342 = tpu.matmul %341, %0, %cst_510 {dimension_numbers = #tpu.dot_dimension_numbers<[1], [0], [0], [1], [0, 0, 1, 1], [], []>} : vector<110x27xbf16>, vector<27x4xbf16>, vector<110x4xf32> -> vector<110x4xf32>
      %343 = vector.broadcast %1 : vector<1x4xf32> to vector<110x4xf32>
      %344 = arith.addf %342, %343 : vector<110x4xf32>
      %cst_511 = arith.constant 0.000000e+00 : f32
      %345 = vector.broadcast %cst_511 : f32 to vector<110x4xf32>
      %346 = arith.maximumf %344, %345 : vector<110x4xf32>
      %c1_i32_512 = arith.constant 1 : i32
      %347 = arith.addi %294, %c1_i32_512 : i32
      %c0_i32_513 = arith.constant 0 : i32
      %348 = arith.addi %347, %c0_i32_513 : i32
      %c0_514 = arith.constant 0 : index
      %349 = arith.index_cast %348 : i32 to index
      %c0_515 = arith.constant 0 : index
      %c0_516 = arith.constant 0 : index
      %350 = vector.load %arg1[%c0_514, %349, %c0_515, %c0_516] : memref<1x112x112x3xbf16, #tpu.memory_space<vmem>>, vector<1x1x110x3xbf16>
      %351 = vector.shape_cast %350 : vector<1x1x110x3xbf16> to vector<1x110x3xbf16>
      %c1_i32_517 = arith.constant 1 : i32
      %352 = arith.addi %294, %c1_i32_517 : i32
      %c0_i32_518 = arith.constant 0 : i32
      %353 = arith.addi %352, %c0_i32_518 : i32
      %c0_519 = arith.constant 0 : index
      %354 = arith.index_cast %353 : i32 to index
      %c1_520 = arith.constant 1 : index
      %c0_521 = arith.constant 0 : index
      %355 = vector.load %arg1[%c0_519, %354, %c1_520, %c0_521] : memref<1x112x112x3xbf16, #tpu.memory_space<vmem>>, vector<1x1x110x3xbf16>
      %356 = vector.shape_cast %355 : vector<1x1x110x3xbf16> to vector<1x110x3xbf16>
      %c1_i32_522 = arith.constant 1 : i32
      %357 = arith.addi %294, %c1_i32_522 : i32
      %c0_i32_523 = arith.constant 0 : i32
      %358 = arith.addi %357, %c0_i32_523 : i32
      %c0_524 = arith.constant 0 : index
      %359 = arith.index_cast %358 : i32 to index
      %c2_525 = arith.constant 2 : index
      %c0_526 = arith.constant 0 : index
      %360 = vector.load %arg1[%c0_524, %359, %c2_525, %c0_526] : memref<1x112x112x3xbf16, #tpu.memory_space<vmem>>, vector<1x1x110x3xbf16>
      %361 = vector.shape_cast %360 : vector<1x1x110x3xbf16> to vector<1x110x3xbf16>
      %c1_i32_527 = arith.constant 1 : i32
      %362 = arith.addi %294, %c1_i32_527 : i32
      %c1_i32_528 = arith.constant 1 : i32
      %363 = arith.addi %362, %c1_i32_528 : i32
      %c0_529 = arith.constant 0 : index
      %364 = arith.index_cast %363 : i32 to index
      %c0_530 = arith.constant 0 : index
      %c0_531 = arith.constant 0 : index
      %365 = vector.load %arg1[%c0_529, %364, %c0_530, %c0_531] : memref<1x112x112x3xbf16, #tpu.memory_space<vmem>>, vector<1x1x110x3xbf16>
      %366 = vector.shape_cast %365 : vector<1x1x110x3xbf16> to vector<1x110x3xbf16>
      %c1_i32_532 = arith.constant 1 : i32
      %367 = arith.addi %294, %c1_i32_532 : i32
      %c1_i32_533 = arith.constant 1 : i32
      %368 = arith.addi %367, %c1_i32_533 : i32
      %c0_534 = arith.constant 0 : index
      %369 = arith.index_cast %368 : i32 to index
      %c1_535 = arith.constant 1 : index
      %c0_536 = arith.constant 0 : index
      %370 = vector.load %arg1[%c0_534, %369, %c1_535, %c0_536] : memref<1x112x112x3xbf16, #tpu.memory_space<vmem>>, vector<1x1x110x3xbf16>
      %371 = vector.shape_cast %370 : vector<1x1x110x3xbf16> to vector<1x110x3xbf16>
      %c1_i32_537 = arith.constant 1 : i32
      %372 = arith.addi %294, %c1_i32_537 : i32
      %c1_i32_538 = arith.constant 1 : i32
      %373 = arith.addi %372, %c1_i32_538 : i32
      %c0_539 = arith.constant 0 : index
      %374 = arith.index_cast %373 : i32 to index
      %c2_540 = arith.constant 2 : index
      %c0_541 = arith.constant 0 : index
      %375 = vector.load %arg1[%c0_539, %374, %c2_540, %c0_541] : memref<1x112x112x3xbf16, #tpu.memory_space<vmem>>, vector<1x1x110x3xbf16>
      %376 = vector.shape_cast %375 : vector<1x1x110x3xbf16> to vector<1x110x3xbf16>
      %c1_i32_542 = arith.constant 1 : i32
      %377 = arith.addi %294, %c1_i32_542 : i32
      %c2_i32_543 = arith.constant 2 : i32
      %378 = arith.addi %377, %c2_i32_543 : i32
      %c0_544 = arith.constant 0 : index
      %379 = arith.index_cast %378 : i32 to index
      %c0_545 = arith.constant 0 : index
      %c0_546 = arith.constant 0 : index
      %380 = vector.load %arg1[%c0_544, %379, %c0_545, %c0_546] : memref<1x112x112x3xbf16, #tpu.memory_space<vmem>>, vector<1x1x110x3xbf16>
      %381 = vector.shape_cast %380 : vector<1x1x110x3xbf16> to vector<1x110x3xbf16>
      %c1_i32_547 = arith.constant 1 : i32
      %382 = arith.addi %294, %c1_i32_547 : i32
      %c2_i32_548 = arith.constant 2 : i32
      %383 = arith.addi %382, %c2_i32_548 : i32
      %c0_549 = arith.constant 0 : index
      %384 = arith.index_cast %383 : i32 to index
      %c1_550 = arith.constant 1 : index
      %c0_551 = arith.constant 0 : index
      %385 = vector.load %arg1[%c0_549, %384, %c1_550, %c0_551] : memref<1x112x112x3xbf16, #tpu.memory_space<vmem>>, vector<1x1x110x3xbf16>
      %386 = vector.shape_cast %385 : vector<1x1x110x3xbf16> to vector<1x110x3xbf16>
      %c1_i32_552 = arith.constant 1 : i32
      %387 = arith.addi %294, %c1_i32_552 : i32
      %c2_i32_553 = arith.constant 2 : i32
      %388 = arith.addi %387, %c2_i32_553 : i32
      %c0_554 = arith.constant 0 : index
      %389 = arith.index_cast %388 : i32 to index
      %c2_555 = arith.constant 2 : index
      %c0_556 = arith.constant 0 : index
      %390 = vector.load %arg1[%c0_554, %389, %c2_555, %c0_556] : memref<1x112x112x3xbf16, #tpu.memory_space<vmem>>, vector<1x1x110x3xbf16>
      %391 = vector.shape_cast %390 : vector<1x1x110x3xbf16> to vector<1x110x3xbf16>
      %392 = tpu.concatenate %351, %356, %361, %366, %371, %376, %381, %386, %391 in 2 : vector<1x110x3xbf16>, vector<1x110x3xbf16>, vector<1x110x3xbf16>, vector<1x110x3xbf16>, vector<1x110x3xbf16>, vector<1x110x3xbf16>, vector<1x110x3xbf16>, vector<1x110x3xbf16>, vector<1x110x3xbf16> -> vector<1x110x27xbf16>
      %393 = vector.shape_cast %392 : vector<1x110x27xbf16> to vector<110x27xbf16>
      %cst_557 = arith.constant dense<0.000000e+00> : vector<110x4xf32>
      %394 = tpu.matmul %393, %0, %cst_557 {dimension_numbers = #tpu.dot_dimension_numbers<[1], [0], [0], [1], [0, 0, 1, 1], [], []>} : vector<110x27xbf16>, vector<27x4xbf16>, vector<110x4xf32> -> vector<110x4xf32>
      %395 = vector.broadcast %1 : vector<1x4xf32> to vector<110x4xf32>
      %396 = arith.addf %394, %395 : vector<110x4xf32>
      %cst_558 = arith.constant 0.000000e+00 : f32
      %397 = vector.broadcast %cst_558 : f32 to vector<110x4xf32>
      %398 = arith.maximumf %396, %397 : vector<110x4xf32>
      %399 = arith.maximumf %346, %398 : vector<110x4xf32>
      %c0_559 = arith.constant 0 : index
      %c0_560 = arith.constant 0 : index
      %400 = vector.load %arg22[%c0_559, %c0_560] : memref<110x4xf32, #tpu.memory_space<vmem>>, vector<110x4xf32>
      tpu.vector_store %arg22[%c0_559, %c0_560], %399 {strides = array<i32>} : memref<110x4xf32, #tpu.memory_space<vmem>>, vector<110x4xf32>,
      %c0_561 = arith.constant 0 : index
      %c0_562 = arith.constant 0 : index
      %401 = tpu.strided_load %arg22[%c0_561, %c0_562] {strides = array<i32: 2, 1>} : memref<110x4xf32, #tpu.memory_space<vmem>>, vector<55x4xf32>
      %c1_563 = arith.constant 1 : index
      %c0_564 = arith.constant 0 : index
      %402 = tpu.strided_load %arg22[%c1_563, %c0_564] {strides = array<i32: 2, 1>} : memref<110x4xf32, #tpu.memory_space<vmem>>, vector<55x4xf32>
      %403 = arith.maximumf %401, %402 : vector<55x4xf32>
      %404 = vector.shape_cast %403 : vector<55x4xf32> to vector<1x55x4xf32>
      %405 = arith.truncf %404 : vector<1x55x4xf32> to vector<1x55x4xbf16>
      %406 = arith.index_cast %arg27 : i32 to index
      %c0_565 = arith.constant 0 : index
      %c0_566 = arith.constant 0 : index
      %407 = vector.load %arg17[%406, %c0_565, %c0_566] : memref<55x55x4xbf16, #tpu.memory_space<vmem>>, vector<1x55x4xbf16>
      tpu.vector_store %arg17[%406, %c0_565, %c0_566], %405 {strides = array<i32>} : memref<55x55x4xbf16, #tpu.memory_space<vmem>>, vector<1x55x4xbf16>,
    }
    %c55_i32_3 = arith.constant 55 : i32
    %c0_4 = arith.constant 0 : index
    %c0_5 = arith.constant 0 : index
    %3 = vector.load %arg4[%c0_4, %c0_5] : memref<36x8xbf16, #tpu.memory_space<vmem>>, vector<36x8xbf16>
    %c0_6 = arith.constant 0 : index
    %c0_7 = arith.constant 0 : index
    %4 = vector.load %arg5[%c0_6, %c0_7] : memref<1x8xf32, #tpu.memory_space<vmem>>, vector<1x8xf32>
    %c0_i32_8 = arith.constant 0 : i32
    %c26_i32 = arith.constant 26 : i32
    %5 = arith.addi %c0_i32_8, %c26_i32 : i32
    %c1_i32_9 = arith.constant 1 : i32
    scf.for %arg27 = %c0_i32_8 to %5 step %c1_i32_9  : i32 {
      %c2_i32 = arith.constant 2 : i32
      %294 = arith.muli %arg27, %c2_i32 : i32
      %c0_i32_465 = arith.constant 0 : i32
      %295 = arith.addi %294, %c0_i32_465 : i32
      %c0_i32_466 = arith.constant 0 : i32
      %296 = arith.addi %295, %c0_i32_466 : i32
      %297 = arith.index_cast %296 : i32 to index
      %c0_467 = arith.constant 0 : index
      %c0_468 = arith.constant 0 : index
      %298 = vector.load %arg17[%297, %c0_467, %c0_468] : memref<55x55x4xbf16, #tpu.memory_space<vmem>>, vector<1x53x4xbf16>
      %c0_i32_469 = arith.constant 0 : i32
      %299 = arith.addi %294, %c0_i32_469 : i32
      %c0_i32_470 = arith.constant 0 : i32
      %300 = arith.addi %299, %c0_i32_470 : i32
      %301 = arith.index_cast %300 : i32 to index
      %c1_471 = arith.constant 1 : index
      %c0_472 = arith.constant 0 : index
      %302 = vector.load %arg17[%301, %c1_471, %c0_472] : memref<55x55x4xbf16, #tpu.memory_space<vmem>>, vector<1x53x4xbf16>
      %c0_i32_473 = arith.constant 0 : i32
      %303 = arith.addi %294, %c0_i32_473 : i32
      %c0_i32_474 = arith.constant 0 : i32
      %304 = arith.addi %303, %c0_i32_474 : i32
      %305 = arith.index_cast %304 : i32 to index
      %c2_475 = arith.constant 2 : index
      %c0_476 = arith.constant 0 : index
      %306 = vector.load %arg17[%305, %c2_475, %c0_476] : memref<55x55x4xbf16, #tpu.memory_space<vmem>>, vector<1x53x4xbf16>
      %c0_i32_477 = arith.constant 0 : i32
      %307 = arith.addi %294, %c0_i32_477 : i32
      %c1_i32_478 = arith.constant 1 : i32
      %308 = arith.addi %307, %c1_i32_478 : i32
      %309 = arith.index_cast %308 : i32 to index
      %c0_479 = arith.constant 0 : index
      %c0_480 = arith.constant 0 : index
      %310 = vector.load %arg17[%309, %c0_479, %c0_480] : memref<55x55x4xbf16, #tpu.memory_space<vmem>>, vector<1x53x4xbf16>
      %c0_i32_481 = arith.constant 0 : i32
      %311 = arith.addi %294, %c0_i32_481 : i32
      %c1_i32_482 = arith.constant 1 : i32
      %312 = arith.addi %311, %c1_i32_482 : i32
      %313 = arith.index_cast %312 : i32 to index
      %c1_483 = arith.constant 1 : index
      %c0_484 = arith.constant 0 : index
      %314 = vector.load %arg17[%313, %c1_483, %c0_484] : memref<55x55x4xbf16, #tpu.memory_space<vmem>>, vector<1x53x4xbf16>
      %c0_i32_485 = arith.constant 0 : i32
      %315 = arith.addi %294, %c0_i32_485 : i32
      %c1_i32_486 = arith.constant 1 : i32
      %316 = arith.addi %315, %c1_i32_486 : i32
      %317 = arith.index_cast %316 : i32 to index
      %c2_487 = arith.constant 2 : index
      %c0_488 = arith.constant 0 : index
      %318 = vector.load %arg17[%317, %c2_487, %c0_488] : memref<55x55x4xbf16, #tpu.memory_space<vmem>>, vector<1x53x4xbf16>
      %c0_i32_489 = arith.constant 0 : i32
      %319 = arith.addi %294, %c0_i32_489 : i32
      %c2_i32_490 = arith.constant 2 : i32
      %320 = arith.addi %319, %c2_i32_490 : i32
      %321 = arith.index_cast %320 : i32 to index
      %c0_491 = arith.constant 0 : index
      %c0_492 = arith.constant 0 : index
      %322 = vector.load %arg17[%321, %c0_491, %c0_492] : memref<55x55x4xbf16, #tpu.memory_space<vmem>>, vector<1x53x4xbf16>
      %c0_i32_493 = arith.constant 0 : i32
      %323 = arith.addi %294, %c0_i32_493 : i32
      %c2_i32_494 = arith.constant 2 : i32
      %324 = arith.addi %323, %c2_i32_494 : i32
      %325 = arith.index_cast %324 : i32 to index
      %c1_495 = arith.constant 1 : index
      %c0_496 = arith.constant 0 : index
      %326 = vector.load %arg17[%325, %c1_495, %c0_496] : memref<55x55x4xbf16, #tpu.memory_space<vmem>>, vector<1x53x4xbf16>
      %c0_i32_497 = arith.constant 0 : i32
      %327 = arith.addi %294, %c0_i32_497 : i32
      %c2_i32_498 = arith.constant 2 : i32
      %328 = arith.addi %327, %c2_i32_498 : i32
      %329 = arith.index_cast %328 : i32 to index
      %c2_499 = arith.constant 2 : index
      %c0_500 = arith.constant 0 : index
      %330 = vector.load %arg17[%329, %c2_499, %c0_500] : memref<55x55x4xbf16, #tpu.memory_space<vmem>>, vector<1x53x4xbf16>
      %331 = tpu.concatenate %298, %302, %306, %310, %314, %318, %322, %326, %330 in 2 : vector<1x53x4xbf16>, vector<1x53x4xbf16>, vector<1x53x4xbf16>, vector<1x53x4xbf16>, vector<1x53x4xbf16>, vector<1x53x4xbf16>, vector<1x53x4xbf16>, vector<1x53x4xbf16>, vector<1x53x4xbf16> -> vector<1x53x36xbf16>
      %332 = vector.shape_cast %331 : vector<1x53x36xbf16> to vector<53x36xbf16>
      %cst_501 = arith.constant dense<0.000000e+00> : vector<53x8xf32>
      %333 = tpu.matmul %332, %3, %cst_501 {dimension_numbers = #tpu.dot_dimension_numbers<[1], [0], [0], [1], [0, 0, 1, 1], [], []>} : vector<53x36xbf16>, vector<36x8xbf16>, vector<53x8xf32> -> vector<53x8xf32>
      %334 = vector.broadcast %4 : vector<1x8xf32> to vector<53x8xf32>
      %335 = arith.addf %333, %334 : vector<53x8xf32>
      %cst_502 = arith.constant 0.000000e+00 : f32
      %336 = vector.broadcast %cst_502 : f32 to vector<53x8xf32>
      %337 = arith.maximumf %335, %336 : vector<53x8xf32>
      %c1_i32_503 = arith.constant 1 : i32
      %338 = arith.addi %294, %c1_i32_503 : i32
      %c0_i32_504 = arith.constant 0 : i32
      %339 = arith.addi %338, %c0_i32_504 : i32
      %340 = arith.index_cast %339 : i32 to index
      %c0_505 = arith.constant 0 : index
      %c0_506 = arith.constant 0 : index
      %341 = vector.load %arg17[%340, %c0_505, %c0_506] : memref<55x55x4xbf16, #tpu.memory_space<vmem>>, vector<1x53x4xbf16>
      %c1_i32_507 = arith.constant 1 : i32
      %342 = arith.addi %294, %c1_i32_507 : i32
      %c0_i32_508 = arith.constant 0 : i32
      %343 = arith.addi %342, %c0_i32_508 : i32
      %344 = arith.index_cast %343 : i32 to index
      %c1_509 = arith.constant 1 : index
      %c0_510 = arith.constant 0 : index
      %345 = vector.load %arg17[%344, %c1_509, %c0_510] : memref<55x55x4xbf16, #tpu.memory_space<vmem>>, vector<1x53x4xbf16>
      %c1_i32_511 = arith.constant 1 : i32
      %346 = arith.addi %294, %c1_i32_511 : i32
      %c0_i32_512 = arith.constant 0 : i32
      %347 = arith.addi %346, %c0_i32_512 : i32
      %348 = arith.index_cast %347 : i32 to index
      %c2_513 = arith.constant 2 : index
      %c0_514 = arith.constant 0 : index
      %349 = vector.load %arg17[%348, %c2_513, %c0_514] : memref<55x55x4xbf16, #tpu.memory_space<vmem>>, vector<1x53x4xbf16>
      %c1_i32_515 = arith.constant 1 : i32
      %350 = arith.addi %294, %c1_i32_515 : i32
      %c1_i32_516 = arith.constant 1 : i32
      %351 = arith.addi %350, %c1_i32_516 : i32
      %352 = arith.index_cast %351 : i32 to index
      %c0_517 = arith.constant 0 : index
      %c0_518 = arith.constant 0 : index
      %353 = vector.load %arg17[%352, %c0_517, %c0_518] : memref<55x55x4xbf16, #tpu.memory_space<vmem>>, vector<1x53x4xbf16>
      %c1_i32_519 = arith.constant 1 : i32
      %354 = arith.addi %294, %c1_i32_519 : i32
      %c1_i32_520 = arith.constant 1 : i32
      %355 = arith.addi %354, %c1_i32_520 : i32
      %356 = arith.index_cast %355 : i32 to index
      %c1_521 = arith.constant 1 : index
      %c0_522 = arith.constant 0 : index
      %357 = vector.load %arg17[%356, %c1_521, %c0_522] : memref<55x55x4xbf16, #tpu.memory_space<vmem>>, vector<1x53x4xbf16>
      %c1_i32_523 = arith.constant 1 : i32
      %358 = arith.addi %294, %c1_i32_523 : i32
      %c1_i32_524 = arith.constant 1 : i32
      %359 = arith.addi %358, %c1_i32_524 : i32
      %360 = arith.index_cast %359 : i32 to index
      %c2_525 = arith.constant 2 : index
      %c0_526 = arith.constant 0 : index
      %361 = vector.load %arg17[%360, %c2_525, %c0_526] : memref<55x55x4xbf16, #tpu.memory_space<vmem>>, vector<1x53x4xbf16>
      %c1_i32_527 = arith.constant 1 : i32
      %362 = arith.addi %294, %c1_i32_527 : i32
      %c2_i32_528 = arith.constant 2 : i32
      %363 = arith.addi %362, %c2_i32_528 : i32
      %364 = arith.index_cast %363 : i32 to index
      %c0_529 = arith.constant 0 : index
      %c0_530 = arith.constant 0 : index
      %365 = vector.load %arg17[%364, %c0_529, %c0_530] : memref<55x55x4xbf16, #tpu.memory_space<vmem>>, vector<1x53x4xbf16>
      %c1_i32_531 = arith.constant 1 : i32
      %366 = arith.addi %294, %c1_i32_531 : i32
      %c2_i32_532 = arith.constant 2 : i32
      %367 = arith.addi %366, %c2_i32_532 : i32
      %368 = arith.index_cast %367 : i32 to index
      %c1_533 = arith.constant 1 : index
      %c0_534 = arith.constant 0 : index
      %369 = vector.load %arg17[%368, %c1_533, %c0_534] : memref<55x55x4xbf16, #tpu.memory_space<vmem>>, vector<1x53x4xbf16>
      %c1_i32_535 = arith.constant 1 : i32
      %370 = arith.addi %294, %c1_i32_535 : i32
      %c2_i32_536 = arith.constant 2 : i32
      %371 = arith.addi %370, %c2_i32_536 : i32
      %372 = arith.index_cast %371 : i32 to index
      %c2_537 = arith.constant 2 : index
      %c0_538 = arith.constant 0 : index
      %373 = vector.load %arg17[%372, %c2_537, %c0_538] : memref<55x55x4xbf16, #tpu.memory_space<vmem>>, vector<1x53x4xbf16>
      %374 = tpu.concatenate %341, %345, %349, %353, %357, %361, %365, %369, %373 in 2 : vector<1x53x4xbf16>, vector<1x53x4xbf16>, vector<1x53x4xbf16>, vector<1x53x4xbf16>, vector<1x53x4xbf16>, vector<1x53x4xbf16>, vector<1x53x4xbf16>, vector<1x53x4xbf16>, vector<1x53x4xbf16> -> vector<1x53x36xbf16>
      %375 = vector.shape_cast %374 : vector<1x53x36xbf16> to vector<53x36xbf16>
      %cst_539 = arith.constant dense<0.000000e+00> : vector<53x8xf32>
      %376 = tpu.matmul %375, %3, %cst_539 {dimension_numbers = #tpu.dot_dimension_numbers<[1], [0], [0], [1], [0, 0, 1, 1], [], []>} : vector<53x36xbf16>, vector<36x8xbf16>, vector<53x8xf32> -> vector<53x8xf32>
      %377 = vector.broadcast %4 : vector<1x8xf32> to vector<53x8xf32>
      %378 = arith.addf %376, %377 : vector<53x8xf32>
      %cst_540 = arith.constant 0.000000e+00 : f32
      %379 = vector.broadcast %cst_540 : f32 to vector<53x8xf32>
      %380 = arith.maximumf %378, %379 : vector<53x8xf32>
      %381 = arith.maximumf %337, %380 : vector<53x8xf32>
      %c0_541 = arith.constant 0 : index
      %c0_542 = arith.constant 0 : index
      %382 = vector.load %arg23[%c0_541, %c0_542] : memref<53x8xf32, #tpu.memory_space<vmem>>, vector<53x8xf32>
      tpu.vector_store %arg23[%c0_541, %c0_542], %381 {strides = array<i32>} : memref<53x8xf32, #tpu.memory_space<vmem>>, vector<53x8xf32>,
      %c0_543 = arith.constant 0 : index
      %c0_544 = arith.constant 0 : index
      %383 = tpu.strided_load %arg23[%c0_543, %c0_544] {strides = array<i32: 2, 1>} : memref<53x8xf32, #tpu.memory_space<vmem>>, vector<26x8xf32>
      %c1_545 = arith.constant 1 : index
      %c0_546 = arith.constant 0 : index
      %384 = tpu.strided_load %arg23[%c1_545, %c0_546] {strides = array<i32: 2, 1>} : memref<53x8xf32, #tpu.memory_space<vmem>>, vector<26x8xf32>
      %385 = arith.maximumf %383, %384 : vector<26x8xf32>
      %386 = vector.shape_cast %385 : vector<26x8xf32> to vector<1x26x8xf32>
      %387 = arith.truncf %386 : vector<1x26x8xf32> to vector<1x26x8xbf16>
      %388 = arith.index_cast %arg27 : i32 to index
      %c0_547 = arith.constant 0 : index
      %c0_548 = arith.constant 0 : index
      %389 = vector.load %arg18[%388, %c0_547, %c0_548] : memref<26x26x8xbf16, #tpu.memory_space<vmem>>, vector<1x26x8xbf16>
      tpu.vector_store %arg18[%388, %c0_547, %c0_548], %387 {strides = array<i32>} : memref<26x26x8xbf16, #tpu.memory_space<vmem>>, vector<1x26x8xbf16>,
    }
    %c26_i32_10 = arith.constant 26 : i32
    %c0_11 = arith.constant 0 : index
    %c0_12 = arith.constant 0 : index
    %6 = vector.load %arg6[%c0_11, %c0_12] : memref<72x8xbf16, #tpu.memory_space<vmem>>, vector<72x8xbf16>
    %c0_13 = arith.constant 0 : index
    %c0_14 = arith.constant 0 : index
    %7 = vector.load %arg7[%c0_13, %c0_14] : memref<1x8xf32, #tpu.memory_space<vmem>>, vector<1x8xf32>
    %c0_i32_15 = arith.constant 0 : i32
    %c12_i32 = arith.constant 12 : i32
    %8 = arith.addi %c0_i32_15, %c12_i32 : i32
    %c1_i32_16 = arith.constant 1 : i32
    scf.for %arg27 = %c0_i32_15 to %8 step %c1_i32_16  : i32 {
      %c2_i32 = arith.constant 2 : i32
      %294 = arith.muli %arg27, %c2_i32 : i32
      %c0_i32_465 = arith.constant 0 : i32
      %295 = arith.addi %294, %c0_i32_465 : i32
      %c0_i32_466 = arith.constant 0 : i32
      %296 = arith.addi %295, %c0_i32_466 : i32
      %297 = arith.index_cast %296 : i32 to index
      %c0_467 = arith.constant 0 : index
      %c0_468 = arith.constant 0 : index
      %298 = vector.load %arg18[%297, %c0_467, %c0_468] : memref<26x26x8xbf16, #tpu.memory_space<vmem>>, vector<1x24x8xbf16>
      %c0_i32_469 = arith.constant 0 : i32
      %299 = arith.addi %294, %c0_i32_469 : i32
      %c0_i32_470 = arith.constant 0 : i32
      %300 = arith.addi %299, %c0_i32_470 : i32
      %301 = arith.index_cast %300 : i32 to index
      %c1_471 = arith.constant 1 : index
      %c0_472 = arith.constant 0 : index
      %302 = vector.load %arg18[%301, %c1_471, %c0_472] : memref<26x26x8xbf16, #tpu.memory_space<vmem>>, vector<1x24x8xbf16>
      %c0_i32_473 = arith.constant 0 : i32
      %303 = arith.addi %294, %c0_i32_473 : i32
      %c0_i32_474 = arith.constant 0 : i32
      %304 = arith.addi %303, %c0_i32_474 : i32
      %305 = arith.index_cast %304 : i32 to index
      %c2_475 = arith.constant 2 : index
      %c0_476 = arith.constant 0 : index
      %306 = vector.load %arg18[%305, %c2_475, %c0_476] : memref<26x26x8xbf16, #tpu.memory_space<vmem>>, vector<1x24x8xbf16>
      %c0_i32_477 = arith.constant 0 : i32
      %307 = arith.addi %294, %c0_i32_477 : i32
      %c1_i32_478 = arith.constant 1 : i32
      %308 = arith.addi %307, %c1_i32_478 : i32
      %309 = arith.index_cast %308 : i32 to index
      %c0_479 = arith.constant 0 : index
      %c0_480 = arith.constant 0 : index
      %310 = vector.load %arg18[%309, %c0_479, %c0_480] : memref<26x26x8xbf16, #tpu.memory_space<vmem>>, vector<1x24x8xbf16>
      %c0_i32_481 = arith.constant 0 : i32
      %311 = arith.addi %294, %c0_i32_481 : i32
      %c1_i32_482 = arith.constant 1 : i32
      %312 = arith.addi %311, %c1_i32_482 : i32
      %313 = arith.index_cast %312 : i32 to index
      %c1_483 = arith.constant 1 : index
      %c0_484 = arith.constant 0 : index
      %314 = vector.load %arg18[%313, %c1_483, %c0_484] : memref<26x26x8xbf16, #tpu.memory_space<vmem>>, vector<1x24x8xbf16>
      %c0_i32_485 = arith.constant 0 : i32
      %315 = arith.addi %294, %c0_i32_485 : i32
      %c1_i32_486 = arith.constant 1 : i32
      %316 = arith.addi %315, %c1_i32_486 : i32
      %317 = arith.index_cast %316 : i32 to index
      %c2_487 = arith.constant 2 : index
      %c0_488 = arith.constant 0 : index
      %318 = vector.load %arg18[%317, %c2_487, %c0_488] : memref<26x26x8xbf16, #tpu.memory_space<vmem>>, vector<1x24x8xbf16>
      %c0_i32_489 = arith.constant 0 : i32
      %319 = arith.addi %294, %c0_i32_489 : i32
      %c2_i32_490 = arith.constant 2 : i32
      %320 = arith.addi %319, %c2_i32_490 : i32
      %321 = arith.index_cast %320 : i32 to index
      %c0_491 = arith.constant 0 : index
      %c0_492 = arith.constant 0 : index
      %322 = vector.load %arg18[%321, %c0_491, %c0_492] : memref<26x26x8xbf16, #tpu.memory_space<vmem>>, vector<1x24x8xbf16>
      %c0_i32_493 = arith.constant 0 : i32
      %323 = arith.addi %294, %c0_i32_493 : i32
      %c2_i32_494 = arith.constant 2 : i32
      %324 = arith.addi %323, %c2_i32_494 : i32
      %325 = arith.index_cast %324 : i32 to index
      %c1_495 = arith.constant 1 : index
      %c0_496 = arith.constant 0 : index
      %326 = vector.load %arg18[%325, %c1_495, %c0_496] : memref<26x26x8xbf16, #tpu.memory_space<vmem>>, vector<1x24x8xbf16>
      %c0_i32_497 = arith.constant 0 : i32
      %327 = arith.addi %294, %c0_i32_497 : i32
      %c2_i32_498 = arith.constant 2 : i32
      %328 = arith.addi %327, %c2_i32_498 : i32
      %329 = arith.index_cast %328 : i32 to index
      %c2_499 = arith.constant 2 : index
      %c0_500 = arith.constant 0 : index
      %330 = vector.load %arg18[%329, %c2_499, %c0_500] : memref<26x26x8xbf16, #tpu.memory_space<vmem>>, vector<1x24x8xbf16>
      %331 = tpu.concatenate %298, %302, %306, %310, %314, %318, %322, %326, %330 in 2 : vector<1x24x8xbf16>, vector<1x24x8xbf16>, vector<1x24x8xbf16>, vector<1x24x8xbf16>, vector<1x24x8xbf16>, vector<1x24x8xbf16>, vector<1x24x8xbf16>, vector<1x24x8xbf16>, vector<1x24x8xbf16> -> vector<1x24x72xbf16>
      %332 = vector.shape_cast %331 : vector<1x24x72xbf16> to vector<24x72xbf16>
      %cst_501 = arith.constant dense<0.000000e+00> : vector<24x8xf32>
      %333 = tpu.matmul %332, %6, %cst_501 {dimension_numbers = #tpu.dot_dimension_numbers<[1], [0], [0], [1], [0, 0, 1, 1], [], []>} : vector<24x72xbf16>, vector<72x8xbf16>, vector<24x8xf32> -> vector<24x8xf32>
      %334 = vector.broadcast %7 : vector<1x8xf32> to vector<24x8xf32>
      %335 = arith.addf %333, %334 : vector<24x8xf32>
      %c1_i32_502 = arith.constant 1 : i32
      %336 = arith.addi %294, %c1_i32_502 : i32
      %c0_i32_503 = arith.constant 0 : i32
      %337 = arith.addi %336, %c0_i32_503 : i32
      %338 = arith.index_cast %337 : i32 to index
      %c0_504 = arith.constant 0 : index
      %c0_505 = arith.constant 0 : index
      %339 = vector.load %arg18[%338, %c0_504, %c0_505] : memref<26x26x8xbf16, #tpu.memory_space<vmem>>, vector<1x24x8xbf16>
      %c1_i32_506 = arith.constant 1 : i32
      %340 = arith.addi %294, %c1_i32_506 : i32
      %c0_i32_507 = arith.constant 0 : i32
      %341 = arith.addi %340, %c0_i32_507 : i32
      %342 = arith.index_cast %341 : i32 to index
      %c1_508 = arith.constant 1 : index
      %c0_509 = arith.constant 0 : index
      %343 = vector.load %arg18[%342, %c1_508, %c0_509] : memref<26x26x8xbf16, #tpu.memory_space<vmem>>, vector<1x24x8xbf16>
      %c1_i32_510 = arith.constant 1 : i32
      %344 = arith.addi %294, %c1_i32_510 : i32
      %c0_i32_511 = arith.constant 0 : i32
      %345 = arith.addi %344, %c0_i32_511 : i32
      %346 = arith.index_cast %345 : i32 to index
      %c2_512 = arith.constant 2 : index
      %c0_513 = arith.constant 0 : index
      %347 = vector.load %arg18[%346, %c2_512, %c0_513] : memref<26x26x8xbf16, #tpu.memory_space<vmem>>, vector<1x24x8xbf16>
      %c1_i32_514 = arith.constant 1 : i32
      %348 = arith.addi %294, %c1_i32_514 : i32
      %c1_i32_515 = arith.constant 1 : i32
      %349 = arith.addi %348, %c1_i32_515 : i32
      %350 = arith.index_cast %349 : i32 to index
      %c0_516 = arith.constant 0 : index
      %c0_517 = arith.constant 0 : index
      %351 = vector.load %arg18[%350, %c0_516, %c0_517] : memref<26x26x8xbf16, #tpu.memory_space<vmem>>, vector<1x24x8xbf16>
      %c1_i32_518 = arith.constant 1 : i32
      %352 = arith.addi %294, %c1_i32_518 : i32
      %c1_i32_519 = arith.constant 1 : i32
      %353 = arith.addi %352, %c1_i32_519 : i32
      %354 = arith.index_cast %353 : i32 to index
      %c1_520 = arith.constant 1 : index
      %c0_521 = arith.constant 0 : index
      %355 = vector.load %arg18[%354, %c1_520, %c0_521] : memref<26x26x8xbf16, #tpu.memory_space<vmem>>, vector<1x24x8xbf16>
      %c1_i32_522 = arith.constant 1 : i32
      %356 = arith.addi %294, %c1_i32_522 : i32
      %c1_i32_523 = arith.constant 1 : i32
      %357 = arith.addi %356, %c1_i32_523 : i32
      %358 = arith.index_cast %357 : i32 to index
      %c2_524 = arith.constant 2 : index
      %c0_525 = arith.constant 0 : index
      %359 = vector.load %arg18[%358, %c2_524, %c0_525] : memref<26x26x8xbf16, #tpu.memory_space<vmem>>, vector<1x24x8xbf16>
      %c1_i32_526 = arith.constant 1 : i32
      %360 = arith.addi %294, %c1_i32_526 : i32
      %c2_i32_527 = arith.constant 2 : i32
      %361 = arith.addi %360, %c2_i32_527 : i32
      %362 = arith.index_cast %361 : i32 to index
      %c0_528 = arith.constant 0 : index
      %c0_529 = arith.constant 0 : index
      %363 = vector.load %arg18[%362, %c0_528, %c0_529] : memref<26x26x8xbf16, #tpu.memory_space<vmem>>, vector<1x24x8xbf16>
      %c1_i32_530 = arith.constant 1 : i32
      %364 = arith.addi %294, %c1_i32_530 : i32
      %c2_i32_531 = arith.constant 2 : i32
      %365 = arith.addi %364, %c2_i32_531 : i32
      %366 = arith.index_cast %365 : i32 to index
      %c1_532 = arith.constant 1 : index
      %c0_533 = arith.constant 0 : index
      %367 = vector.load %arg18[%366, %c1_532, %c0_533] : memref<26x26x8xbf16, #tpu.memory_space<vmem>>, vector<1x24x8xbf16>
      %c1_i32_534 = arith.constant 1 : i32
      %368 = arith.addi %294, %c1_i32_534 : i32
      %c2_i32_535 = arith.constant 2 : i32
      %369 = arith.addi %368, %c2_i32_535 : i32
      %370 = arith.index_cast %369 : i32 to index
      %c2_536 = arith.constant 2 : index
      %c0_537 = arith.constant 0 : index
      %371 = vector.load %arg18[%370, %c2_536, %c0_537] : memref<26x26x8xbf16, #tpu.memory_space<vmem>>, vector<1x24x8xbf16>
      %372 = tpu.concatenate %339, %343, %347, %351, %355, %359, %363, %367, %371 in 2 : vector<1x24x8xbf16>, vector<1x24x8xbf16>, vector<1x24x8xbf16>, vector<1x24x8xbf16>, vector<1x24x8xbf16>, vector<1x24x8xbf16>, vector<1x24x8xbf16>, vector<1x24x8xbf16>, vector<1x24x8xbf16> -> vector<1x24x72xbf16>
      %373 = vector.shape_cast %372 : vector<1x24x72xbf16> to vector<24x72xbf16>
      %cst_538 = arith.constant dense<0.000000e+00> : vector<24x8xf32>
      %374 = tpu.matmul %373, %6, %cst_538 {dimension_numbers = #tpu.dot_dimension_numbers<[1], [0], [0], [1], [0, 0, 1, 1], [], []>} : vector<24x72xbf16>, vector<72x8xbf16>, vector<24x8xf32> -> vector<24x8xf32>
      %375 = vector.broadcast %7 : vector<1x8xf32> to vector<24x8xf32>
      %376 = arith.addf %374, %375 : vector<24x8xf32>
      %377 = arith.maximumf %335, %376 : vector<24x8xf32>
      %c0_539 = arith.constant 0 : index
      %c0_540 = arith.constant 0 : index
      %378 = vector.load %arg24[%c0_539, %c0_540] : memref<24x8xf32, #tpu.memory_space<vmem>>, vector<24x8xf32>
      tpu.vector_store %arg24[%c0_539, %c0_540], %377 {strides = array<i32>} : memref<24x8xf32, #tpu.memory_space<vmem>>, vector<24x8xf32>,
      %c0_541 = arith.constant 0 : index
      %c0_542 = arith.constant 0 : index
      %379 = tpu.strided_load %arg24[%c0_541, %c0_542] {strides = array<i32: 2, 1>} : memref<24x8xf32, #tpu.memory_space<vmem>>, vector<12x8xf32>
      %c1_543 = arith.constant 1 : index
      %c0_544 = arith.constant 0 : index
      %380 = tpu.strided_load %arg24[%c1_543, %c0_544] {strides = array<i32: 2, 1>} : memref<24x8xf32, #tpu.memory_space<vmem>>, vector<12x8xf32>
      %381 = arith.maximumf %379, %380 : vector<12x8xf32>
      %382 = vector.shape_cast %381 : vector<12x8xf32> to vector<1x12x8xf32>
      %383 = arith.truncf %382 : vector<1x12x8xf32> to vector<1x12x8xbf16>
      %384 = arith.index_cast %arg27 : i32 to index
      %c0_545 = arith.constant 0 : index
      %c0_546 = arith.constant 0 : index
      %385 = vector.load %arg19[%384, %c0_545, %c0_546] : memref<12x12x8xbf16, #tpu.memory_space<vmem>>, vector<1x12x8xbf16>
      tpu.vector_store %arg19[%384, %c0_545, %c0_546], %383 {strides = array<i32>} : memref<12x12x8xbf16, #tpu.memory_space<vmem>>, vector<1x12x8xbf16>,
    }
    %c12_i32_17 = arith.constant 12 : i32
    %c0_18 = arith.constant 0 : index
    %c0_19 = arith.constant 0 : index
    %9 = vector.load %arg8[%c0_18, %c0_19] : memref<72x16xbf16, #tpu.memory_space<vmem>>, vector<72x16xbf16>
    %c0_20 = arith.constant 0 : index
    %c0_21 = arith.constant 0 : index
    %10 = vector.load %arg9[%c0_20, %c0_21] : memref<1x16xf32, #tpu.memory_space<vmem>>, vector<1x16xf32>
    %c0_22 = arith.constant 0 : index
    %c0_23 = arith.constant 0 : index
    %c0_24 = arith.constant 0 : index
    %11 = vector.load %arg19[%c0_22, %c0_23, %c0_24] : memref<12x12x8xbf16, #tpu.memory_space<vmem>>, vector<1x10x8xbf16>
    %c0_25 = arith.constant 0 : index
    %c1 = arith.constant 1 : index
    %c0_26 = arith.constant 0 : index
    %12 = vector.load %arg19[%c0_25, %c1, %c0_26] : memref<12x12x8xbf16, #tpu.memory_space<vmem>>, vector<1x10x8xbf16>
    %c0_27 = arith.constant 0 : index
    %c2 = arith.constant 2 : index
    %c0_28 = arith.constant 0 : index
    %13 = vector.load %arg19[%c0_27, %c2, %c0_28] : memref<12x12x8xbf16, #tpu.memory_space<vmem>>, vector<1x10x8xbf16>
    %c1_29 = arith.constant 1 : index
    %c0_30 = arith.constant 0 : index
    %c0_31 = arith.constant 0 : index
    %14 = vector.load %arg19[%c1_29, %c0_30, %c0_31] : memref<12x12x8xbf16, #tpu.memory_space<vmem>>, vector<1x10x8xbf16>
    %c1_32 = arith.constant 1 : index
    %c1_33 = arith.constant 1 : index
    %c0_34 = arith.constant 0 : index
    %15 = vector.load %arg19[%c1_32, %c1_33, %c0_34] : memref<12x12x8xbf16, #tpu.memory_space<vmem>>, vector<1x10x8xbf16>
    %c1_35 = arith.constant 1 : index
    %c2_36 = arith.constant 2 : index
    %c0_37 = arith.constant 0 : index
    %16 = vector.load %arg19[%c1_35, %c2_36, %c0_37] : memref<12x12x8xbf16, #tpu.memory_space<vmem>>, vector<1x10x8xbf16>
    %c2_38 = arith.constant 2 : index
    %c0_39 = arith.constant 0 : index
    %c0_40 = arith.constant 0 : index
    %17 = vector.load %arg19[%c2_38, %c0_39, %c0_40] : memref<12x12x8xbf16, #tpu.memory_space<vmem>>, vector<1x10x8xbf16>
    %c2_41 = arith.constant 2 : index
    %c1_42 = arith.constant 1 : index
    %c0_43 = arith.constant 0 : index
    %18 = vector.load %arg19[%c2_41, %c1_42, %c0_43] : memref<12x12x8xbf16, #tpu.memory_space<vmem>>, vector<1x10x8xbf16>
    %c2_44 = arith.constant 2 : index
    %c2_45 = arith.constant 2 : index
    %c0_46 = arith.constant 0 : index
    %19 = vector.load %arg19[%c2_44, %c2_45, %c0_46] : memref<12x12x8xbf16, #tpu.memory_space<vmem>>, vector<1x10x8xbf16>
    %20 = tpu.concatenate %11, %12, %13, %14, %15, %16, %17, %18, %19 in 2 : vector<1x10x8xbf16>, vector<1x10x8xbf16>, vector<1x10x8xbf16>, vector<1x10x8xbf16>, vector<1x10x8xbf16>, vector<1x10x8xbf16>, vector<1x10x8xbf16>, vector<1x10x8xbf16>, vector<1x10x8xbf16> -> vector<1x10x72xbf16>
    %21 = vector.shape_cast %20 : vector<1x10x72xbf16> to vector<10x72xbf16>
    %cst = arith.constant dense<0.000000e+00> : vector<10x16xf32>
    %22 = tpu.matmul %21, %9, %cst {dimension_numbers = #tpu.dot_dimension_numbers<[1], [0], [0], [1], [0, 0, 1, 1], [], []>} : vector<10x72xbf16>, vector<72x16xbf16>, vector<10x16xf32> -> vector<10x16xf32>
    %23 = vector.broadcast %10 : vector<1x16xf32> to vector<10x16xf32>
    %24 = arith.addf %22, %23 : vector<10x16xf32>
    %cst_47 = arith.constant 0.000000e+00 : f32
    %25 = vector.broadcast %cst_47 : f32 to vector<10x16xf32>
    %26 = arith.maximumf %24, %25 : vector<10x16xf32>
    %c1_48 = arith.constant 1 : index
    %c0_49 = arith.constant 0 : index
    %c0_50 = arith.constant 0 : index
    %27 = vector.load %arg19[%c1_48, %c0_49, %c0_50] : memref<12x12x8xbf16, #tpu.memory_space<vmem>>, vector<1x10x8xbf16>
    %c1_51 = arith.constant 1 : index
    %c1_52 = arith.constant 1 : index
    %c0_53 = arith.constant 0 : index
    %28 = vector.load %arg19[%c1_51, %c1_52, %c0_53] : memref<12x12x8xbf16, #tpu.memory_space<vmem>>, vector<1x10x8xbf16>
    %c1_54 = arith.constant 1 : index
    %c2_55 = arith.constant 2 : index
    %c0_56 = arith.constant 0 : index
    %29 = vector.load %arg19[%c1_54, %c2_55, %c0_56] : memref<12x12x8xbf16, #tpu.memory_space<vmem>>, vector<1x10x8xbf16>
    %c2_57 = arith.constant 2 : index
    %c0_58 = arith.constant 0 : index
    %c0_59 = arith.constant 0 : index
    %30 = vector.load %arg19[%c2_57, %c0_58, %c0_59] : memref<12x12x8xbf16, #tpu.memory_space<vmem>>, vector<1x10x8xbf16>
    %c2_60 = arith.constant 2 : index
    %c1_61 = arith.constant 1 : index
    %c0_62 = arith.constant 0 : index
    %31 = vector.load %arg19[%c2_60, %c1_61, %c0_62] : memref<12x12x8xbf16, #tpu.memory_space<vmem>>, vector<1x10x8xbf16>
    %c2_63 = arith.constant 2 : index
    %c2_64 = arith.constant 2 : index
    %c0_65 = arith.constant 0 : index
    %32 = vector.load %arg19[%c2_63, %c2_64, %c0_65] : memref<12x12x8xbf16, #tpu.memory_space<vmem>>, vector<1x10x8xbf16>
    %c3 = arith.constant 3 : index
    %c0_66 = arith.constant 0 : index
    %c0_67 = arith.constant 0 : index
    %33 = vector.load %arg19[%c3, %c0_66, %c0_67] : memref<12x12x8xbf16, #tpu.memory_space<vmem>>, vector<1x10x8xbf16>
    %c3_68 = arith.constant 3 : index
    %c1_69 = arith.constant 1 : index
    %c0_70 = arith.constant 0 : index
    %34 = vector.load %arg19[%c3_68, %c1_69, %c0_70] : memref<12x12x8xbf16, #tpu.memory_space<vmem>>, vector<1x10x8xbf16>
    %c3_71 = arith.constant 3 : index
    %c2_72 = arith.constant 2 : index
    %c0_73 = arith.constant 0 : index
    %35 = vector.load %arg19[%c3_71, %c2_72, %c0_73] : memref<12x12x8xbf16, #tpu.memory_space<vmem>>, vector<1x10x8xbf16>
    %36 = tpu.concatenate %27, %28, %29, %30, %31, %32, %33, %34, %35 in 2 : vector<1x10x8xbf16>, vector<1x10x8xbf16>, vector<1x10x8xbf16>, vector<1x10x8xbf16>, vector<1x10x8xbf16>, vector<1x10x8xbf16>, vector<1x10x8xbf16>, vector<1x10x8xbf16>, vector<1x10x8xbf16> -> vector<1x10x72xbf16>
    %37 = vector.shape_cast %36 : vector<1x10x72xbf16> to vector<10x72xbf16>
    %cst_74 = arith.constant dense<0.000000e+00> : vector<10x16xf32>
    %38 = tpu.matmul %37, %9, %cst_74 {dimension_numbers = #tpu.dot_dimension_numbers<[1], [0], [0], [1], [0, 0, 1, 1], [], []>} : vector<10x72xbf16>, vector<72x16xbf16>, vector<10x16xf32> -> vector<10x16xf32>
    %39 = vector.broadcast %10 : vector<1x16xf32> to vector<10x16xf32>
    %40 = arith.addf %38, %39 : vector<10x16xf32>
    %cst_75 = arith.constant 0.000000e+00 : f32
    %41 = vector.broadcast %cst_75 : f32 to vector<10x16xf32>
    %42 = arith.maximumf %40, %41 : vector<10x16xf32>
    %43 = arith.maximumf %26, %42 : vector<10x16xf32>
    %c0_76 = arith.constant 0 : index
    %c0_77 = arith.constant 0 : index
    %44 = vector.load %arg25[%c0_76, %c0_77] : memref<10x16xf32, #tpu.memory_space<vmem>>, vector<10x16xf32>
    tpu.vector_store %arg25[%c0_76, %c0_77], %43 {strides = array<i32>} : memref<10x16xf32, #tpu.memory_space<vmem>>, vector<10x16xf32>,
    %c0_78 = arith.constant 0 : index
    %c0_79 = arith.constant 0 : index
    %45 = tpu.strided_load %arg25[%c0_78, %c0_79] {strides = array<i32: 2, 1>} : memref<10x16xf32, #tpu.memory_space<vmem>>, vector<5x16xf32>
    %c1_80 = arith.constant 1 : index
    %c0_81 = arith.constant 0 : index
    %46 = tpu.strided_load %arg25[%c1_80, %c0_81] {strides = array<i32: 2, 1>} : memref<10x16xf32, #tpu.memory_space<vmem>>, vector<5x16xf32>
    %47 = arith.maximumf %45, %46 : vector<5x16xf32>
    %48 = vector.shape_cast %47 : vector<5x16xf32> to vector<1x5x16xf32>
    %49 = arith.truncf %48 : vector<1x5x16xf32> to vector<1x5x16xbf16>
    %c0_82 = arith.constant 0 : index
    %c0_83 = arith.constant 0 : index
    %c0_84 = arith.constant 0 : index
    %50 = vector.load %arg20[%c0_82, %c0_83, %c0_84] : memref<5x5x16xbf16, #tpu.memory_space<vmem>>, vector<1x5x16xbf16>
    tpu.vector_store %arg20[%c0_82, %c0_83, %c0_84], %49 {strides = array<i32>} : memref<5x5x16xbf16, #tpu.memory_space<vmem>>, vector<1x5x16xbf16>,
    %c2_85 = arith.constant 2 : index
    %c0_86 = arith.constant 0 : index
    %c0_87 = arith.constant 0 : index
    %51 = vector.load %arg19[%c2_85, %c0_86, %c0_87] : memref<12x12x8xbf16, #tpu.memory_space<vmem>>, vector<1x10x8xbf16>
    %c2_88 = arith.constant 2 : index
    %c1_89 = arith.constant 1 : index
    %c0_90 = arith.constant 0 : index
    %52 = vector.load %arg19[%c2_88, %c1_89, %c0_90] : memref<12x12x8xbf16, #tpu.memory_space<vmem>>, vector<1x10x8xbf16>
    %c2_91 = arith.constant 2 : index
    %c2_92 = arith.constant 2 : index
    %c0_93 = arith.constant 0 : index
    %53 = vector.load %arg19[%c2_91, %c2_92, %c0_93] : memref<12x12x8xbf16, #tpu.memory_space<vmem>>, vector<1x10x8xbf16>
    %c3_94 = arith.constant 3 : index
    %c0_95 = arith.constant 0 : index
    %c0_96 = arith.constant 0 : index
    %54 = vector.load %arg19[%c3_94, %c0_95, %c0_96] : memref<12x12x8xbf16, #tpu.memory_space<vmem>>, vector<1x10x8xbf16>
    %c3_97 = arith.constant 3 : index
    %c1_98 = arith.constant 1 : index
    %c0_99 = arith.constant 0 : index
    %55 = vector.load %arg19[%c3_97, %c1_98, %c0_99] : memref<12x12x8xbf16, #tpu.memory_space<vmem>>, vector<1x10x8xbf16>
    %c3_100 = arith.constant 3 : index
    %c2_101 = arith.constant 2 : index
    %c0_102 = arith.constant 0 : index
    %56 = vector.load %arg19[%c3_100, %c2_101, %c0_102] : memref<12x12x8xbf16, #tpu.memory_space<vmem>>, vector<1x10x8xbf16>
    %c4 = arith.constant 4 : index
    %c0_103 = arith.constant 0 : index
    %c0_104 = arith.constant 0 : index
    %57 = vector.load %arg19[%c4, %c0_103, %c0_104] : memref<12x12x8xbf16, #tpu.memory_space<vmem>>, vector<1x10x8xbf16>
    %c4_105 = arith.constant 4 : index
    %c1_106 = arith.constant 1 : index
    %c0_107 = arith.constant 0 : index
    %58 = vector.load %arg19[%c4_105, %c1_106, %c0_107] : memref<12x12x8xbf16, #tpu.memory_space<vmem>>, vector<1x10x8xbf16>
    %c4_108 = arith.constant 4 : index
    %c2_109 = arith.constant 2 : index
    %c0_110 = arith.constant 0 : index
    %59 = vector.load %arg19[%c4_108, %c2_109, %c0_110] : memref<12x12x8xbf16, #tpu.memory_space<vmem>>, vector<1x10x8xbf16>
    %60 = tpu.concatenate %51, %52, %53, %54, %55, %56, %57, %58, %59 in 2 : vector<1x10x8xbf16>, vector<1x10x8xbf16>, vector<1x10x8xbf16>, vector<1x10x8xbf16>, vector<1x10x8xbf16>, vector<1x10x8xbf16>, vector<1x10x8xbf16>, vector<1x10x8xbf16>, vector<1x10x8xbf16> -> vector<1x10x72xbf16>
    %61 = vector.shape_cast %60 : vector<1x10x72xbf16> to vector<10x72xbf16>
    %cst_111 = arith.constant dense<0.000000e+00> : vector<10x16xf32>
    %62 = tpu.matmul %61, %9, %cst_111 {dimension_numbers = #tpu.dot_dimension_numbers<[1], [0], [0], [1], [0, 0, 1, 1], [], []>} : vector<10x72xbf16>, vector<72x16xbf16>, vector<10x16xf32> -> vector<10x16xf32>
    %63 = vector.broadcast %10 : vector<1x16xf32> to vector<10x16xf32>
    %64 = arith.addf %62, %63 : vector<10x16xf32>
    %cst_112 = arith.constant 0.000000e+00 : f32
    %65 = vector.broadcast %cst_112 : f32 to vector<10x16xf32>
    %66 = arith.maximumf %64, %65 : vector<10x16xf32>
    %c3_113 = arith.constant 3 : index
    %c0_114 = arith.constant 0 : index
    %c0_115 = arith.constant 0 : index
    %67 = vector.load %arg19[%c3_113, %c0_114, %c0_115] : memref<12x12x8xbf16, #tpu.memory_space<vmem>>, vector<1x10x8xbf16>
    %c3_116 = arith.constant 3 : index
    %c1_117 = arith.constant 1 : index
    %c0_118 = arith.constant 0 : index
    %68 = vector.load %arg19[%c3_116, %c1_117, %c0_118] : memref<12x12x8xbf16, #tpu.memory_space<vmem>>, vector<1x10x8xbf16>
    %c3_119 = arith.constant 3 : index
    %c2_120 = arith.constant 2 : index
    %c0_121 = arith.constant 0 : index
    %69 = vector.load %arg19[%c3_119, %c2_120, %c0_121] : memref<12x12x8xbf16, #tpu.memory_space<vmem>>, vector<1x10x8xbf16>
    %c4_122 = arith.constant 4 : index
    %c0_123 = arith.constant 0 : index
    %c0_124 = arith.constant 0 : index
    %70 = vector.load %arg19[%c4_122, %c0_123, %c0_124] : memref<12x12x8xbf16, #tpu.memory_space<vmem>>, vector<1x10x8xbf16>
    %c4_125 = arith.constant 4 : index
    %c1_126 = arith.constant 1 : index
    %c0_127 = arith.constant 0 : index
    %71 = vector.load %arg19[%c4_125, %c1_126, %c0_127] : memref<12x12x8xbf16, #tpu.memory_space<vmem>>, vector<1x10x8xbf16>
    %c4_128 = arith.constant 4 : index
    %c2_129 = arith.constant 2 : index
    %c0_130 = arith.constant 0 : index
    %72 = vector.load %arg19[%c4_128, %c2_129, %c0_130] : memref<12x12x8xbf16, #tpu.memory_space<vmem>>, vector<1x10x8xbf16>
    %c5 = arith.constant 5 : index
    %c0_131 = arith.constant 0 : index
    %c0_132 = arith.constant 0 : index
    %73 = vector.load %arg19[%c5, %c0_131, %c0_132] : memref<12x12x8xbf16, #tpu.memory_space<vmem>>, vector<1x10x8xbf16>
    %c5_133 = arith.constant 5 : index
    %c1_134 = arith.constant 1 : index
    %c0_135 = arith.constant 0 : index
    %74 = vector.load %arg19[%c5_133, %c1_134, %c0_135] : memref<12x12x8xbf16, #tpu.memory_space<vmem>>, vector<1x10x8xbf16>
    %c5_136 = arith.constant 5 : index
    %c2_137 = arith.constant 2 : index
    %c0_138 = arith.constant 0 : index
    %75 = vector.load %arg19[%c5_136, %c2_137, %c0_138] : memref<12x12x8xbf16, #tpu.memory_space<vmem>>, vector<1x10x8xbf16>
    %76 = tpu.concatenate %67, %68, %69, %70, %71, %72, %73, %74, %75 in 2 : vector<1x10x8xbf16>, vector<1x10x8xbf16>, vector<1x10x8xbf16>, vector<1x10x8xbf16>, vector<1x10x8xbf16>, vector<1x10x8xbf16>, vector<1x10x8xbf16>, vector<1x10x8xbf16>, vector<1x10x8xbf16> -> vector<1x10x72xbf16>
    %77 = vector.shape_cast %76 : vector<1x10x72xbf16> to vector<10x72xbf16>
    %cst_139 = arith.constant dense<0.000000e+00> : vector<10x16xf32>
    %78 = tpu.matmul %77, %9, %cst_139 {dimension_numbers = #tpu.dot_dimension_numbers<[1], [0], [0], [1], [0, 0, 1, 1], [], []>} : vector<10x72xbf16>, vector<72x16xbf16>, vector<10x16xf32> -> vector<10x16xf32>
    %79 = vector.broadcast %10 : vector<1x16xf32> to vector<10x16xf32>
    %80 = arith.addf %78, %79 : vector<10x16xf32>
    %cst_140 = arith.constant 0.000000e+00 : f32
    %81 = vector.broadcast %cst_140 : f32 to vector<10x16xf32>
    %82 = arith.maximumf %80, %81 : vector<10x16xf32>
    %83 = arith.maximumf %66, %82 : vector<10x16xf32>
    %c0_141 = arith.constant 0 : index
    %c0_142 = arith.constant 0 : index
    %84 = vector.load %arg25[%c0_141, %c0_142] : memref<10x16xf32, #tpu.memory_space<vmem>>, vector<10x16xf32>
    tpu.vector_store %arg25[%c0_141, %c0_142], %83 {strides = array<i32>} : memref<10x16xf32, #tpu.memory_space<vmem>>, vector<10x16xf32>,
    %c0_143 = arith.constant 0 : index
    %c0_144 = arith.constant 0 : index
    %85 = tpu.strided_load %arg25[%c0_143, %c0_144] {strides = array<i32: 2, 1>} : memref<10x16xf32, #tpu.memory_space<vmem>>, vector<5x16xf32>
    %c1_145 = arith.constant 1 : index
    %c0_146 = arith.constant 0 : index
    %86 = tpu.strided_load %arg25[%c1_145, %c0_146] {strides = array<i32: 2, 1>} : memref<10x16xf32, #tpu.memory_space<vmem>>, vector<5x16xf32>
    %87 = arith.maximumf %85, %86 : vector<5x16xf32>
    %88 = vector.shape_cast %87 : vector<5x16xf32> to vector<1x5x16xf32>
    %89 = arith.truncf %88 : vector<1x5x16xf32> to vector<1x5x16xbf16>
    %c1_147 = arith.constant 1 : index
    %c0_148 = arith.constant 0 : index
    %c0_149 = arith.constant 0 : index
    %90 = vector.load %arg20[%c1_147, %c0_148, %c0_149] : memref<5x5x16xbf16, #tpu.memory_space<vmem>>, vector<1x5x16xbf16>
    tpu.vector_store %arg20[%c1_147, %c0_148, %c0_149], %89 {strides = array<i32>} : memref<5x5x16xbf16, #tpu.memory_space<vmem>>, vector<1x5x16xbf16>,
    %c4_150 = arith.constant 4 : index
    %c0_151 = arith.constant 0 : index
    %c0_152 = arith.constant 0 : index
    %91 = vector.load %arg19[%c4_150, %c0_151, %c0_152] : memref<12x12x8xbf16, #tpu.memory_space<vmem>>, vector<1x10x8xbf16>
    %c4_153 = arith.constant 4 : index
    %c1_154 = arith.constant 1 : index
    %c0_155 = arith.constant 0 : index
    %92 = vector.load %arg19[%c4_153, %c1_154, %c0_155] : memref<12x12x8xbf16, #tpu.memory_space<vmem>>, vector<1x10x8xbf16>
    %c4_156 = arith.constant 4 : index
    %c2_157 = arith.constant 2 : index
    %c0_158 = arith.constant 0 : index
    %93 = vector.load %arg19[%c4_156, %c2_157, %c0_158] : memref<12x12x8xbf16, #tpu.memory_space<vmem>>, vector<1x10x8xbf16>
    %c5_159 = arith.constant 5 : index
    %c0_160 = arith.constant 0 : index
    %c0_161 = arith.constant 0 : index
    %94 = vector.load %arg19[%c5_159, %c0_160, %c0_161] : memref<12x12x8xbf16, #tpu.memory_space<vmem>>, vector<1x10x8xbf16>
    %c5_162 = arith.constant 5 : index
    %c1_163 = arith.constant 1 : index
    %c0_164 = arith.constant 0 : index
    %95 = vector.load %arg19[%c5_162, %c1_163, %c0_164] : memref<12x12x8xbf16, #tpu.memory_space<vmem>>, vector<1x10x8xbf16>
    %c5_165 = arith.constant 5 : index
    %c2_166 = arith.constant 2 : index
    %c0_167 = arith.constant 0 : index
    %96 = vector.load %arg19[%c5_165, %c2_166, %c0_167] : memref<12x12x8xbf16, #tpu.memory_space<vmem>>, vector<1x10x8xbf16>
    %c6 = arith.constant 6 : index
    %c0_168 = arith.constant 0 : index
    %c0_169 = arith.constant 0 : index
    %97 = vector.load %arg19[%c6, %c0_168, %c0_169] : memref<12x12x8xbf16, #tpu.memory_space<vmem>>, vector<1x10x8xbf16>
    %c6_170 = arith.constant 6 : index
    %c1_171 = arith.constant 1 : index
    %c0_172 = arith.constant 0 : index
    %98 = vector.load %arg19[%c6_170, %c1_171, %c0_172] : memref<12x12x8xbf16, #tpu.memory_space<vmem>>, vector<1x10x8xbf16>
    %c6_173 = arith.constant 6 : index
    %c2_174 = arith.constant 2 : index
    %c0_175 = arith.constant 0 : index
    %99 = vector.load %arg19[%c6_173, %c2_174, %c0_175] : memref<12x12x8xbf16, #tpu.memory_space<vmem>>, vector<1x10x8xbf16>
    %100 = tpu.concatenate %91, %92, %93, %94, %95, %96, %97, %98, %99 in 2 : vector<1x10x8xbf16>, vector<1x10x8xbf16>, vector<1x10x8xbf16>, vector<1x10x8xbf16>, vector<1x10x8xbf16>, vector<1x10x8xbf16>, vector<1x10x8xbf16>, vector<1x10x8xbf16>, vector<1x10x8xbf16> -> vector<1x10x72xbf16>
    %101 = vector.shape_cast %100 : vector<1x10x72xbf16> to vector<10x72xbf16>
    %cst_176 = arith.constant dense<0.000000e+00> : vector<10x16xf32>
    %102 = tpu.matmul %101, %9, %cst_176 {dimension_numbers = #tpu.dot_dimension_numbers<[1], [0], [0], [1], [0, 0, 1, 1], [], []>} : vector<10x72xbf16>, vector<72x16xbf16>, vector<10x16xf32> -> vector<10x16xf32>
    %103 = vector.broadcast %10 : vector<1x16xf32> to vector<10x16xf32>
    %104 = arith.addf %102, %103 : vector<10x16xf32>
    %cst_177 = arith.constant 0.000000e+00 : f32
    %105 = vector.broadcast %cst_177 : f32 to vector<10x16xf32>
    %106 = arith.maximumf %104, %105 : vector<10x16xf32>
    %c5_178 = arith.constant 5 : index
    %c0_179 = arith.constant 0 : index
    %c0_180 = arith.constant 0 : index
    %107 = vector.load %arg19[%c5_178, %c0_179, %c0_180] : memref<12x12x8xbf16, #tpu.memory_space<vmem>>, vector<1x10x8xbf16>
    %c5_181 = arith.constant 5 : index
    %c1_182 = arith.constant 1 : index
    %c0_183 = arith.constant 0 : index
    %108 = vector.load %arg19[%c5_181, %c1_182, %c0_183] : memref<12x12x8xbf16, #tpu.memory_space<vmem>>, vector<1x10x8xbf16>
    %c5_184 = arith.constant 5 : index
    %c2_185 = arith.constant 2 : index
    %c0_186 = arith.constant 0 : index
    %109 = vector.load %arg19[%c5_184, %c2_185, %c0_186] : memref<12x12x8xbf16, #tpu.memory_space<vmem>>, vector<1x10x8xbf16>
    %c6_187 = arith.constant 6 : index
    %c0_188 = arith.constant 0 : index
    %c0_189 = arith.constant 0 : index
    %110 = vector.load %arg19[%c6_187, %c0_188, %c0_189] : memref<12x12x8xbf16, #tpu.memory_space<vmem>>, vector<1x10x8xbf16>
    %c6_190 = arith.constant 6 : index
    %c1_191 = arith.constant 1 : index
    %c0_192 = arith.constant 0 : index
    %111 = vector.load %arg19[%c6_190, %c1_191, %c0_192] : memref<12x12x8xbf16, #tpu.memory_space<vmem>>, vector<1x10x8xbf16>
    %c6_193 = arith.constant 6 : index
    %c2_194 = arith.constant 2 : index
    %c0_195 = arith.constant 0 : index
    %112 = vector.load %arg19[%c6_193, %c2_194, %c0_195] : memref<12x12x8xbf16, #tpu.memory_space<vmem>>, vector<1x10x8xbf16>
    %c7 = arith.constant 7 : index
    %c0_196 = arith.constant 0 : index
    %c0_197 = arith.constant 0 : index
    %113 = vector.load %arg19[%c7, %c0_196, %c0_197] : memref<12x12x8xbf16, #tpu.memory_space<vmem>>, vector<1x10x8xbf16>
    %c7_198 = arith.constant 7 : index
    %c1_199 = arith.constant 1 : index
    %c0_200 = arith.constant 0 : index
    %114 = vector.load %arg19[%c7_198, %c1_199, %c0_200] : memref<12x12x8xbf16, #tpu.memory_space<vmem>>, vector<1x10x8xbf16>
    %c7_201 = arith.constant 7 : index
    %c2_202 = arith.constant 2 : index
    %c0_203 = arith.constant 0 : index
    %115 = vector.load %arg19[%c7_201, %c2_202, %c0_203] : memref<12x12x8xbf16, #tpu.memory_space<vmem>>, vector<1x10x8xbf16>
    %116 = tpu.concatenate %107, %108, %109, %110, %111, %112, %113, %114, %115 in 2 : vector<1x10x8xbf16>, vector<1x10x8xbf16>, vector<1x10x8xbf16>, vector<1x10x8xbf16>, vector<1x10x8xbf16>, vector<1x10x8xbf16>, vector<1x10x8xbf16>, vector<1x10x8xbf16>, vector<1x10x8xbf16> -> vector<1x10x72xbf16>
    %117 = vector.shape_cast %116 : vector<1x10x72xbf16> to vector<10x72xbf16>
    %cst_204 = arith.constant dense<0.000000e+00> : vector<10x16xf32>
    %118 = tpu.matmul %117, %9, %cst_204 {dimension_numbers = #tpu.dot_dimension_numbers<[1], [0], [0], [1], [0, 0, 1, 1], [], []>} : vector<10x72xbf16>, vector<72x16xbf16>, vector<10x16xf32> -> vector<10x16xf32>
    %119 = vector.broadcast %10 : vector<1x16xf32> to vector<10x16xf32>
    %120 = arith.addf %118, %119 : vector<10x16xf32>
    %cst_205 = arith.constant 0.000000e+00 : f32
    %121 = vector.broadcast %cst_205 : f32 to vector<10x16xf32>
    %122 = arith.maximumf %120, %121 : vector<10x16xf32>
    %123 = arith.maximumf %106, %122 : vector<10x16xf32>
    %c0_206 = arith.constant 0 : index
    %c0_207 = arith.constant 0 : index
    %124 = vector.load %arg25[%c0_206, %c0_207] : memref<10x16xf32, #tpu.memory_space<vmem>>, vector<10x16xf32>
    tpu.vector_store %arg25[%c0_206, %c0_207], %123 {strides = array<i32>} : memref<10x16xf32, #tpu.memory_space<vmem>>, vector<10x16xf32>,
    %c0_208 = arith.constant 0 : index
    %c0_209 = arith.constant 0 : index
    %125 = tpu.strided_load %arg25[%c0_208, %c0_209] {strides = array<i32: 2, 1>} : memref<10x16xf32, #tpu.memory_space<vmem>>, vector<5x16xf32>
    %c1_210 = arith.constant 1 : index
    %c0_211 = arith.constant 0 : index
    %126 = tpu.strided_load %arg25[%c1_210, %c0_211] {strides = array<i32: 2, 1>} : memref<10x16xf32, #tpu.memory_space<vmem>>, vector<5x16xf32>
    %127 = arith.maximumf %125, %126 : vector<5x16xf32>
    %128 = vector.shape_cast %127 : vector<5x16xf32> to vector<1x5x16xf32>
    %129 = arith.truncf %128 : vector<1x5x16xf32> to vector<1x5x16xbf16>
    %c2_212 = arith.constant 2 : index
    %c0_213 = arith.constant 0 : index
    %c0_214 = arith.constant 0 : index
    %130 = vector.load %arg20[%c2_212, %c0_213, %c0_214] : memref<5x5x16xbf16, #tpu.memory_space<vmem>>, vector<1x5x16xbf16>
    tpu.vector_store %arg20[%c2_212, %c0_213, %c0_214], %129 {strides = array<i32>} : memref<5x5x16xbf16, #tpu.memory_space<vmem>>, vector<1x5x16xbf16>,
    %c6_215 = arith.constant 6 : index
    %c0_216 = arith.constant 0 : index
    %c0_217 = arith.constant 0 : index
    %131 = vector.load %arg19[%c6_215, %c0_216, %c0_217] : memref<12x12x8xbf16, #tpu.memory_space<vmem>>, vector<1x10x8xbf16>
    %c6_218 = arith.constant 6 : index
    %c1_219 = arith.constant 1 : index
    %c0_220 = arith.constant 0 : index
    %132 = vector.load %arg19[%c6_218, %c1_219, %c0_220] : memref<12x12x8xbf16, #tpu.memory_space<vmem>>, vector<1x10x8xbf16>
    %c6_221 = arith.constant 6 : index
    %c2_222 = arith.constant 2 : index
    %c0_223 = arith.constant 0 : index
    %133 = vector.load %arg19[%c6_221, %c2_222, %c0_223] : memref<12x12x8xbf16, #tpu.memory_space<vmem>>, vector<1x10x8xbf16>
    %c7_224 = arith.constant 7 : index
    %c0_225 = arith.constant 0 : index
    %c0_226 = arith.constant 0 : index
    %134 = vector.load %arg19[%c7_224, %c0_225, %c0_226] : memref<12x12x8xbf16, #tpu.memory_space<vmem>>, vector<1x10x8xbf16>
    %c7_227 = arith.constant 7 : index
    %c1_228 = arith.constant 1 : index
    %c0_229 = arith.constant 0 : index
    %135 = vector.load %arg19[%c7_227, %c1_228, %c0_229] : memref<12x12x8xbf16, #tpu.memory_space<vmem>>, vector<1x10x8xbf16>
    %c7_230 = arith.constant 7 : index
    %c2_231 = arith.constant 2 : index
    %c0_232 = arith.constant 0 : index
    %136 = vector.load %arg19[%c7_230, %c2_231, %c0_232] : memref<12x12x8xbf16, #tpu.memory_space<vmem>>, vector<1x10x8xbf16>
    %c8 = arith.constant 8 : index
    %c0_233 = arith.constant 0 : index
    %c0_234 = arith.constant 0 : index
    %137 = vector.load %arg19[%c8, %c0_233, %c0_234] : memref<12x12x8xbf16, #tpu.memory_space<vmem>>, vector<1x10x8xbf16>
    %c8_235 = arith.constant 8 : index
    %c1_236 = arith.constant 1 : index
    %c0_237 = arith.constant 0 : index
    %138 = vector.load %arg19[%c8_235, %c1_236, %c0_237] : memref<12x12x8xbf16, #tpu.memory_space<vmem>>, vector<1x10x8xbf16>
    %c8_238 = arith.constant 8 : index
    %c2_239 = arith.constant 2 : index
    %c0_240 = arith.constant 0 : index
    %139 = vector.load %arg19[%c8_238, %c2_239, %c0_240] : memref<12x12x8xbf16, #tpu.memory_space<vmem>>, vector<1x10x8xbf16>
    %140 = tpu.concatenate %131, %132, %133, %134, %135, %136, %137, %138, %139 in 2 : vector<1x10x8xbf16>, vector<1x10x8xbf16>, vector<1x10x8xbf16>, vector<1x10x8xbf16>, vector<1x10x8xbf16>, vector<1x10x8xbf16>, vector<1x10x8xbf16>, vector<1x10x8xbf16>, vector<1x10x8xbf16> -> vector<1x10x72xbf16>
    %141 = vector.shape_cast %140 : vector<1x10x72xbf16> to vector<10x72xbf16>
    %cst_241 = arith.constant dense<0.000000e+00> : vector<10x16xf32>
    %142 = tpu.matmul %141, %9, %cst_241 {dimension_numbers = #tpu.dot_dimension_numbers<[1], [0], [0], [1], [0, 0, 1, 1], [], []>} : vector<10x72xbf16>, vector<72x16xbf16>, vector<10x16xf32> -> vector<10x16xf32>
    %143 = vector.broadcast %10 : vector<1x16xf32> to vector<10x16xf32>
    %144 = arith.addf %142, %143 : vector<10x16xf32>
    %cst_242 = arith.constant 0.000000e+00 : f32
    %145 = vector.broadcast %cst_242 : f32 to vector<10x16xf32>
    %146 = arith.maximumf %144, %145 : vector<10x16xf32>
    %c7_243 = arith.constant 7 : index
    %c0_244 = arith.constant 0 : index
    %c0_245 = arith.constant 0 : index
    %147 = vector.load %arg19[%c7_243, %c0_244, %c0_245] : memref<12x12x8xbf16, #tpu.memory_space<vmem>>, vector<1x10x8xbf16>
    %c7_246 = arith.constant 7 : index
    %c1_247 = arith.constant 1 : index
    %c0_248 = arith.constant 0 : index
    %148 = vector.load %arg19[%c7_246, %c1_247, %c0_248] : memref<12x12x8xbf16, #tpu.memory_space<vmem>>, vector<1x10x8xbf16>
    %c7_249 = arith.constant 7 : index
    %c2_250 = arith.constant 2 : index
    %c0_251 = arith.constant 0 : index
    %149 = vector.load %arg19[%c7_249, %c2_250, %c0_251] : memref<12x12x8xbf16, #tpu.memory_space<vmem>>, vector<1x10x8xbf16>
    %c8_252 = arith.constant 8 : index
    %c0_253 = arith.constant 0 : index
    %c0_254 = arith.constant 0 : index
    %150 = vector.load %arg19[%c8_252, %c0_253, %c0_254] : memref<12x12x8xbf16, #tpu.memory_space<vmem>>, vector<1x10x8xbf16>
    %c8_255 = arith.constant 8 : index
    %c1_256 = arith.constant 1 : index
    %c0_257 = arith.constant 0 : index
    %151 = vector.load %arg19[%c8_255, %c1_256, %c0_257] : memref<12x12x8xbf16, #tpu.memory_space<vmem>>, vector<1x10x8xbf16>
    %c8_258 = arith.constant 8 : index
    %c2_259 = arith.constant 2 : index
    %c0_260 = arith.constant 0 : index
    %152 = vector.load %arg19[%c8_258, %c2_259, %c0_260] : memref<12x12x8xbf16, #tpu.memory_space<vmem>>, vector<1x10x8xbf16>
    %c9 = arith.constant 9 : index
    %c0_261 = arith.constant 0 : index
    %c0_262 = arith.constant 0 : index
    %153 = vector.load %arg19[%c9, %c0_261, %c0_262] : memref<12x12x8xbf16, #tpu.memory_space<vmem>>, vector<1x10x8xbf16>
    %c9_263 = arith.constant 9 : index
    %c1_264 = arith.constant 1 : index
    %c0_265 = arith.constant 0 : index
    %154 = vector.load %arg19[%c9_263, %c1_264, %c0_265] : memref<12x12x8xbf16, #tpu.memory_space<vmem>>, vector<1x10x8xbf16>
    %c9_266 = arith.constant 9 : index
    %c2_267 = arith.constant 2 : index
    %c0_268 = arith.constant 0 : index
    %155 = vector.load %arg19[%c9_266, %c2_267, %c0_268] : memref<12x12x8xbf16, #tpu.memory_space<vmem>>, vector<1x10x8xbf16>
    %156 = tpu.concatenate %147, %148, %149, %150, %151, %152, %153, %154, %155 in 2 : vector<1x10x8xbf16>, vector<1x10x8xbf16>, vector<1x10x8xbf16>, vector<1x10x8xbf16>, vector<1x10x8xbf16>, vector<1x10x8xbf16>, vector<1x10x8xbf16>, vector<1x10x8xbf16>, vector<1x10x8xbf16> -> vector<1x10x72xbf16>
    %157 = vector.shape_cast %156 : vector<1x10x72xbf16> to vector<10x72xbf16>
    %cst_269 = arith.constant dense<0.000000e+00> : vector<10x16xf32>
    %158 = tpu.matmul %157, %9, %cst_269 {dimension_numbers = #tpu.dot_dimension_numbers<[1], [0], [0], [1], [0, 0, 1, 1], [], []>} : vector<10x72xbf16>, vector<72x16xbf16>, vector<10x16xf32> -> vector<10x16xf32>
    %159 = vector.broadcast %10 : vector<1x16xf32> to vector<10x16xf32>
    %160 = arith.addf %158, %159 : vector<10x16xf32>
    %cst_270 = arith.constant 0.000000e+00 : f32
    %161 = vector.broadcast %cst_270 : f32 to vector<10x16xf32>
    %162 = arith.maximumf %160, %161 : vector<10x16xf32>
    %163 = arith.maximumf %146, %162 : vector<10x16xf32>
    %c0_271 = arith.constant 0 : index
    %c0_272 = arith.constant 0 : index
    %164 = vector.load %arg25[%c0_271, %c0_272] : memref<10x16xf32, #tpu.memory_space<vmem>>, vector<10x16xf32>
    tpu.vector_store %arg25[%c0_271, %c0_272], %163 {strides = array<i32>} : memref<10x16xf32, #tpu.memory_space<vmem>>, vector<10x16xf32>,
    %c0_273 = arith.constant 0 : index
    %c0_274 = arith.constant 0 : index
    %165 = tpu.strided_load %arg25[%c0_273, %c0_274] {strides = array<i32: 2, 1>} : memref<10x16xf32, #tpu.memory_space<vmem>>, vector<5x16xf32>
    %c1_275 = arith.constant 1 : index
    %c0_276 = arith.constant 0 : index
    %166 = tpu.strided_load %arg25[%c1_275, %c0_276] {strides = array<i32: 2, 1>} : memref<10x16xf32, #tpu.memory_space<vmem>>, vector<5x16xf32>
    %167 = arith.maximumf %165, %166 : vector<5x16xf32>
    %168 = vector.shape_cast %167 : vector<5x16xf32> to vector<1x5x16xf32>
    %169 = arith.truncf %168 : vector<1x5x16xf32> to vector<1x5x16xbf16>
    %c3_277 = arith.constant 3 : index
    %c0_278 = arith.constant 0 : index
    %c0_279 = arith.constant 0 : index
    %170 = vector.load %arg20[%c3_277, %c0_278, %c0_279] : memref<5x5x16xbf16, #tpu.memory_space<vmem>>, vector<1x5x16xbf16>
    tpu.vector_store %arg20[%c3_277, %c0_278, %c0_279], %169 {strides = array<i32>} : memref<5x5x16xbf16, #tpu.memory_space<vmem>>, vector<1x5x16xbf16>,
    %c8_280 = arith.constant 8 : index
    %c0_281 = arith.constant 0 : index
    %c0_282 = arith.constant 0 : index
    %171 = vector.load %arg19[%c8_280, %c0_281, %c0_282] : memref<12x12x8xbf16, #tpu.memory_space<vmem>>, vector<1x10x8xbf16>
    %c8_283 = arith.constant 8 : index
    %c1_284 = arith.constant 1 : index
    %c0_285 = arith.constant 0 : index
    %172 = vector.load %arg19[%c8_283, %c1_284, %c0_285] : memref<12x12x8xbf16, #tpu.memory_space<vmem>>, vector<1x10x8xbf16>
    %c8_286 = arith.constant 8 : index
    %c2_287 = arith.constant 2 : index
    %c0_288 = arith.constant 0 : index
    %173 = vector.load %arg19[%c8_286, %c2_287, %c0_288] : memref<12x12x8xbf16, #tpu.memory_space<vmem>>, vector<1x10x8xbf16>
    %c9_289 = arith.constant 9 : index
    %c0_290 = arith.constant 0 : index
    %c0_291 = arith.constant 0 : index
    %174 = vector.load %arg19[%c9_289, %c0_290, %c0_291] : memref<12x12x8xbf16, #tpu.memory_space<vmem>>, vector<1x10x8xbf16>
    %c9_292 = arith.constant 9 : index
    %c1_293 = arith.constant 1 : index
    %c0_294 = arith.constant 0 : index
    %175 = vector.load %arg19[%c9_292, %c1_293, %c0_294] : memref<12x12x8xbf16, #tpu.memory_space<vmem>>, vector<1x10x8xbf16>
    %c9_295 = arith.constant 9 : index
    %c2_296 = arith.constant 2 : index
    %c0_297 = arith.constant 0 : index
    %176 = vector.load %arg19[%c9_295, %c2_296, %c0_297] : memref<12x12x8xbf16, #tpu.memory_space<vmem>>, vector<1x10x8xbf16>
    %c10 = arith.constant 10 : index
    %c0_298 = arith.constant 0 : index
    %c0_299 = arith.constant 0 : index
    %177 = vector.load %arg19[%c10, %c0_298, %c0_299] : memref<12x12x8xbf16, #tpu.memory_space<vmem>>, vector<1x10x8xbf16>
    %c10_300 = arith.constant 10 : index
    %c1_301 = arith.constant 1 : index
    %c0_302 = arith.constant 0 : index
    %178 = vector.load %arg19[%c10_300, %c1_301, %c0_302] : memref<12x12x8xbf16, #tpu.memory_space<vmem>>, vector<1x10x8xbf16>
    %c10_303 = arith.constant 10 : index
    %c2_304 = arith.constant 2 : index
    %c0_305 = arith.constant 0 : index
    %179 = vector.load %arg19[%c10_303, %c2_304, %c0_305] : memref<12x12x8xbf16, #tpu.memory_space<vmem>>, vector<1x10x8xbf16>
    %180 = tpu.concatenate %171, %172, %173, %174, %175, %176, %177, %178, %179 in 2 : vector<1x10x8xbf16>, vector<1x10x8xbf16>, vector<1x10x8xbf16>, vector<1x10x8xbf16>, vector<1x10x8xbf16>, vector<1x10x8xbf16>, vector<1x10x8xbf16>, vector<1x10x8xbf16>, vector<1x10x8xbf16> -> vector<1x10x72xbf16>
    %181 = vector.shape_cast %180 : vector<1x10x72xbf16> to vector<10x72xbf16>
    %cst_306 = arith.constant dense<0.000000e+00> : vector<10x16xf32>
    %182 = tpu.matmul %181, %9, %cst_306 {dimension_numbers = #tpu.dot_dimension_numbers<[1], [0], [0], [1], [0, 0, 1, 1], [], []>} : vector<10x72xbf16>, vector<72x16xbf16>, vector<10x16xf32> -> vector<10x16xf32>
    %183 = vector.broadcast %10 : vector<1x16xf32> to vector<10x16xf32>
    %184 = arith.addf %182, %183 : vector<10x16xf32>
    %cst_307 = arith.constant 0.000000e+00 : f32
    %185 = vector.broadcast %cst_307 : f32 to vector<10x16xf32>
    %186 = arith.maximumf %184, %185 : vector<10x16xf32>
    %c9_308 = arith.constant 9 : index
    %c0_309 = arith.constant 0 : index
    %c0_310 = arith.constant 0 : index
    %187 = vector.load %arg19[%c9_308, %c0_309, %c0_310] : memref<12x12x8xbf16, #tpu.memory_space<vmem>>, vector<1x10x8xbf16>
    %c9_311 = arith.constant 9 : index
    %c1_312 = arith.constant 1 : index
    %c0_313 = arith.constant 0 : index
    %188 = vector.load %arg19[%c9_311, %c1_312, %c0_313] : memref<12x12x8xbf16, #tpu.memory_space<vmem>>, vector<1x10x8xbf16>
    %c9_314 = arith.constant 9 : index
    %c2_315 = arith.constant 2 : index
    %c0_316 = arith.constant 0 : index
    %189 = vector.load %arg19[%c9_314, %c2_315, %c0_316] : memref<12x12x8xbf16, #tpu.memory_space<vmem>>, vector<1x10x8xbf16>
    %c10_317 = arith.constant 10 : index
    %c0_318 = arith.constant 0 : index
    %c0_319 = arith.constant 0 : index
    %190 = vector.load %arg19[%c10_317, %c0_318, %c0_319] : memref<12x12x8xbf16, #tpu.memory_space<vmem>>, vector<1x10x8xbf16>
    %c10_320 = arith.constant 10 : index
    %c1_321 = arith.constant 1 : index
    %c0_322 = arith.constant 0 : index
    %191 = vector.load %arg19[%c10_320, %c1_321, %c0_322] : memref<12x12x8xbf16, #tpu.memory_space<vmem>>, vector<1x10x8xbf16>
    %c10_323 = arith.constant 10 : index
    %c2_324 = arith.constant 2 : index
    %c0_325 = arith.constant 0 : index
    %192 = vector.load %arg19[%c10_323, %c2_324, %c0_325] : memref<12x12x8xbf16, #tpu.memory_space<vmem>>, vector<1x10x8xbf16>
    %c11 = arith.constant 11 : index
    %c0_326 = arith.constant 0 : index
    %c0_327 = arith.constant 0 : index
    %193 = vector.load %arg19[%c11, %c0_326, %c0_327] : memref<12x12x8xbf16, #tpu.memory_space<vmem>>, vector<1x10x8xbf16>
    %c11_328 = arith.constant 11 : index
    %c1_329 = arith.constant 1 : index
    %c0_330 = arith.constant 0 : index
    %194 = vector.load %arg19[%c11_328, %c1_329, %c0_330] : memref<12x12x8xbf16, #tpu.memory_space<vmem>>, vector<1x10x8xbf16>
    %c11_331 = arith.constant 11 : index
    %c2_332 = arith.constant 2 : index
    %c0_333 = arith.constant 0 : index
    %195 = vector.load %arg19[%c11_331, %c2_332, %c0_333] : memref<12x12x8xbf16, #tpu.memory_space<vmem>>, vector<1x10x8xbf16>
    %196 = tpu.concatenate %187, %188, %189, %190, %191, %192, %193, %194, %195 in 2 : vector<1x10x8xbf16>, vector<1x10x8xbf16>, vector<1x10x8xbf16>, vector<1x10x8xbf16>, vector<1x10x8xbf16>, vector<1x10x8xbf16>, vector<1x10x8xbf16>, vector<1x10x8xbf16>, vector<1x10x8xbf16> -> vector<1x10x72xbf16>
    %197 = vector.shape_cast %196 : vector<1x10x72xbf16> to vector<10x72xbf16>
    %cst_334 = arith.constant dense<0.000000e+00> : vector<10x16xf32>
    %198 = tpu.matmul %197, %9, %cst_334 {dimension_numbers = #tpu.dot_dimension_numbers<[1], [0], [0], [1], [0, 0, 1, 1], [], []>} : vector<10x72xbf16>, vector<72x16xbf16>, vector<10x16xf32> -> vector<10x16xf32>
    %199 = vector.broadcast %10 : vector<1x16xf32> to vector<10x16xf32>
    %200 = arith.addf %198, %199 : vector<10x16xf32>
    %cst_335 = arith.constant 0.000000e+00 : f32
    %201 = vector.broadcast %cst_335 : f32 to vector<10x16xf32>
    %202 = arith.maximumf %200, %201 : vector<10x16xf32>
    %203 = arith.maximumf %186, %202 : vector<10x16xf32>
    %c0_336 = arith.constant 0 : index
    %c0_337 = arith.constant 0 : index
    %204 = vector.load %arg25[%c0_336, %c0_337] : memref<10x16xf32, #tpu.memory_space<vmem>>, vector<10x16xf32>
    tpu.vector_store %arg25[%c0_336, %c0_337], %203 {strides = array<i32>} : memref<10x16xf32, #tpu.memory_space<vmem>>, vector<10x16xf32>,
    %c0_338 = arith.constant 0 : index
    %c0_339 = arith.constant 0 : index
    %205 = tpu.strided_load %arg25[%c0_338, %c0_339] {strides = array<i32: 2, 1>} : memref<10x16xf32, #tpu.memory_space<vmem>>, vector<5x16xf32>
    %c1_340 = arith.constant 1 : index
    %c0_341 = arith.constant 0 : index
    %206 = tpu.strided_load %arg25[%c1_340, %c0_341] {strides = array<i32: 2, 1>} : memref<10x16xf32, #tpu.memory_space<vmem>>, vector<5x16xf32>
    %207 = arith.maximumf %205, %206 : vector<5x16xf32>
    %208 = vector.shape_cast %207 : vector<5x16xf32> to vector<1x5x16xf32>
    %209 = arith.truncf %208 : vector<1x5x16xf32> to vector<1x5x16xbf16>
    %c4_342 = arith.constant 4 : index
    %c0_343 = arith.constant 0 : index
    %c0_344 = arith.constant 0 : index
    %210 = vector.load %arg20[%c4_342, %c0_343, %c0_344] : memref<5x5x16xbf16, #tpu.memory_space<vmem>>, vector<1x5x16xbf16>
    tpu.vector_store %arg20[%c4_342, %c0_343, %c0_344], %209 {strides = array<i32>} : memref<5x5x16xbf16, #tpu.memory_space<vmem>>, vector<1x5x16xbf16>,
    %c0_345 = arith.constant 0 : index
    %c0_346 = arith.constant 0 : index
    %211 = vector.load %arg10[%c0_345, %c0_346] : memref<144x16xbf16, #tpu.memory_space<vmem>>, vector<144x16xbf16>
    %c0_347 = arith.constant 0 : index
    %c0_348 = arith.constant 0 : index
    %212 = vector.load %arg11[%c0_347, %c0_348] : memref<1x16xf32, #tpu.memory_space<vmem>>, vector<1x16xf32>
    %c0_349 = arith.constant 0 : index
    %c0_350 = arith.constant 0 : index
    %c0_351 = arith.constant 0 : index
    %213 = vector.load %arg20[%c0_349, %c0_350, %c0_351] : memref<5x5x16xbf16, #tpu.memory_space<vmem>>, vector<1x3x16xbf16>
    %c0_352 = arith.constant 0 : index
    %c1_353 = arith.constant 1 : index
    %c0_354 = arith.constant 0 : index
    %214 = vector.load %arg20[%c0_352, %c1_353, %c0_354] : memref<5x5x16xbf16, #tpu.memory_space<vmem>>, vector<1x3x16xbf16>
    %c0_355 = arith.constant 0 : index
    %c2_356 = arith.constant 2 : index
    %c0_357 = arith.constant 0 : index
    %215 = vector.load %arg20[%c0_355, %c2_356, %c0_357] : memref<5x5x16xbf16, #tpu.memory_space<vmem>>, vector<1x3x16xbf16>
    %c1_358 = arith.constant 1 : index
    %c0_359 = arith.constant 0 : index
    %c0_360 = arith.constant 0 : index
    %216 = vector.load %arg20[%c1_358, %c0_359, %c0_360] : memref<5x5x16xbf16, #tpu.memory_space<vmem>>, vector<1x3x16xbf16>
    %c1_361 = arith.constant 1 : index
    %c1_362 = arith.constant 1 : index
    %c0_363 = arith.constant 0 : index
    %217 = vector.load %arg20[%c1_361, %c1_362, %c0_363] : memref<5x5x16xbf16, #tpu.memory_space<vmem>>, vector<1x3x16xbf16>
    %c1_364 = arith.constant 1 : index
    %c2_365 = arith.constant 2 : index
    %c0_366 = arith.constant 0 : index
    %218 = vector.load %arg20[%c1_364, %c2_365, %c0_366] : memref<5x5x16xbf16, #tpu.memory_space<vmem>>, vector<1x3x16xbf16>
    %c2_367 = arith.constant 2 : index
    %c0_368 = arith.constant 0 : index
    %c0_369 = arith.constant 0 : index
    %219 = vector.load %arg20[%c2_367, %c0_368, %c0_369] : memref<5x5x16xbf16, #tpu.memory_space<vmem>>, vector<1x3x16xbf16>
    %c2_370 = arith.constant 2 : index
    %c1_371 = arith.constant 1 : index
    %c0_372 = arith.constant 0 : index
    %220 = vector.load %arg20[%c2_370, %c1_371, %c0_372] : memref<5x5x16xbf16, #tpu.memory_space<vmem>>, vector<1x3x16xbf16>
    %c2_373 = arith.constant 2 : index
    %c2_374 = arith.constant 2 : index
    %c0_375 = arith.constant 0 : index
    %221 = vector.load %arg20[%c2_373, %c2_374, %c0_375] : memref<5x5x16xbf16, #tpu.memory_space<vmem>>, vector<1x3x16xbf16>
    %222 = tpu.concatenate %213, %214, %215, %216, %217, %218, %219, %220, %221 in 2 : vector<1x3x16xbf16>, vector<1x3x16xbf16>, vector<1x3x16xbf16>, vector<1x3x16xbf16>, vector<1x3x16xbf16>, vector<1x3x16xbf16>, vector<1x3x16xbf16>, vector<1x3x16xbf16>, vector<1x3x16xbf16> -> vector<1x3x144xbf16>
    %223 = vector.shape_cast %222 : vector<1x3x144xbf16> to vector<3x144xbf16>
    %cst_376 = arith.constant dense<0.000000e+00> : vector<3x16xf32>
    %224 = tpu.matmul %223, %211, %cst_376 {dimension_numbers = #tpu.dot_dimension_numbers<[1], [0], [0], [1], [0, 0, 1, 1], [], []>} : vector<3x144xbf16>, vector<144x16xbf16>, vector<3x16xf32> -> vector<3x16xf32>
    %225 = vector.broadcast %212 : vector<1x16xf32> to vector<3x16xf32>
    %226 = arith.addf %224, %225 : vector<3x16xf32>
    %cst_377 = arith.constant 0.000000e+00 : f32
    %227 = vector.broadcast %cst_377 : f32 to vector<3x16xf32>
    %228 = arith.maximumf %226, %227 : vector<3x16xf32>
    %c1_378 = arith.constant 1 : index
    %c0_379 = arith.constant 0 : index
    %c0_380 = arith.constant 0 : index
    %229 = vector.load %arg20[%c1_378, %c0_379, %c0_380] : memref<5x5x16xbf16, #tpu.memory_space<vmem>>, vector<1x3x16xbf16>
    %c1_381 = arith.constant 1 : index
    %c1_382 = arith.constant 1 : index
    %c0_383 = arith.constant 0 : index
    %230 = vector.load %arg20[%c1_381, %c1_382, %c0_383] : memref<5x5x16xbf16, #tpu.memory_space<vmem>>, vector<1x3x16xbf16>
    %c1_384 = arith.constant 1 : index
    %c2_385 = arith.constant 2 : index
    %c0_386 = arith.constant 0 : index
    %231 = vector.load %arg20[%c1_384, %c2_385, %c0_386] : memref<5x5x16xbf16, #tpu.memory_space<vmem>>, vector<1x3x16xbf16>
    %c2_387 = arith.constant 2 : index
    %c0_388 = arith.constant 0 : index
    %c0_389 = arith.constant 0 : index
    %232 = vector.load %arg20[%c2_387, %c0_388, %c0_389] : memref<5x5x16xbf16, #tpu.memory_space<vmem>>, vector<1x3x16xbf16>
    %c2_390 = arith.constant 2 : index
    %c1_391 = arith.constant 1 : index
    %c0_392 = arith.constant 0 : index
    %233 = vector.load %arg20[%c2_390, %c1_391, %c0_392] : memref<5x5x16xbf16, #tpu.memory_space<vmem>>, vector<1x3x16xbf16>
    %c2_393 = arith.constant 2 : index
    %c2_394 = arith.constant 2 : index
    %c0_395 = arith.constant 0 : index
    %234 = vector.load %arg20[%c2_393, %c2_394, %c0_395] : memref<5x5x16xbf16, #tpu.memory_space<vmem>>, vector<1x3x16xbf16>
    %c3_396 = arith.constant 3 : index
    %c0_397 = arith.constant 0 : index
    %c0_398 = arith.constant 0 : index
    %235 = vector.load %arg20[%c3_396, %c0_397, %c0_398] : memref<5x5x16xbf16, #tpu.memory_space<vmem>>, vector<1x3x16xbf16>
    %c3_399 = arith.constant 3 : index
    %c1_400 = arith.constant 1 : index
    %c0_401 = arith.constant 0 : index
    %236 = vector.load %arg20[%c3_399, %c1_400, %c0_401] : memref<5x5x16xbf16, #tpu.memory_space<vmem>>, vector<1x3x16xbf16>
    %c3_402 = arith.constant 3 : index
    %c2_403 = arith.constant 2 : index
    %c0_404 = arith.constant 0 : index
    %237 = vector.load %arg20[%c3_402, %c2_403, %c0_404] : memref<5x5x16xbf16, #tpu.memory_space<vmem>>, vector<1x3x16xbf16>
    %238 = tpu.concatenate %229, %230, %231, %232, %233, %234, %235, %236, %237 in 2 : vector<1x3x16xbf16>, vector<1x3x16xbf16>, vector<1x3x16xbf16>, vector<1x3x16xbf16>, vector<1x3x16xbf16>, vector<1x3x16xbf16>, vector<1x3x16xbf16>, vector<1x3x16xbf16>, vector<1x3x16xbf16> -> vector<1x3x144xbf16>
    %239 = vector.shape_cast %238 : vector<1x3x144xbf16> to vector<3x144xbf16>
    %cst_405 = arith.constant dense<0.000000e+00> : vector<3x16xf32>
    %240 = tpu.matmul %239, %211, %cst_405 {dimension_numbers = #tpu.dot_dimension_numbers<[1], [0], [0], [1], [0, 0, 1, 1], [], []>} : vector<3x144xbf16>, vector<144x16xbf16>, vector<3x16xf32> -> vector<3x16xf32>
    %241 = vector.broadcast %212 : vector<1x16xf32> to vector<3x16xf32>
    %242 = arith.addf %240, %241 : vector<3x16xf32>
    %cst_406 = arith.constant 0.000000e+00 : f32
    %243 = vector.broadcast %cst_406 : f32 to vector<3x16xf32>
    %244 = arith.maximumf %242, %243 : vector<3x16xf32>
    %245 = arith.maximumf %228, %244 : vector<3x16xf32>
    %c2_407 = arith.constant 2 : index
    %c0_408 = arith.constant 0 : index
    %c0_409 = arith.constant 0 : index
    %246 = vector.load %arg20[%c2_407, %c0_408, %c0_409] : memref<5x5x16xbf16, #tpu.memory_space<vmem>>, vector<1x3x16xbf16>
    %c2_410 = arith.constant 2 : index
    %c1_411 = arith.constant 1 : index
    %c0_412 = arith.constant 0 : index
    %247 = vector.load %arg20[%c2_410, %c1_411, %c0_412] : memref<5x5x16xbf16, #tpu.memory_space<vmem>>, vector<1x3x16xbf16>
    %c2_413 = arith.constant 2 : index
    %c2_414 = arith.constant 2 : index
    %c0_415 = arith.constant 0 : index
    %248 = vector.load %arg20[%c2_413, %c2_414, %c0_415] : memref<5x5x16xbf16, #tpu.memory_space<vmem>>, vector<1x3x16xbf16>
    %c3_416 = arith.constant 3 : index
    %c0_417 = arith.constant 0 : index
    %c0_418 = arith.constant 0 : index
    %249 = vector.load %arg20[%c3_416, %c0_417, %c0_418] : memref<5x5x16xbf16, #tpu.memory_space<vmem>>, vector<1x3x16xbf16>
    %c3_419 = arith.constant 3 : index
    %c1_420 = arith.constant 1 : index
    %c0_421 = arith.constant 0 : index
    %250 = vector.load %arg20[%c3_419, %c1_420, %c0_421] : memref<5x5x16xbf16, #tpu.memory_space<vmem>>, vector<1x3x16xbf16>
    %c3_422 = arith.constant 3 : index
    %c2_423 = arith.constant 2 : index
    %c0_424 = arith.constant 0 : index
    %251 = vector.load %arg20[%c3_422, %c2_423, %c0_424] : memref<5x5x16xbf16, #tpu.memory_space<vmem>>, vector<1x3x16xbf16>
    %c4_425 = arith.constant 4 : index
    %c0_426 = arith.constant 0 : index
    %c0_427 = arith.constant 0 : index
    %252 = vector.load %arg20[%c4_425, %c0_426, %c0_427] : memref<5x5x16xbf16, #tpu.memory_space<vmem>>, vector<1x3x16xbf16>
    %c4_428 = arith.constant 4 : index
    %c1_429 = arith.constant 1 : index
    %c0_430 = arith.constant 0 : index
    %253 = vector.load %arg20[%c4_428, %c1_429, %c0_430] : memref<5x5x16xbf16, #tpu.memory_space<vmem>>, vector<1x3x16xbf16>
    %c4_431 = arith.constant 4 : index
    %c2_432 = arith.constant 2 : index
    %c0_433 = arith.constant 0 : index
    %254 = vector.load %arg20[%c4_431, %c2_432, %c0_433] : memref<5x5x16xbf16, #tpu.memory_space<vmem>>, vector<1x3x16xbf16>
    %255 = tpu.concatenate %246, %247, %248, %249, %250, %251, %252, %253, %254 in 2 : vector<1x3x16xbf16>, vector<1x3x16xbf16>, vector<1x3x16xbf16>, vector<1x3x16xbf16>, vector<1x3x16xbf16>, vector<1x3x16xbf16>, vector<1x3x16xbf16>, vector<1x3x16xbf16>, vector<1x3x16xbf16> -> vector<1x3x144xbf16>
    %256 = vector.shape_cast %255 : vector<1x3x144xbf16> to vector<3x144xbf16>
    %cst_434 = arith.constant dense<0.000000e+00> : vector<3x16xf32>
    %257 = tpu.matmul %256, %211, %cst_434 {dimension_numbers = #tpu.dot_dimension_numbers<[1], [0], [0], [1], [0, 0, 1, 1], [], []>} : vector<3x144xbf16>, vector<144x16xbf16>, vector<3x16xf32> -> vector<3x16xf32>
    %258 = vector.broadcast %212 : vector<1x16xf32> to vector<3x16xf32>
    %259 = arith.addf %257, %258 : vector<3x16xf32>
    %cst_435 = arith.constant 0.000000e+00 : f32
    %260 = vector.broadcast %cst_435 : f32 to vector<3x16xf32>
    %261 = arith.maximumf %259, %260 : vector<3x16xf32>
    %262 = arith.maximumf %245, %261 : vector<3x16xf32>
    %c0_436 = arith.constant 0 : index
    %c0_437 = arith.constant 0 : index
    %263 = vector.load %arg26[%c0_436, %c0_437] : memref<3x16xf32, #tpu.memory_space<vmem>>, vector<3x16xf32>
    tpu.vector_store %arg26[%c0_436, %c0_437], %262 {strides = array<i32>} : memref<3x16xf32, #tpu.memory_space<vmem>>, vector<3x16xf32>,
    %c0_438 = arith.constant 0 : index
    %c0_439 = arith.constant 0 : index
    %264 = vector.load %arg26[%c0_438, %c0_439] : memref<3x16xf32, #tpu.memory_space<vmem>>, vector<1x16xf32>
    %c1_440 = arith.constant 1 : index
    %c0_441 = arith.constant 0 : index
    %265 = vector.load %arg26[%c1_440, %c0_441] : memref<3x16xf32, #tpu.memory_space<vmem>>, vector<1x16xf32>
    %266 = arith.maximumf %264, %265 : vector<1x16xf32>
    %c2_442 = arith.constant 2 : index
    %c0_443 = arith.constant 0 : index
    %267 = vector.load %arg26[%c2_442, %c0_443] : memref<3x16xf32, #tpu.memory_space<vmem>>, vector<1x16xf32>
    %268 = arith.maximumf %266, %267 : vector<1x16xf32>
    %269 = vector.shape_cast %268 : vector<1x16xf32> to vector<1x1x16xf32>
    %270 = arith.truncf %269 : vector<1x1x16xf32> to vector<1x1x16xbf16>
    %c0_444 = arith.constant 0 : index
    %c0_445 = arith.constant 0 : index
    %c0_446 = arith.constant 0 : index
    %271 = vector.load %arg21[%c0_444, %c0_445, %c0_446] : memref<1x1x16xbf16, #tpu.memory_space<vmem>>, vector<1x1x16xbf16>
    tpu.vector_store %arg21[%c0_444, %c0_445, %c0_446], %270 {strides = array<i32>} : memref<1x1x16xbf16, #tpu.memory_space<vmem>>, vector<1x1x16xbf16>,
    %c0_447 = arith.constant 0 : index
    %c0_448 = arith.constant 0 : index
    %c0_449 = arith.constant 0 : index
    %272 = vector.load %arg21[%c0_447, %c0_448, %c0_449] : memref<1x1x16xbf16, #tpu.memory_space<vmem>>, vector<1x1x16xbf16>
    %273 = vector.shape_cast %272 : vector<1x1x16xbf16> to vector<1x16xbf16>
    %274 = arith.extf %273 : vector<1x16xbf16> to vector<1x16xf32>
    %c0_450 = arith.constant 0 : index
    %c0_451 = arith.constant 0 : index
    %275 = vector.load %arg12[%c0_450, %c0_451] : memref<16x512xf32, #tpu.memory_space<vmem>>, vector<16x512xf32>
    %cst_452 = arith.constant dense<0.000000e+00> : vector<1x512xf32>
    %276 = tpu.matmul %274, %275, %cst_452 {dimension_numbers = #tpu.dot_dimension_numbers<[1], [0], [0], [1], [0, 0, 1, 1], [], []>} : vector<1x16xf32>, vector<16x512xf32>, vector<1x512xf32> -> vector<1x512xf32>
    %c0_453 = arith.constant 0 : index
    %c0_454 = arith.constant 0 : index
    %277 = vector.load %arg13[%c0_453, %c0_454] : memref<1x512xf32, #tpu.memory_space<vmem>>, vector<1x512xf32>
    %278 = arith.addf %276, %277 : vector<1x512xf32>
    %cst_455 = arith.constant 0.000000e+00 : f32
    %279 = vector.broadcast %cst_455 : f32 to vector<1x512xf32>
    %280 = arith.maximumf %278, %279 : vector<1x512xf32>
    %c0_456 = arith.constant 0 : index
    %c0_457 = arith.constant 0 : index
    %281 = vector.load %arg14[%c0_456, %c0_457] : memref<512x1xf32, #tpu.memory_space<vmem>>, vector<512x1xf32>
    %cst_458 = arith.constant dense<0.000000e+00> : vector<1x1xf32>
    %282 = tpu.matmul %280, %281, %cst_458 {dimension_numbers = #tpu.dot_dimension_numbers<[1], [0], [0], [1], [0, 0, 1, 1], [], []>} : vector<1x512xf32>, vector<512x1xf32>, vector<1x1xf32> -> vector<1x1xf32>
    %c0_459 = arith.constant 0 : index
    %c0_460 = arith.constant 0 : index
    %283 = vector.load %arg15[%c0_459, %c0_460] : memref<1x1xf32, #tpu.memory_space<vmem>>, vector<1x1xf32>
    %284 = arith.addf %282, %283 : vector<1x1xf32>
    %285 = arith.negf %284 : vector<1x1xf32>
    %286 = math.exp %285 : vector<1x1xf32>
    %cst_461 = arith.constant 1.000000e+00 : f32
    %287 = vector.broadcast %cst_461 : f32 to vector<1x1xf32>
    %288 = arith.addf %287, %286 : vector<1x1xf32>
    %289 = arith.divf %287, %288 : vector<1x1xf32>
    %290 = vector.shape_cast %289 : vector<1x1xf32> to vector<1x1x1xf32>
    %291 = vector.shape_cast %290 : vector<1x1x1xf32> to vector<1x1x1xf32>
    %292 = vector.broadcast %291 : vector<1x1x1xf32> to vector<1x1x128xf32>
    %c0_462 = arith.constant 0 : index
    %c0_463 = arith.constant 0 : index
    %c0_464 = arith.constant 0 : index
    %293 = vector.load %arg16[%c0_462, %c0_463, %c0_464] : memref<1x1x128xf32, #tpu.memory_space<vmem>>, vector<1x1x128xf32>
    tpu.vector_store %arg16[%c0_462, %c0_463, %c0_464], %292 {strides = array<i32>} : memref<1x1x128xf32, #tpu.memory_space<vmem>>, vector<1x1x128xf32>,
    return
  }
  func.func @transform_0(%arg0: i32) -> (i32, i32, i32, i32) {
    %c0_i32 = arith.constant 0 : i32
    %c0_i32_0 = arith.constant 0 : i32
    %c0_i32_1 = arith.constant 0 : i32
    %c0_i32_2 = arith.constant 0 : i32
    return %arg0, %c0_i32, %c0_i32_0, %c0_i32_1 : i32, i32, i32, i32
  }
  func.func @transform_1(%arg0: i32) -> (i32, i32) {
    %c0_i32 = arith.constant 0 : i32
    %c0_i32_0 = arith.constant 0 : i32
    %c0_i32_1 = arith.constant 0 : i32
    return %c0_i32, %c0_i32_0 : i32, i32
  }
  func.func @transform_2(%arg0: i32) -> (i32, i32) {
    %c0_i32 = arith.constant 0 : i32
    %c0_i32_0 = arith.constant 0 : i32
    %c0_i32_1 = arith.constant 0 : i32
    return %c0_i32, %c0_i32_0 : i32, i32
  }
  func.func @transform_3(%arg0: i32) -> (i32, i32) {
    %c0_i32 = arith.constant 0 : i32
    %c0_i32_0 = arith.constant 0 : i32
    %c0_i32_1 = arith.constant 0 : i32
    return %c0_i32, %c0_i32_0 : i32, i32
  }
  func.func @transform_4(%arg0: i32) -> (i32, i32) {
    %c0_i32 = arith.constant 0 : i32
    %c0_i32_0 = arith.constant 0 : i32
    %c0_i32_1 = arith.constant 0 : i32
    return %c0_i32, %c0_i32_0 : i32, i32
  }
  func.func @transform_5(%arg0: i32) -> (i32, i32) {
    %c0_i32 = arith.constant 0 : i32
    %c0_i32_0 = arith.constant 0 : i32
    %c0_i32_1 = arith.constant 0 : i32
    return %c0_i32, %c0_i32_0 : i32, i32
  }
  func.func @transform_6(%arg0: i32) -> (i32, i32) {
    %c0_i32 = arith.constant 0 : i32
    %c0_i32_0 = arith.constant 0 : i32
    %c0_i32_1 = arith.constant 0 : i32
    return %c0_i32, %c0_i32_0 : i32, i32
  }
  func.func @transform_7(%arg0: i32) -> (i32, i32) {
    %c0_i32 = arith.constant 0 : i32
    %c0_i32_0 = arith.constant 0 : i32
    %c0_i32_1 = arith.constant 0 : i32
    return %c0_i32, %c0_i32_0 : i32, i32
  }
  func.func @transform_8(%arg0: i32) -> (i32, i32) {
    %c0_i32 = arith.constant 0 : i32
    %c0_i32_0 = arith.constant 0 : i32
    %c0_i32_1 = arith.constant 0 : i32
    return %c0_i32, %c0_i32_0 : i32, i32
  }
  func.func @transform_9(%arg0: i32) -> (i32, i32) {
    %c0_i32 = arith.constant 0 : i32
    %c0_i32_0 = arith.constant 0 : i32
    %c0_i32_1 = arith.constant 0 : i32
    return %c0_i32, %c0_i32_0 : i32, i32
  }
  func.func @transform_10(%arg0: i32) -> (i32, i32) {
    %c0_i32 = arith.constant 0 : i32
    %c0_i32_0 = arith.constant 0 : i32
    %c0_i32_1 = arith.constant 0 : i32
    return %c0_i32, %c0_i32_0 : i32, i32
  }
  func.func @transform_11(%arg0: i32) -> (i32, i32) {
    %c0_i32 = arith.constant 0 : i32
    %c0_i32_0 = arith.constant 0 : i32
    %c0_i32_1 = arith.constant 0 : i32
    return %c0_i32, %c0_i32_0 : i32, i32
  }
  func.func @transform_12(%arg0: i32) -> (i32, i32) {
    %c0_i32 = arith.constant 0 : i32
    %c0_i32_0 = arith.constant 0 : i32
    %c0_i32_1 = arith.constant 0 : i32
    return %c0_i32, %c0_i32_0 : i32, i32
  }
  func.func @transform_13(%arg0: i32) -> (i32, i32) {
    %c0_i32 = arith.constant 0 : i32
    %c0_i32_0 = arith.constant 0 : i32
    %c0_i32_1 = arith.constant 0 : i32
    return %c0_i32, %c0_i32_0 : i32, i32
  }
  func.func @transform_14(%arg0: i32) -> (i32, i32) {
    %c0_i32 = arith.constant 0 : i32
    %c0_i32_0 = arith.constant 0 : i32
    %c0_i32_1 = arith.constant 0 : i32
    return %c0_i32, %c0_i32_0 : i32, i32
  }
  func.func @transform_15(%arg0: i32) -> (i32, i32, i32) {
    %c0_i32 = arith.constant 0 : i32
    %c0_i32_0 = arith.constant 0 : i32
    %c0_i32_1 = arith.constant 0 : i32
    return %arg0, %c0_i32, %c0_i32_0 : i32, i32, i32
  }
}

</mosaic_0001>

<llo_original>
// kernel: neural_network_forward.1
$region0: #{neural_network_forward.1}
  #allocation0 [shape = 'u32[]', space=smem, size = 0x4, offset = 0x4, fixed_abs, tag = 'smem constant byte address 0x4 - core index']
  #allocation1 [shape = 'u32[144,128]{1,0:T(1,128)}', space=vmem, size = 0x12000, scoped, tag = 'internal scratch']
  #allocation2 [shape = 'bf16[55,55,4]{2,1,0:T(8,128)(2,1)}', space=vmem, size = 0xc0800, scoped, tag = 'scratch operand']
  #allocation3 [shape = 'bf16[26,26,8]{2,1,0:T(8,128)(2,1)}', space=vmem, size = 0x34000, scoped, tag = 'scratch operand']
  #allocation4 [shape = 'bf16[12,12,8]{2,1,0:T(8,128)(2,1)}', space=vmem, size = 0xc000, scoped, tag = 'scratch operand']
  #allocation5 [shape = 'bf16[5,5,16]{2,1,0:T(8,128)(2,1)}', space=vmem, size = 0x2800, scoped, tag = 'scratch operand']
  #allocation6 [shape = 'bf16[1,1,16]{2,1,0:T(2,128)(2,1)}', space=vmem, size = 0x200, scoped, tag = 'scratch operand']
  #allocation7 [shape = 'f32[110,4]{1,0:T(8,128)}', space=vmem, size = 0xe000, scoped, tag = 'scratch operand']
  #allocation8 [shape = 'f32[53,8]{1,0:T(8,128)}', space=vmem, size = 0x7000, scoped, tag = 'scratch operand']
  #allocation9 [shape = 'f32[24,8]{1,0:T(8,128)}', space=vmem, size = 0x3000, scoped, tag = 'scratch operand']
  #allocation10 [shape = 'f32[10,16]{1,0:T(8,128)}', space=vmem, size = 0x2000, scoped, tag = 'scratch operand']
  #allocation11 [shape = 'f32[3,16]{1,0:T(4,128)}', space=vmem, size = 0x800, scoped, tag = 'scratch operand']
  #allocation12 [shape = 'f32[1,1]{1,0:T(1,128)S(1)}', space=vmem, size = 0x200, scoped, tag = 'scoped memory for neural_network_forward.1']
  %s0 = inlined_call_operand.vmem [shape: bf16[2,112,112,3], index: 0, kind: input, shape index: {}]
  %s1 = inlined_call_operand.vmem [shape: bf16[27,4], index: 1, kind: input, shape index: {}]
  %s2 = inlined_call_operand.vmem [shape: f32[1,4], index: 2, kind: input, shape index: {}]
  %s3 = inlined_call_operand.vmem [shape: bf16[36,8], index: 3, kind: input, shape index: {}]
  %s4 = inlined_call_operand.vmem [shape: f32[1,8], index: 4, kind: input, shape index: {}]
  %s5 = inlined_call_operand.vmem [shape: bf16[72,8], index: 5, kind: input, shape index: {}]
  %s6 = inlined_call_operand.vmem [shape: f32[1,8], index: 6, kind: input, shape index: {}]
  %s7 = inlined_call_operand.vmem [shape: bf16[72,16], index: 7, kind: input, shape index: {}]
  %s8 = inlined_call_operand.vmem [shape: f32[1,16], index: 8, kind: input, shape index: {}]
  %s9 = inlined_call_operand.vmem [shape: bf16[144,16], index: 9, kind: input, shape index: {}]
  %s10 = inlined_call_operand.vmem [shape: f32[1,16], index: 10, kind: input, shape index: {}]
  %s11 = inlined_call_operand.vmem [shape: f32[16,512], index: 11, kind: input, shape index: {}]
  %s12 = inlined_call_operand.vmem [shape: f32[1,512], index: 12, kind: input, shape index: {}]
  %s13 = inlined_call_operand.vmem [shape: f32[512,1], index: 13, kind: input, shape index: {}]
  %s14 = inlined_call_operand.<no memory space> [shape: f32[1,1], index: 14, kind: input, shape index: {}]
  %s15 = inlined_call_operand.vmem [shape: f32[2,1,128], index: 15, kind: output, shape index: {}]
  %s16 = sld [smem:[#allocation0]]
  $region114: #{neural_network_forward.1} parent=0
    _
  %s18 = ssub.s32 1, %s16
  %s19 = scalar_select 0, %s18, %s16
  %v20 = vstv %s14
  %21 = vst [vmem:[#allocation12] sm:$0x1] %v20
  loop: start=0, step=1, limit=4
  $region2: #{neural_network_forward.1} parent=0 // loop_pre_header
    _
  $region3: #{neural_network_forward.1} parent=0 // loop_header
    %s23 = sphi 0, %s27
    %p24 = scmp.ge.s32.totalorder %s23, 4
    %s33 = sphi 0, %s35
    %s36 = sphi 0, %s33
    %s37 = sphi 0, %s36
    %s53 = sphi 0, %s37
    %s57 = sphi 0, %s57
    %s59 = sphi 0, %s57
    %s60 = sphi 0, %s59
    %s74 = sphi 0, %s60
    %s78 = sphi 0, %s78
    %s80 = sphi 0, %s78
    %s81 = sphi 0, %s80
    %s95 = sphi 0, %s81
    %s99 = sphi 0, %s99
    %s101 = sphi 0, %s99
    %s102 = sphi 0, %s101
    %s116 = sphi 0, %s102
    %s120 = sphi 0, %s120
    %s122 = sphi 0, %s120
    %s123 = sphi 0, %s122
    %s137 = sphi 0, %s123
    %s141 = sphi 0, %s141
    %s143 = sphi 0, %s141
    %s144 = sphi 0, %s143
    %s158 = sphi 0, %s144
    %s162 = sphi 0, %s162
    %s164 = sphi 0, %s162
    %s165 = sphi 0, %s164
    %s179 = sphi 0, %s165
    %s183 = sphi 0, %s183
    %s185 = sphi 0, %s183
    %s186 = sphi 0, %s185
    %s200 = sphi 0, %s186
    %s204 = sphi 0, %s204
    %s206 = sphi 0, %s204
    %s207 = sphi 0, %s206
    %s221 = sphi 0, %s207
    %s225 = sphi 0, %s225
    %s227 = sphi 0, %s225
    %s228 = sphi 0, %s227
    %s242 = sphi 0, %s228
    %s246 = sphi 0, %s246
    %s248 = sphi 0, %s246
    %s249 = sphi 0, %s248
    %s263 = sphi 0, %s249
    %s267 = sphi 0, %s267
    %s269 = sphi 0, %s267
    %s270 = sphi 0, %s269
    %s284 = sphi 0, %s270
    %s288 = sphi 0, %s288
    %s290 = sphi 0, %s288
    %s291 = sphi 0, %s290
    %s305 = sphi 0, %s291
    %s309 = sphi 0, %s309
    %s311 = sphi 0, %s309
    %s312 = sphi 0, %s311
    %s326 = sphi 0, %s312
    %s330 = sphi 0, %s330
    %s332 = sphi 0, %s330
    %s333 = sphi 0, %s332
    %s347 = sphi 0, %s333
    %s353 = sphi 0, %s355
    %s356 = sphi 0, %s353
    %s357 = sphi 0, %s356
    %s373 = sphi 0, %s357
  $region4: #{neural_network_forward.1} parent=0 // loop_header_branch
    %26 = sbr.rel (%p24) target = $region8
  $region5: #{neural_network_forward.1} parent=0 // loop_body
    %s28 = ssub.s32 %s23, 1
    %s29 = ssub.s32 %s23, 2
    %s30 = sadd.s32 %s23, 1
    %s31 = ssub.s32 %s23, %s30
    %p32 = scmp.eq.s32.totalorder %s31, 0
    %s34 = sadd.s32 %s33, 1
    %s35 = scalar_select %p32, %s33, %s34
    %p38 = pneg %p32
    %p39 = scmp.eq.s32.totalorder %s23, 1
    %p40 = por %p38, %p39
    %p41 = scmp.ne.s32.totalorder %s33, %s36
    %p42 = scmp.eq.s32.totalorder %s23, 0
    %p43 = por %p41, %p42
    %p44 = scmp.ne.s32.totalorder %s33, %s36
    %p45 = scmp.eq.s32.totalorder %s28, 1
    %p46 = por %p44, %p45
    %p47 = scmp.ne.s32.totalorder %s36, %s37
    %p48 = scmp.eq.s32.totalorder %s28, 0
    %p49 = por %p47, %p48
    %p50 = scmp.ne.s32.totalorder %s36, %s37
    %p51 = scmp.eq.s32.totalorder %s29, 1
    %p52 = por %p50, %p51
    %p54 = scmp.ne.s32.totalorder %s37, %s53
    %p55 = scmp.eq.s32.totalorder %s29, 0
    %p56 = por %p54, %p55
    %s58 = sadd.s32 %s57, 1
    %p61 = scmp.eq.s32.totalorder %s23, 1
    %p62 = scmp.ne.s32.totalorder %s57, %s59
    %p63 = scmp.eq.s32.totalorder %s23, 0
    %p64 = por %p62, %p63
    %p65 = scmp.ne.s32.totalorder %s57, %s59
    %p66 = scmp.eq.s32.totalorder %s28, 1
    %p67 = por %p65, %p66
    %p68 = scmp.ne.s32.totalorder %s59, %s60
    %p69 = scmp.eq.s32.totalorder %s28, 0
    %p70 = por %p68, %p69
    %p71 = scmp.ne.s32.totalorder %s59, %s60
    %p72 = scmp.eq.s32.totalorder %s29, 1
    %p73 = por %p71, %p72
    %p75 = scmp.ne.s32.totalorder %s60, %s74
    %p76 = scmp.eq.s32.totalorder %s29, 0
    %p77 = por %p75, %p76
    %s79 = sadd.s32 %s78, 1
    %p82 = scmp.eq.s32.totalorder %s23, 1
    %p83 = scmp.ne.s32.totalorder %s78, %s80
    %p84 = scmp.eq.s32.totalorder %s23, 0
    %p85 = por %p83, %p84
    %p86 = scmp.ne.s32.totalorder %s78, %s80
    %p87 = scmp.eq.s32.totalorder %s28, 1
    %p88 = por %p86, %p87
    %p89 = scmp.ne.s32.totalorder %s80, %s81
    %p90 = scmp.eq.s32.totalorder %s28, 0
    %p91 = por %p89, %p90
    %p92 = scmp.ne.s32.totalorder %s80, %s81
    %p93 = scmp.eq.s32.totalorder %s29, 1
    %p94 = por %p92, %p93
    %p96 = scmp.ne.s32.totalorder %s81, %s95
    %p97 = scmp.eq.s32.totalorder %s29, 0
    %p98 = por %p96, %p97
    %s100 = sadd.s32 %s99, 1
    %p103 = scmp.eq.s32.totalorder %s23, 1
    %p104 = scmp.ne.s32.totalorder %s99, %s101
    %p105 = scmp.eq.s32.totalorder %s23, 0
    %p106 = por %p104, %p105
    %p107 = scmp.ne.s32.totalorder %s99, %s101
    %p108 = scmp.eq.s32.totalorder %s28, 1
    %p109 = por %p107, %p108
    %p110 = scmp.ne.s32.totalorder %s101, %s102
    %p111 = scmp.eq.s32.totalorder %s28, 0
    %p112 = por %p110, %p111
    %p113 = scmp.ne.s32.totalorder %s101, %s102
    %p114 = scmp.eq.s32.totalorder %s29, 1
    %p115 = por %p113, %p114
    %p117 = scmp.ne.s32.totalorder %s102, %s116
    %p118 = scmp.eq.s32.totalorder %s29, 0
    %p119 = por %p117, %p118
    %s121 = sadd.s32 %s120, 1
    %p124 = scmp.eq.s32.totalorder %s23, 1
    %p125 = scmp.ne.s32.totalorder %s120, %s122
    %p126 = scmp.eq.s32.totalorder %s23, 0
    %p127 = por %p125, %p126
    %p128 = scmp.ne.s32.totalorder %s120, %s122
    %p129 = scmp.eq.s32.totalorder %s28, 1
    %p130 = por %p128, %p129
    %p131 = scmp.ne.s32.totalorder %s122, %s123
    %p132 = scmp.eq.s32.totalorder %s28, 0
    %p133 = por %p131, %p132
    %p134 = scmp.ne.s32.totalorder %s122, %s123
    %p135 = scmp.eq.s32.totalorder %s29, 1
    %p136 = por %p134, %p135
    %p138 = scmp.ne.s32.totalorder %s123, %s137
    %p139 = scmp.eq.s32.totalorder %s29, 0
    %p140 = por %p138, %p139
    %s142 = sadd.s32 %s141, 1
    %p145 = scmp.eq.s32.totalorder %s23, 1
    %p146 = scmp.ne.s32.totalorder %s141, %s143
    %p147 = scmp.eq.s32.totalorder %s23, 0
    %p148 = por %p146, %p147
    %p149 = scmp.ne.s32.totalorder %s141, %s143
    %p150 = scmp.eq.s32.totalorder %s28, 1
    %p151 = por %p149, %p150
    %p152 = scmp.ne.s32.totalorder %s143, %s144
    %p153 = scmp.eq.s32.totalorder %s28, 0
    %p154 = por %p152, %p153
    %p155 = scmp.ne.s32.totalorder %s143, %s144
    %p156 = scmp.eq.s32.totalorder %s29, 1
    %p157 = por %p155, %p156
    %p159 = scmp.ne.s32.totalorder %s144, %s158
    %p160 = scmp.eq.s32.totalorder %s29, 0
    %p161 = por %p159, %p160
    %s163 = sadd.s32 %s162, 1
    %p166 = scmp.eq.s32.totalorder %s23, 1
    %p167 = scmp.ne.s32.totalorder %s162, %s164
    %p168 = scmp.eq.s32.totalorder %s23, 0
    %p169 = por %p167, %p168
    %p170 = scmp.ne.s32.totalorder %s162, %s164
    %p171 = scmp.eq.s32.totalorder %s28, 1
    %p172 = por %p170, %p171
    %p173 = scmp.ne.s32.totalorder %s164, %s165
    %p174 = scmp.eq.s32.totalorder %s28, 0
    %p175 = por %p173, %p174
    %p176 = scmp.ne.s32.totalorder %s164, %s165
    %p177 = scmp.eq.s32.totalorder %s29, 1
    %p178 = por %p176, %p177
    %p180 = scmp.ne.s32.totalorder %s165, %s179
    %p181 = scmp.eq.s32.totalorder %s29, 0
    %p182 = por %p180, %p181
    %s184 = sadd.s32 %s183, 1
    %p187 = scmp.eq.s32.totalorder %s23, 1
    %p188 = scmp.ne.s32.totalorder %s183, %s185
    %p189 = scmp.eq.s32.totalorder %s23, 0
    %p190 = por %p188, %p189
    %p191 = scmp.ne.s32.totalorder %s183, %s185
    %p192 = scmp.eq.s32.totalorder %s28, 1
    %p193 = por %p191, %p192
    %p194 = scmp.ne.s32.totalorder %s185, %s186
    %p195 = scmp.eq.s32.totalorder %s28, 0
    %p196 = por %p194, %p195
    %p197 = scmp.ne.s32.totalorder %s185, %s186
    %p198 = scmp.eq.s32.totalorder %s29, 1
    %p199 = por %p197, %p198
    %p201 = scmp.ne.s32.totalorder %s186, %s200
    %p202 = scmp.eq.s32.totalorder %s29, 0
    %p203 = por %p201, %p202
    %s205 = sadd.s32 %s204, 1
    %p208 = scmp.eq.s32.totalorder %s23, 1
    %p209 = scmp.ne.s32.totalorder %s204, %s206
    %p210 = scmp.eq.s32.totalorder %s23, 0
    %p211 = por %p209, %p210
    %p212 = scmp.ne.s32.totalorder %s204, %s206
    %p213 = scmp.eq.s32.totalorder %s28, 1
    %p214 = por %p212, %p213
    %p215 = scmp.ne.s32.totalorder %s206, %s207
    %p216 = scmp.eq.s32.totalorder %s28, 0
    %p217 = por %p215, %p216
    %p218 = scmp.ne.s32.totalorder %s206, %s207
    %p219 = scmp.eq.s32.totalorder %s29, 1
    %p220 = por %p218, %p219
    %p222 = scmp.ne.s32.totalorder %s207, %s221
    %p223 = scmp.eq.s32.totalorder %s29, 0
    %p224 = por %p222, %p223
    %s226 = sadd.s32 %s225, 1
    %p229 = scmp.eq.s32.totalorder %s23, 1
    %p230 = scmp.ne.s32.totalorder %s225, %s227
    %p231 = scmp.eq.s32.totalorder %s23, 0
    %p232 = por %p230, %p231
    %p233 = scmp.ne.s32.totalorder %s225, %s227
    %p234 = scmp.eq.s32.totalorder %s28, 1
    %p235 = por %p233, %p234
    %p236 = scmp.ne.s32.totalorder %s227, %s228
    %p237 = scmp.eq.s32.totalorder %s28, 0
    %p238 = por %p236, %p237
    %p239 = scmp.ne.s32.totalorder %s227, %s228
    %p240 = scmp.eq.s32.totalorder %s29, 1
    %p241 = por %p239, %p240
    %p243 = scmp.ne.s32.totalorder %s228, %s242
    %p244 = scmp.eq.s32.totalorder %s29, 0
    %p245 = por %p243, %p244
    %s247 = sadd.s32 %s246, 1
    %p250 = scmp.eq.s32.totalorder %s23, 1
    %p251 = scmp.ne.s32.totalorder %s246, %s248
    %p252 = scmp.eq.s32.totalorder %s23, 0
    %p253 = por %p251, %p252
    %p254 = scmp.ne.s32.totalorder %s246, %s248
    %p255 = scmp.eq.s32.totalorder %s28, 1
    %p256 = por %p254, %p255
    %p257 = scmp.ne.s32.totalorder %s248, %s249
    %p258 = scmp.eq.s32.totalorder %s28, 0
    %p259 = por %p257, %p258
    %p260 = scmp.ne.s32.totalorder %s248, %s249
    %p261 = scmp.eq.s32.totalorder %s29, 1
    %p262 = por %p260, %p261
    %p264 = scmp.ne.s32.totalorder %s249, %s263
    %p265 = scmp.eq.s32.totalorder %s29, 0
    %p266 = por %p264, %p265
    %s268 = sadd.s32 %s267, 1
    %p271 = scmp.eq.s32.totalorder %s23, 1
    %p272 = scmp.ne.s32.totalorder %s267, %s269
    %p273 = scmp.eq.s32.totalorder %s23, 0
    %p274 = por %p272, %p273
    %p275 = scmp.ne.s32.totalorder %s267, %s269
    %p276 = scmp.eq.s32.totalorder %s28, 1
    %p277 = por %p275, %p276
    %p278 = scmp.ne.s32.totalorder %s269, %s270
    %p279 = scmp.eq.s32.totalorder %s28, 0
    %p280 = por %p278, %p279
    %p281 = scmp.ne.s32.totalorder %s269, %s270
    %p282 = scmp.eq.s32.totalorder %s29, 1
    %p283 = por %p281, %p282
    %p285 = scmp.ne.s32.totalorder %s270, %s284
    %p286 = scmp.eq.s32.totalorder %s29, 0
    %p287 = por %p285, %p286
    %s289 = sadd.s32 %s288, 1
    %p292 = scmp.eq.s32.totalorder %s23, 1
    %p293 = scmp.ne.s32.totalorder %s288, %s290
    %p294 = scmp.eq.s32.totalorder %s23, 0
    %p295 = por %p293, %p294
    %p296 = scmp.ne.s32.totalorder %s288, %s290
    %p297 = scmp.eq.s32.totalorder %s28, 1
    %p298 = por %p296, %p297
    %p299 = scmp.ne.s32.totalorder %s290, %s291
    %p300 = scmp.eq.s32.totalorder %s28, 0
    %p301 = por %p299, %p300
    %p302 = scmp.ne.s32.totalorder %s290, %s291
    %p303 = scmp.eq.s32.totalorder %s29, 1
    %p304 = por %p302, %p303
    %p306 = scmp.ne.s32.totalorder %s291, %s305
    %p307 = scmp.eq.s32.totalorder %s29, 0
    %p308 = por %p306, %p307
    %s310 = sadd.s32 %s309, 1
    %p313 = scmp.eq.s32.totalorder %s23, 1
    %p314 = scmp.ne.s32.totalorder %s309, %s311
    %p315 = scmp.eq.s32.totalorder %s23, 0
    %p316 = por %p314, %p315
    %p317 = scmp.ne.s32.totalorder %s309, %s311
    %p318 = scmp.eq.s32.totalorder %s28, 1
    %p319 = por %p317, %p318
    %p320 = scmp.ne.s32.totalorder %s311, %s312
    %p321 = scmp.eq.s32.totalorder %s28, 0
    %p322 = por %p320, %p321
    %p323 = scmp.ne.s32.totalorder %s311, %s312
    %p324 = scmp.eq.s32.totalorder %s29, 1
    %p325 = por %p323, %p324
    %p327 = scmp.ne.s32.totalorder %s312, %s326
    %p328 = scmp.eq.s32.totalorder %s29, 0
    %p329 = por %p327, %p328
    %s331 = sadd.s32 %s330, 1
    %p334 = scmp.eq.s32.totalorder %s23, 1
    %p335 = scmp.ne.s32.totalorder %s330, %s332
    %p336 = scmp.eq.s32.totalorder %s23, 0
    %p337 = por %p335, %p336
    %p338 = scmp.ne.s32.totalorder %s330, %s332
    %p339 = scmp.eq.s32.totalorder %s28, 1
    %p340 = por %p338, %p339
    %p341 = scmp.ne.s32.totalorder %s332, %s333
    %p342 = scmp.eq.s32.totalorder %s28, 0
    %p343 = por %p341, %p342
    %p344 = scmp.ne.s32.totalorder %s332, %s333
    %p345 = scmp.eq.s32.totalorder %s29, 1
    %p346 = por %p344, %p345
    %p348 = scmp.ne.s32.totalorder %s333, %s347
    %p349 = scmp.eq.s32.totalorder %s29, 0
    %p350 = por %p348, %p349
    %s351 = ssub.s32 %s23, %s30
    %p352 = scmp.eq.s32.totalorder %s351, 0
    %s354 = sadd.s32 %s353, 1
    %s355 = scalar_select %p352, %s353, %s354
    %p358 = pneg %p352
    %p359 = scmp.eq.s32.totalorder %s23, 1
    %p360 = por %p358, %p359
    %p361 = scmp.ne.s32.totalorder %s353, %s356
    %p362 = scmp.eq.s32.totalorder %s23, 0
    %p363 = por %p361, %p362
    %p364 = scmp.ne.s32.totalorder %s353, %s356
    %p365 = scmp.eq.s32.totalorder %s28, 1
    %p366 = por %p364, %p365
    %p367 = scmp.ne.s32.totalorder %s356, %s357
    %p368 = scmp.eq.s32.totalorder %s28, 0
    %p369 = por %p367, %p368
    %p370 = scmp.ne.s32.totalorder %s356, %s357
    %p371 = scmp.eq.s32.totalorder %s29, 1
    %p372 = por %p370, %p371
    %p374 = scmp.ne.s32.totalorder %s357, %s373
    %p375 = scmp.eq.s32.totalorder %s29, 0
    %p376 = por %p374, %p375
    %p377 = scmp.le.s32.totalorder 1, %s23
    %p378 = scmp.lt.s32.totalorder %s23, 3
    %p379 = pnand %p377, %p378
    %p380 = pneg %p379
    // Predicated region
    $region9: #{neural_network_forward.1} parent=5 // pred_check
      _
    $region10: #{neural_network_forward.1} parent=5 // pred_check_branch
      %382 = sbr.rel (%p379) target = $region12
    $region11: #{neural_network_forward.1} parent=5 // pred_region
      %s383 = ssub.s32 %s23, 1
      // Predicated region
      $region13: #{neural_network_forward.1} parent=11 // pred_check
        %p384 = pneg %p70
      $region14: #{neural_network_forward.1} parent=11 // pred_check_branch
        %386 = sbr.rel (%p384) target = $region16
      $region15: #{neural_network_forward.1} parent=11 // pred_region
        _
      $region16: #{neural_network_forward.1} parent=11 // pred_fallthru
        _
      // Predicated region
      $region17: #{neural_network_forward.1} parent=11 // pred_check
        %p387 = pneg %p91
      $region18: #{neural_network_forward.1} parent=11 // pred_check_branch
        %389 = sbr.rel (%p387) target = $region20
      $region19: #{neural_network_forward.1} parent=11 // pred_region
        _
      $region20: #{neural_network_forward.1} parent=11 // pred_fallthru
        _
      // Predicated region
      $region21: #{neural_network_forward.1} parent=11 // pred_check
        %p390 = pneg %p112
      $region22: #{neural_network_forward.1} parent=11 // pred_check_branch
        %392 = sbr.rel (%p390) target = $region24
      $region23: #{neural_network_forward.1} parent=11 // pred_region
        _
      $region24: #{neural_network_forward.1} parent=11 // pred_fallthru
        _
      // Predicated region
      $region25: #{neural_network_forward.1} parent=11 // pred_check
        %p393 = pneg %p133
      $region26: #{neural_network_forward.1} parent=11 // pred_check_branch
        %395 = sbr.rel (%p393) target = $region28
      $region27: #{neural_network_forward.1} parent=11 // pred_region
        _
      $region28: #{neural_network_forward.1} parent=11 // pred_fallthru
        _
      // Predicated region
      $region29: #{neural_network_forward.1} parent=11 // pred_check
        %p396 = pneg %p154
      $region30: #{neural_network_forward.1} parent=11 // pred_check_branch
        %398 = sbr.rel (%p396) target = $region32
      $region31: #{neural_network_forward.1} parent=11 // pred_region
        _
      $region32: #{neural_network_forward.1} parent=11 // pred_fallthru
        _
      // Predicated region
      $region33: #{neural_network_forward.1} parent=11 // pred_check
        %p399 = pneg %p175
      $region34: #{neural_network_forward.1} parent=11 // pred_check_branch
        %401 = sbr.rel (%p399) target = $region36
      $region35: #{neural_network_forward.1} parent=11 // pred_region
        _
      $region36: #{neural_network_forward.1} parent=11 // pred_fallthru
        _
      // Predicated region
      $region37: #{neural_network_forward.1} parent=11 // pred_check
        %p402 = pneg %p196
      $region38: #{neural_network_forward.1} parent=11 // pred_check_branch
        %404 = sbr.rel (%p402) target = $region40
      $region39: #{neural_network_forward.1} parent=11 // pred_region
        _
      $region40: #{neural_network_forward.1} parent=11 // pred_fallthru
        _
      // Predicated region
      $region41: #{neural_network_forward.1} parent=11 // pred_check
        %p405 = pneg %p217
      $region42: #{neural_network_forward.1} parent=11 // pred_check_branch
        %407 = sbr.rel (%p405) target = $region44
      $region43: #{neural_network_forward.1} parent=11 // pred_region
        _
      $region44: #{neural_network_forward.1} parent=11 // pred_fallthru
        _
      // Predicated region
      $region45: #{neural_network_forward.1} parent=11 // pred_check
        %p408 = pneg %p238
      $region46: #{neural_network_forward.1} parent=11 // pred_check_branch
        %410 = sbr.rel (%p408) target = $region48
      $region47: #{neural_network_forward.1} parent=11 // pred_region
        _
      $region48: #{neural_network_forward.1} parent=11 // pred_fallthru
        _
      // Predicated region
      $region49: #{neural_network_forward.1} parent=11 // pred_check
        %p411 = pneg %p259
      $region50: #{neural_network_forward.1} parent=11 // pred_check_branch
        %413 = sbr.rel (%p411) target = $region52
      $region51: #{neural_network_forward.1} parent=11 // pred_region
        _
      $region52: #{neural_network_forward.1} parent=11 // pred_fallthru
        _
      // Predicated region
      $region53: #{neural_network_forward.1} parent=11 // pred_check
        %p414 = pneg %p280
      $region54: #{neural_network_forward.1} parent=11 // pred_check_branch
        %416 = sbr.rel (%p414) target = $region56
      $region55: #{neural_network_forward.1} parent=11 // pred_region
        _
      $region56: #{neural_network_forward.1} parent=11 // pred_fallthru
        _
      // Predicated region
      $region57: #{neural_network_forward.1} parent=11 // pred_check
        %p417 = pneg %p301
      $region58: #{neural_network_forward.1} parent=11 // pred_check_branch
        %419 = sbr.rel (%p417) target = $region60
      $region59: #{neural_network_forward.1} parent=11 // pred_region
        _
      $region60: #{neural_network_forward.1} parent=11 // pred_fallthru
        _
      // Predicated region
      $region61: #{neural_network_forward.1} parent=11 // pred_check
        %p420 = pneg %p322
      $region62: #{neural_network_forward.1} parent=11 // pred_check_branch
        %422 = sbr.rel (%p420) target = $region64
      $region63: #{neural_network_forward.1} parent=11 // pred_region
        _
      $region64: #{neural_network_forward.1} parent=11 // pred_fallthru
        _
      // Predicated region
      $region65: #{neural_network_forward.1} parent=11 // pred_check
        %p423 = pneg %p343
      $region66: #{neural_network_forward.1} parent=11 // pred_check_branch
        %425 = sbr.rel (%p423) target = $region68
      $region67: #{neural_network_forward.1} parent=11 // pred_region
        _
      $region68: #{neural_network_forward.1} parent=11 // pred_fallthru
        _
    $region12: #{neural_network_forward.1} parent=5 // pred_fallthru
      _
    %p426 = scmp.lt.s32.totalorder %s23, 2
    // Predicated region
    $region69: #{neural_network_forward.1} parent=5 // pred_check
      %p427 = pneg %p426
    $region70: #{neural_network_forward.1} parent=5 // pred_check_branch
      %429 = sbr.rel (%p427) target = $region72
    $region71: #{neural_network_forward.1} parent=5 // pred_region
      // Predicated region
      $region73: #{neural_network_forward.1} parent=71 // pred_check
        %p430 = pneg %p43
      $region74: #{neural_network_forward.1} parent=71 // pred_check_branch
        %432 = sbr.rel (%p430) target = $region76
      $region75: #{neural_network_forward.1} parent=71 // pred_region
        %p433 = scmp.lt.s32.totalorder %s23, 1
        %s434 = scalar_select %p433, %s23, 1
        %s435 = smul.addr %s434, 1568
        %s436 = smul.addr %s435, 4
        %s437 = scalar_lea.vmem %s0, %s436
      $region76: #{neural_network_forward.1} parent=71 // pred_fallthru
        _
    $region72: #{neural_network_forward.1} parent=5 // pred_fallthru
      _
    %p438 = scmp.le.s32.totalorder 1, %s23
    %p439 = scmp.lt.s32.totalorder %s23, 3
    %p440 = pnand %p438, %p439
    %p441 = pneg %p440
    // Predicated region
    $region77: #{neural_network_forward.1} parent=5 // pred_check
      _
    $region78: #{neural_network_forward.1} parent=5 // pred_check_branch
      %443 = sbr.rel (%p440) target = $region80
    $region79: #{neural_network_forward.1} parent=5 // pred_region
      %s444 = ssub.s32 %s23, 1
      %p445 = scmp.lt.s32.totalorder %s28, 1
      %s446 = scalar_select %p445, %s28, 1
      %s447 = smul.addr %s446, 1568
      %s448 = smul.addr %s447, 4
      %s449 = scalar_lea.vmem %s0, %s448
      %p450 = pneg %p49
      %p451 = pneg %p46
      %p452 = pneg %p70
      %p453 = pneg %p67
      %p454 = pneg %p91
      %p455 = pneg %p88
      %p456 = pneg %p112
      %p457 = pneg %p109
      %p458 = pneg %p133
      %p459 = pneg %p130
      %p460 = pneg %p154
      %p461 = pneg %p151
      %p462 = pneg %p175
      %p463 = pneg %p172
      %p464 = pneg %p196
      %p465 = pneg %p193
      %p466 = pneg %p217
      %p467 = pneg %p214
      %p468 = pneg %p238
      %p469 = pneg %p235
      %p470 = pneg %p259
      %p471 = pneg %p256
      %p472 = pneg %p280
      %p473 = pneg %p277
      %p474 = pneg %p301
      %p475 = pneg %p298
      %p476 = pneg %p322
      %p477 = pneg %p319
      %p478 = pneg %p343
      %p479 = pneg %p340
      %p480 = pneg %p369
      %p481 = pneg %p366
      %p482 = scmp.lt.s32.totalorder %s28, 1
      %s483 = scalar_select %p482, %s28, 1
      %s484 = scalar_lea.vmem %s15, %s483
      %p485 = scmp.lt.s32.totalorder %s28, 1
      %s486 = scalar_select %p485, %s28, 1
      %s487 = smul.addr %s486, 1568
      %s488 = smul.addr %s487, 4
      %s489 = scalar_lea.vmem %s0, %s488
      %p490 = scmp.lt.s32.totalorder %s28, 1
      %s491 = scalar_select %p490, %s28, 1
      %s492 = scalar_lea.vmem %s15, %s491
      %v494 = vld [vmem:[%s1] sm:$0xf]
      %v495 = vld [vmem:[%s1 + $0x4] sm:$0xf]
      %v496 = vld [vmem:[%s1 + $0x8] sm:$0xf]
      %v497 = vld [vmem:[%s1 + $0xc] sm:$0x3]
      %v498 = vld [vmem:[%s2] sm:$0x1]
      loop: start=0, step=1, limit=55
      $region81: #{neural_network_forward.1} parent=79 // loop_pre_header
        _
      $region82: #{neural_network_forward.1} parent=79 // loop_header
        %s500 = sphi 0, %s504
        %p501 = scmp.ge.s32.totalorder %s500, 55
      $region83: #{neural_network_forward.1} parent=79 // loop_header_branch
        %503 = sbr.rel (%p501) target = $region87
      $region84: #{neural_network_forward.1} parent=79 // loop_body
        %s505 = smul.u32 %s500, 2
        %s506 = smul.u32 %s505, 14
        %s507 = smul.addr %s506, 4
        %s508 = scalar_lea.vmem %s489, %s507
        %v509 = vld [vmem:[%s508] sm:$0xf]
        %v510 = vld [vmem:[%s508 + $0x4] sm:$0xf]
        %v511 = vld [vmem:[%s508 + $0x8] sm:$0xf]
        %v512 = vld [vmem:[%s508 + $0xc] sm:$0xf]
        %v513 = vld [vmem:[%s508 + $0x10] sm:$0xf]
        %v514 = vld [vmem:[%s508 + $0x14] sm:$0xf]
        %v515 = vld [vmem:[%s508 + $0x18] sm:$0xf]
        %v516 = vld [vmem:[%s508 + $0x1c] sm:$0xf]
        %v517 = vld [vmem:[%s508 + $0x20] sm:$0xf]
        %v518 = vld [vmem:[%s508 + $0x24] sm:$0xf]
        %v519 = vld [vmem:[%s508 + $0x28] sm:$0xf]
        %v520 = vld [vmem:[%s508 + $0x2c] sm:$0xf]
        %v521 = vld [vmem:[%s508 + $0x30] sm:$0xf]
        %v522 = vld [vmem:[%s508 + $0x34] sm:$0x7]
        %v523 = vld [vmem:[%s508 + $0x34] sm:$0xf]
        %v524 = vld [vmem:[%s508] sm:$0xe]
        %s525 = sadd.s32 %s505, 1
        %s526 = smul.u32 %s525, 14
        %s527 = smul.addr %s526, 4
        %s528 = scalar_lea.vmem %s489, %s527
        %v529 = vld [vmem:[%s528] sm:$0xf]
        %v530 = vld [vmem:[%s528 + $0x4] sm:$0xf]
        %v531 = vld [vmem:[%s528 + $0x8] sm:$0xf]
        %v532 = vld [vmem:[%s528 + $0xc] sm:$0xf]
        %v533 = vld [vmem:[%s528 + $0x10] sm:$0xf]
        %v534 = vld [vmem:[%s528 + $0x14] sm:$0xf]
        %v535 = vld [vmem:[%s528 + $0x18] sm:$0xf]
        %v536 = vld [vmem:[%s528 + $0x1c] sm:$0xf]
        %v537 = vld [vmem:[%s528 + $0x20] sm:$0xf]
        %v538 = vld [vmem:[%s528 + $0x24] sm:$0xf]
        %v539 = vld [vmem:[%s528 + $0x28] sm:$0xf]
        %v540 = vld [vmem:[%s528 + $0x2c] sm:$0xf]
        %v541 = vld [vmem:[%s528 + $0x30] sm:$0xf]
        %v542 = vld [vmem:[%s528 + $0x34] sm:$0x7]
        %v543 = vld [vmem:[%s528 + $0x34] sm:$0xf]
        %v544 = vld [vmem:[%s528] sm:$0xe]
        %s545 = sadd.s32 %s505, 2
        %s546 = smul.u32 %s545, 14
        %s547 = smul.addr %s546, 4
        %s548 = scalar_lea.vmem %s489, %s547
        %v549 = vld [vmem:[%s548] sm:$0xf]
        %v550 = vld [vmem:[%s548 + $0x4] sm:$0xf]
        %v551 = vld [vmem:[%s548 + $0x8] sm:$0xf]
        %v552 = vld [vmem:[%s548 + $0xc] sm:$0xf]
        %v553 = vld [vmem:[%s548 + $0x10] sm:$0xf]
        %v554 = vld [vmem:[%s548 + $0x14] sm:$0xf]
        %v555 = vld [vmem:[%s548 + $0x18] sm:$0xf]
        %v556 = vld [vmem:[%s548 + $0x1c] sm:$0xf]
        %v557 = vld [vmem:[%s548 + $0x20] sm:$0xf]
        %v558 = vld [vmem:[%s548 + $0x24] sm:$0xf]
        %v559 = vld [vmem:[%s548 + $0x28] sm:$0xf]
        %v560 = vld [vmem:[%s548 + $0x2c] sm:$0xf]
        %v561 = vld [vmem:[%s548 + $0x30] sm:$0xf]
        %v562 = vld [vmem:[%s548 + $0x34] sm:$0x7]
        %v563 = vld [vmem:[%s548 + $0x34] sm:$0xf]
        %v564 = vld [vmem:[%s548] sm:$0xe]
        %v579 = vunpack.c.l.b16 %v509
        %v580 = vunpack.c.l.b16 %v510
        %v581 = vunpack.c.l.b16 %v511
        %v582 = vunpack.c.l.b16 %v512
        %v583 = vunpack.c.l.b16 %v513
        %v584 = vunpack.c.l.b16 %v514
        %v585 = vunpack.c.l.b16 %v515
        %v586 = vunpack.c.l.b16 %v516
        %v587 = vunpack.c.l.b16 %v517
        %v588 = vunpack.c.l.b16 %v518
        %v589 = vunpack.c.l.b16 %v519
        %v590 = vunpack.c.l.b16 %v520
        %v591 = vunpack.c.l.b16 %v521
        %v592 = vunpack.c.l.b16 %v522
        %v593 = vpack.c.b16 %v580, %v579
        %v594 = vpack.c.b16 %v582, %v581
        %v595 = vpack.c.b16 %v584, %v583
        %v596 = vpack.c.b16 %v586, %v585
        %v597 = vpack.c.b16 %v588, %v587
        %v598 = vpack.c.b16 %v590, %v589
        %v599 = vpack.c.b16 %v592, %v591
        %v601 = vunpack.c.l.b16 %v523
        %v602 = vpack.c.b16 %v601, %v591
        %vm603 = vsmask.f32 7424
        %v605 = vshrl.u32 %v593, 16
        %v607 = vshll.u32 %v593, 16
        %v609 = vrot.slane %v607, 1
        %v610 = vor.u32 %v605, %v609
        %v612 = vshll.u32 %v594, 16
        %v614 = vrot.slane %v612, 1
        %v615 = vsel %vm603, %v610, %v614
        %v616 = vshrl.u32 %v594, 16
        %v618 = vor.u32 %v616, %v614
        %v620 = vshll.u32 %v595, 16
        %v622 = vrot.slane %v620, 1
        %v623 = vsel %vm603, %v618, %v622
        %v624 = vshrl.u32 %v595, 16
        %v626 = vor.u32 %v624, %v622
        %v628 = vshll.u32 %v596, 16
        %v630 = vrot.slane %v628, 1
        %v631 = vsel %vm603, %v626, %v630
        %v632 = vshrl.u32 %v596, 16
        %v634 = vor.u32 %v632, %v630
        %v636 = vshll.u32 %v597, 16
        %v638 = vrot.slane %v636, 1
        %v639 = vsel %vm603, %v634, %v638
        %v640 = vshrl.u32 %v597, 16
        %v642 = vor.u32 %v640, %v638
        %v644 = vshll.u32 %v598, 16
        %v646 = vrot.slane %v644, 1
        %v647 = vsel %vm603, %v642, %v646
        %v648 = vshrl.u32 %v598, 16
        %v650 = vor.u32 %v648, %v646
        %v652 = vshll.u32 %v602, 16
        %v654 = vrot.slane %v652, 1
        %v655 = vsel %vm603, %v650, %v654
        %v656 = vshrl.u32 %v602, 16
        %v658 = vor.u32 %v656, %v654
        %659 = vrot.lane.b32.xlu0 %v615, 3
        %v660 = vpop.permute.xlu0 %659
        %661 = vrot.lane.b32.xlu0 %v623, 3
        %v662 = vpop.permute.xlu0 %661
        %663 = vrot.lane.b32.xlu0 %v631, 3
        %v664 = vpop.permute.xlu0 %663
        %665 = vrot.lane.b32.xlu0 %v639, 3
        %v666 = vpop.permute.xlu0 %665
        %667 = vrot.lane.b32.xlu0 %v647, 3
        %v668 = vpop.permute.xlu0 %667
        %669 = vrot.lane.b32.xlu0 %v655, 3
        %v670 = vpop.permute.xlu0 %669
        %671 = vrot.lane.b32.xlu0 %v658, 3
        %v672 = vpop.permute.xlu0 %671
        %v674 = vunpack.c.l.b16 %v524
        %v675 = vpack.c.b16 %v580, %v674
        %vm676 = vcmask 1046528
        %v677 = vrot.slane %v675, 1
        %v678 = vrot.slane %v594, 1
        %v679 = vsel %vm676, %v677, %v678
        %v680 = vrot.slane %v595, 1
        %v681 = vsel %vm676, %v678, %v680
        %v682 = vrot.slane %v596, 1
        %v683 = vsel %vm676, %v680, %v682
        %v684 = vrot.slane %v597, 1
        %v685 = vsel %vm676, %v682, %v684
        %v686 = vrot.slane %v598, 1
        %v687 = vsel %vm676, %v684, %v686
        %v688 = vrot.slane %v602, 1
        %v689 = vsel %vm676, %v686, %v688
        %690 = vrot.lane.b32.xlu0 %v679, 6
        %v691 = vpop.permute.xlu0 %690
        %692 = vrot.lane.b32.xlu0 %v681, 6
        %v693 = vpop.permute.xlu0 %692
        %694 = vrot.lane.b32.xlu0 %v683, 6
        %v695 = vpop.permute.xlu0 %694
        %696 = vrot.lane.b32.xlu0 %v685, 6
        %v697 = vpop.permute.xlu0 %696
        %698 = vrot.lane.b32.xlu0 %v687, 6
        %v699 = vpop.permute.xlu0 %698
        %700 = vrot.lane.b32.xlu0 %v689, 6
        %v701 = vpop.permute.xlu0 %700
        %702 = vrot.lane.b32.xlu0 %v688, 6
        %v703 = vpop.permute.xlu0 %702
        %v718 = vunpack.c.l.b16 %v529
        %v719 = vunpack.c.l.b16 %v530
        %v720 = vunpack.c.l.b16 %v531
        %v721 = vunpack.c.l.b16 %v532
        %v722 = vunpack.c.l.b16 %v533
        %v723 = vunpack.c.l.b16 %v534
        %v724 = vunpack.c.l.b16 %v535
        %v725 = vunpack.c.l.b16 %v536
        %v726 = vunpack.c.l.b16 %v537
        %v727 = vunpack.c.l.b16 %v538
        %v728 = vunpack.c.l.b16 %v539
        %v729 = vunpack.c.l.b16 %v540
        %v730 = vunpack.c.l.b16 %v541
        %v731 = vunpack.c.l.b16 %v542
        %v732 = vpack.c.b16 %v719, %v718
        %v733 = vpack.c.b16 %v721, %v720
        %v734 = vpack.c.b16 %v723, %v722
        %v735 = vpack.c.b16 %v725, %v724
        %v736 = vpack.c.b16 %v727, %v726
        %v737 = vpack.c.b16 %v729, %v728
        %v738 = vpack.c.b16 %v731, %v730
        %739 = vrot.lane.b32.xlu0 %v732, 9
        %v740 = vpop.permute.xlu0 %739
        %741 = vrot.lane.b32.xlu0 %v733, 9
        %v742 = vpop.permute.xlu0 %741
        %743 = vrot.lane.b32.xlu0 %v734, 9
        %v744 = vpop.permute.xlu0 %743
        %745 = vrot.lane.b32.xlu0 %v735, 9
        %v746 = vpop.permute.xlu0 %745
        %747 = vrot.lane.b32.xlu0 %v736, 9
        %v748 = vpop.permute.xlu0 %747
        %749 = vrot.lane.b32.xlu0 %v737, 9
        %v750 = vpop.permute.xlu0 %749
        %751 = vrot.lane.b32.xlu0 %v738, 9
        %v752 = vpop.permute.xlu0 %751
        %v754 = vunpack.c.l.b16 %v543
        %v755 = vpack.c.b16 %v754, %v730
        %v757 = vshrl.u32 %v732, 16
        %v759 = vshll.u32 %v732, 16
        %v761 = vrot.slane %v759, 1
        %v762 = vor.u32 %v757, %v761
        %v764 = vshll.u32 %v733, 16
        %v766 = vrot.slane %v764, 1
        %v767 = vsel %vm603, %v762, %v766
        %v768 = vshrl.u32 %v733, 16
        %v770 = vor.u32 %v768, %v766
        %v772 = vshll.u32 %v734, 16
        %v774 = vrot.slane %v772, 1
        %v775 = vsel %vm603, %v770, %v774
        %v776 = vshrl.u32 %v734, 16
        %v778 = vor.u32 %v776, %v774
        %v780 = vshll.u32 %v735, 16
        %v782 = vrot.slane %v780, 1
        %v783 = vsel %vm603, %v778, %v782
        %v784 = vshrl.u32 %v735, 16
        %v786 = vor.u32 %v784, %v782
        %v788 = vshll.u32 %v736, 16
        %v790 = vrot.slane %v788, 1
        %v791 = vsel %vm603, %v786, %v790
        %v792 = vshrl.u32 %v736, 16
        %v794 = vor.u32 %v792, %v790
        %v796 = vshll.u32 %v737, 16
        %v798 = vrot.slane %v796, 1
        %v799 = vsel %vm603, %v794, %v798
        %v800 = vshrl.u32 %v737, 16
        %v802 = vor.u32 %v800, %v798
        %v804 = vshll.u32 %v755, 16
        %v806 = vrot.slane %v804, 1
        %v807 = vsel %vm603, %v802, %v806
        %v808 = vshrl.u32 %v755, 16
        %v810 = vor.u32 %v808, %v806
        %811 = vrot.lane.b32.xlu0 %v767, 12
        %v812 = vpop.permute.xlu0 %811
        %813 = vrot.lane.b32.xlu0 %v775, 12
        %v814 = vpop.permute.xlu0 %813
        %815 = vrot.lane.b32.xlu0 %v783, 12
        %v816 = vpop.permute.xlu0 %815
        %817 = vrot.lane.b32.xlu0 %v791, 12
        %v818 = vpop.permute.xlu0 %817
        %819 = vrot.lane.b32.xlu0 %v799, 12
        %v820 = vpop.permute.xlu0 %819
        %821 = vrot.lane.b32.xlu0 %v807, 12
        %v822 = vpop.permute.xlu0 %821
        %823 = vrot.lane.b32.xlu0 %v810, 12
        %v824 = vpop.permute.xlu0 %823
        %v826 = vunpack.c.l.b16 %v544
        %v827 = vpack.c.b16 %v719, %v826
        %v828 = vrot.slane %v827, 1
        %v829 = vrot.slane %v733, 1
        %v830 = vsel %vm676, %v828, %v829
        %v831 = vrot.slane %v734, 1
        %v832 = vsel %vm676, %v829, %v831
        %v833 = vrot.slane %v735, 1
        %v834 = vsel %vm676, %v831, %v833
        %v835 = vrot.slane %v736, 1
        %v836 = vsel %vm676, %v833, %v835
        %v837 = vrot.slane %v737, 1
        %v838 = vsel %vm676, %v835, %v837
        %v839 = vrot.slane %v755, 1
        %v840 = vsel %vm676, %v837, %v839
        %841 = vrot.lane.b32.xlu0 %v830, 15
        %v842 = vpop.permute.xlu0 %841
        %843 = vrot.lane.b32.xlu0 %v832, 15
        %v844 = vpop.permute.xlu0 %843
        %845 = vrot.lane.b32.xlu0 %v834, 15
        %v846 = vpop.permute.xlu0 %845
        %847 = vrot.lane.b32.xlu0 %v836, 15
        %v848 = vpop.permute.xlu0 %847
        %849 = vrot.lane.b32.xlu0 %v838, 15
        %v850 = vpop.permute.xlu0 %849
        %851 = vrot.lane.b32.xlu0 %v840, 15
        %v852 = vpop.permute.xlu0 %851
        %853 = vrot.lane.b32.xlu0 %v839, 15
        %v854 = vpop.permute.xlu0 %853
        %v869 = vunpack.c.l.b16 %v549
        %v870 = vunpack.c.l.b16 %v550
        %v871 = vunpack.c.l.b16 %v551
        %v872 = vunpack.c.l.b16 %v552
        %v873 = vunpack.c.l.b16 %v553
        %v874 = vunpack.c.l.b16 %v554
        %v875 = vunpack.c.l.b16 %v555
        %v876 = vunpack.c.l.b16 %v556
        %v877 = vunpack.c.l.b16 %v557
        %v878 = vunpack.c.l.b16 %v558
        %v879 = vunpack.c.l.b16 %v559
        %v880 = vunpack.c.l.b16 %v560
        %v881 = vunpack.c.l.b16 %v561
        %v882 = vunpack.c.l.b16 %v562
        %v883 = vpack.c.b16 %v870, %v869
        %v884 = vpack.c.b16 %v872, %v871
        %v885 = vpack.c.b16 %v874, %v873
        %v886 = vpack.c.b16 %v876, %v875
        %v887 = vpack.c.b16 %v878, %v877
        %v888 = vpack.c.b16 %v880, %v879
        %v889 = vpack.c.b16 %v882, %v881
        %890 = vrot.lane.b32.xlu0 %v883, 18
        %v891 = vpop.permute.xlu0 %890
        %892 = vrot.lane.b32.xlu0 %v884, 18
        %v893 = vpop.permute.xlu0 %892
        %894 = vrot.lane.b32.xlu0 %v885, 18
        %v895 = vpop.permute.xlu0 %894
        %896 = vrot.lane.b32.xlu0 %v886, 18
        %v897 = vpop.permute.xlu0 %896
        %898 = vrot.lane.b32.xlu0 %v887, 18
        %v899 = vpop.permute.xlu0 %898
        %900 = vrot.lane.b32.xlu0 %v888, 18
        %v901 = vpop.permute.xlu0 %900
        %902 = vrot.lane.b32.xlu0 %v889, 18
        %v903 = vpop.permute.xlu0 %902
        %v905 = vunpack.c.l.b16 %v563
        %v906 = vpack.c.b16 %v905, %v881
        %v908 = vshrl.u32 %v883, 16
        %v910 = vshll.u32 %v883, 16
        %v912 = vrot.slane %v910, 1
        %v913 = vor.u32 %v908, %v912
        %v915 = vshll.u32 %v884, 16
        %v917 = vrot.slane %v915, 1
        %v918 = vsel %vm603, %v913, %v917
        %v919 = vshrl.u32 %v884, 16
        %v921 = vor.u32 %v919, %v917
        %v923 = vshll.u32 %v885, 16
        %v925 = vrot.slane %v923, 1
        %v926 = vsel %vm603, %v921, %v925
        %v927 = vshrl.u32 %v885, 16
        %v929 = vor.u32 %v927, %v925
        %v931 = vshll.u32 %v886, 16
        %v933 = vrot.slane %v931, 1
        %v934 = vsel %vm603, %v929, %v933
        %v935 = vshrl.u32 %v886, 16
        %v937 = vor.u32 %v935, %v933
        %v939 = vshll.u32 %v887, 16
        %v941 = vrot.slane %v939, 1
        %v942 = vsel %vm603, %v937, %v941
        %v943 = vshrl.u32 %v887, 16
        %v945 = vor.u32 %v943, %v941
        %v947 = vshll.u32 %v888, 16
        %v949 = vrot.slane %v947, 1
        %v950 = vsel %vm603, %v945, %v949
        %v951 = vshrl.u32 %v888, 16
        %v953 = vor.u32 %v951, %v949
        %v955 = vshll.u32 %v906, 16
        %v957 = vrot.slane %v955, 1
        %v958 = vsel %vm603, %v953, %v957
        %v959 = vshrl.u32 %v906, 16
        %v961 = vor.u32 %v959, %v957
        %962 = vrot.lane.b32.xlu0 %v918, 21
        %v963 = vpop.permute.xlu0 %962
        %964 = vrot.lane.b32.xlu0 %v926, 21
        %v965 = vpop.permute.xlu0 %964
        %966 = vrot.lane.b32.xlu0 %v934, 21
        %v967 = vpop.permute.xlu0 %966
        %968 = vrot.lane.b32.xlu0 %v942, 21
        %v969 = vpop.permute.xlu0 %968
        %970 = vrot.lane.b32.xlu0 %v950, 21
        %v971 = vpop.permute.xlu0 %970
        %972 = vrot.lane.b32.xlu0 %v958, 21
        %v973 = vpop.permute.xlu0 %972
        %974 = vrot.lane.b32.xlu0 %v961, 21
        %v975 = vpop.permute.xlu0 %974
        %v977 = vunpack.c.l.b16 %v564
        %v978 = vpack.c.b16 %v870, %v977
        %v979 = vrot.slane %v978, 1
        %v980 = vrot.slane %v884, 1
        %v981 = vsel %vm676, %v979, %v980
        %v982 = vrot.slane %v885, 1
        %v983 = vsel %vm676, %v980, %v982
        %v984 = vrot.slane %v886, 1
        %v985 = vsel %vm676, %v982, %v984
        %v986 = vrot.slane %v887, 1
        %v987 = vsel %vm676, %v984, %v986
        %v988 = vrot.slane %v888, 1
        %v989 = vsel %vm676, %v986, %v988
        %v990 = vrot.slane %v906, 1
        %v991 = vsel %vm676, %v988, %v990
        %992 = vrot.lane.b32.xlu0 %v981, 24
        %v993 = vpop.permute.xlu0 %992
        %994 = vrot.lane.b32.xlu0 %v983, 24
        %v995 = vpop.permute.xlu0 %994
        %996 = vrot.lane.b32.xlu0 %v985, 24
        %v997 = vpop.permute.xlu0 %996
        %998 = vrot.lane.b32.xlu0 %v987, 24
        %v999 = vpop.permute.xlu0 %998
        %1000 = vrot.lane.b32.xlu0 %v989, 24
        %v1001 = vpop.permute.xlu0 %1000
        %1002 = vrot.lane.b32.xlu0 %v991, 24
        %v1003 = vpop.permute.xlu0 %1002
        %1004 = vrot.lane.b32.xlu0 %v990, 24
        %v1005 = vpop.permute.xlu0 %1004
        %vm1006 = vcmask 23552
        %v1008 = vsel %vm1006, %v593, %v660
        %v1010 = vsel %vm1006, %v594, %v662
        %v1012 = vsel %vm1006, %v595, %v664
        %v1014 = vsel %vm1006, %v596, %v666
        %v1016 = vsel %vm1006, %v597, %v668
        %v1018 = vsel %vm1006, %v598, %v670
        %v1021 = vsel %vm1006, %v599, %v672
        %vm1022 = vcmask 48128
        %v1024 = vsel %vm1022, %v1008, %v691
        %v1026 = vsel %vm1022, %v1010, %v693
        %v1028 = vsel %vm1022, %v1012, %v695
        %v1030 = vsel %vm1022, %v1014, %v697
        %v1032 = vsel %vm1022, %v1016, %v699
        %v1034 = vsel %vm1022, %v1018, %v701
        %v1036 = vsel %vm1022, %v1021, %v703
        %vm1037 = vcmask 72704
        %v1039 = vsel %vm1037, %v1024, %v740
        %v1041 = vsel %vm1037, %v1026, %v742
        %v1043 = vsel %vm1037, %v1028, %v744
        %v1045 = vsel %vm1037, %v1030, %v746
        %v1047 = vsel %vm1037, %v1032, %v748
        %v1049 = vsel %vm1037, %v1034, %v750
        %v1051 = vsel %vm1037, %v1036, %v752
        %vm1052 = vcmask 97280
        %v1054 = vsel %vm1052, %v1039, %v812
        %v1056 = vsel %vm1052, %v1041, %v814
        %v1058 = vsel %vm1052, %v1043, %v816
        %v1060 = vsel %vm1052, %v1045, %v818
        %v1062 = vsel %vm1052, %v1047, %v820
        %v1064 = vsel %vm1052, %v1049, %v822
        %v1066 = vsel %vm1052, %v1051, %v824
        %vm1067 = vcmask 121856
        %v1069 = vsel %vm1067, %v1054, %v842
        %v1071 = vsel %vm1067, %v1056, %v844
        %v1073 = vsel %vm1067, %v1058, %v846
        %v1075 = vsel %vm1067, %v1060, %v848
        %v1077 = vsel %vm1067, %v1062, %v850
        %v1079 = vsel %vm1067, %v1064, %v852
        %v1081 = vsel %vm1067, %v1066, %v854
        %vm1082 = vcmask 146432
        %v1084 = vsel %vm1082, %v1069, %v891
        %v1086 = vsel %vm1082, %v1071, %v893
        %v1088 = vsel %vm1082, %v1073, %v895
        %v1090 = vsel %vm1082, %v1075, %v897
        %v1092 = vsel %vm1082, %v1077, %v899
        %v1094 = vsel %vm1082, %v1079, %v901
        %v1096 = vsel %vm1082, %v1081, %v903
        %vm1097 = vcmask 171008
        %v1099 = vsel %vm1097, %v1084, %v963
        %v1101 = vsel %vm1097, %v1086, %v965
        %v1103 = vsel %vm1097, %v1088, %v967
        %v1105 = vsel %vm1097, %v1090, %v969
        %v1107 = vsel %vm1097, %v1092, %v971
        %v1109 = vsel %vm1097, %v1094, %v973
        %v1111 = vsel %vm1097, %v1096, %v975
        %vm1112 = vcmask 195584
        %v1114 = vsel %vm1112, %v1099, %v993
        %v1116 = vsel %vm1112, %v1101, %v995
        %v1118 = vsel %vm1112, %v1103, %v997
        %v1120 = vsel %vm1112, %v1105, %v999
        %v1122 = vsel %vm1112, %v1107, %v1001
        %v1124 = vsel %vm1112, %v1109, %v1003
        %v1126 = vsel %vm1112, %v1111, %v1005
        %v1128 = vlaneseq
        %v1129 = vshrl.u32 %v1128, 7
        %v1130 = vsub.s32 0, %v1129
        %v1131 = vrot.slane %v498, %v1130
        %v1137 = vunpack.c.l.b16 %v494
        %v1138 = vunpack.c.l.b16 %v495
        %v1139 = vunpack.c.l.b16 %v496
        %v1140 = vunpack.c.l.b16 %v497
        %v1141 = vpack.c.b16 %v1138, %v1137
        %v1142 = vpack.c.b16 %v1140, %v1139
        %vm1144 = vcmask 220160
        %v1145 = vsel %vm1144, %v1114, 0
        %v1147 = vsel %vm1144, %v1116, 0
        %v1149 = vsel %vm1144, %v1118, 0
        %v1151 = vsel %vm1144, %v1120, 0
        %v1153 = vsel %vm1144, %v1122, 0
        %v1155 = vsel %vm1144, %v1124, 0
        %v1157 = vsel %vm1144, %v1126, 0
        %vm1159 = vcmask 1044480
        %vm1160 = vcmask 1045504
        %v1161 = vsel %vm1159, 4294967295, 65535
        %v1162 = vsel %vm1160, %v1161, 0
        %v1164 = vand.u32 %v1142, %v1162
        %1166 = vmatprep.subr.bf16.mxu0 0
        %1167 = vmatpush1.bf16.msra.mxu0 %v1141
        %1168 = vmatprep.subr.bf16.mxu0 0
        %1169 = vmatpush1.bf16.msra.mxu0 %v1164
        %1170 = vmatprep.subr.bf16.mxu0 0
        %1171 = vmatpush1.bf16.msra.mxu0 0
        %1172 = vmatprep.subr.bf16.mxu0 0
        %1173 = vmatpush1.bf16.msra.mxu0 0
        %1174 = vmatprep.subr.bf16.mxu0 0
        %1175 = vmatpush1.bf16.msra.mxu0 0
        %1176 = vmatprep.subr.bf16.mxu0 0
        %1177 = vmatpush1.bf16.msra.mxu0 0
        %1178 = vmatprep.subr.bf16.mxu0 0
        %1179 = vmatpush1.bf16.msra.mxu0 0
        %1180 = vmatprep.subr.bf16.mxu0 0
        %1181 = vmatpush1.bf16.msra.mxu0 0
        %1182 = vmatprep.subr.bf16.mxu0 0
        %1183 = vmatpush1.bf16.msra.mxu0 0
        %1184 = vmatprep.subr.bf16.mxu0 0
        %1185 = vmatpush1.bf16.msra.mxu0 0
        %1186 = vmatprep.subr.bf16.mxu0 0
        %1187 = vmatpush1.bf16.msra.mxu0 0
        %1188 = vmatprep.subr.bf16.mxu0 0
        %1189 = vmatpush1.bf16.msra.mxu0 0
        %1190 = vmatprep.subr.bf16.mxu0 0
        %1191 = vmatpush1.bf16.msra.mxu0 0
        %1192 = vmatprep.subr.bf16.mxu0 0
        %1193 = vmatpush1.bf16.msra.mxu0 0
        %1194 = vmatprep.subr.bf16.mxu0 0
        %1195 = vmatpush1.bf16.msra.mxu0 0
        %1196 = vmatprep.subr.bf16.mxu0 0
        %1197 = vmatpush1.bf16.msra.mxu0 0
        %1198 = vmatprep.mubr.bf16.mxu0 0
        %1199 = vmatmul.mubr.bf16.gmra.mrb[0].mxu0 %v1145
        %v1200 = vpop.f32.mrb[0].mxu0
        %v1201 = vadd.f32 %v1131, %v1200
        %v1202 = vpop.f32.mrb[0].mxu0
        %v1203 = vpop.f32.mrb[0].mxu0
        %v1204 = vadd.f32 %v1131, %v1203
        %v1205 = vpop.f32.mrb[0].mxu0
        %1206 = vmatprep.mubr.bf16.mxu0 0
        %1207 = vmatmul.mubr.bf16.gmra.mrb[0].mxu0 %v1147
        %v1208 = vpop.f32.mrb[0].mxu0
        %v1209 = vadd.f32 %v1131, %v1208
        %v1210 = vpop.f32.mrb[0].mxu0
        %v1211 = vpop.f32.mrb[0].mxu0
        %v1212 = vadd.f32 %v1131, %v1211
        %v1213 = vpop.f32.mrb[0].mxu0
        %1214 = vmatprep.mubr.bf16.mxu0 0
        %1215 = vmatmul.mubr.bf16.gmra.mrb[0].mxu0 %v1149
        %v1216 = vpop.f32.mrb[0].mxu0
        %v1217 = vadd.f32 %v1131, %v1216
        %v1218 = vpop.f32.mrb[0].mxu0
        %v1219 = vpop.f32.mrb[0].mxu0
        %v1220 = vadd.f32 %v1131, %v1219
        %v1221 = vpop.f32.mrb[0].mxu0
        %1222 = vmatprep.mubr.bf16.mxu0 0
        %1223 = vmatmul.mubr.bf16.gmra.mrb[0].mxu0 %v1151
        %v1224 = vpop.f32.mrb[0].mxu0
        %v1225 = vadd.f32 %v1131, %v1224
        %v1226 = vpop.f32.mrb[0].mxu0
        %v1227 = vpop.f32.mrb[0].mxu0
        %v1228 = vadd.f32 %v1131, %v1227
        %v1229 = vpop.f32.mrb[0].mxu0
        %1230 = vmatprep.mubr.bf16.mxu0 0
        %1231 = vmatmul.mubr.bf16.gmra.mrb[0].mxu0 %v1153
        %v1232 = vpop.f32.mrb[0].mxu0
        %v1233 = vadd.f32 %v1131, %v1232
        %v1234 = vpop.f32.mrb[0].mxu0
        %v1235 = vpop.f32.mrb[0].mxu0
        %v1236 = vadd.f32 %v1131, %v1235
        %v1237 = vpop.f32.mrb[0].mxu0
        %1238 = vmatprep.mubr.bf16.mxu0 0
        %1239 = vmatmul.mubr.bf16.gmra.mrb[0].mxu0 %v1155
        %v1240 = vpop.f32.mrb[0].mxu0
        %v1241 = vadd.f32 %v1131, %v1240
        %v1242 = vpop.f32.mrb[0].mxu0
        %v1243 = vpop.f32.mrb[0].mxu0
        %v1244 = vadd.f32 %v1131, %v1243
        %v1245 = vpop.f32.mrb[0].mxu0
        %1246 = vmatprep.mubr.bf16.mxu0 0
        %1247 = vmatmul.mubr.bf16.gmra.mrb[0].mxu0 %v1157
        %v1248 = vpop.f32.mrb[0].mxu0
        %v1249 = vadd.f32 %v1131, %v1248
        %v1250 = vpop.f32.mrb[0].mxu0
        %v1251 = vpop.f32.mrb[0].mxu0
        %v1252 = vadd.f32 %v1131, %v1251
        %v1253 = vpop.f32.mrb[0].mxu0
        %1254 = vdwg.mxu0
        %v1255 = vmax.f32 %v1201, 0.0
        %v1256 = vmax.f32 %v1204, 0.0
        %v1257 = vmax.f32 %v1209, 0.0
        %v1258 = vmax.f32 %v1212, 0.0
        %v1259 = vmax.f32 %v1217, 0.0
        %v1260 = vmax.f32 %v1220, 0.0
        %v1261 = vmax.f32 %v1225, 0.0
        %v1262 = vmax.f32 %v1228, 0.0
        %v1263 = vmax.f32 %v1233, 0.0
        %v1264 = vmax.f32 %v1236, 0.0
        %v1265 = vmax.f32 %v1241, 0.0
        %v1266 = vmax.f32 %v1244, 0.0
        %v1267 = vmax.f32 %v1249, 0.0
        %v1268 = vmax.f32 %v1252, 0.0
        %s1269 = sadd.s32 %s505, 3
        %s1270 = smul.u32 %s1269, 14
        %s1271 = smul.addr %s1270, 4
        %s1272 = scalar_lea.vmem %s489, %s1271
        %v1273 = vld [vmem:[%s1272] sm:$0xf]
        %v1274 = vld [vmem:[%s1272 + $0x4] sm:$0xf]
        %v1275 = vld [vmem:[%s1272 + $0x8] sm:$0xf]
        %v1276 = vld [vmem:[%s1272 + $0xc] sm:$0xf]
        %v1277 = vld [vmem:[%s1272 + $0x10] sm:$0xf]
        %v1278 = vld [vmem:[%s1272 + $0x14] sm:$0xf]
        %v1279 = vld [vmem:[%s1272 + $0x18] sm:$0xf]
        %v1280 = vld [vmem:[%s1272 + $0x1c] sm:$0xf]
        %v1281 = vld [vmem:[%s1272 + $0x20] sm:$0xf]
        %v1282 = vld [vmem:[%s1272 + $0x24] sm:$0xf]
        %v1283 = vld [vmem:[%s1272 + $0x28] sm:$0xf]
        %v1284 = vld [vmem:[%s1272 + $0x2c] sm:$0xf]
        %v1285 = vld [vmem:[%s1272 + $0x30] sm:$0xf]
        %v1286 = vld [vmem:[%s1272 + $0x34] sm:$0x7]
        %v1287 = vld [vmem:[%s1272 + $0x34] sm:$0xf]
        %v1288 = vld [vmem:[%s1272] sm:$0xe]
        %1289 = vrot.lane.b32.xlu0 %v767, 3
        %v1290 = vpop.permute.xlu0 %1289
        %1291 = vrot.lane.b32.xlu0 %v775, 3
        %v1292 = vpop.permute.xlu0 %1291
        %1293 = vrot.lane.b32.xlu0 %v783, 3
        %v1294 = vpop.permute.xlu0 %1293
        %1295 = vrot.lane.b32.xlu0 %v791, 3
        %v1296 = vpop.permute.xlu0 %1295
        %1297 = vrot.lane.b32.xlu0 %v799, 3
        %v1298 = vpop.permute.xlu0 %1297
        %1299 = vrot.lane.b32.xlu0 %v807, 3
        %v1300 = vpop.permute.xlu0 %1299
        %1301 = vrot.lane.b32.xlu0 %v810, 3
        %v1302 = vpop.permute.xlu0 %1301
        %1303 = vrot.lane.b32.xlu0 %v830, 6
        %v1304 = vpop.permute.xlu0 %1303
        %1305 = vrot.lane.b32.xlu0 %v832, 6
        %v1306 = vpop.permute.xlu0 %1305
        %1307 = vrot.lane.b32.xlu0 %v834, 6
        %v1308 = vpop.permute.xlu0 %1307
        %1309 = vrot.lane.b32.xlu0 %v836, 6
        %v1310 = vpop.permute.xlu0 %1309
        %1311 = vrot.lane.b32.xlu0 %v838, 6
        %v1312 = vpop.permute.xlu0 %1311
        %1313 = vrot.lane.b32.xlu0 %v840, 6
        %v1314 = vpop.permute.xlu0 %1313
        %1315 = vrot.lane.b32.xlu0 %v839, 6
        %v1316 = vpop.permute.xlu0 %1315
        %1317 = vrot.lane.b32.xlu0 %v883, 9
        %v1318 = vpop.permute.xlu0 %1317
        %1319 = vrot.lane.b32.xlu0 %v884, 9
        %v1320 = vpop.permute.xlu0 %1319
        %1321 = vrot.lane.b32.xlu0 %v885, 9
        %v1322 = vpop.permute.xlu0 %1321
        %1323 = vrot.lane.b32.xlu0 %v886, 9
        %v1324 = vpop.permute.xlu0 %1323
        %1325 = vrot.lane.b32.xlu0 %v887, 9
        %v1326 = vpop.permute.xlu0 %1325
        %1327 = vrot.lane.b32.xlu0 %v888, 9
        %v1328 = vpop.permute.xlu0 %1327
        %1329 = vrot.lane.b32.xlu0 %v889, 9
        %v1330 = vpop.permute.xlu0 %1329
        %1331 = vrot.lane.b32.xlu0 %v918, 12
        %v1332 = vpop.permute.xlu0 %1331
        %1333 = vrot.lane.b32.xlu0 %v926, 12
        %v1334 = vpop.permute.xlu0 %1333
        %1335 = vrot.lane.b32.xlu0 %v934, 12
        %v1336 = vpop.permute.xlu0 %1335
        %1337 = vrot.lane.b32.xlu0 %v942, 12
        %v1338 = vpop.permute.xlu0 %1337
        %1339 = vrot.lane.b32.xlu0 %v950, 12
        %v1340 = vpop.permute.xlu0 %1339
        %1341 = vrot.lane.b32.xlu0 %v958, 12
        %v1342 = vpop.permute.xlu0 %1341
        %1343 = vrot.lane.b32.xlu0 %v961, 12
        %v1344 = vpop.permute.xlu0 %1343
        %1345 = vrot.lane.b32.xlu0 %v981, 15
        %v1346 = vpop.permute.xlu0 %1345
        %1347 = vrot.lane.b32.xlu0 %v983, 15
        %v1348 = vpop.permute.xlu0 %1347
        %1349 = vrot.lane.b32.xlu0 %v985, 15
        %v1350 = vpop.permute.xlu0 %1349
        %1351 = vrot.lane.b32.xlu0 %v987, 15
        %v1352 = vpop.permute.xlu0 %1351
        %1353 = vrot.lane.b32.xlu0 %v989, 15
        %v1354 = vpop.permute.xlu0 %1353
        %1355 = vrot.lane.b32.xlu0 %v991, 15
        %v1356 = vpop.permute.xlu0 %1355
        %1357 = vrot.lane.b32.xlu0 %v990, 15
        %v1358 = vpop.permute.xlu0 %1357
        %v1373 = vunpack.c.l.b16 %v1273
        %v1374 = vunpack.c.l.b16 %v1274
        %v1375 = vunpack.c.l.b16 %v1275
        %v1376 = vunpack.c.l.b16 %v1276
        %v1377 = vunpack.c.l.b16 %v1277
        %v1378 = vunpack.c.l.b16 %v1278
        %v1379 = vunpack.c.l.b16 %v1279
        %v1380 = vunpack.c.l.b16 %v1280
        %v1381 = vunpack.c.l.b16 %v1281
        %v1382 = vunpack.c.l.b16 %v1282
        %v1383 = vunpack.c.l.b16 %v1283
        %v1384 = vunpack.c.l.b16 %v1284
        %v1385 = vunpack.c.l.b16 %v1285
        %v1386 = vunpack.c.l.b16 %v1286
        %v1387 = vpack.c.b16 %v1374, %v1373
        %v1388 = vpack.c.b16 %v1376, %v1375
        %v1389 = vpack.c.b16 %v1378, %v1377
        %v1390 = vpack.c.b16 %v1380, %v1379
        %v1391 = vpack.c.b16 %v1382, %v1381
        %v1392 = vpack.c.b16 %v1384, %v1383
        %v1393 = vpack.c.b16 %v1386, %v1385
        %1394 = vrot.lane.b32.xlu0 %v1387, 18
        %v1395 = vpop.permute.xlu0 %1394
        %1396 = vrot.lane.b32.xlu0 %v1388, 18
        %v1397 = vpop.permute.xlu0 %1396
        %1398 = vrot.lane.b32.xlu0 %v1389, 18
        %v1399 = vpop.permute.xlu0 %1398
        %1400 = vrot.lane.b32.xlu0 %v1390, 18
        %v1401 = vpop.permute.xlu0 %1400
        %1402 = vrot.lane.b32.xlu0 %v1391, 18
        %v1403 = vpop.permute.xlu0 %1402
        %1404 = vrot.lane.b32.xlu0 %v1392, 18
        %v1405 = vpop.permute.xlu0 %1404
        %1406 = vrot.lane.b32.xlu0 %v1393, 18
        %v1407 = vpop.permute.xlu0 %1406
        %v1409 = vunpack.c.l.b16 %v1287
        %v1410 = vpack.c.b16 %v1409, %v1385
        %v1412 = vshrl.u32 %v1387, 16
        %v1414 = vshll.u32 %v1387, 16
        %v1416 = vrot.slane %v1414, 1
        %v1417 = vor.u32 %v1412, %v1416
        %v1419 = vshll.u32 %v1388, 16
        %v1421 = vrot.slane %v1419, 1
        %v1422 = vsel %vm603, %v1417, %v1421
        %v1423 = vshrl.u32 %v1388, 16
        %v1425 = vor.u32 %v1423, %v1421
        %v1427 = vshll.u32 %v1389, 16
        %v1429 = vrot.slane %v1427, 1
        %v1430 = vsel %vm603, %v1425, %v1429
        %v1431 = vshrl.u32 %v1389, 16
        %v1433 = vor.u32 %v1431, %v1429
        %v1435 = vshll.u32 %v1390, 16
        %v1437 = vrot.slane %v1435, 1
        %v1438 = vsel %vm603, %v1433, %v1437
        %v1439 = vshrl.u32 %v1390, 16
        %v1441 = vor.u32 %v1439, %v1437
        %v1443 = vshll.u32 %v1391, 16
        %v1445 = vrot.slane %v1443, 1
        %v1446 = vsel %vm603, %v1441, %v1445
        %v1447 = vshrl.u32 %v1391, 16
        %v1449 = vor.u32 %v1447, %v1445
        %v1451 = vshll.u32 %v1392, 16
        %v1453 = vrot.slane %v1451, 1
        %v1454 = vsel %vm603, %v1449, %v1453
        %v1455 = vshrl.u32 %v1392, 16
        %v1457 = vor.u32 %v1455, %v1453
        %v1459 = vshll.u32 %v1410, 16
        %v1461 = vrot.slane %v1459, 1
        %v1462 = vsel %vm603, %v1457, %v1461
        %v1463 = vshrl.u32 %v1410, 16
        %v1465 = vor.u32 %v1463, %v1461
        %1466 = vrot.lane.b32.xlu0 %v1422, 21
        %v1467 = vpop.permute.xlu0 %1466
        %1468 = vrot.lane.b32.xlu0 %v1430, 21
        %v1469 = vpop.permute.xlu0 %1468
        %1470 = vrot.lane.b32.xlu0 %v1438, 21
        %v1471 = vpop.permute.xlu0 %1470
        %1472 = vrot.lane.b32.xlu0 %v1446, 21
        %v1473 = vpop.permute.xlu0 %1472
        %1474 = vrot.lane.b32.xlu0 %v1454, 21
        %v1475 = vpop.permute.xlu0 %1474
        %1476 = vrot.lane.b32.xlu0 %v1462, 21
        %v1477 = vpop.permute.xlu0 %1476
        %1478 = vrot.lane.b32.xlu0 %v1465, 21
        %v1479 = vpop.permute.xlu0 %1478
        %v1481 = vunpack.c.l.b16 %v1288
        %v1482 = vpack.c.b16 %v1374, %v1481
        %v1483 = vrot.slane %v1482, 1
        %v1484 = vrot.slane %v1388, 1
        %v1485 = vsel %vm676, %v1483, %v1484
        %v1486 = vrot.slane %v1389, 1
        %v1487 = vsel %vm676, %v1484, %v1486
        %v1488 = vrot.slane %v1390, 1
        %v1489 = vsel %vm676, %v1486, %v1488
        %v1490 = vrot.slane %v1391, 1
        %v1491 = vsel %vm676, %v1488, %v1490
        %v1492 = vrot.slane %v1392, 1
        %v1493 = vsel %vm676, %v1490, %v1492
        %v1494 = vrot.slane %v1410, 1
        %v1495 = vsel %vm676, %v1492, %v1494
        %1496 = vrot.lane.b32.xlu0 %v1485, 24
        %v1497 = vpop.permute.xlu0 %1496
        %1498 = vrot.lane.b32.xlu0 %v1487, 24
        %v1499 = vpop.permute.xlu0 %1498
        %1500 = vrot.lane.b32.xlu0 %v1489, 24
        %v1501 = vpop.permute.xlu0 %1500
        %1502 = vrot.lane.b32.xlu0 %v1491, 24
        %v1503 = vpop.permute.xlu0 %1502
        %1504 = vrot.lane.b32.xlu0 %v1493, 24
        %v1505 = vpop.permute.xlu0 %1504
        %1506 = vrot.lane.b32.xlu0 %v1495, 24
        %v1507 = vpop.permute.xlu0 %1506
        %1508 = vrot.lane.b32.xlu0 %v1494, 24
        %v1509 = vpop.permute.xlu0 %1508
        %v1511 = vsel %vm1006, %v732, %v1290
        %v1513 = vsel %vm1006, %v733, %v1292
        %v1515 = vsel %vm1006, %v734, %v1294
        %v1517 = vsel %vm1006, %v735, %v1296
        %v1519 = vsel %vm1006, %v736, %v1298
        %v1521 = vsel %vm1006, %v737, %v1300
        %v1524 = vsel %vm1006, %v738, %v1302
        %v1526 = vsel %vm1022, %v1511, %v1304
        %v1528 = vsel %vm1022, %v1513, %v1306
        %v1530 = vsel %vm1022, %v1515, %v1308
        %v1532 = vsel %vm1022, %v1517, %v1310
        %v1534 = vsel %vm1022, %v1519, %v1312
        %v1536 = vsel %vm1022, %v1521, %v1314
        %v1538 = vsel %vm1022, %v1524, %v1316
        %v1540 = vsel %vm1037, %v1526, %v1318
        %v1542 = vsel %vm1037, %v1528, %v1320
        %v1544 = vsel %vm1037, %v1530, %v1322
        %v1546 = vsel %vm1037, %v1532, %v1324
        %v1548 = vsel %vm1037, %v1534, %v1326
        %v1550 = vsel %vm1037, %v1536, %v1328
        %v1552 = vsel %vm1037, %v1538, %v1330
        %v1554 = vsel %vm1052, %v1540, %v1332
        %v1556 = vsel %vm1052, %v1542, %v1334
        %v1558 = vsel %vm1052, %v1544, %v1336
        %v1560 = vsel %vm1052, %v1546, %v1338
        %v1562 = vsel %vm1052, %v1548, %v1340
        %v1564 = vsel %vm1052, %v1550, %v1342
        %v1566 = vsel %vm1052, %v1552, %v1344
        %v1568 = vsel %vm1067, %v1554, %v1346
        %v1570 = vsel %vm1067, %v1556, %v1348
        %v1572 = vsel %vm1067, %v1558, %v1350
        %v1574 = vsel %vm1067, %v1560, %v1352
        %v1576 = vsel %vm1067, %v1562, %v1354
        %v1578 = vsel %vm1067, %v1564, %v1356
        %v1580 = vsel %vm1067, %v1566, %v1358
        %v1582 = vsel %vm1082, %v1568, %v1395
        %v1584 = vsel %vm1082, %v1570, %v1397
        %v1586 = vsel %vm1082, %v1572, %v1399
        %v1588 = vsel %vm1082, %v1574, %v1401
        %v1590 = vsel %vm1082, %v1576, %v1403
        %v1592 = vsel %vm1082, %v1578, %v1405
        %v1594 = vsel %vm1082, %v1580, %v1407
        %v1596 = vsel %vm1097, %v1582, %v1467
        %v1598 = vsel %vm1097, %v1584, %v1469
        %v1600 = vsel %vm1097, %v1586, %v1471
        %v1602 = vsel %vm1097, %v1588, %v1473
        %v1604 = vsel %vm1097, %v1590, %v1475
        %v1606 = vsel %vm1097, %v1592, %v1477
        %v1608 = vsel %vm1097, %v1594, %v1479
        %v1610 = vsel %vm1112, %v1596, %v1497
        %v1612 = vsel %vm1112, %v1598, %v1499
        %v1614 = vsel %vm1112, %v1600, %v1501
        %v1616 = vsel %vm1112, %v1602, %v1503
        %v1618 = vsel %vm1112, %v1604, %v1505
        %v1620 = vsel %vm1112, %v1606, %v1507
        %v1622 = vsel %vm1112, %v1608, %v1509
        %v1623 = vsel %vm1144, %v1610, 0
        %v1625 = vsel %vm1144, %v1612, 0
        %v1627 = vsel %vm1144, %v1614, 0
        %v1629 = vsel %vm1144, %v1616, 0
        %v1631 = vsel %vm1144, %v1618, 0
        %v1633 = vsel %vm1144, %v1620, 0
        %v1635 = vsel %vm1144, %v1622, 0
        %1637 = vmatprep.subr.bf16.mxu0 0
        %1638 = vmatpush1.bf16.msra.mxu0 %v1141
        %1639 = vmatprep.subr.bf16.mxu0 0
        %1640 = vmatpush1.bf16.msra.mxu0 %v1164
        %1641 = vmatprep.subr.bf16.mxu0 0
        %1642 = vmatpush1.bf16.msra.mxu0 0
        %1643 = vmatprep.subr.bf16.mxu0 0
        %1644 = vmatpush1.bf16.msra.mxu0 0
        %1645 = vmatprep.subr.bf16.mxu0 0
        %1646 = vmatpush1.bf16.msra.mxu0 0
        %1647 = vmatprep.subr.bf16.mxu0 0
        %1648 = vmatpush1.bf16.msra.mxu0 0
        %1649 = vmatprep.subr.bf16.mxu0 0
        %1650 = vmatpush1.bf16.msra.mxu0 0
        %1651 = vmatprep.subr.bf16.mxu0 0
        %1652 = vmatpush1.bf16.msra.mxu0 0
        %1653 = vmatprep.subr.bf16.mxu0 0
        %1654 = vmatpush1.bf16.msra.mxu0 0
        %1655 = vmatprep.subr.bf16.mxu0 0
        %1656 = vmatpush1.bf16.msra.mxu0 0
        %1657 = vmatprep.subr.bf16.mxu0 0
        %1658 = vmatpush1.bf16.msra.mxu0 0
        %1659 = vmatprep.subr.bf16.mxu0 0
        %1660 = vmatpush1.bf16.msra.mxu0 0
        %1661 = vmatprep.subr.bf16.mxu0 0
        %1662 = vmatpush1.bf16.msra.mxu0 0
        %1663 = vmatprep.subr.bf16.mxu0 0
        %1664 = vmatpush1.bf16.msra.mxu0 0
        %1665 = vmatprep.subr.bf16.mxu0 0
        %1666 = vmatpush1.bf16.msra.mxu0 0
        %1667 = vmatprep.subr.bf16.mxu0 0
        %1668 = vmatpush1.bf16.msra.mxu0 0
        %1669 = vmatprep.mubr.bf16.mxu0 0
        %1670 = vmatmul.mubr.bf16.gmra.mrb[0].mxu0 %v1623
        %v1671 = vpop.f32.mrb[0].mxu0
        %v1672 = vadd.f32 %v1131, %v1671
        %v1673 = vpop.f32.mrb[0].mxu0
        %v1674 = vpop.f32.mrb[0].mxu0
        %v1675 = vadd.f32 %v1131, %v1674
        %v1676 = vpop.f32.mrb[0].mxu0
        %1677 = vmatprep.mubr.bf16.mxu0 0
        %1678 = vmatmul.mubr.bf16.gmra.mrb[0].mxu0 %v1625
        %v1679 = vpop.f32.mrb[0].mxu0
        %v1680 = vadd.f32 %v1131, %v1679
        %v1681 = vpop.f32.mrb[0].mxu0
        %v1682 = vpop.f32.mrb[0].mxu0
        %v1683 = vadd.f32 %v1131, %v1682
        %v1684 = vpop.f32.mrb[0].mxu0
        %1685 = vmatprep.mubr.bf16.mxu0 0
        %1686 = vmatmul.mubr.bf16.gmra.mrb[0].mxu0 %v1627
        %v1687 = vpop.f32.mrb[0].mxu0
        %v1688 = vadd.f32 %v1131, %v1687
        %v1689 = vpop.f32.mrb[0].mxu0
        %v1690 = vpop.f32.mrb[0].mxu0
        %v1691 = vadd.f32 %v1131, %v1690
        %v1692 = vpop.f32.mrb[0].mxu0
        %1693 = vmatprep.mubr.bf16.mxu0 0
        %1694 = vmatmul.mubr.bf16.gmra.mrb[0].mxu0 %v1629
        %v1695 = vpop.f32.mrb[0].mxu0
        %v1696 = vadd.f32 %v1131, %v1695
        %v1697 = vpop.f32.mrb[0].mxu0
        %v1698 = vpop.f32.mrb[0].mxu0
        %v1699 = vadd.f32 %v1131, %v1698
        %v1700 = vpop.f32.mrb[0].mxu0
        %1701 = vmatprep.mubr.bf16.mxu0 0
        %1702 = vmatmul.mubr.bf16.gmra.mrb[0].mxu0 %v1631
        %v1703 = vpop.f32.mrb[0].mxu0
        %v1704 = vadd.f32 %v1131, %v1703
        %v1705 = vpop.f32.mrb[0].mxu0
        %v1706 = vpop.f32.mrb[0].mxu0
        %v1707 = vadd.f32 %v1131, %v1706
        %v1708 = vpop.f32.mrb[0].mxu0
        %1709 = vmatprep.mubr.bf16.mxu0 0
        %1710 = vmatmul.mubr.bf16.gmra.mrb[0].mxu0 %v1633
        %v1711 = vpop.f32.mrb[0].mxu0
        %v1712 = vadd.f32 %v1131, %v1711
        %v1713 = vpop.f32.mrb[0].mxu0
        %v1714 = vpop.f32.mrb[0].mxu0
        %v1715 = vadd.f32 %v1131, %v1714
        %v1716 = vpop.f32.mrb[0].mxu0
        %1717 = vmatprep.mubr.bf16.mxu0 0
        %1718 = vmatmul.mubr.bf16.gmra.mrb[0].mxu0 %v1635
        %v1719 = vpop.f32.mrb[0].mxu0
        %v1720 = vadd.f32 %v1131, %v1719
        %v1721 = vpop.f32.mrb[0].mxu0
        %v1722 = vpop.f32.mrb[0].mxu0
        %v1723 = vadd.f32 %v1131, %v1722
        %v1724 = vpop.f32.mrb[0].mxu0
        %1725 = vdwg.mxu0
        %v1726 = vmax.f32 %v1672, 0.0
        %v1727 = vmax.f32 %v1675, 0.0
        %v1728 = vmax.f32 %v1680, 0.0
        %v1729 = vmax.f32 %v1683, 0.0
        %v1730 = vmax.f32 %v1688, 0.0
        %v1731 = vmax.f32 %v1691, 0.0
        %v1732 = vmax.f32 %v1696, 0.0
        %v1733 = vmax.f32 %v1699, 0.0
        %v1734 = vmax.f32 %v1704, 0.0
        %v1735 = vmax.f32 %v1707, 0.0
        %v1736 = vmax.f32 %v1712, 0.0
        %v1737 = vmax.f32 %v1715, 0.0
        %v1738 = vmax.f32 %v1720, 0.0
        %v1739 = vmax.f32 %v1723, 0.0
        %v1740 = vmax.f32 %v1255, %v1726
        %v1741 = vmax.f32 %v1256, %v1727
        %v1742 = vmax.f32 %v1257, %v1728
        %v1743 = vmax.f32 %v1258, %v1729
        %v1744 = vmax.f32 %v1259, %v1730
        %v1745 = vmax.f32 %v1260, %v1731
        %v1746 = vmax.f32 %v1261, %v1732
        %v1747 = vmax.f32 %v1262, %v1733
        %v1748 = vmax.f32 %v1263, %v1734
        %v1749 = vmax.f32 %v1264, %v1735
        %v1750 = vmax.f32 %v1265, %v1736
        %v1751 = vmax.f32 %v1266, %v1737
        %v1752 = vmax.f32 %v1267, %v1738
        %v1753 = vmax.f32 %v1268, %v1739
        %vm1754 = vcmask 31744
        %1755 = vst.msk [vmem:[#allocation7] sm:$0xff] %vm1754, %v1740
        %1756 = vst.msk [vmem:[#allocation7 + $0x8] sm:$0xff] %vm1754, %v1741
        %1757 = vst.msk [vmem:[#allocation7 + $0x10] sm:$0xff] %vm1754, %v1742
        %1758 = vst.msk [vmem:[#allocation7 + $0x18] sm:$0xff] %vm1754, %v1743
        %1759 = vst.msk [vmem:[#allocation7 + $0x20] sm:$0xff] %vm1754, %v1744
        %1760 = vst.msk [vmem:[#allocation7 + $0x28] sm:$0xff] %vm1754, %v1745
        %1761 = vst.msk [vmem:[#allocation7 + $0x30] sm:$0xff] %vm1754, %v1746
        %1762 = vst.msk [vmem:[#allocation7 + $0x38] sm:$0xff] %vm1754, %v1747
        %1763 = vst.msk [vmem:[#allocation7 + $0x40] sm:$0xff] %vm1754, %v1748
        %1764 = vst.msk [vmem:[#allocation7 + $0x48] sm:$0xff] %vm1754, %v1749
        %1765 = vst.msk [vmem:[#allocation7 + $0x50] sm:$0xff] %vm1754, %v1750
        %1766 = vst.msk [vmem:[#allocation7 + $0x58] sm:$0xff] %vm1754, %v1751
        %1767 = vst.msk [vmem:[#allocation7 + $0x60] sm:$0xff] %vm1754, %v1752
        %vm1768 = vcmask 29696
        %1769 = vst.msk [vmem:[#allocation7 + $0x68] sm:$0x3f] %vm1768, %v1753
        %v1770 = vld [vmem:[#allocation7] ss:$2 sm:$0xff]
        %s1771 = scalar_lea.vmem [#allocation7], 16
        %v1772 = vld [vmem:[%s1771] ss:$2 sm:$0xff]
        %s1773 = scalar_lea.vmem [#allocation7], 32
        %v1774 = vld [vmem:[%s1773] ss:$2 sm:$0xff]
        %s1775 = scalar_lea.vmem [#allocation7], 48
        %v1776 = vld [vmem:[%s1775] ss:$2 sm:$0xff]
        %s1777 = scalar_lea.vmem [#allocation7], 64
        %v1778 = vld [vmem:[%s1777] ss:$2 sm:$0xff]
        %s1779 = scalar_lea.vmem [#allocation7], 80
        %v1780 = vld [vmem:[%s1779] ss:$2 sm:$0xff]
        %s1781 = scalar_lea.vmem [#allocation7], 96
        %v1782 = vld [vmem:[%s1781] ss:$2 sm:$0x7f]
        %s1783 = scalar_lea.vmem [#allocation7], 1
        %v1784 = vld [vmem:[%s1783] ss:$2 sm:$0xff]
        %s1785 = scalar_lea.vmem [#allocation7], 17
        %v1786 = vld [vmem:[%s1785] ss:$2 sm:$0xff]
        %s1787 = scalar_lea.vmem [#allocation7], 33
        %v1788 = vld [vmem:[%s1787] ss:$2 sm:$0xff]
        %s1789 = scalar_lea.vmem [#allocation7], 49
        %v1790 = vld [vmem:[%s1789] ss:$2 sm:$0xff]
        %s1791 = scalar_lea.vmem [#allocation7], 65
        %v1792 = vld [vmem:[%s1791] ss:$2 sm:$0xff]
        %s1793 = scalar_lea.vmem [#allocation7], 81
        %v1794 = vld [vmem:[%s1793] ss:$2 sm:$0xff]
        %s1795 = scalar_lea.vmem [#allocation7], 97
        %v1796 = vld [vmem:[%s1795] ss:$2 sm:$0x7f]
        %v1797 = vmax.f32 %v1770, %v1784
        %v1798 = vmax.f32 %v1772, %v1786
        %v1799 = vmax.f32 %v1774, %v1788
        %v1800 = vmax.f32 %v1776, %v1790
        %v1801 = vmax.f32 %v1778, %v1792
        %v1802 = vmax.f32 %v1780, %v1794
        %v1803 = vmax.f32 %v1782, %v1796
        %v1804 = vpack.c.bf16 %v1798, %v1797
        %v1805 = vpack.c.bf16 %v1800, %v1799
        %v1806 = vpack.c.bf16 %v1802, %v1801
        %v1807 = vpack.c.bf16 %v1803, %v1803
        %v1812 = vunpack.c.l.b16 %v1804
        %v1813 = vunpack.c.h.b16 %v1804
        %v1814 = vunpack.c.l.b16 %v1805
        %v1815 = vunpack.c.h.b16 %v1805
        %v1816 = vunpack.c.l.b16 %v1806
        %v1817 = vunpack.c.h.b16 %v1806
        %v1818 = vunpack.c.l.b16 %v1807
        %v1819 = vpack.c.b16 %v1812, %v1812
        %v1820 = vpack.c.b16 %v1813, %v1813
        %v1821 = vpack.c.b16 %v1814, %v1814
        %v1822 = vpack.c.b16 %v1815, %v1815
        %v1823 = vpack.c.b16 %v1816, %v1816
        %v1824 = vpack.c.b16 %v1817, %v1817
        %v1825 = vpack.c.b16 %v1818, %v1818
        %s1833 = smul.u32 %s500, 7
        %s1834 = smul.addr %s1833, 4
        %s1835 = scalar_lea.vmem [#allocation2], %s1834
        %vm1836 = vcmask 27648
        %1837 = vst.msk [vmem:[%s1835] sm:$0xf] %vm1836, %v1819
        %1838 = vst.msk [vmem:[%s1835 + $0x4] sm:$0xf] %vm1836, %v1820
        %1839 = vst.msk [vmem:[%s1835 + $0x8] sm:$0xf] %vm1836, %v1821
        %1840 = vst.msk [vmem:[%s1835 + $0xc] sm:$0xf] %vm1836, %v1822
        %1841 = vst.msk [vmem:[%s1835 + $0x10] sm:$0xf] %vm1836, %v1823
        %1842 = vst.msk [vmem:[%s1835 + $0x14] sm:$0xf] %vm1836, %v1824
        %vm1843 = vcmask 27648
        %vm1844 = vsmask.f32 3328
        %vm1845 = vmand %vm1843, %vm1844
        %v1846 = vld [vmem:[%s1835 + $0x18] sm:$0xf]
        %v1847 = vsel %vm1845, %v1825, %v1846
        %1848 = vst [vmem:[%s1835 + $0x18] sm:$0xf] %v1847
      $region85: #{neural_network_forward.1} parent=79 // loop_footer
        %s504 = sadd.s32 1, %s500
      $region86: #{neural_network_forward.1} parent=79 // loop_footer_branch
        %499 = sbr.rel target = $region82
      $region87: #{neural_network_forward.1} parent=79 // loop_exit
        _
      %v1849 = vld [vmem:[%s3] sm:$0xf]
      %v1850 = vld [vmem:[%s3 + $0x4] sm:$0xf]
      %v1851 = vld [vmem:[%s3 + $0x8] sm:$0xf]
      %v1852 = vld [vmem:[%s3 + $0xc] sm:$0xf]
      %v1853 = vld [vmem:[%s3 + $0x10] sm:$0x3]
      %v1854 = vld [vmem:[%s4] sm:$0x1]
      loop: start=0, step=1, limit=26
      $region88: #{neural_network_forward.1} parent=79 // loop_pre_header
        _
      $region89: #{neural_network_forward.1} parent=79 // loop_header
        %s1856 = sphi 0, %s1860
        %p1857 = scmp.ge.s32.totalorder %s1856, 26
      $region90: #{neural_network_forward.1} parent=79 // loop_header_branch
        %1859 = sbr.rel (%p1857) target = $region94
      $region91: #{neural_network_forward.1} parent=79 // loop_body
        %s1861 = smul.u32 %s1856, 2
        %s1862 = smul.u32 %s1861, 7
        %s1863 = smul.addr %s1862, 4
        %s1864 = scalar_lea.vmem [#allocation2], %s1863
        %v1865 = vld [vmem:[%s1864] sm:$0xf]
        %v1866 = vld [vmem:[%s1864 + $0x4] sm:$0xf]
        %v1867 = vld [vmem:[%s1864 + $0x8] sm:$0xf]
        %v1868 = vld [vmem:[%s1864 + $0xc] sm:$0xf]
        %v1869 = vld [vmem:[%s1864 + $0x10] sm:$0xf]
        %v1870 = vld [vmem:[%s1864 + $0x14] sm:$0xf]
        %v1871 = vld [vmem:[%s1864 + $0x18] sm:$0x7]
        %v1872 = vld [vmem:[%s1864] sm:$0xe]
        %v1873 = vld [vmem:[%s1864 + $0x18] sm:$0xf]
        %s1874 = sadd.s32 %s1861, 1
        %s1875 = smul.u32 %s1874, 7
        %s1876 = smul.addr %s1875, 4
        %s1877 = scalar_lea.vmem [#allocation2], %s1876
        %v1878 = vld [vmem:[%s1877] sm:$0xf]
        %v1879 = vld [vmem:[%s1877 + $0x4] sm:$0xf]
        %v1880 = vld [vmem:[%s1877 + $0x8] sm:$0xf]
        %v1881 = vld [vmem:[%s1877 + $0xc] sm:$0xf]
        %v1882 = vld [vmem:[%s1877 + $0x10] sm:$0xf]
        %v1883 = vld [vmem:[%s1877 + $0x14] sm:$0xf]
        %v1884 = vld [vmem:[%s1877 + $0x18] sm:$0x7]
        %v1885 = vld [vmem:[%s1877] sm:$0xe]
        %v1886 = vld [vmem:[%s1877 + $0x18] sm:$0xf]
        %s1887 = sadd.s32 %s1861, 2
        %s1888 = smul.u32 %s1887, 7
        %s1889 = smul.addr %s1888, 4
        %s1890 = scalar_lea.vmem [#allocation2], %s1889
        %v1891 = vld [vmem:[%s1890] sm:$0xf]
        %v1892 = vld [vmem:[%s1890 + $0x4] sm:$0xf]
        %v1893 = vld [vmem:[%s1890 + $0x8] sm:$0xf]
        %v1894 = vld [vmem:[%s1890 + $0xc] sm:$0xf]
        %v1895 = vld [vmem:[%s1890 + $0x10] sm:$0xf]
        %v1896 = vld [vmem:[%s1890 + $0x14] sm:$0xf]
        %v1897 = vld [vmem:[%s1890 + $0x18] sm:$0x7]
        %v1898 = vld [vmem:[%s1890] sm:$0xe]
        %v1899 = vld [vmem:[%s1890 + $0x18] sm:$0xf]
        %v1907 = vunpack.c.l.b16 %v1865
        %v1908 = vunpack.c.l.b16 %v1866
        %v1909 = vunpack.c.l.b16 %v1867
        %v1910 = vunpack.c.l.b16 %v1868
        %v1911 = vunpack.c.l.b16 %v1869
        %v1912 = vunpack.c.l.b16 %v1870
        %v1913 = vunpack.c.l.b16 %v1871
        %v1914 = vpack.c.b16 %v1908, %v1907
        %v1915 = vpack.c.b16 %v1910, %v1909
        %v1916 = vpack.c.b16 %v1912, %v1911
        %v1917 = vpack.c.b16 %v1913, %v1913
        %vm1918 = vsmask.f32 7424
        %v1920 = vshrl.u32 %v1914, 16
        %v1922 = vshll.u32 %v1914, 16
        %v1924 = vrot.slane %v1922, 1
        %v1925 = vor.u32 %v1920, %v1924
        %v1927 = vshll.u32 %v1915, 16
        %v1929 = vrot.slane %v1927, 1
        %v1930 = vsel %vm1918, %v1925, %v1929
        %v1931 = vshrl.u32 %v1915, 16
        %v1933 = vor.u32 %v1931, %v1929
        %v1935 = vshll.u32 %v1916, 16
        %v1937 = vrot.slane %v1935, 1
        %v1938 = vsel %vm1918, %v1933, %v1937
        %v1939 = vshrl.u32 %v1916, 16
        %v1941 = vor.u32 %v1939, %v1937
        %v1943 = vshll.u32 %v1917, 16
        %v1945 = vrot.slane %v1943, 1
        %v1946 = vsel %vm1918, %v1941, %v1945
        %v1947 = vshrl.u32 %v1917, 16
        %v1949 = vor.u32 %v1947, %v1945
        %1950 = vrot.lane.b32.xlu0 %v1930, 4
        %v1951 = vpop.permute.xlu0 %1950
        %1952 = vrot.lane.b32.xlu0 %v1938, 4
        %v1953 = vpop.permute.xlu0 %1952
        %1954 = vrot.lane.b32.xlu0 %v1946, 4
        %v1955 = vpop.permute.xlu0 %1954
        %1956 = vrot.lane.b32.xlu0 %v1949, 4
        %v1957 = vpop.permute.xlu0 %1956
        %v1960 = vunpack.c.l.b16 %v1872
        %v1961 = vunpack.c.l.b16 %v1873
        %v1962 = vpack.c.b16 %v1908, %v1960
        %v1963 = vpack.c.b16 %v1961, %v1961
        %vm1964 = vcmask 1046528
        %v1965 = vrot.slane %v1962, 1
        %v1966 = vrot.slane %v1915, 1
        %v1967 = vsel %vm1964, %v1965, %v1966
        %v1968 = vrot.slane %v1916, 1
        %v1969 = vsel %vm1964, %v1966, %v1968
        %v1970 = vrot.slane %v1963, 1
        %v1971 = vsel %vm1964, %v1968, %v1970
        %1972 = vrot.lane.b32.xlu0 %v1967, 8
        %v1973 = vpop.permute.xlu0 %1972
        %1974 = vrot.lane.b32.xlu0 %v1969, 8
        %v1975 = vpop.permute.xlu0 %1974
        %1976 = vrot.lane.b32.xlu0 %v1971, 8
        %v1977 = vpop.permute.xlu0 %1976
        %1978 = vrot.lane.b32.xlu0 %v1970, 8
        %v1979 = vpop.permute.xlu0 %1978
        %v1987 = vunpack.c.l.b16 %v1878
        %v1988 = vunpack.c.l.b16 %v1879
        %v1989 = vunpack.c.l.b16 %v1880
        %v1990 = vunpack.c.l.b16 %v1881
        %v1991 = vunpack.c.l.b16 %v1882
        %v1992 = vunpack.c.l.b16 %v1883
        %v1993 = vunpack.c.l.b16 %v1884
        %v1994 = vpack.c.b16 %v1988, %v1987
        %v1995 = vpack.c.b16 %v1990, %v1989
        %v1996 = vpack.c.b16 %v1992, %v1991
        %v1997 = vpack.c.b16 %v1993, %v1993
        %1998 = vrot.lane.b32.xlu0 %v1994, 12
        %v1999 = vpop.permute.xlu0 %1998
        %2000 = vrot.lane.b32.xlu0 %v1995, 12
        %v2001 = vpop.permute.xlu0 %2000
        %2002 = vrot.lane.b32.xlu0 %v1996, 12
        %v2003 = vpop.permute.xlu0 %2002
        %2004 = vrot.lane.b32.xlu0 %v1997, 12
        %v2005 = vpop.permute.xlu0 %2004
        %v2007 = vshrl.u32 %v1994, 16
        %v2009 = vshll.u32 %v1994, 16
        %v2011 = vrot.slane %v2009, 1
        %v2012 = vor.u32 %v2007, %v2011
        %v2014 = vshll.u32 %v1995, 16
        %v2016 = vrot.slane %v2014, 1
        %v2017 = vsel %vm1918, %v2012, %v2016
        %v2018 = vshrl.u32 %v1995, 16
        %v2020 = vor.u32 %v2018, %v2016
        %v2022 = vshll.u32 %v1996, 16
        %v2024 = vrot.slane %v2022, 1
        %v2025 = vsel %vm1918, %v2020, %v2024
        %v2026 = vshrl.u32 %v1996, 16
        %v2028 = vor.u32 %v2026, %v2024
        %v2030 = vshll.u32 %v1997, 16
        %v2032 = vrot.slane %v2030, 1
        %v2033 = vsel %vm1918, %v2028, %v2032
        %v2034 = vshrl.u32 %v1997, 16
        %v2036 = vor.u32 %v2034, %v2032
        %2037 = vrot.lane.b32.xlu0 %v2017, 16
        %v2038 = vpop.permute.xlu0 %2037
        %2039 = vrot.lane.b32.xlu0 %v2025, 16
        %v2040 = vpop.permute.xlu0 %2039
        %2041 = vrot.lane.b32.xlu0 %v2033, 16
        %v2042 = vpop.permute.xlu0 %2041
        %2043 = vrot.lane.b32.xlu0 %v2036, 16
        %v2044 = vpop.permute.xlu0 %2043
        %v2047 = vunpack.c.l.b16 %v1885
        %v2048 = vunpack.c.l.b16 %v1886
        %v2049 = vpack.c.b16 %v1988, %v2047
        %v2050 = vpack.c.b16 %v2048, %v2048
        %v2051 = vrot.slane %v2049, 1
        %v2052 = vrot.slane %v1995, 1
        %v2053 = vsel %vm1964, %v2051, %v2052
        %v2054 = vrot.slane %v1996, 1
        %v2055 = vsel %vm1964, %v2052, %v2054
        %v2056 = vrot.slane %v2050, 1
        %v2057 = vsel %vm1964, %v2054, %v2056
        %2058 = vrot.lane.b32.xlu0 %v2053, 20
        %v2059 = vpop.permute.xlu0 %2058
        %2060 = vrot.lane.b32.xlu0 %v2055, 20
        %v2061 = vpop.permute.xlu0 %2060
        %2062 = vrot.lane.b32.xlu0 %v2057, 20
        %v2063 = vpop.permute.xlu0 %2062
        %2064 = vrot.lane.b32.xlu0 %v2056, 20
        %v2065 = vpop.permute.xlu0 %2064
        %v2073 = vunpack.c.l.b16 %v1891
        %v2074 = vunpack.c.l.b16 %v1892
        %v2075 = vunpack.c.l.b16 %v1893
        %v2076 = vunpack.c.l.b16 %v1894
        %v2077 = vunpack.c.l.b16 %v1895
        %v2078 = vunpack.c.l.b16 %v1896
        %v2079 = vunpack.c.l.b16 %v1897
        %v2080 = vpack.c.b16 %v2074, %v2073
        %v2081 = vpack.c.b16 %v2076, %v2075
        %v2082 = vpack.c.b16 %v2078, %v2077
        %v2083 = vpack.c.b16 %v2079, %v2079
        %2084 = vrot.lane.b32.xlu0 %v2080, 24
        %v2085 = vpop.permute.xlu0 %2084
        %2086 = vrot.lane.b32.xlu0 %v2081, 24
        %v2087 = vpop.permute.xlu0 %2086
        %2088 = vrot.lane.b32.xlu0 %v2082, 24
        %v2089 = vpop.permute.xlu0 %2088
        %2090 = vrot.lane.b32.xlu0 %v2083, 24
        %v2091 = vpop.permute.xlu0 %2090
        %v2093 = vshrl.u32 %v2080, 16
        %v2095 = vshll.u32 %v2080, 16
        %v2097 = vrot.slane %v2095, 1
        %v2098 = vor.u32 %v2093, %v2097
        %v2100 = vshll.u32 %v2081, 16
        %v2102 = vrot.slane %v2100, 1
        %v2103 = vsel %vm1918, %v2098, %v2102
        %v2104 = vshrl.u32 %v2081, 16
        %v2106 = vor.u32 %v2104, %v2102
        %v2108 = vshll.u32 %v2082, 16
        %v2110 = vrot.slane %v2108, 1
        %v2111 = vsel %vm1918, %v2106, %v2110
        %v2112 = vshrl.u32 %v2082, 16
        %v2114 = vor.u32 %v2112, %v2110
        %v2116 = vshll.u32 %v2083, 16
        %v2118 = vrot.slane %v2116, 1
        %v2119 = vsel %vm1918, %v2114, %v2118
        %v2120 = vshrl.u32 %v2083, 16
        %v2122 = vor.u32 %v2120, %v2118
        %2123 = vrot.lane.b32.xlu0 %v2103, 28
        %v2124 = vpop.permute.xlu0 %2123
        %2125 = vrot.lane.b32.xlu0 %v2111, 28
        %v2126 = vpop.permute.xlu0 %2125
        %2127 = vrot.lane.b32.xlu0 %v2119, 28
        %v2128 = vpop.permute.xlu0 %2127
        %2129 = vrot.lane.b32.xlu0 %v2122, 28
        %v2130 = vpop.permute.xlu0 %2129
        %v2133 = vunpack.c.l.b16 %v1898
        %v2134 = vunpack.c.l.b16 %v1899
        %v2135 = vpack.c.b16 %v2074, %v2133
        %v2136 = vpack.c.b16 %v2134, %v2134
        %v2137 = vrot.slane %v2135, 1
        %v2138 = vrot.slane %v2081, 1
        %v2139 = vsel %vm1964, %v2137, %v2138
        %v2140 = vrot.slane %v2082, 1
        %v2141 = vsel %vm1964, %v2138, %v2140
        %v2142 = vrot.slane %v2136, 1
        %v2143 = vsel %vm1964, %v2140, %v2142
        %2144 = vrot.lane.b32.xlu0 %v2139, 32
        %v2145 = vpop.permute.xlu0 %2144
        %2146 = vrot.lane.b32.xlu0 %v2141, 32
        %v2147 = vpop.permute.xlu0 %2146
        %2148 = vrot.lane.b32.xlu0 %v2143, 32
        %v2149 = vpop.permute.xlu0 %2148
        %2150 = vrot.lane.b32.xlu0 %v2142, 32
        %v2151 = vpop.permute.xlu0 %2150
        %vm2152 = vcmask 31744
        %v2154 = vsel %vm2152, %v1914, %v1951
        %v2156 = vsel %vm2152, %v1915, %v1953
        %v2158 = vsel %vm2152, %v1916, %v1955
        %v2160 = vsel %vm2152, %v1917, %v1957
        %vm2161 = vcmask 64512
        %v2163 = vsel %vm2161, %v2154, %v1973
        %v2165 = vsel %vm2161, %v2156, %v1975
        %v2167 = vsel %vm2161, %v2158, %v1977
        %v2169 = vsel %vm2161, %v2160, %v1979
        %vm2170 = vcmask 97280
        %v2172 = vsel %vm2170, %v2163, %v1999
        %v2174 = vsel %vm2170, %v2165, %v2001
        %v2176 = vsel %vm2170, %v2167, %v2003
        %v2178 = vsel %vm2170, %v2169, %v2005
        %vm2179 = vcmask 130048
        %v2181 = vsel %vm2179, %v2172, %v2038
        %v2183 = vsel %vm2179, %v2174, %v2040
        %v2185 = vsel %vm2179, %v2176, %v2042
        %v2187 = vsel %vm2179, %v2178, %v2044
        %vm2188 = vcmask 162816
        %v2190 = vsel %vm2188, %v2181, %v2059
        %v2192 = vsel %vm2188, %v2183, %v2061
        %v2194 = vsel %vm2188, %v2185, %v2063
        %v2196 = vsel %vm2188, %v2187, %v2065
        %vm2197 = vcmask 195584
        %v2199 = vsel %vm2197, %v2190, %v2085
        %v2201 = vsel %vm2197, %v2192, %v2087
        %v2203 = vsel %vm2197, %v2194, %v2089
        %v2205 = vsel %vm2197, %v2196, %v2091
        %vm2206 = vcmask 228352
        %v2208 = vsel %vm2206, %v2199, %v2124
        %v2210 = vsel %vm2206, %v2201, %v2126
        %v2212 = vsel %vm2206, %v2203, %v2128
        %v2214 = vsel %vm2206, %v2205, %v2130
        %vm2215 = vcmask 261120
        %v2217 = vsel %vm2215, %v2208, %v2145
        %v2219 = vsel %vm2215, %v2210, %v2147
        %v2221 = vsel %vm2215, %v2212, %v2149
        %v2223 = vsel %vm2215, %v2214, %v2151
        %v2225 = vlaneseq
        %v2226 = vshrl.u32 %v2225, 7
        %v2227 = vsub.s32 0, %v2226
        %v2228 = vrot.slane %v1854, %v2227
        %v2235 = vunpack.c.l.b16 %v1849
        %v2236 = vunpack.c.l.b16 %v1850
        %v2237 = vunpack.c.l.b16 %v1851
        %v2238 = vunpack.c.l.b16 %v1852
        %v2239 = vunpack.c.l.b16 %v1853
        %v2240 = vpack.c.b16 %v2236, %v2235
        %v2241 = vpack.c.b16 %v2238, %v2237
        %v2242 = vpack.c.b16 %v2239, %v2239
        %vm2245 = vcmask 293888
        %v2246 = vsel %vm2245, %v2217, 0
        %v2248 = vsel %vm2245, %v2219, 0
        %v2250 = vsel %vm2245, %v2221, 0
        %v2252 = vsel %vm2245, %v2223, 0
        %vm2254 = vcmask 1041408
        %v2256 = vsel %vm2254, %v2242, 0
        %2258 = vmatprep.subr.bf16.mxu0 0
        %2259 = vmatpush1.bf16.msra.mxu0 %v2240
        %2260 = vmatprep.subr.bf16.mxu0 0
        %2261 = vmatpush1.bf16.msra.mxu0 %v2241
        %2262 = vmatprep.subr.bf16.mxu0 0
        %2263 = vmatpush1.bf16.msra.mxu0 %v2256
        %2264 = vmatprep.subr.bf16.mxu0 0
        %2265 = vmatpush1.bf16.msra.mxu0 0
        %2266 = vmatprep.subr.bf16.mxu0 0
        %2267 = vmatpush1.bf16.msra.mxu0 0
        %2268 = vmatprep.subr.bf16.mxu0 0
        %2269 = vmatpush1.bf16.msra.mxu0 0
        %2270 = vmatprep.subr.bf16.mxu0 0
        %2271 = vmatpush1.bf16.msra.mxu0 0
        %2272 = vmatprep.subr.bf16.mxu0 0
        %2273 = vmatpush1.bf16.msra.mxu0 0
        %2274 = vmatprep.subr.bf16.mxu0 0
        %2275 = vmatpush1.bf16.msra.mxu0 0
        %2276 = vmatprep.subr.bf16.mxu0 0
        %2277 = vmatpush1.bf16.msra.mxu0 0
        %2278 = vmatprep.subr.bf16.mxu0 0
        %2279 = vmatpush1.bf16.msra.mxu0 0
        %2280 = vmatprep.subr.bf16.mxu0 0
        %2281 = vmatpush1.bf16.msra.mxu0 0
        %2282 = vmatprep.subr.bf16.mxu0 0
        %2283 = vmatpush1.bf16.msra.mxu0 0
        %2284 = vmatprep.subr.bf16.mxu0 0
        %2285 = vmatpush1.bf16.msra.mxu0 0
        %2286 = vmatprep.subr.bf16.mxu0 0
        %2287 = vmatpush1.bf16.msra.mxu0 0
        %2288 = vmatprep.subr.bf16.mxu0 0
        %2289 = vmatpush1.bf16.msra.mxu0 0
        %2290 = vmatprep.mubr.bf16.mxu0 0
        %2291 = vmatmul.mubr.bf16.gmra.mrb[0].mxu0 %v2246
        %v2292 = vpop.f32.mrb[0].mxu0
        %v2293 = vadd.f32 %v2228, %v2292
        %v2294 = vpop.f32.mrb[0].mxu0
        %v2295 = vpop.f32.mrb[0].mxu0
        %v2296 = vadd.f32 %v2228, %v2295
        %v2297 = vpop.f32.mrb[0].mxu0
        %2298 = vmatprep.mubr.bf16.mxu0 0
        %2299 = vmatmul.mubr.bf16.gmra.mrb[0].mxu0 %v2248
        %v2300 = vpop.f32.mrb[0].mxu0
        %v2301 = vadd.f32 %v2228, %v2300
        %v2302 = vpop.f32.mrb[0].mxu0
        %v2303 = vpop.f32.mrb[0].mxu0
        %v2304 = vadd.f32 %v2228, %v2303
        %v2305 = vpop.f32.mrb[0].mxu0
        %2306 = vmatprep.mubr.bf16.mxu0 0
        %2307 = vmatmul.mubr.bf16.gmra.mrb[0].mxu0 %v2250
        %v2308 = vpop.f32.mrb[0].mxu0
        %v2309 = vadd.f32 %v2228, %v2308
        %v2310 = vpop.f32.mrb[0].mxu0
        %v2311 = vpop.f32.mrb[0].mxu0
        %v2312 = vadd.f32 %v2228, %v2311
        %v2313 = vpop.f32.mrb[0].mxu0
        %2314 = vmatprep.mubr.bf16.mxu0 0
        %2315 = vmatmul.mubr.bf16.gmra.mrb[0].mxu0 %v2252
        %v2316 = vpop.f32.mrb[0].mxu0
        %v2317 = vadd.f32 %v2228, %v2316
        %v2318 = vpop.f32.mrb[0].mxu0
        %v2319 = vpop.f32.mrb[0].mxu0
        %v2320 = vpop.f32.mrb[0].mxu0
        %2321 = vdwg.mxu0
        %v2322 = vmax.f32 %v2293, 0.0
        %v2323 = vmax.f32 %v2296, 0.0
        %v2324 = vmax.f32 %v2301, 0.0
        %v2325 = vmax.f32 %v2304, 0.0
        %v2326 = vmax.f32 %v2309, 0.0
        %v2327 = vmax.f32 %v2312, 0.0
        %v2328 = vmax.f32 %v2317, 0.0
        %s2329 = sadd.s32 %s1861, 3
        %s2330 = smul.u32 %s2329, 7
        %s2331 = smul.addr %s2330, 4
        %s2332 = scalar_lea.vmem [#allocation2], %s2331
        %v2333 = vld [vmem:[%s2332] sm:$0xf]
        %v2334 = vld [vmem:[%s2332 + $0x4] sm:$0xf]
        %v2335 = vld [vmem:[%s2332 + $0x8] sm:$0xf]
        %v2336 = vld [vmem:[%s2332 + $0xc] sm:$0xf]
        %v2337 = vld [vmem:[%s2332 + $0x10] sm:$0xf]
        %v2338 = vld [vmem:[%s2332 + $0x14] sm:$0xf]
        %v2339 = vld [vmem:[%s2332 + $0x18] sm:$0x7]
        %v2340 = vld [vmem:[%s2332] sm:$0xe]
        %v2341 = vld [vmem:[%s2332 + $0x18] sm:$0xf]
        %2342 = vrot.lane.b32.xlu0 %v2017, 4
        %v2343 = vpop.permute.xlu0 %2342
        %2344 = vrot.lane.b32.xlu0 %v2025, 4
        %v2345 = vpop.permute.xlu0 %2344
        %2346 = vrot.lane.b32.xlu0 %v2033, 4
        %v2347 = vpop.permute.xlu0 %2346
        %2348 = vrot.lane.b32.xlu0 %v2036, 4
        %v2349 = vpop.permute.xlu0 %2348
        %2350 = vrot.lane.b32.xlu0 %v2053, 8
        %v2351 = vpop.permute.xlu0 %2350
        %2352 = vrot.lane.b32.xlu0 %v2055, 8
        %v2353 = vpop.permute.xlu0 %2352
        %2354 = vrot.lane.b32.xlu0 %v2057, 8
        %v2355 = vpop.permute.xlu0 %2354
        %2356 = vrot.lane.b32.xlu0 %v2056, 8
        %v2357 = vpop.permute.xlu0 %2356
        %2358 = vrot.lane.b32.xlu0 %v2080, 12
        %v2359 = vpop.permute.xlu0 %2358
        %2360 = vrot.lane.b32.xlu0 %v2081, 12
        %v2361 = vpop.permute.xlu0 %2360
        %2362 = vrot.lane.b32.xlu0 %v2082, 12
        %v2363 = vpop.permute.xlu0 %2362
        %2364 = vrot.lane.b32.xlu0 %v2083, 12
        %v2365 = vpop.permute.xlu0 %2364
        %2366 = vrot.lane.b32.xlu0 %v2103, 16
        %v2367 = vpop.permute.xlu0 %2366
        %2368 = vrot.lane.b32.xlu0 %v2111, 16
        %v2369 = vpop.permute.xlu0 %2368
        %2370 = vrot.lane.b32.xlu0 %v2119, 16
        %v2371 = vpop.permute.xlu0 %2370
        %2372 = vrot.lane.b32.xlu0 %v2122, 16
        %v2373 = vpop.permute.xlu0 %2372
        %2374 = vrot.lane.b32.xlu0 %v2139, 20
        %v2375 = vpop.permute.xlu0 %2374
        %2376 = vrot.lane.b32.xlu0 %v2141, 20
        %v2377 = vpop.permute.xlu0 %2376
        %2378 = vrot.lane.b32.xlu0 %v2143, 20
        %v2379 = vpop.permute.xlu0 %2378
        %2380 = vrot.lane.b32.xlu0 %v2142, 20
        %v2381 = vpop.permute.xlu0 %2380
        %v2389 = vunpack.c.l.b16 %v2333
        %v2390 = vunpack.c.l.b16 %v2334
        %v2391 = vunpack.c.l.b16 %v2335
        %v2392 = vunpack.c.l.b16 %v2336
        %v2393 = vunpack.c.l.b16 %v2337
        %v2394 = vunpack.c.l.b16 %v2338
        %v2395 = vunpack.c.l.b16 %v2339
        %v2396 = vpack.c.b16 %v2390, %v2389
        %v2397 = vpack.c.b16 %v2392, %v2391
        %v2398 = vpack.c.b16 %v2394, %v2393
        %v2399 = vpack.c.b16 %v2395, %v2395
        %2400 = vrot.lane.b32.xlu0 %v2396, 24
        %v2401 = vpop.permute.xlu0 %2400
        %2402 = vrot.lane.b32.xlu0 %v2397, 24
        %v2403 = vpop.permute.xlu0 %2402
        %2404 = vrot.lane.b32.xlu0 %v2398, 24
        %v2405 = vpop.permute.xlu0 %2404
        %2406 = vrot.lane.b32.xlu0 %v2399, 24
        %v2407 = vpop.permute.xlu0 %2406
        %v2409 = vshrl.u32 %v2396, 16
        %v2411 = vshll.u32 %v2396, 16
        %v2413 = vrot.slane %v2411, 1
        %v2414 = vor.u32 %v2409, %v2413
        %v2416 = vshll.u32 %v2397, 16
        %v2418 = vrot.slane %v2416, 1
        %v2419 = vsel %vm1918, %v2414, %v2418
        %v2420 = vshrl.u32 %v2397, 16
        %v2422 = vor.u32 %v2420, %v2418
        %v2424 = vshll.u32 %v2398, 16
        %v2426 = vrot.slane %v2424, 1
        %v2427 = vsel %vm1918, %v2422, %v2426
        %v2428 = vshrl.u32 %v2398, 16
        %v2430 = vor.u32 %v2428, %v2426
        %v2432 = vshll.u32 %v2399, 16
        %v2434 = vrot.slane %v2432, 1
        %v2435 = vsel %vm1918, %v2430, %v2434
        %v2436 = vshrl.u32 %v2399, 16
        %v2438 = vor.u32 %v2436, %v2434
        %2439 = vrot.lane.b32.xlu0 %v2419, 28
        %v2440 = vpop.permute.xlu0 %2439
        %2441 = vrot.lane.b32.xlu0 %v2427, 28
        %v2442 = vpop.permute.xlu0 %2441
        %2443 = vrot.lane.b32.xlu0 %v2435, 28
        %v2444 = vpop.permute.xlu0 %2443
        %2445 = vrot.lane.b32.xlu0 %v2438, 28
        %v2446 = vpop.permute.xlu0 %2445
        %v2449 = vunpack.c.l.b16 %v2340
        %v2450 = vunpack.c.l.b16 %v2341
        %v2451 = vpack.c.b16 %v2390, %v2449
        %v2452 = vpack.c.b16 %v2450, %v2450
        %v2453 = vrot.slane %v2451, 1
        %v2454 = vrot.slane %v2397, 1
        %v2455 = vsel %vm1964, %v2453, %v2454
        %v2456 = vrot.slane %v2398, 1
        %v2457 = vsel %vm1964, %v2454, %v2456
        %v2458 = vrot.slane %v2452, 1
        %v2459 = vsel %vm1964, %v2456, %v2458
        %2460 = vrot.lane.b32.xlu0 %v2455, 32
        %v2461 = vpop.permute.xlu0 %2460
        %2462 = vrot.lane.b32.xlu0 %v2457, 32
        %v2463 = vpop.permute.xlu0 %2462
        %2464 = vrot.lane.b32.xlu0 %v2459, 32
        %v2465 = vpop.permute.xlu0 %2464
        %2466 = vrot.lane.b32.xlu0 %v2458, 32
        %v2467 = vpop.permute.xlu0 %2466
        %v2469 = vsel %vm2152, %v1994, %v2343
        %v2471 = vsel %vm2152, %v1995, %v2345
        %v2473 = vsel %vm2152, %v1996, %v2347
        %v2475 = vsel %vm2152, %v1997, %v2349
        %v2477 = vsel %vm2161, %v2469, %v2351
        %v2479 = vsel %vm2161, %v2471, %v2353
        %v2481 = vsel %vm2161, %v2473, %v2355
        %v2483 = vsel %vm2161, %v2475, %v2357
        %v2485 = vsel %vm2170, %v2477, %v2359
        %v2487 = vsel %vm2170, %v2479, %v2361
        %v2489 = vsel %vm2170, %v2481, %v2363
        %v2491 = vsel %vm2170, %v2483, %v2365
        %v2493 = vsel %vm2179, %v2485, %v2367
        %v2495 = vsel %vm2179, %v2487, %v2369
        %v2497 = vsel %vm2179, %v2489, %v2371
        %v2499 = vsel %vm2179, %v2491, %v2373
        %v2501 = vsel %vm2188, %v2493, %v2375
        %v2503 = vsel %vm2188, %v2495, %v2377
        %v2505 = vsel %vm2188, %v2497, %v2379
        %v2507 = vsel %vm2188, %v2499, %v2381
        %v2509 = vsel %vm2197, %v2501, %v2401
        %v2511 = vsel %vm2197, %v2503, %v2403
        %v2513 = vsel %vm2197, %v2505, %v2405
        %v2515 = vsel %vm2197, %v2507, %v2407
        %v2517 = vsel %vm2206, %v2509, %v2440
        %v2519 = vsel %vm2206, %v2511, %v2442
        %v2521 = vsel %vm2206, %v2513, %v2444
        %v2523 = vsel %vm2206, %v2515, %v2446
        %v2525 = vsel %vm2215, %v2517, %v2461
        %v2527 = vsel %vm2215, %v2519, %v2463
        %v2529 = vsel %vm2215, %v2521, %v2465
        %v2531 = vsel %vm2215, %v2523, %v2467
        %v2532 = vsel %vm2245, %v2525, 0
        %v2534 = vsel %vm2245, %v2527, 0
        %v2536 = vsel %vm2245, %v2529, 0
        %v2538 = vsel %vm2245, %v2531, 0
        %2540 = vmatprep.subr.bf16.mxu0 0
        %2541 = vmatpush1.bf16.msra.mxu0 %v2240
        %2542 = vmatprep.subr.bf16.mxu0 0
        %2543 = vmatpush1.bf16.msra.mxu0 %v2241
        %2544 = vmatprep.subr.bf16.mxu0 0
        %2545 = vmatpush1.bf16.msra.mxu0 %v2256
        %2546 = vmatprep.subr.bf16.mxu0 0
        %2547 = vmatpush1.bf16.msra.mxu0 0
        %2548 = vmatprep.subr.bf16.mxu0 0
        %2549 = vmatpush1.bf16.msra.mxu0 0
        %2550 = vmatprep.subr.bf16.mxu0 0
        %2551 = vmatpush1.bf16.msra.mxu0 0
        %2552 = vmatprep.subr.bf16.mxu0 0
        %2553 = vmatpush1.bf16.msra.mxu0 0
        %2554 = vmatprep.subr.bf16.mxu0 0
        %2555 = vmatpush1.bf16.msra.mxu0 0
        %2556 = vmatprep.subr.bf16.mxu0 0
        %2557 = vmatpush1.bf16.msra.mxu0 0
        %2558 = vmatprep.subr.bf16.mxu0 0
        %2559 = vmatpush1.bf16.msra.mxu0 0
        %2560 = vmatprep.subr.bf16.mxu0 0
        %2561 = vmatpush1.bf16.msra.mxu0 0
        %2562 = vmatprep.subr.bf16.mxu0 0
        %2563 = vmatpush1.bf16.msra.mxu0 0
        %2564 = vmatprep.subr.bf16.mxu0 0
        %2565 = vmatpush1.bf16.msra.mxu0 0
        %2566 = vmatprep.subr.bf16.mxu0 0
        %2567 = vmatpush1.bf16.msra.mxu0 0
        %2568 = vmatprep.subr.bf16.mxu0 0
        %2569 = vmatpush1.bf16.msra.mxu0 0
        %2570 = vmatprep.subr.bf16.mxu0 0
        %2571 = vmatpush1.bf16.msra.mxu0 0
        %2572 = vmatprep.mubr.bf16.mxu0 0
        %2573 = vmatmul.mubr.bf16.gmra.mrb[0].mxu0 %v2532
        %v2574 = vpop.f32.mrb[0].mxu0
        %v2575 = vadd.f32 %v2228, %v2574
        %v2576 = vpop.f32.mrb[0].mxu0
        %v2577 = vpop.f32.mrb[0].mxu0
        %v2578 = vadd.f32 %v2228, %v2577
        %v2579 = vpop.f32.mrb[0].mxu0
        %2580 = vmatprep.mubr.bf16.mxu0 0
        %2581 = vmatmul.mubr.bf16.gmra.mrb[0].mxu0 %v2534
        %v2582 = vpop.f32.mrb[0].mxu0
        %v2583 = vadd.f32 %v2228, %v2582
        %v2584 = vpop.f32.mrb[0].mxu0
        %v2585 = vpop.f32.mrb[0].mxu0
        %v2586 = vadd.f32 %v2228, %v2585
        %v2587 = vpop.f32.mrb[0].mxu0
        %2588 = vmatprep.mubr.bf16.mxu0 0
        %2589 = vmatmul.mubr.bf16.gmra.mrb[0].mxu0 %v2536
        %v2590 = vpop.f32.mrb[0].mxu0
        %v2591 = vadd.f32 %v2228, %v2590
        %v2592 = vpop.f32.mrb[0].mxu0
        %v2593 = vpop.f32.mrb[0].mxu0
        %v2594 = vadd.f32 %v2228, %v2593
        %v2595 = vpop.f32.mrb[0].mxu0
        %2596 = vmatprep.mubr.bf16.mxu0 0
        %2597 = vmatmul.mubr.bf16.gmra.mrb[0].mxu0 %v2538
        %v2598 = vpop.f32.mrb[0].mxu0
        %v2599 = vadd.f32 %v2228, %v2598
        %v2600 = vpop.f32.mrb[0].mxu0
        %v2601 = vpop.f32.mrb[0].mxu0
        %v2602 = vpop.f32.mrb[0].mxu0
        %2603 = vdwg.mxu0
        %v2604 = vmax.f32 %v2575, 0.0
        %v2605 = vmax.f32 %v2578, 0.0
        %v2606 = vmax.f32 %v2583, 0.0
        %v2607 = vmax.f32 %v2586, 0.0
        %v2608 = vmax.f32 %v2591, 0.0
        %v2609 = vmax.f32 %v2594, 0.0
        %v2610 = vmax.f32 %v2599, 0.0
        %v2611 = vmax.f32 %v2322, %v2604
        %v2612 = vmax.f32 %v2323, %v2605
        %v2613 = vmax.f32 %v2324, %v2606
        %v2614 = vmax.f32 %v2325, %v2607
        %v2615 = vmax.f32 %v2326, %v2608
        %v2616 = vmax.f32 %v2327, %v2609
        %v2617 = vmax.f32 %v2328, %v2610
        %2618 = vst.msk [vmem:[#allocation8] sm:$0xff] %vm2161, %v2611
        %2619 = vst.msk [vmem:[#allocation8 + $0x8] sm:$0xff] %vm2161, %v2612
        %2620 = vst.msk [vmem:[#allocation8 + $0x10] sm:$0xff] %vm2161, %v2613
        %2621 = vst.msk [vmem:[#allocation8 + $0x18] sm:$0xff] %vm2161, %v2614
        %2622 = vst.msk [vmem:[#allocation8 + $0x20] sm:$0xff] %vm2161, %v2615
        %2623 = vst.msk [vmem:[#allocation8 + $0x28] sm:$0xff] %vm2161, %v2616
        %vm2624 = vcmask 61440
        %2625 = vst.msk [vmem:[#allocation8 + $0x30] sm:$0x1f] %vm2624, %v2617
        %v2626 = vld [vmem:[#allocation8] ss:$2 sm:$0xff]
        %s2627 = scalar_lea.vmem [#allocation8], 16
        %v2628 = vld [vmem:[%s2627] ss:$2 sm:$0xff]
        %s2629 = scalar_lea.vmem [#allocation8], 32
        %v2630 = vld [vmem:[%s2629] ss:$2 sm:$0xff]
        %s2631 = scalar_lea.vmem [#allocation8], 48
        %v2632 = vld [vmem:[%s2631] ss:$2 sm:$0x3]
        %s2633 = scalar_lea.vmem [#allocation8], 1
        %v2634 = vld [vmem:[%s2633] ss:$2 sm:$0xff]
        %s2635 = scalar_lea.vmem [#allocation8], 17
        %v2636 = vld [vmem:[%s2635] ss:$2 sm:$0xff]
        %s2637 = scalar_lea.vmem [#allocation8], 33
        %v2638 = vld [vmem:[%s2637] ss:$2 sm:$0xff]
        %s2639 = scalar_lea.vmem [#allocation8], 49
        %v2640 = vld [vmem:[%s2639] ss:$2 sm:$0x3]
        %v2641 = vmax.f32 %v2626, %v2634
        %v2642 = vmax.f32 %v2628, %v2636
        %v2643 = vmax.f32 %v2630, %v2638
        %v2644 = vmax.f32 %v2632, %v2640
        %v2645 = vpack.c.bf16 %v2642, %v2641
        %v2646 = vpack.c.bf16 %v2644, %v2643
        %v2649 = vunpack.c.l.b16 %v2645
        %v2650 = vunpack.c.h.b16 %v2645
        %v2651 = vunpack.c.l.b16 %v2646
        %v2652 = vunpack.c.h.b16 %v2646
        %v2653 = vpack.c.b16 %v2649, %v2649
        %v2654 = vpack.c.b16 %v2650, %v2650
        %v2655 = vpack.c.b16 %v2651, %v2651
        %v2656 = vpack.c.b16 %v2652, %v2652
        %s2661 = smul.u32 %s1856, 4
        %s2662 = smul.addr %s2661, 4
        %s2663 = scalar_lea.vmem [#allocation3], %s2662
        %vm2664 = vcmask 60416
        %2665 = vst.msk [vmem:[%s2663] sm:$0xf] %vm2664, %v2653
        %2666 = vst.msk [vmem:[%s2663 + $0x4] sm:$0xf] %vm2664, %v2654
        %2667 = vst.msk [vmem:[%s2663 + $0x8] sm:$0xf] %vm2664, %v2655
        %vm2668 = vcmask 57344
        %2669 = vst.msk [vmem:[%s2663 + $0xc] sm:$0x1] %vm2668, %v2656
      $region92: #{neural_network_forward.1} parent=79 // loop_footer
        %s1860 = sadd.s32 1, %s1856
      $region93: #{neural_network_forward.1} parent=79 // loop_footer_branch
        %1855 = sbr.rel target = $region89
      $region94: #{neural_network_forward.1} parent=79 // loop_exit
        _
      %v2670 = vld [vmem:[%s5] sm:$0xf]
      %v2671 = vld [vmem:[%s5 + $0x4] sm:$0xf]
      %v2672 = vld [vmem:[%s5 + $0x8] sm:$0xf]
      %v2673 = vld [vmem:[%s5 + $0xc] sm:$0xf]
      %v2674 = vld [vmem:[%s5 + $0x10] sm:$0xf]
      %v2675 = vld [vmem:[%s5 + $0x14] sm:$0xf]
      %v2676 = vld [vmem:[%s5 + $0x18] sm:$0xf]
      %v2677 = vld [vmem:[%s5 + $0x1c] sm:$0xf]
      %v2678 = vld [vmem:[%s5 + $0x20] sm:$0xf]
      %v2679 = vld [vmem:[%s6] sm:$0x1]
      loop: start=0, step=1, limit=12
      $region95: #{neural_network_forward.1} parent=79 // loop_pre_header
        _
      $region96: #{neural_network_forward.1} parent=79 // loop_header
        %s2681 = sphi 0, %s2685
        %p2682 = scmp.ge.s32.totalorder %s2681, 12
      $region97: #{neural_network_forward.1} parent=79 // loop_header_branch
        %2684 = sbr.rel (%p2682) target = $region101
      $region98: #{neural_network_forward.1} parent=79 // loop_body
        %s2686 = smul.u32 %s2681, 2
        %s2687 = smul.u32 %s2686, 4
        %s2688 = smul.addr %s2687, 4
        %s2689 = scalar_lea.vmem [#allocation3], %s2688
        %v2690 = vld [vmem:[%s2689] sm:$0xf]
        %v2691 = vld [vmem:[%s2689 + $0x4] sm:$0xf]
        %v2692 = vld [vmem:[%s2689 + $0x8] sm:$0xf]
        %v2693 = vld [vmem:[%s2689 + $0xc] sm:$0x1]
        %v2694 = vld [vmem:[%s2689] sm:$0xe]
        %s2695 = sadd.s32 %s2686, 1
        %s2696 = smul.u32 %s2695, 4
        %s2697 = smul.addr %s2696, 4
        %s2698 = scalar_lea.vmem [#allocation3], %s2697
        %v2699 = vld [vmem:[%s2698] sm:$0xf]
        %v2700 = vld [vmem:[%s2698 + $0x4] sm:$0xf]
        %v2701 = vld [vmem:[%s2698 + $0x8] sm:$0xf]
        %v2702 = vld [vmem:[%s2698 + $0xc] sm:$0x1]
        %v2703 = vld [vmem:[%s2698] sm:$0xe]
        %s2704 = sadd.s32 %s2686, 2
        %s2705 = smul.u32 %s2704, 4
        %s2706 = smul.addr %s2705, 4
        %s2707 = scalar_lea.vmem [#allocation3], %s2706
        %v2708 = vld [vmem:[%s2707] sm:$0xf]
        %v2709 = vld [vmem:[%s2707 + $0x4] sm:$0xf]
        %v2710 = vld [vmem:[%s2707 + $0x8] sm:$0xf]
        %v2711 = vld [vmem:[%s2707 + $0xc] sm:$0x1]
        %v2712 = vld [vmem:[%s2707] sm:$0xe]
        %v2716 = vunpack.c.l.b16 %v2690
        %v2717 = vunpack.c.l.b16 %v2691
        %v2718 = vunpack.c.l.b16 %v2692
        %v2719 = vpack.c.b16 %v2717, %v2716
        %v2720 = vpack.c.b16 %v2718, %v2718
        %v2722 = vunpack.c.l.b16 %v2693
        %v2723 = vpack.c.b16 %v2722, %v2718
        %vm2724 = vsmask.f32 7424
        %v2726 = vshrl.u32 %v2719, 16
        %v2728 = vshll.u32 %v2719, 16
        %v2730 = vrot.slane %v2728, 1
        %v2731 = vor.u32 %v2726, %v2730
        %v2733 = vshll.u32 %v2723, 16
        %v2735 = vrot.slane %v2733, 1
        %v2736 = vsel %vm2724, %v2731, %v2735
        %v2737 = vshrl.u32 %v2723, 16
        %v2739 = vor.u32 %v2737, %v2735
        %2740 = vrot.lane.b32.xlu0 %v2736, 8
        %v2741 = vpop.permute.xlu0 %2740
        %2742 = vrot.lane.b32.xlu0 %v2739, 8
        %v2743 = vpop.permute.xlu0 %2742
        %v2745 = vunpack.c.l.b16 %v2694
        %v2746 = vpack.c.b16 %v2717, %v2745
        %vm2747 = vcmask 1046528
        %v2748 = vrot.slane %v2746, 1
        %v2749 = vrot.slane %v2723, 1
        %v2750 = vsel %vm2747, %v2748, %v2749
        %2751 = vrot.lane.b32.xlu0 %v2750, 16
        %v2752 = vpop.permute.xlu0 %2751
        %2753 = vrot.lane.b32.xlu0 %v2749, 16
        %v2754 = vpop.permute.xlu0 %2753
        %v2758 = vunpack.c.l.b16 %v2699
        %v2759 = vunpack.c.l.b16 %v2700
        %v2760 = vunpack.c.l.b16 %v2701
        %v2761 = vpack.c.b16 %v2759, %v2758
        %v2762 = vpack.c.b16 %v2760, %v2760
        %2763 = vrot.lane.b32.xlu0 %v2761, 24
        %v2764 = vpop.permute.xlu0 %2763
        %2765 = vrot.lane.b32.xlu0 %v2762, 24
        %v2766 = vpop.permute.xlu0 %2765
        %v2768 = vunpack.c.l.b16 %v2702
        %v2769 = vpack.c.b16 %v2768, %v2760
        %v2771 = vshrl.u32 %v2761, 16
        %v2773 = vshll.u32 %v2761, 16
        %v2775 = vrot.slane %v2773, 1
        %v2776 = vor.u32 %v2771, %v2775
        %v2778 = vshll.u32 %v2769, 16
        %v2780 = vrot.slane %v2778, 1
        %v2781 = vsel %vm2724, %v2776, %v2780
        %v2782 = vshrl.u32 %v2769, 16
        %v2784 = vor.u32 %v2782, %v2780
        %2785 = vrot.lane.b32.xlu0 %v2781, 32
        %v2786 = vpop.permute.xlu0 %2785
        %2787 = vrot.lane.b32.xlu0 %v2784, 32
        %v2788 = vpop.permute.xlu0 %2787
        %v2790 = vunpack.c.l.b16 %v2703
        %v2791 = vpack.c.b16 %v2759, %v2790
        %v2792 = vrot.slane %v2791, 1
        %v2793 = vrot.slane %v2769, 1
        %v2794 = vsel %vm2747, %v2792, %v2793
        %2795 = vrot.lane.b32.xlu0 %v2794, 40
        %v2796 = vpop.permute.xlu0 %2795
        %2797 = vrot.lane.b32.xlu0 %v2793, 40
        %v2798 = vpop.permute.xlu0 %2797
        %v2802 = vunpack.c.l.b16 %v2708
        %v2803 = vunpack.c.l.b16 %v2709
        %v2804 = vunpack.c.l.b16 %v2710
        %v2805 = vpack.c.b16 %v2803, %v2802
        %v2806 = vpack.c.b16 %v2804, %v2804
        %2807 = vrot.lane.b32.xlu0 %v2805, 48
        %v2808 = vpop.permute.xlu0 %2807
        %2809 = vrot.lane.b32.xlu0 %v2806, 48
        %v2810 = vpop.permute.xlu0 %2809
        %v2812 = vunpack.c.l.b16 %v2711
        %v2813 = vpack.c.b16 %v2812, %v2804
        %v2815 = vshrl.u32 %v2805, 16
        %v2817 = vshll.u32 %v2805, 16
        %v2819 = vrot.slane %v2817, 1
        %v2820 = vor.u32 %v2815, %v2819
        %v2822 = vshll.u32 %v2813, 16
        %v2824 = vrot.slane %v2822, 1
        %v2825 = vsel %vm2724, %v2820, %v2824
        %v2826 = vshrl.u32 %v2813, 16
        %v2828 = vor.u32 %v2826, %v2824
        %2829 = vrot.lane.b32.xlu0 %v2825, 56
        %v2830 = vpop.permute.xlu0 %2829
        %2831 = vrot.lane.b32.xlu0 %v2828, 56
        %v2832 = vpop.permute.xlu0 %2831
        %v2834 = vunpack.c.l.b16 %v2712
        %v2835 = vpack.c.b16 %v2803, %v2834
        %v2836 = vrot.slane %v2835, 1
        %v2837 = vrot.slane %v2813, 1
        %v2838 = vsel %vm2747, %v2836, %v2837
        %2839 = vrot.lane.b32.xlu0 %v2838, 64
        %v2840 = vpop.permute.xlu0 %2839
        %2841 = vrot.lane.b32.xlu0 %v2837, 64
        %v2842 = vpop.permute.xlu0 %2841
        %vm2843 = vcmask 64512
        %v2845 = vsel %vm2843, %v2719, %v2741
        %v2848 = vsel %vm2843, %v2720, %v2743
        %vm2849 = vcmask 130048
        %v2851 = vsel %vm2849, %v2845, %v2752
        %v2853 = vsel %vm2849, %v2848, %v2754
        %vm2854 = vcmask 195584
        %v2856 = vsel %vm2854, %v2851, %v2764
        %v2858 = vsel %vm2854, %v2853, %v2766
        %vm2859 = vcmask 261120
        %v2861 = vsel %vm2859, %v2856, %v2786
        %v2863 = vsel %vm2859, %v2858, %v2788
        %vm2864 = vcmask 326656
        %v2866 = vsel %vm2864, %v2861, %v2796
        %v2868 = vsel %vm2864, %v2863, %v2798
        %vm2869 = vcmask 392192
        %v2871 = vsel %vm2869, %v2866, %v2808
        %v2873 = vsel %vm2869, %v2868, %v2810
        %vm2874 = vcmask 457728
        %v2876 = vsel %vm2874, %v2871, %v2830
        %v2878 = vsel %vm2874, %v2873, %v2832
        %vm2879 = vcmask 523264
        %v2881 = vsel %vm2879, %v2876, %v2840
        %v2883 = vsel %vm2879, %v2878, %v2842
        %v2885 = vlaneseq
        %v2886 = vshrl.u32 %v2885, 7
        %v2887 = vsub.s32 0, %v2886
        %v2888 = vrot.slane %v2679, %v2887
        %v2899 = vunpack.c.l.b16 %v2670
        %v2900 = vunpack.c.l.b16 %v2671
        %v2901 = vunpack.c.l.b16 %v2672
        %v2902 = vunpack.c.l.b16 %v2673
        %v2903 = vunpack.c.l.b16 %v2674
        %v2904 = vunpack.c.l.b16 %v2675
        %v2905 = vunpack.c.l.b16 %v2676
        %v2906 = vunpack.c.l.b16 %v2677
        %v2907 = vunpack.c.l.b16 %v2678
        %v2908 = vpack.c.b16 %v2900, %v2899
        %v2909 = vpack.c.b16 %v2902, %v2901
        %v2910 = vpack.c.b16 %v2904, %v2903
        %v2911 = vpack.c.b16 %v2906, %v2905
        %v2912 = vpack.c.b16 %v2907, %v2907
        %vm2917 = vcmask 588800
        %v2918 = vsel %vm2917, %v2881, 0
        %v2920 = vsel %vm2917, %v2883, 0
        %vm2922 = vcmask 1043456
        %v2924 = vsel %vm2922, %v2912, 0
        %2926 = vmatprep.subr.bf16.mxu0 0
        %2927 = vmatpush1.bf16.msra.mxu0 %v2908
        %2928 = vmatprep.subr.bf16.mxu0 0
        %2929 = vmatpush1.bf16.msra.mxu0 %v2909
        %2930 = vmatprep.subr.bf16.mxu0 0
        %2931 = vmatpush1.bf16.msra.mxu0 %v2910
        %2932 = vmatprep.subr.bf16.mxu0 0
        %2933 = vmatpush1.bf16.msra.mxu0 %v2911
        %2934 = vmatprep.subr.bf16.mxu0 0
        %2935 = vmatpush1.bf16.msra.mxu0 %v2924
        %2936 = vmatprep.subr.bf16.mxu0 0
        %2937 = vmatpush1.bf16.msra.mxu0 0
        %2938 = vmatprep.subr.bf16.mxu0 0
        %2939 = vmatpush1.bf16.msra.mxu0 0
        %2940 = vmatprep.subr.bf16.mxu0 0
        %2941 = vmatpush1.bf16.msra.mxu0 0
        %2942 = vmatprep.subr.bf16.mxu0 0
        %2943 = vmatpush1.bf16.msra.mxu0 0
        %2944 = vmatprep.subr.bf16.mxu0 0
        %2945 = vmatpush1.bf16.msra.mxu0 0
        %2946 = vmatprep.subr.bf16.mxu0 0
        %2947 = vmatpush1.bf16.msra.mxu0 0
        %2948 = vmatprep.subr.bf16.mxu0 0
        %2949 = vmatpush1.bf16.msra.mxu0 0
        %2950 = vmatprep.subr.bf16.mxu0 0
        %2951 = vmatpush1.bf16.msra.mxu0 0
        %2952 = vmatprep.subr.bf16.mxu0 0
        %2953 = vmatpush1.bf16.msra.mxu0 0
        %2954 = vmatprep.subr.bf16.mxu0 0
        %2955 = vmatpush1.bf16.msra.mxu0 0
        %2956 = vmatprep.subr.bf16.mxu0 0
        %2957 = vmatpush1.bf16.msra.mxu0 0
        %2958 = vmatprep.mubr.bf16.mxu0 0
        %2959 = vmatmul.mubr.bf16.gmra.mrb[0].mxu0 %v2918
        %v2960 = vpop.f32.mrb[0].mxu0
        %v2961 = vadd.f32 %v2888, %v2960
        %v2962 = vpop.f32.mrb[0].mxu0
        %v2963 = vpop.f32.mrb[0].mxu0
        %v2964 = vadd.f32 %v2888, %v2963
        %v2965 = vpop.f32.mrb[0].mxu0
        %2966 = vmatprep.mubr.bf16.mxu0 0
        %2967 = vmatmul.mubr.bf16.gmra.mrb[0].mxu0 %v2920
        %v2968 = vpop.f32.mrb[0].mxu0
        %v2969 = vadd.f32 %v2888, %v2968
        %v2970 = vpop.f32.mrb[0].mxu0
        %v2971 = vpop.f32.mrb[0].mxu0
        %v2972 = vpop.f32.mrb[0].mxu0
        %2973 = vdwg.mxu0
        %s2974 = sadd.s32 %s2686, 3
        %s2975 = smul.u32 %s2974, 4
        %s2976 = smul.addr %s2975, 4
        %s2977 = scalar_lea.vmem [#allocation3], %s2976
        %v2978 = vld [vmem:[%s2977] sm:$0xf]
        %v2979 = vld [vmem:[%s2977 + $0x4] sm:$0xf]
        %v2980 = vld [vmem:[%s2977 + $0x8] sm:$0xf]
        %v2981 = vld [vmem:[%s2977 + $0xc] sm:$0x1]
        %v2982 = vld [vmem:[%s2977] sm:$0xe]
        %2983 = vrot.lane.b32.xlu0 %v2781, 8
        %v2984 = vpop.permute.xlu0 %2983
        %2985 = vrot.lane.b32.xlu0 %v2784, 8
        %v2986 = vpop.permute.xlu0 %2985
        %2987 = vrot.lane.b32.xlu0 %v2794, 16
        %v2988 = vpop.permute.xlu0 %2987
        %2989 = vrot.lane.b32.xlu0 %v2793, 16
        %v2990 = vpop.permute.xlu0 %2989
        %2991 = vrot.lane.b32.xlu0 %v2805, 24
        %v2992 = vpop.permute.xlu0 %2991
        %2993 = vrot.lane.b32.xlu0 %v2806, 24
        %v2994 = vpop.permute.xlu0 %2993
        %2995 = vrot.lane.b32.xlu0 %v2825, 32
        %v2996 = vpop.permute.xlu0 %2995
        %2997 = vrot.lane.b32.xlu0 %v2828, 32
        %v2998 = vpop.permute.xlu0 %2997
        %2999 = vrot.lane.b32.xlu0 %v2838, 40
        %v3000 = vpop.permute.xlu0 %2999
        %3001 = vrot.lane.b32.xlu0 %v2837, 40
        %v3002 = vpop.permute.xlu0 %3001
        %v3006 = vunpack.c.l.b16 %v2978
        %v3007 = vunpack.c.l.b16 %v2979
        %v3008 = vunpack.c.l.b16 %v2980
        %v3009 = vpack.c.b16 %v3007, %v3006
        %v3010 = vpack.c.b16 %v3008, %v3008
        %3011 = vrot.lane.b32.xlu0 %v3009, 48
        %v3012 = vpop.permute.xlu0 %3011
        %3013 = vrot.lane.b32.xlu0 %v3010, 48
        %v3014 = vpop.permute.xlu0 %3013
        %v3016 = vunpack.c.l.b16 %v2981
        %v3017 = vpack.c.b16 %v3016, %v3008
        %v3019 = vshrl.u32 %v3009, 16
        %v3021 = vshll.u32 %v3009, 16
        %v3023 = vrot.slane %v3021, 1
        %v3024 = vor.u32 %v3019, %v3023
        %v3026 = vshll.u32 %v3017, 16
        %v3028 = vrot.slane %v3026, 1
        %v3029 = vsel %vm2724, %v3024, %v3028
        %v3030 = vshrl.u32 %v3017, 16
        %v3032 = vor.u32 %v3030, %v3028
        %3033 = vrot.lane.b32.xlu0 %v3029, 56
        %v3034 = vpop.permute.xlu0 %3033
        %3035 = vrot.lane.b32.xlu0 %v3032, 56
        %v3036 = vpop.permute.xlu0 %3035
        %v3038 = vunpack.c.l.b16 %v2982
        %v3039 = vpack.c.b16 %v3007, %v3038
        %v3040 = vrot.slane %v3039, 1
        %v3041 = vrot.slane %v3017, 1
        %v3042 = vsel %vm2747, %v3040, %v3041
        %3043 = vrot.lane.b32.xlu0 %v3042, 64
        %v3044 = vpop.permute.xlu0 %3043
        %3045 = vrot.lane.b32.xlu0 %v3041, 64
        %v3046 = vpop.permute.xlu0 %3045
        %v3048 = vsel %vm2843, %v2761, %v2984
        %v3051 = vsel %vm2843, %v2762, %v2986
        %v3053 = vsel %vm2849, %v3048, %v2988
        %v3055 = vsel %vm2849, %v3051, %v2990
        %v3057 = vsel %vm2854, %v3053, %v2992
        %v3059 = vsel %vm2854, %v3055, %v2994
        %v3061 = vsel %vm2859, %v3057, %v2996
        %v3063 = vsel %vm2859, %v3059, %v2998
        %v3065 = vsel %vm2864, %v3061, %v3000
        %v3067 = vsel %vm2864, %v3063, %v3002
        %v3069 = vsel %vm2869, %v3065, %v3012
        %v3071 = vsel %vm2869, %v3067, %v3014
        %v3073 = vsel %vm2874, %v3069, %v3034
        %v3075 = vsel %vm2874, %v3071, %v3036
        %v3077 = vsel %vm2879, %v3073, %v3044
        %v3079 = vsel %vm2879, %v3075, %v3046
        %v3080 = vsel %vm2917, %v3077, 0
        %v3082 = vsel %vm2917, %v3079, 0
        %3084 = vmatprep.subr.bf16.mxu0 0
        %3085 = vmatpush1.bf16.msra.mxu0 %v2908
        %3086 = vmatprep.subr.bf16.mxu0 0
        %3087 = vmatpush1.bf16.msra.mxu0 %v2909
        %3088 = vmatprep.subr.bf16.mxu0 0
        %3089 = vmatpush1.bf16.msra.mxu0 %v2910
        %3090 = vmatprep.subr.bf16.mxu0 0
        %3091 = vmatpush1.bf16.msra.mxu0 %v2911
        %3092 = vmatprep.subr.bf16.mxu0 0
        %3093 = vmatpush1.bf16.msra.mxu0 %v2924
        %3094 = vmatprep.subr.bf16.mxu0 0
        %3095 = vmatpush1.bf16.msra.mxu0 0
        %3096 = vmatprep.subr.bf16.mxu0 0
        %3097 = vmatpush1.bf16.msra.mxu0 0
        %3098 = vmatprep.subr.bf16.mxu0 0
        %3099 = vmatpush1.bf16.msra.mxu0 0
        %3100 = vmatprep.subr.bf16.mxu0 0
        %3101 = vmatpush1.bf16.msra.mxu0 0
        %3102 = vmatprep.subr.bf16.mxu0 0
        %3103 = vmatpush1.bf16.msra.mxu0 0
        %3104 = vmatprep.subr.bf16.mxu0 0
        %3105 = vmatpush1.bf16.msra.mxu0 0
        %3106 = vmatprep.subr.bf16.mxu0 0
        %3107 = vmatpush1.bf16.msra.mxu0 0
        %3108 = vmatprep.subr.bf16.mxu0 0
        %3109 = vmatpush1.bf16.msra.mxu0 0
        %3110 = vmatprep.subr.bf16.mxu0 0
        %3111 = vmatpush1.bf16.msra.mxu0 0
        %3112 = vmatprep.subr.bf16.mxu0 0
        %3113 = vmatpush1.bf16.msra.mxu0 0
        %3114 = vmatprep.subr.bf16.mxu0 0
        %3115 = vmatpush1.bf16.msra.mxu0 0
        %3116 = vmatprep.mubr.bf16.mxu0 0
        %3117 = vmatmul.mubr.bf16.gmra.mrb[0].mxu0 %v3080
        %v3118 = vpop.f32.mrb[0].mxu0
        %v3119 = vadd.f32 %v2888, %v3118
        %v3120 = vpop.f32.mrb[0].mxu0
        %v3121 = vpop.f32.mrb[0].mxu0
        %v3122 = vadd.f32 %v2888, %v3121
        %v3123 = vpop.f32.mrb[0].mxu0
        %3124 = vmatprep.mubr.bf16.mxu0 0
        %3125 = vmatmul.mubr.bf16.gmra.mrb[0].mxu0 %v3082
        %v3126 = vpop.f32.mrb[0].mxu0
        %v3127 = vadd.f32 %v2888, %v3126
        %v3128 = vpop.f32.mrb[0].mxu0
        %v3129 = vpop.f32.mrb[0].mxu0
        %v3130 = vpop.f32.mrb[0].mxu0
        %3131 = vdwg.mxu0
        %v3132 = vmax.f32 %v2961, %v3119
        %v3133 = vmax.f32 %v2964, %v3122
        %v3134 = vmax.f32 %v2969, %v3127
        %3135 = vst.msk [vmem:[#allocation9] sm:$0xff] %vm2843, %v3132
        %3136 = vst.msk [vmem:[#allocation9 + $0x8] sm:$0xff] %vm2843, %v3133
        %3137 = vst.msk [vmem:[#allocation9 + $0x10] sm:$0xff] %vm2843, %v3134
        %v3138 = vld [vmem:[#allocation9] ss:$2 sm:$0xff]
        %s3139 = scalar_lea.vmem [#allocation9], 16
        %v3140 = vld [vmem:[%s3139] ss:$2 sm:$0xf]
        %s3141 = scalar_lea.vmem [#allocation9], 1
        %v3142 = vld [vmem:[%s3141] ss:$2 sm:$0xff]
        %s3143 = scalar_lea.vmem [#allocation9], 17
        %v3144 = vld [vmem:[%s3143] ss:$2 sm:$0xf]
        %v3145 = vmax.f32 %v3138, %v3142
        %v3146 = vmax.f32 %v3140, %v3144
        %v3147 = vpack.c.bf16 %v3146, %v3145
        %v3149 = vunpack.c.l.b16 %v3147
        %v3150 = vunpack.c.h.b16 %v3147
        %v3151 = vpack.c.b16 %v3149, %v3149
        %v3152 = vpack.c.b16 %v3150, %v3150
        %s3155 = smul.addr %s2686, 4
        %s3156 = scalar_lea.vmem [#allocation4], %s3155
        %vm3157 = vcmask 60416
        %3158 = vst.msk [vmem:[%s3156] sm:$0xf] %vm3157, %v3151
        %vm3159 = vcmask 58368
        %3160 = vst.msk [vmem:[%s3156 + $0x4] sm:$0x3] %vm3159, %v3152
      $region99: #{neural_network_forward.1} parent=79 // loop_footer
        %s2685 = sadd.s32 1, %s2681
      $region100: #{neural_network_forward.1} parent=79 // loop_footer_branch
        %2680 = sbr.rel target = $region96
      $region101: #{neural_network_forward.1} parent=79 // loop_exit
        _
      %v3161 = vld [vmem:[%s7] sm:$0xf]
      %v3162 = vld [vmem:[%s7 + $0x4] sm:$0xf]
      %v3163 = vld [vmem:[%s7 + $0x8] sm:$0xf]
      %v3164 = vld [vmem:[%s7 + $0xc] sm:$0xf]
      %v3165 = vld [vmem:[%s7 + $0x10] sm:$0xf]
      %v3166 = vld [vmem:[%s7 + $0x14] sm:$0xf]
      %v3167 = vld [vmem:[%s7 + $0x18] sm:$0xf]
      %v3168 = vld [vmem:[%s7 + $0x1c] sm:$0xf]
      %v3169 = vld [vmem:[%s7 + $0x20] sm:$0xf]
      %v3170 = vld [vmem:[%s8] sm:$0x1]
      %v3171 = vld [vmem:[#allocation4] sm:$0xf]
      %v3172 = vld [vmem:[#allocation4 + $0x4] sm:$0x1]
      %v3173 = vld [vmem:[#allocation4 + $0x4] sm:$0x3]
      %v3174 = vld [vmem:[#allocation4] sm:$0xe]
      %s3175 = scalar_lea.vmem [#allocation4], 8
      %v3176 = vld [vmem:[%s3175] sm:$0xf]
      %v3177 = vld [vmem:[%s3175 + $0x4] sm:$0x1]
      %v3178 = vld [vmem:[%s3175 + $0x4] sm:$0x3]
      %v3179 = vld [vmem:[%s3175] sm:$0xe]
      %s3180 = scalar_lea.vmem [#allocation4], 16
      %v3181 = vld [vmem:[%s3180] sm:$0xf]
      %v3182 = vld [vmem:[%s3180 + $0x4] sm:$0x1]
      %v3183 = vld [vmem:[%s3180 + $0x4] sm:$0x3]
      %v3184 = vld [vmem:[%s3180] sm:$0xe]
      %v3187 = vunpack.c.l.b16 %v3171
      %v3188 = vunpack.c.l.b16 %v3172
      %v3189 = vpack.c.b16 %v3188, %v3187
      %v3191 = vunpack.c.l.b16 %v3173
      %v3192 = vpack.c.b16 %v3191, %v3187
      %v3194 = vshrl.u32 %v3192, 16
      %v3196 = vshll.u32 %v3192, 16
      %v3198 = vrot.slane %v3196, 1
      %v3199 = vor.u32 %v3194, %v3198
      %3200 = vrot.lane.b32.xlu0 %v3199, 8
      %v3201 = vpop.permute.xlu0 %3200
      %v3203 = vunpack.c.l.b16 %v3174
      %v3204 = vpack.c.b16 %v3191, %v3203
      %v3205 = vrot.slane %v3204, 1
      %3206 = vrot.lane.b32.xlu0 %v3205, 16
      %v3207 = vpop.permute.xlu0 %3206
      %v3210 = vunpack.c.l.b16 %v3176
      %v3211 = vunpack.c.l.b16 %v3177
      %v3212 = vpack.c.b16 %v3211, %v3210
      %3213 = vrot.lane.b32.xlu0 %v3212, 24
      %v3214 = vpop.permute.xlu0 %3213
      %v3216 = vunpack.c.l.b16 %v3178
      %v3217 = vpack.c.b16 %v3216, %v3210
      %v3219 = vshrl.u32 %v3217, 16
      %v3221 = vshll.u32 %v3217, 16
      %v3223 = vrot.slane %v3221, 1
      %v3224 = vor.u32 %v3219, %v3223
      %3225 = vrot.lane.b32.xlu0 %v3224, 32
      %v3226 = vpop.permute.xlu0 %3225
      %v3228 = vunpack.c.l.b16 %v3179
      %v3229 = vpack.c.b16 %v3216, %v3228
      %v3230 = vrot.slane %v3229, 1
      %3231 = vrot.lane.b32.xlu0 %v3230, 40
      %v3232 = vpop.permute.xlu0 %3231
      %v3235 = vunpack.c.l.b16 %v3181
      %v3236 = vunpack.c.l.b16 %v3182
      %v3237 = vpack.c.b16 %v3236, %v3235
      %3238 = vrot.lane.b32.xlu0 %v3237, 48
      %v3239 = vpop.permute.xlu0 %3238
      %v3241 = vunpack.c.l.b16 %v3183
      %v3242 = vpack.c.b16 %v3241, %v3235
      %v3244 = vshrl.u32 %v3242, 16
      %v3246 = vshll.u32 %v3242, 16
      %v3248 = vrot.slane %v3246, 1
      %v3249 = vor.u32 %v3244, %v3248
      %3250 = vrot.lane.b32.xlu0 %v3249, 56
      %v3251 = vpop.permute.xlu0 %3250
      %v3253 = vunpack.c.l.b16 %v3184
      %v3254 = vpack.c.b16 %v3241, %v3253
      %v3255 = vrot.slane %v3254, 1
      %3256 = vrot.lane.b32.xlu0 %v3255, 64
      %v3257 = vpop.permute.xlu0 %3256
      %vm3258 = vcmask 64512
      %v3261 = vsel %vm3258, %v3189, %v3201
      %vm3262 = vcmask 130048
      %v3264 = vsel %vm3262, %v3261, %v3207
      %vm3265 = vcmask 195584
      %v3267 = vsel %vm3265, %v3264, %v3214
      %vm3268 = vcmask 261120
      %v3270 = vsel %vm3268, %v3267, %v3226
      %vm3271 = vcmask 326656
      %v3273 = vsel %vm3271, %v3270, %v3232
      %vm3274 = vcmask 392192
      %v3276 = vsel %vm3274, %v3273, %v3239
      %vm3277 = vcmask 457728
      %v3279 = vsel %vm3277, %v3276, %v3251
      %vm3280 = vcmask 523264
      %v3282 = vsel %vm3280, %v3279, %v3257
      %v3284 = vlaneseq
      %v3285 = vshrl.u32 %v3284, 7
      %v3286 = vsub.s32 0, %v3285
      %v3287 = vrot.slane %v3170, %v3286
      %v3298 = vunpack.c.l.b16 %v3161
      %v3299 = vunpack.c.l.b16 %v3162
      %v3300 = vunpack.c.l.b16 %v3163
      %v3301 = vunpack.c.l.b16 %v3164
      %v3302 = vunpack.c.l.b16 %v3165
      %v3303 = vunpack.c.l.b16 %v3166
      %v3304 = vunpack.c.l.b16 %v3167
      %v3305 = vunpack.c.l.b16 %v3168
      %v3306 = vunpack.c.l.b16 %v3169
      %v3307 = vpack.c.b16 %v3299, %v3298
      %v3308 = vpack.c.b16 %v3301, %v3300
      %v3309 = vpack.c.b16 %v3303, %v3302
      %v3310 = vpack.c.b16 %v3305, %v3304
      %v3311 = vpack.c.b16 %v3306, %v3306
      %vm3316 = vcmask 588800
      %v3317 = vsel %vm3316, %v3282, 0
      %vm3319 = vcmask 1043456
      %v3321 = vsel %vm3319, %v3311, 0
      %3323 = vmatprep.subr.bf16.mxu0 0
      %3324 = vmatpush1.bf16.msra.mxu0 %v3307
      %3325 = vmatprep.subr.bf16.mxu0 0
      %3326 = vmatpush1.bf16.msra.mxu0 %v3308
      %3327 = vmatprep.subr.bf16.mxu0 0
      %3328 = vmatpush1.bf16.msra.mxu0 %v3309
      %3329 = vmatprep.subr.bf16.mxu0 0
      %3330 = vmatpush1.bf16.msra.mxu0 %v3310
      %3331 = vmatprep.subr.bf16.mxu0 0
      %3332 = vmatpush1.bf16.msra.mxu0 %v3321
      %3333 = vmatprep.subr.bf16.mxu0 0
      %3334 = vmatpush1.bf16.msra.mxu0 0
      %3335 = vmatprep.subr.bf16.mxu0 0
      %3336 = vmatpush1.bf16.msra.mxu0 0
      %3337 = vmatprep.subr.bf16.mxu0 0
      %3338 = vmatpush1.bf16.msra.mxu0 0
      %3339 = vmatprep.subr.bf16.mxu0 0
      %3340 = vmatpush1.bf16.msra.mxu0 0
      %3341 = vmatprep.subr.bf16.mxu0 0
      %3342 = vmatpush1.bf16.msra.mxu0 0
      %3343 = vmatprep.subr.bf16.mxu0 0
      %3344 = vmatpush1.bf16.msra.mxu0 0
      %3345 = vmatprep.subr.bf16.mxu0 0
      %3346 = vmatpush1.bf16.msra.mxu0 0
      %3347 = vmatprep.subr.bf16.mxu0 0
      %3348 = vmatpush1.bf16.msra.mxu0 0
      %3349 = vmatprep.subr.bf16.mxu0 0
      %3350 = vmatpush1.bf16.msra.mxu0 0
      %3351 = vmatprep.subr.bf16.mxu0 0
      %3352 = vmatpush1.bf16.msra.mxu0 0
      %3353 = vmatprep.subr.bf16.mxu0 0
      %3354 = vmatpush1.bf16.msra.mxu0 0
      %3355 = vmatprep.mubr.bf16.mxu0 0
      %3356 = vmatmul.mubr.bf16.gmra.mrb[0].mxu0 %v3317
      %v3357 = vpop.f32.mrb[0].mxu0
      %v3358 = vadd.f32 %v3287, %v3357
      %v3359 = vpop.f32.mrb[0].mxu0
      %v3360 = vpop.f32.mrb[0].mxu0
      %v3361 = vadd.f32 %v3287, %v3360
      %v3362 = vpop.f32.mrb[0].mxu0
      %3363 = vdwg.mxu0
      %v3364 = vmax.f32 %v3358, 0.0
      %v3365 = vmax.f32 %v3361, 0.0
      %s3366 = scalar_lea.vmem [#allocation4], 24
      %v3367 = vld [vmem:[%s3366] sm:$0xf]
      %v3368 = vld [vmem:[%s3366 + $0x4] sm:$0x1]
      %v3369 = vld [vmem:[%s3366 + $0x4] sm:$0x3]
      %v3370 = vld [vmem:[%s3366] sm:$0xe]
      %3371 = vrot.lane.b32.xlu0 %v3224, 8
      %v3372 = vpop.permute.xlu0 %3371
      %3373 = vrot.lane.b32.xlu0 %v3230, 16
      %v3374 = vpop.permute.xlu0 %3373
      %3375 = vrot.lane.b32.xlu0 %v3237, 24
      %v3376 = vpop.permute.xlu0 %3375
      %3377 = vrot.lane.b32.xlu0 %v3249, 32
      %v3378 = vpop.permute.xlu0 %3377
      %3379 = vrot.lane.b32.xlu0 %v3255, 40
      %v3380 = vpop.permute.xlu0 %3379
      %v3383 = vunpack.c.l.b16 %v3367
      %v3384 = vunpack.c.l.b16 %v3368
      %v3385 = vpack.c.b16 %v3384, %v3383
      %3386 = vrot.lane.b32.xlu0 %v3385, 48
      %v3387 = vpop.permute.xlu0 %3386
      %v3389 = vunpack.c.l.b16 %v3369
      %v3390 = vpack.c.b16 %v3389, %v3383
      %v3392 = vshrl.u32 %v3390, 16
      %v3394 = vshll.u32 %v3390, 16
      %v3396 = vrot.slane %v3394, 1
      %v3397 = vor.u32 %v3392, %v3396
      %3398 = vrot.lane.b32.xlu0 %v3397, 56
      %v3399 = vpop.permute.xlu0 %3398
      %v3401 = vunpack.c.l.b16 %v3370
      %v3402 = vpack.c.b16 %v3389, %v3401
      %v3403 = vrot.slane %v3402, 1
      %3404 = vrot.lane.b32.xlu0 %v3403, 64
      %v3405 = vpop.permute.xlu0 %3404
      %v3408 = vsel %vm3258, %v3212, %v3372
      %v3410 = vsel %vm3262, %v3408, %v3374
      %v3412 = vsel %vm3265, %v3410, %v3376
      %v3414 = vsel %vm3268, %v3412, %v3378
      %v3416 = vsel %vm3271, %v3414, %v3380
      %v3418 = vsel %vm3274, %v3416, %v3387
      %v3420 = vsel %vm3277, %v3418, %v3399
      %v3422 = vsel %vm3280, %v3420, %v3405
      %v3423 = vsel %vm3316, %v3422, 0
      %3425 = vmatprep.subr.bf16.mxu0 0
      %3426 = vmatpush1.bf16.msra.mxu0 %v3307
      %3427 = vmatprep.subr.bf16.mxu0 0
      %3428 = vmatpush1.bf16.msra.mxu0 %v3308
      %3429 = vmatprep.subr.bf16.mxu0 0
      %3430 = vmatpush1.bf16.msra.mxu0 %v3309
      %3431 = vmatprep.subr.bf16.mxu0 0
      %3432 = vmatpush1.bf16.msra.mxu0 %v3310
      %3433 = vmatprep.subr.bf16.mxu0 0
      %3434 = vmatpush1.bf16.msra.mxu0 %v3321
      %3435 = vmatprep.subr.bf16.mxu0 0
      %3436 = vmatpush1.bf16.msra.mxu0 0
      %3437 = vmatprep.subr.bf16.mxu0 0
      %3438 = vmatpush1.bf16.msra.mxu0 0
      %3439 = vmatprep.subr.bf16.mxu0 0
      %3440 = vmatpush1.bf16.msra.mxu0 0
      %3441 = vmatprep.subr.bf16.mxu0 0
      %3442 = vmatpush1.bf16.msra.mxu0 0
      %3443 = vmatprep.subr.bf16.mxu0 0
      %3444 = vmatpush1.bf16.msra.mxu0 0
      %3445 = vmatprep.subr.bf16.mxu0 0
      %3446 = vmatpush1.bf16.msra.mxu0 0
      %3447 = vmatprep.subr.bf16.mxu0 0
      %3448 = vmatpush1.bf16.msra.mxu0 0
      %3449 = vmatprep.subr.bf16.mxu0 0
      %3450 = vmatpush1.bf16.msra.mxu0 0
      %3451 = vmatprep.subr.bf16.mxu0 0
      %3452 = vmatpush1.bf16.msra.mxu0 0
      %3453 = vmatprep.subr.bf16.mxu0 0
      %3454 = vmatpush1.bf16.msra.mxu0 0
      %3455 = vmatprep.subr.bf16.mxu0 0
      %3456 = vmatpush1.bf16.msra.mxu0 0
      %3457 = vmatprep.mubr.bf16.mxu0 0
      %3458 = vmatmul.mubr.bf16.gmra.mrb[0].mxu0 %v3423
      %v3459 = vpop.f32.mrb[0].mxu0
      %v3460 = vadd.f32 %v3287, %v3459
      %v3461 = vpop.f32.mrb[0].mxu0
      %v3462 = vpop.f32.mrb[0].mxu0
      %v3463 = vadd.f32 %v3287, %v3462
      %v3464 = vpop.f32.mrb[0].mxu0
      %3465 = vdwg.mxu0
      %v3466 = vmax.f32 %v3460, 0.0
      %v3467 = vmax.f32 %v3463, 0.0
      %v3468 = vmax.f32 %v3364, %v3466
      %v3469 = vmax.f32 %v3365, %v3467
      %3470 = vst.msk [vmem:[#allocation10] sm:$0xff] %vm3262, %v3468
      %vm3471 = vcmask 123904
      %3472 = vst.msk [vmem:[#allocation10 + $0x8] sm:$0x3] %vm3471, %v3469
      %v3473 = vld [vmem:[#allocation10] ss:$2 sm:$0x1f]
      %s3474 = scalar_lea.vmem [#allocation10], 1
      %v3475 = vld [vmem:[%s3474] ss:$2 sm:$0x1f]
      %v3476 = vmax.f32 %v3473, %v3475
      %v3477 = vpack.c.bf16 %v3476, %v3476
      %vm3478 = vcmask 124928
      %vm3479 = vsmask.f32 2304
      %vm3480 = vmand %vm3478, %vm3479
      %v3481 = vld [vmem:[#allocation5] sm:$0x7]
      %v3482 = vsel %vm3480, %v3477, %v3481
      %3483 = vst [vmem:[#allocation5] sm:$0x7] %v3482
      %v3484 = vld [vmem:[%s3180] sm:$0xf]
      %v3485 = vld [vmem:[%s3180 + $0x4] sm:$0x1]
      %v3486 = vld [vmem:[%s3180 + $0x4] sm:$0x3]
      %v3487 = vld [vmem:[%s3180] sm:$0xe]
      %v3488 = vld [vmem:[%s3366] sm:$0xf]
      %v3489 = vld [vmem:[%s3366 + $0x4] sm:$0x1]
      %v3490 = vld [vmem:[%s3366 + $0x4] sm:$0x3]
      %v3491 = vld [vmem:[%s3366] sm:$0xe]
      %s3492 = scalar_lea.vmem [#allocation4], 32
      %v3493 = vld [vmem:[%s3492] sm:$0xf]
      %v3494 = vld [vmem:[%s3492 + $0x4] sm:$0x1]
      %v3495 = vld [vmem:[%s3492 + $0x4] sm:$0x3]
      %v3496 = vld [vmem:[%s3492] sm:$0xe]
      %v3499 = vunpack.c.l.b16 %v3484
      %v3500 = vunpack.c.l.b16 %v3485
      %v3501 = vpack.c.b16 %v3500, %v3499
      %v3503 = vunpack.c.l.b16 %v3486
      %v3504 = vpack.c.b16 %v3503, %v3499
      %v3506 = vshrl.u32 %v3504, 16
      %v3508 = vshll.u32 %v3504, 16
      %v3510 = vrot.slane %v3508, 1
      %v3511 = vor.u32 %v3506, %v3510
      %3512 = vrot.lane.b32.xlu0 %v3511, 8
      %v3513 = vpop.permute.xlu0 %3512
      %v3515 = vunpack.c.l.b16 %v3487
      %v3516 = vpack.c.b16 %v3503, %v3515
      %v3517 = vrot.slane %v3516, 1
      %3518 = vrot.lane.b32.xlu0 %v3517, 16
      %v3519 = vpop.permute.xlu0 %3518
      %v3522 = vunpack.c.l.b16 %v3488
      %v3523 = vunpack.c.l.b16 %v3489
      %v3524 = vpack.c.b16 %v3523, %v3522
      %3525 = vrot.lane.b32.xlu0 %v3524, 24
      %v3526 = vpop.permute.xlu0 %3525
      %v3528 = vunpack.c.l.b16 %v3490
      %v3529 = vpack.c.b16 %v3528, %v3522
      %v3531 = vshrl.u32 %v3529, 16
      %v3533 = vshll.u32 %v3529, 16
      %v3535 = vrot.slane %v3533, 1
      %v3536 = vor.u32 %v3531, %v3535
      %3537 = vrot.lane.b32.xlu0 %v3536, 32
      %v3538 = vpop.permute.xlu0 %3537
      %v3540 = vunpack.c.l.b16 %v3491
      %v3541 = vpack.c.b16 %v3528, %v3540
      %v3542 = vrot.slane %v3541, 1
      %3543 = vrot.lane.b32.xlu0 %v3542, 40
      %v3544 = vpop.permute.xlu0 %3543
      %v3547 = vunpack.c.l.b16 %v3493
      %v3548 = vunpack.c.l.b16 %v3494
      %v3549 = vpack.c.b16 %v3548, %v3547
      %3550 = vrot.lane.b32.xlu0 %v3549, 48
      %v3551 = vpop.permute.xlu0 %3550
      %v3553 = vunpack.c.l.b16 %v3495
      %v3554 = vpack.c.b16 %v3553, %v3547
      %v3556 = vshrl.u32 %v3554, 16
      %v3558 = vshll.u32 %v3554, 16
      %v3560 = vrot.slane %v3558, 1
      %v3561 = vor.u32 %v3556, %v3560
      %3562 = vrot.lane.b32.xlu0 %v3561, 56
      %v3563 = vpop.permute.xlu0 %3562
      %v3565 = vunpack.c.l.b16 %v3496
      %v3566 = vpack.c.b16 %v3553, %v3565
      %v3567 = vrot.slane %v3566, 1
      %3568 = vrot.lane.b32.xlu0 %v3567, 64
      %v3569 = vpop.permute.xlu0 %3568
      %v3572 = vsel %vm3258, %v3501, %v3513
      %v3574 = vsel %vm3262, %v3572, %v3519
      %v3576 = vsel %vm3265, %v3574, %v3526
      %v3578 = vsel %vm3268, %v3576, %v3538
      %v3580 = vsel %vm3271, %v3578, %v3544
      %v3582 = vsel %vm3274, %v3580, %v3551
      %v3584 = vsel %vm3277, %v3582, %v3563
      %v3586 = vsel %vm3280, %v3584, %v3569
      %v3587 = vsel %vm3316, %v3586, 0
      %3589 = vmatprep.subr.bf16.mxu0 0
      %3590 = vmatpush1.bf16.msra.mxu0 %v3307
      %3591 = vmatprep.subr.bf16.mxu0 0
      %3592 = vmatpush1.bf16.msra.mxu0 %v3308
      %3593 = vmatprep.subr.bf16.mxu0 0
      %3594 = vmatpush1.bf16.msra.mxu0 %v3309
      %3595 = vmatprep.subr.bf16.mxu0 0
      %3596 = vmatpush1.bf16.msra.mxu0 %v3310
      %3597 = vmatprep.subr.bf16.mxu0 0
      %3598 = vmatpush1.bf16.msra.mxu0 %v3321
      %3599 = vmatprep.subr.bf16.mxu0 0
      %3600 = vmatpush1.bf16.msra.mxu0 0
      %3601 = vmatprep.subr.bf16.mxu0 0
      %3602 = vmatpush1.bf16.msra.mxu0 0
      %3603 = vmatprep.subr.bf16.mxu0 0
      %3604 = vmatpush1.bf16.msra.mxu0 0
      %3605 = vmatprep.subr.bf16.mxu0 0
      %3606 = vmatpush1.bf16.msra.mxu0 0
      %3607 = vmatprep.subr.bf16.mxu0 0
      %3608 = vmatpush1.bf16.msra.mxu0 0
      %3609 = vmatprep.subr.bf16.mxu0 0
      %3610 = vmatpush1.bf16.msra.mxu0 0
      %3611 = vmatprep.subr.bf16.mxu0 0
      %3612 = vmatpush1.bf16.msra.mxu0 0
      %3613 = vmatprep.subr.bf16.mxu0 0
      %3614 = vmatpush1.bf16.msra.mxu0 0
      %3615 = vmatprep.subr.bf16.mxu0 0
      %3616 = vmatpush1.bf16.msra.mxu0 0
      %3617 = vmatprep.subr.bf16.mxu0 0
      %3618 = vmatpush1.bf16.msra.mxu0 0
      %3619 = vmatprep.subr.bf16.mxu0 0
      %3620 = vmatpush1.bf16.msra.mxu0 0
      %3621 = vmatprep.mubr.bf16.mxu0 0
      %3622 = vmatmul.mubr.bf16.gmra.mrb[0].mxu0 %v3587
      %v3623 = vpop.f32.mrb[0].mxu0
      %v3624 = vadd.f32 %v3287, %v3623
      %v3625 = vpop.f32.mrb[0].mxu0
      %v3626 = vpop.f32.mrb[0].mxu0
      %v3627 = vadd.f32 %v3287, %v3626
      %v3628 = vpop.f32.mrb[0].mxu0
      %3629 = vdwg.mxu0
      %v3630 = vmax.f32 %v3624, 0.0
      %v3631 = vmax.f32 %v3627, 0.0
      %s3632 = scalar_lea.vmem [#allocation4], 40
      %v3633 = vld [vmem:[%s3632] sm:$0xf]
      %v3634 = vld [vmem:[%s3632 + $0x4] sm:$0x1]
      %v3635 = vld [vmem:[%s3632 + $0x4] sm:$0x3]
      %v3636 = vld [vmem:[%s3632] sm:$0xe]
      %3637 = vrot.lane.b32.xlu0 %v3536, 8
      %v3638 = vpop.permute.xlu0 %3637
      %3639 = vrot.lane.b32.xlu0 %v3542, 16
      %v3640 = vpop.permute.xlu0 %3639
      %3641 = vrot.lane.b32.xlu0 %v3549, 24
      %v3642 = vpop.permute.xlu0 %3641
      %3643 = vrot.lane.b32.xlu0 %v3561, 32
      %v3644 = vpop.permute.xlu0 %3643
      %3645 = vrot.lane.b32.xlu0 %v3567, 40
      %v3646 = vpop.permute.xlu0 %3645
      %v3649 = vunpack.c.l.b16 %v3633
      %v3650 = vunpack.c.l.b16 %v3634
      %v3651 = vpack.c.b16 %v3650, %v3649
      %3652 = vrot.lane.b32.xlu0 %v3651, 48
      %v3653 = vpop.permute.xlu0 %3652
      %v3655 = vunpack.c.l.b16 %v3635
      %v3656 = vpack.c.b16 %v3655, %v3649
      %v3658 = vshrl.u32 %v3656, 16
      %v3660 = vshll.u32 %v3656, 16
      %v3662 = vrot.slane %v3660, 1
      %v3663 = vor.u32 %v3658, %v3662
      %3664 = vrot.lane.b32.xlu0 %v3663, 56
      %v3665 = vpop.permute.xlu0 %3664
      %v3667 = vunpack.c.l.b16 %v3636
      %v3668 = vpack.c.b16 %v3655, %v3667
      %v3669 = vrot.slane %v3668, 1
      %3670 = vrot.lane.b32.xlu0 %v3669, 64
      %v3671 = vpop.permute.xlu0 %3670
      %v3674 = vsel %vm3258, %v3524, %v3638
      %v3676 = vsel %vm3262, %v3674, %v3640
      %v3678 = vsel %vm3265, %v3676, %v3642
      %v3680 = vsel %vm3268, %v3678, %v3644
      %v3682 = vsel %vm3271, %v3680, %v3646
      %v3684 = vsel %vm3274, %v3682, %v3653
      %v3686 = vsel %vm3277, %v3684, %v3665
      %v3688 = vsel %vm3280, %v3686, %v3671
      %v3689 = vsel %vm3316, %v3688, 0
      %3691 = vmatprep.subr.bf16.mxu0 0
      %3692 = vmatpush1.bf16.msra.mxu0 %v3307
      %3693 = vmatprep.subr.bf16.mxu0 0
      %3694 = vmatpush1.bf16.msra.mxu0 %v3308
      %3695 = vmatprep.subr.bf16.mxu0 0
      %3696 = vmatpush1.bf16.msra.mxu0 %v3309
      %3697 = vmatprep.subr.bf16.mxu0 0
      %3698 = vmatpush1.bf16.msra.mxu0 %v3310
      %3699 = vmatprep.subr.bf16.mxu0 0
      %3700 = vmatpush1.bf16.msra.mxu0 %v3321
      %3701 = vmatprep.subr.bf16.mxu0 0
      %3702 = vmatpush1.bf16.msra.mxu0 0
      %3703 = vmatprep.subr.bf16.mxu0 0
      %3704 = vmatpush1.bf16.msra.mxu0 0
      %3705 = vmatprep.subr.bf16.mxu0 0
      %3706 = vmatpush1.bf16.msra.mxu0 0
      %3707 = vmatprep.subr.bf16.mxu0 0
      %3708 = vmatpush1.bf16.msra.mxu0 0
      %3709 = vmatprep.subr.bf16.mxu0 0
      %3710 = vmatpush1.bf16.msra.mxu0 0
      %3711 = vmatprep.subr.bf16.mxu0 0
      %3712 = vmatpush1.bf16.msra.mxu0 0
      %3713 = vmatprep.subr.bf16.mxu0 0
      %3714 = vmatpush1.bf16.msra.mxu0 0
      %3715 = vmatprep.subr.bf16.mxu0 0
      %3716 = vmatpush1.bf16.msra.mxu0 0
      %3717 = vmatprep.subr.bf16.mxu0 0
      %3718 = vmatpush1.bf16.msra.mxu0 0
      %3719 = vmatprep.subr.bf16.mxu0 0
      %3720 = vmatpush1.bf16.msra.mxu0 0
      %3721 = vmatprep.subr.bf16.mxu0 0
      %3722 = vmatpush1.bf16.msra.mxu0 0
      %3723 = vmatprep.mubr.bf16.mxu0 0
      %3724 = vmatmul.mubr.bf16.gmra.mrb[0].mxu0 %v3689
      %v3725 = vpop.f32.mrb[0].mxu0
      %v3726 = vadd.f32 %v3287, %v3725
      %v3727 = vpop.f32.mrb[0].mxu0
      %v3728 = vpop.f32.mrb[0].mxu0
      %v3729 = vadd.f32 %v3287, %v3728
      %v3730 = vpop.f32.mrb[0].mxu0
      %3731 = vdwg.mxu0
      %v3732 = vmax.f32 %v3726, 0.0
      %v3733 = vmax.f32 %v3729, 0.0
      %v3734 = vmax.f32 %v3630, %v3732
      %v3735 = vmax.f32 %v3631, %v3733
      %3736 = vst.msk [vmem:[#allocation10] sm:$0xff] %vm3262, %v3734
      %3737 = vst.msk [vmem:[#allocation10 + $0x8] sm:$0x3] %vm3471, %v3735
      %v3738 = vld [vmem:[#allocation10] ss:$2 sm:$0x1f]
      %v3739 = vld [vmem:[%s3474] ss:$2 sm:$0x1f]
      %v3740 = vmax.f32 %v3738, %v3739
      %v3741 = vpack.c.bf16 %v3740, %v3740
      %s3742 = scalar_lea.vmem [#allocation5], 4
      %v3743 = vld [vmem:[%s3742] sm:$0x7]
      %v3744 = vsel %vm3480, %v3741, %v3743
      %3745 = vst [vmem:[%s3742] sm:$0x7] %v3744
      %v3746 = vld [vmem:[%s3492] sm:$0xf]
      %v3747 = vld [vmem:[%s3492 + $0x4] sm:$0x1]
      %v3748 = vld [vmem:[%s3492 + $0x4] sm:$0x3]
      %v3749 = vld [vmem:[%s3492] sm:$0xe]
      %v3750 = vld [vmem:[%s3632] sm:$0xf]
      %v3751 = vld [vmem:[%s3632 + $0x4] sm:$0x1]
      %v3752 = vld [vmem:[%s3632 + $0x4] sm:$0x3]
      %v3753 = vld [vmem:[%s3632] sm:$0xe]
      %s3754 = scalar_lea.vmem [#allocation4], 48
      %v3755 = vld [vmem:[%s3754] sm:$0xf]
      %v3756 = vld [vmem:[%s3754 + $0x4] sm:$0x1]
      %v3757 = vld [vmem:[%s3754 + $0x4] sm:$0x3]
      %v3758 = vld [vmem:[%s3754] sm:$0xe]
      %v3761 = vunpack.c.l.b16 %v3746
      %v3762 = vunpack.c.l.b16 %v3747
      %v3763 = vpack.c.b16 %v3762, %v3761
      %v3765 = vunpack.c.l.b16 %v3748
      %v3766 = vpack.c.b16 %v3765, %v3761
      %v3768 = vshrl.u32 %v3766, 16
      %v3770 = vshll.u32 %v3766, 16
      %v3772 = vrot.slane %v3770, 1
      %v3773 = vor.u32 %v3768, %v3772
      %3774 = vrot.lane.b32.xlu0 %v3773, 8
      %v3775 = vpop.permute.xlu0 %3774
      %v3777 = vunpack.c.l.b16 %v3749
      %v3778 = vpack.c.b16 %v3765, %v3777
      %v3779 = vrot.slane %v3778, 1
      %3780 = vrot.lane.b32.xlu0 %v3779, 16
      %v3781 = vpop.permute.xlu0 %3780
      %v3784 = vunpack.c.l.b16 %v3750
      %v3785 = vunpack.c.l.b16 %v3751
      %v3786 = vpack.c.b16 %v3785, %v3784
      %3787 = vrot.lane.b32.xlu0 %v3786, 24
      %v3788 = vpop.permute.xlu0 %3787
      %v3790 = vunpack.c.l.b16 %v3752
      %v3791 = vpack.c.b16 %v3790, %v3784
      %v3793 = vshrl.u32 %v3791, 16
      %v3795 = vshll.u32 %v3791, 16
      %v3797 = vrot.slane %v3795, 1
      %v3798 = vor.u32 %v3793, %v3797
      %3799 = vrot.lane.b32.xlu0 %v3798, 32
      %v3800 = vpop.permute.xlu0 %3799
      %v3802 = vunpack.c.l.b16 %v3753
      %v3803 = vpack.c.b16 %v3790, %v3802
      %v3804 = vrot.slane %v3803, 1
      %3805 = vrot.lane.b32.xlu0 %v3804, 40
      %v3806 = vpop.permute.xlu0 %3805
      %v3809 = vunpack.c.l.b16 %v3755
      %v3810 = vunpack.c.l.b16 %v3756
      %v3811 = vpack.c.b16 %v3810, %v3809
      %3812 = vrot.lane.b32.xlu0 %v3811, 48
      %v3813 = vpop.permute.xlu0 %3812
      %v3815 = vunpack.c.l.b16 %v3757
      %v3816 = vpack.c.b16 %v3815, %v3809
      %v3818 = vshrl.u32 %v3816, 16
      %v3820 = vshll.u32 %v3816, 16
      %v3822 = vrot.slane %v3820, 1
      %v3823 = vor.u32 %v3818, %v3822
      %3824 = vrot.lane.b32.xlu0 %v3823, 56
      %v3825 = vpop.permute.xlu0 %3824
      %v3827 = vunpack.c.l.b16 %v3758
      %v3828 = vpack.c.b16 %v3815, %v3827
      %v3829 = vrot.slane %v3828, 1
      %3830 = vrot.lane.b32.xlu0 %v3829, 64
      %v3831 = vpop.permute.xlu0 %3830
      %v3834 = vsel %vm3258, %v3763, %v3775
      %v3836 = vsel %vm3262, %v3834, %v3781
      %v3838 = vsel %vm3265, %v3836, %v3788
      %v3840 = vsel %vm3268, %v3838, %v3800
      %v3842 = vsel %vm3271, %v3840, %v3806
      %v3844 = vsel %vm3274, %v3842, %v3813
      %v3846 = vsel %vm3277, %v3844, %v3825
      %v3848 = vsel %vm3280, %v3846, %v3831
      %v3849 = vsel %vm3316, %v3848, 0
      %3851 = vmatprep.subr.bf16.mxu0 0
      %3852 = vmatpush1.bf16.msra.mxu0 %v3307
      %3853 = vmatprep.subr.bf16.mxu0 0
      %3854 = vmatpush1.bf16.msra.mxu0 %v3308
      %3855 = vmatprep.subr.bf16.mxu0 0
      %3856 = vmatpush1.bf16.msra.mxu0 %v3309
      %3857 = vmatprep.subr.bf16.mxu0 0
      %3858 = vmatpush1.bf16.msra.mxu0 %v3310
      %3859 = vmatprep.subr.bf16.mxu0 0
      %3860 = vmatpush1.bf16.msra.mxu0 %v3321
      %3861 = vmatprep.subr.bf16.mxu0 0
      %3862 = vmatpush1.bf16.msra.mxu0 0
      %3863 = vmatprep.subr.bf16.mxu0 0
      %3864 = vmatpush1.bf16.msra.mxu0 0
      %3865 = vmatprep.subr.bf16.mxu0 0
      %3866 = vmatpush1.bf16.msra.mxu0 0
      %3867 = vmatprep.subr.bf16.mxu0 0
      %3868 = vmatpush1.bf16.msra.mxu0 0
      %3869 = vmatprep.subr.bf16.mxu0 0
      %3870 = vmatpush1.bf16.msra.mxu0 0
      %3871 = vmatprep.subr.bf16.mxu0 0
      %3872 = vmatpush1.bf16.msra.mxu0 0
      %3873 = vmatprep.subr.bf16.mxu0 0
      %3874 = vmatpush1.bf16.msra.mxu0 0
      %3875 = vmatprep.subr.bf16.mxu0 0
      %3876 = vmatpush1.bf16.msra.mxu0 0
      %3877 = vmatprep.subr.bf16.mxu0 0
      %3878 = vmatpush1.bf16.msra.mxu0 0
      %3879 = vmatprep.subr.bf16.mxu0 0
      %3880 = vmatpush1.bf16.msra.mxu0 0
      %3881 = vmatprep.subr.bf16.mxu0 0
      %3882 = vmatpush1.bf16.msra.mxu0 0
      %3883 = vmatprep.mubr.bf16.mxu0 0
      %3884 = vmatmul.mubr.bf16.gmra.mrb[0].mxu0 %v3849
      %v3885 = vpop.f32.mrb[0].mxu0
      %v3886 = vadd.f32 %v3287, %v3885
      %v3887 = vpop.f32.mrb[0].mxu0
      %v3888 = vpop.f32.mrb[0].mxu0
      %v3889 = vadd.f32 %v3287, %v3888
      %v3890 = vpop.f32.mrb[0].mxu0
      %3891 = vdwg.mxu0
      %v3892 = vmax.f32 %v3886, 0.0
      %v3893 = vmax.f32 %v3889, 0.0
      %s3894 = scalar_lea.vmem [#allocation4], 56
      %v3895 = vld [vmem:[%s3894] sm:$0xf]
      %v3896 = vld [vmem:[%s3894 + $0x4] sm:$0x1]
      %v3897 = vld [vmem:[%s3894 + $0x4] sm:$0x3]
      %v3898 = vld [vmem:[%s3894] sm:$0xe]
      %3899 = vrot.lane.b32.xlu0 %v3798, 8
      %v3900 = vpop.permute.xlu0 %3899
      %3901 = vrot.lane.b32.xlu0 %v3804, 16
      %v3902 = vpop.permute.xlu0 %3901
      %3903 = vrot.lane.b32.xlu0 %v3811, 24
      %v3904 = vpop.permute.xlu0 %3903
      %3905 = vrot.lane.b32.xlu0 %v3823, 32
      %v3906 = vpop.permute.xlu0 %3905
      %3907 = vrot.lane.b32.xlu0 %v3829, 40
      %v3908 = vpop.permute.xlu0 %3907
      %v3911 = vunpack.c.l.b16 %v3895
      %v3912 = vunpack.c.l.b16 %v3896
      %v3913 = vpack.c.b16 %v3912, %v3911
      %3914 = vrot.lane.b32.xlu0 %v3913, 48
      %v3915 = vpop.permute.xlu0 %3914
      %v3917 = vunpack.c.l.b16 %v3897
      %v3918 = vpack.c.b16 %v3917, %v3911
      %v3920 = vshrl.u32 %v3918, 16
      %v3922 = vshll.u32 %v3918, 16
      %v3924 = vrot.slane %v3922, 1
      %v3925 = vor.u32 %v3920, %v3924
      %3926 = vrot.lane.b32.xlu0 %v3925, 56
      %v3927 = vpop.permute.xlu0 %3926
      %v3929 = vunpack.c.l.b16 %v3898
      %v3930 = vpack.c.b16 %v3917, %v3929
      %v3931 = vrot.slane %v3930, 1
      %3932 = vrot.lane.b32.xlu0 %v3931, 64
      %v3933 = vpop.permute.xlu0 %3932
      %v3936 = vsel %vm3258, %v3786, %v3900
      %v3938 = vsel %vm3262, %v3936, %v3902
      %v3940 = vsel %vm3265, %v3938, %v3904
      %v3942 = vsel %vm3268, %v3940, %v3906
      %v3944 = vsel %vm3271, %v3942, %v3908
      %v3946 = vsel %vm3274, %v3944, %v3915
      %v3948 = vsel %vm3277, %v3946, %v3927
      %v3950 = vsel %vm3280, %v3948, %v3933
      %v3951 = vsel %vm3316, %v3950, 0
      %3953 = vmatprep.subr.bf16.mxu0 0
      %3954 = vmatpush1.bf16.msra.mxu0 %v3307
      %3955 = vmatprep.subr.bf16.mxu0 0
      %3956 = vmatpush1.bf16.msra.mxu0 %v3308
      %3957 = vmatprep.subr.bf16.mxu0 0
      %3958 = vmatpush1.bf16.msra.mxu0 %v3309
      %3959 = vmatprep.subr.bf16.mxu0 0
      %3960 = vmatpush1.bf16.msra.mxu0 %v3310
      %3961 = vmatprep.subr.bf16.mxu0 0
      %3962 = vmatpush1.bf16.msra.mxu0 %v3321
      %3963 = vmatprep.subr.bf16.mxu0 0
      %3964 = vmatpush1.bf16.msra.mxu0 0
      %3965 = vmatprep.subr.bf16.mxu0 0
      %3966 = vmatpush1.bf16.msra.mxu0 0
      %3967 = vmatprep.subr.bf16.mxu0 0
      %3968 = vmatpush1.bf16.msra.mxu0 0
      %3969 = vmatprep.subr.bf16.mxu0 0
      %3970 = vmatpush1.bf16.msra.mxu0 0
      %3971 = vmatprep.subr.bf16.mxu0 0
      %3972 = vmatpush1.bf16.msra.mxu0 0
      %3973 = vmatprep.subr.bf16.mxu0 0
      %3974 = vmatpush1.bf16.msra.mxu0 0
      %3975 = vmatprep.subr.bf16.mxu0 0
      %3976 = vmatpush1.bf16.msra.mxu0 0
      %3977 = vmatprep.subr.bf16.mxu0 0
      %3978 = vmatpush1.bf16.msra.mxu0 0
      %3979 = vmatprep.subr.bf16.mxu0 0
      %3980 = vmatpush1.bf16.msra.mxu0 0
      %3981 = vmatprep.subr.bf16.mxu0 0
      %3982 = vmatpush1.bf16.msra.mxu0 0
      %3983 = vmatprep.subr.bf16.mxu0 0
      %3984 = vmatpush1.bf16.msra.mxu0 0
      %3985 = vmatprep.mubr.bf16.mxu0 0
      %3986 = vmatmul.mubr.bf16.gmra.mrb[0].mxu0 %v3951
      %v3987 = vpop.f32.mrb[0].mxu0
      %v3988 = vadd.f32 %v3287, %v3987
      %v3989 = vpop.f32.mrb[0].mxu0
      %v3990 = vpop.f32.mrb[0].mxu0
      %v3991 = vadd.f32 %v3287, %v3990
      %v3992 = vpop.f32.mrb[0].mxu0
      %3993 = vdwg.mxu0
      %v3994 = vmax.f32 %v3988, 0.0
      %v3995 = vmax.f32 %v3991, 0.0
      %v3996 = vmax.f32 %v3892, %v3994
      %v3997 = vmax.f32 %v3893, %v3995
      %3998 = vst.msk [vmem:[#allocation10] sm:$0xff] %vm3262, %v3996
      %3999 = vst.msk [vmem:[#allocation10 + $0x8] sm:$0x3] %vm3471, %v3997
      %v4000 = vld [vmem:[#allocation10] ss:$2 sm:$0x1f]
      %v4001 = vld [vmem:[%s3474] ss:$2 sm:$0x1f]
      %v4002 = vmax.f32 %v4000, %v4001
      %v4003 = vpack.c.bf16 %v4002, %v4002
      %s4004 = scalar_lea.vmem [#allocation5], 8
      %v4005 = vld [vmem:[%s4004] sm:$0x7]
      %v4006 = vsel %vm3480, %v4003, %v4005
      %4007 = vst [vmem:[%s4004] sm:$0x7] %v4006
      %v4008 = vld [vmem:[%s3754] sm:$0xf]
      %v4009 = vld [vmem:[%s3754 + $0x4] sm:$0x1]
      %v4010 = vld [vmem:[%s3754 + $0x4] sm:$0x3]
      %v4011 = vld [vmem:[%s3754] sm:$0xe]
      %v4012 = vld [vmem:[%s3894] sm:$0xf]
      %v4013 = vld [vmem:[%s3894 + $0x4] sm:$0x1]
      %v4014 = vld [vmem:[%s3894 + $0x4] sm:$0x3]
      %v4015 = vld [vmem:[%s3894] sm:$0xe]
      %s4016 = scalar_lea.vmem [#allocation4], 64
      %v4017 = vld [vmem:[%s4016] sm:$0xf]
      %v4018 = vld [vmem:[%s4016 + $0x4] sm:$0x1]
      %v4019 = vld [vmem:[%s4016 + $0x4] sm:$0x3]
      %v4020 = vld [vmem:[%s4016] sm:$0xe]
      %v4023 = vunpack.c.l.b16 %v4008
      %v4024 = vunpack.c.l.b16 %v4009
      %v4025 = vpack.c.b16 %v4024, %v4023
      %v4027 = vunpack.c.l.b16 %v4010
      %v4028 = vpack.c.b16 %v4027, %v4023
      %v4030 = vshrl.u32 %v4028, 16
      %v4032 = vshll.u32 %v4028, 16
      %v4034 = vrot.slane %v4032, 1
      %v4035 = vor.u32 %v4030, %v4034
      %4036 = vrot.lane.b32.xlu0 %v4035, 8
      %v4037 = vpop.permute.xlu0 %4036
      %v4039 = vunpack.c.l.b16 %v4011
      %v4040 = vpack.c.b16 %v4027, %v4039
      %v4041 = vrot.slane %v4040, 1
      %4042 = vrot.lane.b32.xlu0 %v4041, 16
      %v4043 = vpop.permute.xlu0 %4042
      %v4046 = vunpack.c.l.b16 %v4012
      %v4047 = vunpack.c.l.b16 %v4013
      %v4048 = vpack.c.b16 %v4047, %v4046
      %4049 = vrot.lane.b32.xlu0 %v4048, 24
      %v4050 = vpop.permute.xlu0 %4049
      %v4052 = vunpack.c.l.b16 %v4014
      %v4053 = vpack.c.b16 %v4052, %v4046
      %v4055 = vshrl.u32 %v4053, 16
      %v4057 = vshll.u32 %v4053, 16
      %v4059 = vrot.slane %v4057, 1
      %v4060 = vor.u32 %v4055, %v4059
      %4061 = vrot.lane.b32.xlu0 %v4060, 32
      %v4062 = vpop.permute.xlu0 %4061
      %v4064 = vunpack.c.l.b16 %v4015
      %v4065 = vpack.c.b16 %v4052, %v4064
      %v4066 = vrot.slane %v4065, 1
      %4067 = vrot.lane.b32.xlu0 %v4066, 40
      %v4068 = vpop.permute.xlu0 %4067
      %v4071 = vunpack.c.l.b16 %v4017
      %v4072 = vunpack.c.l.b16 %v4018
      %v4073 = vpack.c.b16 %v4072, %v4071
      %4074 = vrot.lane.b32.xlu0 %v4073, 48
      %v4075 = vpop.permute.xlu0 %4074
      %v4077 = vunpack.c.l.b16 %v4019
      %v4078 = vpack.c.b16 %v4077, %v4071
      %v4080 = vshrl.u32 %v4078, 16
      %v4082 = vshll.u32 %v4078, 16
      %v4084 = vrot.slane %v4082, 1
      %v4085 = vor.u32 %v4080, %v4084
      %4086 = vrot.lane.b32.xlu0 %v4085, 56
      %v4087 = vpop.permute.xlu0 %4086
      %v4089 = vunpack.c.l.b16 %v4020
      %v4090 = vpack.c.b16 %v4077, %v4089
      %v4091 = vrot.slane %v4090, 1
      %4092 = vrot.lane.b32.xlu0 %v4091, 64
      %v4093 = vpop.permute.xlu0 %4092
      %v4096 = vsel %vm3258, %v4025, %v4037
      %v4098 = vsel %vm3262, %v4096, %v4043
      %v4100 = vsel %vm3265, %v4098, %v4050
      %v4102 = vsel %vm3268, %v4100, %v4062
      %v4104 = vsel %vm3271, %v4102, %v4068
      %v4106 = vsel %vm3274, %v4104, %v4075
      %v4108 = vsel %vm3277, %v4106, %v4087
      %v4110 = vsel %vm3280, %v4108, %v4093
      %v4111 = vsel %vm3316, %v4110, 0
      %4113 = vmatprep.subr.bf16.mxu0 0
      %4114 = vmatpush1.bf16.msra.mxu0 %v3307
      %4115 = vmatprep.subr.bf16.mxu0 0
      %4116 = vmatpush1.bf16.msra.mxu0 %v3308
      %4117 = vmatprep.subr.bf16.mxu0 0
      %4118 = vmatpush1.bf16.msra.mxu0 %v3309
      %4119 = vmatprep.subr.bf16.mxu0 0
      %4120 = vmatpush1.bf16.msra.mxu0 %v3310
      %4121 = vmatprep.subr.bf16.mxu0 0
      %4122 = vmatpush1.bf16.msra.mxu0 %v3321
      %4123 = vmatprep.subr.bf16.mxu0 0
      %4124 = vmatpush1.bf16.msra.mxu0 0
      %4125 = vmatprep.subr.bf16.mxu0 0
      %4126 = vmatpush1.bf16.msra.mxu0 0
      %4127 = vmatprep.subr.bf16.mxu0 0
      %4128 = vmatpush1.bf16.msra.mxu0 0
      %4129 = vmatprep.subr.bf16.mxu0 0
      %4130 = vmatpush1.bf16.msra.mxu0 0
      %4131 = vmatprep.subr.bf16.mxu0 0
      %4132 = vmatpush1.bf16.msra.mxu0 0
      %4133 = vmatprep.subr.bf16.mxu0 0
      %4134 = vmatpush1.bf16.msra.mxu0 0
      %4135 = vmatprep.subr.bf16.mxu0 0
      %4136 = vmatpush1.bf16.msra.mxu0 0
      %4137 = vmatprep.subr.bf16.mxu0 0
      %4138 = vmatpush1.bf16.msra.mxu0 0
      %4139 = vmatprep.subr.bf16.mxu0 0
      %4140 = vmatpush1.bf16.msra.mxu0 0
      %4141 = vmatprep.subr.bf16.mxu0 0
      %4142 = vmatpush1.bf16.msra.mxu0 0
      %4143 = vmatprep.subr.bf16.mxu0 0
      %4144 = vmatpush1.bf16.msra.mxu0 0
      %4145 = vmatprep.mubr.bf16.mxu0 0
      %4146 = vmatmul.mubr.bf16.gmra.mrb[0].mxu0 %v4111
      %v4147 = vpop.f32.mrb[0].mxu0
      %v4148 = vadd.f32 %v3287, %v4147
      %v4149 = vpop.f32.mrb[0].mxu0
      %v4150 = vpop.f32.mrb[0].mxu0
      %v4151 = vadd.f32 %v3287, %v4150
      %v4152 = vpop.f32.mrb[0].mxu0
      %4153 = vdwg.mxu0
      %v4154 = vmax.f32 %v4148, 0.0
      %v4155 = vmax.f32 %v4151, 0.0
      %s4156 = scalar_lea.vmem [#allocation4], 72
      %v4157 = vld [vmem:[%s4156] sm:$0xf]
      %v4158 = vld [vmem:[%s4156 + $0x4] sm:$0x1]
      %v4159 = vld [vmem:[%s4156 + $0x4] sm:$0x3]
      %v4160 = vld [vmem:[%s4156] sm:$0xe]
      %4161 = vrot.lane.b32.xlu0 %v4060, 8
      %v4162 = vpop.permute.xlu0 %4161
      %4163 = vrot.lane.b32.xlu0 %v4066, 16
      %v4164 = vpop.permute.xlu0 %4163
      %4165 = vrot.lane.b32.xlu0 %v4073, 24
      %v4166 = vpop.permute.xlu0 %4165
      %4167 = vrot.lane.b32.xlu0 %v4085, 32
      %v4168 = vpop.permute.xlu0 %4167
      %4169 = vrot.lane.b32.xlu0 %v4091, 40
      %v4170 = vpop.permute.xlu0 %4169
      %v4173 = vunpack.c.l.b16 %v4157
      %v4174 = vunpack.c.l.b16 %v4158
      %v4175 = vpack.c.b16 %v4174, %v4173
      %4176 = vrot.lane.b32.xlu0 %v4175, 48
      %v4177 = vpop.permute.xlu0 %4176
      %v4179 = vunpack.c.l.b16 %v4159
      %v4180 = vpack.c.b16 %v4179, %v4173
      %v4182 = vshrl.u32 %v4180, 16
      %v4184 = vshll.u32 %v4180, 16
      %v4186 = vrot.slane %v4184, 1
      %v4187 = vor.u32 %v4182, %v4186
      %4188 = vrot.lane.b32.xlu0 %v4187, 56
      %v4189 = vpop.permute.xlu0 %4188
      %v4191 = vunpack.c.l.b16 %v4160
      %v4192 = vpack.c.b16 %v4179, %v4191
      %v4193 = vrot.slane %v4192, 1
      %4194 = vrot.lane.b32.xlu0 %v4193, 64
      %v4195 = vpop.permute.xlu0 %4194
      %v4198 = vsel %vm3258, %v4048, %v4162
      %v4200 = vsel %vm3262, %v4198, %v4164
      %v4202 = vsel %vm3265, %v4200, %v4166
      %v4204 = vsel %vm3268, %v4202, %v4168
      %v4206 = vsel %vm3271, %v4204, %v4170
      %v4208 = vsel %vm3274, %v4206, %v4177
      %v4210 = vsel %vm3277, %v4208, %v4189
      %v4212 = vsel %vm3280, %v4210, %v4195
      %v4213 = vsel %vm3316, %v4212, 0
      %4215 = vmatprep.subr.bf16.mxu0 0
      %4216 = vmatpush1.bf16.msra.mxu0 %v3307
      %4217 = vmatprep.subr.bf16.mxu0 0
      %4218 = vmatpush1.bf16.msra.mxu0 %v3308
      %4219 = vmatprep.subr.bf16.mxu0 0
      %4220 = vmatpush1.bf16.msra.mxu0 %v3309
      %4221 = vmatprep.subr.bf16.mxu0 0
      %4222 = vmatpush1.bf16.msra.mxu0 %v3310
      %4223 = vmatprep.subr.bf16.mxu0 0
      %4224 = vmatpush1.bf16.msra.mxu0 %v3321
      %4225 = vmatprep.subr.bf16.mxu0 0
      %4226 = vmatpush1.bf16.msra.mxu0 0
      %4227 = vmatprep.subr.bf16.mxu0 0
      %4228 = vmatpush1.bf16.msra.mxu0 0
      %4229 = vmatprep.subr.bf16.mxu0 0
      %4230 = vmatpush1.bf16.msra.mxu0 0
      %4231 = vmatprep.subr.bf16.mxu0 0
      %4232 = vmatpush1.bf16.msra.mxu0 0
      %4233 = vmatprep.subr.bf16.mxu0 0
      %4234 = vmatpush1.bf16.msra.mxu0 0
      %4235 = vmatprep.subr.bf16.mxu0 0
      %4236 = vmatpush1.bf16.msra.mxu0 0
      %4237 = vmatprep.subr.bf16.mxu0 0
      %4238 = vmatpush1.bf16.msra.mxu0 0
      %4239 = vmatprep.subr.bf16.mxu0 0
      %4240 = vmatpush1.bf16.msra.mxu0 0
      %4241 = vmatprep.subr.bf16.mxu0 0
      %4242 = vmatpush1.bf16.msra.mxu0 0
      %4243 = vmatprep.subr.bf16.mxu0 0
      %4244 = vmatpush1.bf16.msra.mxu0 0
      %4245 = vmatprep.subr.bf16.mxu0 0
      %4246 = vmatpush1.bf16.msra.mxu0 0
      %4247 = vmatprep.mubr.bf16.mxu0 0
      %4248 = vmatmul.mubr.bf16.gmra.mrb[0].mxu0 %v4213
      %v4249 = vpop.f32.mrb[0].mxu0
      %v4250 = vadd.f32 %v3287, %v4249
      %v4251 = vpop.f32.mrb[0].mxu0
      %v4252 = vpop.f32.mrb[0].mxu0
      %v4253 = vadd.f32 %v3287, %v4252
      %v4254 = vpop.f32.mrb[0].mxu0
      %4255 = vdwg.mxu0
      %v4256 = vmax.f32 %v4250, 0.0
      %v4257 = vmax.f32 %v4253, 0.0
      %v4258 = vmax.f32 %v4154, %v4256
      %v4259 = vmax.f32 %v4155, %v4257
      %4260 = vst.msk [vmem:[#allocation10] sm:$0xff] %vm3262, %v4258
      %4261 = vst.msk [vmem:[#allocation10 + $0x8] sm:$0x3] %vm3471, %v4259
      %v4262 = vld [vmem:[#allocation10] ss:$2 sm:$0x1f]
      %v4263 = vld [vmem:[%s3474] ss:$2 sm:$0x1f]
      %v4264 = vmax.f32 %v4262, %v4263
      %v4265 = vpack.c.bf16 %v4264, %v4264
      %s4266 = scalar_lea.vmem [#allocation5], 12
      %v4267 = vld [vmem:[%s4266] sm:$0x7]
      %v4268 = vsel %vm3480, %v4265, %v4267
      %4269 = vst [vmem:[%s4266] sm:$0x7] %v4268
      %v4270 = vld [vmem:[%s4016] sm:$0xf]
      %v4271 = vld [vmem:[%s4016 + $0x4] sm:$0x1]
      %v4272 = vld [vmem:[%s4016 + $0x4] sm:$0x3]
      %v4273 = vld [vmem:[%s4016] sm:$0xe]
      %v4274 = vld [vmem:[%s4156] sm:$0xf]
      %v4275 = vld [vmem:[%s4156 + $0x4] sm:$0x1]
      %v4276 = vld [vmem:[%s4156 + $0x4] sm:$0x3]
      %v4277 = vld [vmem:[%s4156] sm:$0xe]
      %s4278 = scalar_lea.vmem [#allocation4], 80
      %v4279 = vld [vmem:[%s4278] sm:$0xf]
      %v4280 = vld [vmem:[%s4278 + $0x4] sm:$0x1]
      %v4281 = vld [vmem:[%s4278 + $0x4] sm:$0x3]
      %v4282 = vld [vmem:[%s4278] sm:$0xe]
      %v4285 = vunpack.c.l.b16 %v4270
      %v4286 = vunpack.c.l.b16 %v4271
      %v4287 = vpack.c.b16 %v4286, %v4285
      %v4289 = vunpack.c.l.b16 %v4272
      %v4290 = vpack.c.b16 %v4289, %v4285
      %v4292 = vshrl.u32 %v4290, 16
      %v4294 = vshll.u32 %v4290, 16
      %v4296 = vrot.slane %v4294, 1
      %v4297 = vor.u32 %v4292, %v4296
      %4298 = vrot.lane.b32.xlu0 %v4297, 8
      %v4299 = vpop.permute.xlu0 %4298
      %v4301 = vunpack.c.l.b16 %v4273
      %v4302 = vpack.c.b16 %v4289, %v4301
      %v4303 = vrot.slane %v4302, 1
      %4304 = vrot.lane.b32.xlu0 %v4303, 16
      %v4305 = vpop.permute.xlu0 %4304
      %v4308 = vunpack.c.l.b16 %v4274
      %v4309 = vunpack.c.l.b16 %v4275
      %v4310 = vpack.c.b16 %v4309, %v4308
      %4311 = vrot.lane.b32.xlu0 %v4310, 24
      %v4312 = vpop.permute.xlu0 %4311
      %v4314 = vunpack.c.l.b16 %v4276
      %v4315 = vpack.c.b16 %v4314, %v4308
      %v4317 = vshrl.u32 %v4315, 16
      %v4319 = vshll.u32 %v4315, 16
      %v4321 = vrot.slane %v4319, 1
      %v4322 = vor.u32 %v4317, %v4321
      %4323 = vrot.lane.b32.xlu0 %v4322, 32
      %v4324 = vpop.permute.xlu0 %4323
      %v4326 = vunpack.c.l.b16 %v4277
      %v4327 = vpack.c.b16 %v4314, %v4326
      %v4328 = vrot.slane %v4327, 1
      %4329 = vrot.lane.b32.xlu0 %v4328, 40
      %v4330 = vpop.permute.xlu0 %4329
      %v4333 = vunpack.c.l.b16 %v4279
      %v4334 = vunpack.c.l.b16 %v4280
      %v4335 = vpack.c.b16 %v4334, %v4333
      %4336 = vrot.lane.b32.xlu0 %v4335, 48
      %v4337 = vpop.permute.xlu0 %4336
      %v4339 = vunpack.c.l.b16 %v4281
      %v4340 = vpack.c.b16 %v4339, %v4333
      %v4342 = vshrl.u32 %v4340, 16
      %v4344 = vshll.u32 %v4340, 16
      %v4346 = vrot.slane %v4344, 1
      %v4347 = vor.u32 %v4342, %v4346
      %4348 = vrot.lane.b32.xlu0 %v4347, 56
      %v4349 = vpop.permute.xlu0 %4348
      %v4351 = vunpack.c.l.b16 %v4282
      %v4352 = vpack.c.b16 %v4339, %v4351
      %v4353 = vrot.slane %v4352, 1
      %4354 = vrot.lane.b32.xlu0 %v4353, 64
      %v4355 = vpop.permute.xlu0 %4354
      %v4358 = vsel %vm3258, %v4287, %v4299
      %v4360 = vsel %vm3262, %v4358, %v4305
      %v4362 = vsel %vm3265, %v4360, %v4312
      %v4364 = vsel %vm3268, %v4362, %v4324
      %v4366 = vsel %vm3271, %v4364, %v4330
      %v4368 = vsel %vm3274, %v4366, %v4337
      %v4370 = vsel %vm3277, %v4368, %v4349
      %v4372 = vsel %vm3280, %v4370, %v4355
      %v4373 = vsel %vm3316, %v4372, 0
      %4375 = vmatprep.subr.bf16.mxu0 0
      %4376 = vmatpush1.bf16.msra.mxu0 %v3307
      %4377 = vmatprep.subr.bf16.mxu0 0
      %4378 = vmatpush1.bf16.msra.mxu0 %v3308
      %4379 = vmatprep.subr.bf16.mxu0 0
      %4380 = vmatpush1.bf16.msra.mxu0 %v3309
      %4381 = vmatprep.subr.bf16.mxu0 0
      %4382 = vmatpush1.bf16.msra.mxu0 %v3310
      %4383 = vmatprep.subr.bf16.mxu0 0
      %4384 = vmatpush1.bf16.msra.mxu0 %v3321
      %4385 = vmatprep.subr.bf16.mxu0 0
      %4386 = vmatpush1.bf16.msra.mxu0 0
      %4387 = vmatprep.subr.bf16.mxu0 0
      %4388 = vmatpush1.bf16.msra.mxu0 0
      %4389 = vmatprep.subr.bf16.mxu0 0
      %4390 = vmatpush1.bf16.msra.mxu0 0
      %4391 = vmatprep.subr.bf16.mxu0 0
      %4392 = vmatpush1.bf16.msra.mxu0 0
      %4393 = vmatprep.subr.bf16.mxu0 0
      %4394 = vmatpush1.bf16.msra.mxu0 0
      %4395 = vmatprep.subr.bf16.mxu0 0
      %4396 = vmatpush1.bf16.msra.mxu0 0
      %4397 = vmatprep.subr.bf16.mxu0 0
      %4398 = vmatpush1.bf16.msra.mxu0 0
      %4399 = vmatprep.subr.bf16.mxu0 0
      %4400 = vmatpush1.bf16.msra.mxu0 0
      %4401 = vmatprep.subr.bf16.mxu0 0
      %4402 = vmatpush1.bf16.msra.mxu0 0
      %4403 = vmatprep.subr.bf16.mxu0 0
      %4404 = vmatpush1.bf16.msra.mxu0 0
      %4405 = vmatprep.subr.bf16.mxu0 0
      %4406 = vmatpush1.bf16.msra.mxu0 0
      %4407 = vmatprep.mubr.bf16.mxu0 0
      %4408 = vmatmul.mubr.bf16.gmra.mrb[0].mxu0 %v4373
      %v4409 = vpop.f32.mrb[0].mxu0
      %v4410 = vadd.f32 %v3287, %v4409
      %v4411 = vpop.f32.mrb[0].mxu0
      %v4412 = vpop.f32.mrb[0].mxu0
      %v4413 = vadd.f32 %v3287, %v4412
      %v4414 = vpop.f32.mrb[0].mxu0
      %4415 = vdwg.mxu0
      %v4416 = vmax.f32 %v4410, 0.0
      %v4417 = vmax.f32 %v4413, 0.0
      %s4418 = scalar_lea.vmem [#allocation4], 88
      %v4419 = vld [vmem:[%s4418] sm:$0xf]
      %v4420 = vld [vmem:[%s4418 + $0x4] sm:$0x1]
      %v4421 = vld [vmem:[%s4418 + $0x4] sm:$0x3]
      %v4422 = vld [vmem:[%s4418] sm:$0xe]
      %4423 = vrot.lane.b32.xlu0 %v4322, 8
      %v4424 = vpop.permute.xlu0 %4423
      %4425 = vrot.lane.b32.xlu0 %v4328, 16
      %v4426 = vpop.permute.xlu0 %4425
      %4427 = vrot.lane.b32.xlu0 %v4335, 24
      %v4428 = vpop.permute.xlu0 %4427
      %4429 = vrot.lane.b32.xlu0 %v4347, 32
      %v4430 = vpop.permute.xlu0 %4429
      %4431 = vrot.lane.b32.xlu0 %v4353, 40
      %v4432 = vpop.permute.xlu0 %4431
      %v4435 = vunpack.c.l.b16 %v4419
      %v4436 = vunpack.c.l.b16 %v4420
      %v4437 = vpack.c.b16 %v4436, %v4435
      %4438 = vrot.lane.b32.xlu0 %v4437, 48
      %v4439 = vpop.permute.xlu0 %4438
      %v4441 = vunpack.c.l.b16 %v4421
      %v4442 = vpack.c.b16 %v4441, %v4435
      %v4444 = vshrl.u32 %v4442, 16
      %v4446 = vshll.u32 %v4442, 16
      %v4448 = vrot.slane %v4446, 1
      %v4449 = vor.u32 %v4444, %v4448
      %4450 = vrot.lane.b32.xlu0 %v4449, 56
      %v4451 = vpop.permute.xlu0 %4450
      %v4453 = vunpack.c.l.b16 %v4422
      %v4454 = vpack.c.b16 %v4441, %v4453
      %v4455 = vrot.slane %v4454, 1
      %4456 = vrot.lane.b32.xlu0 %v4455, 64
      %v4457 = vpop.permute.xlu0 %4456
      %v4460 = vsel %vm3258, %v4310, %v4424
      %v4462 = vsel %vm3262, %v4460, %v4426
      %v4464 = vsel %vm3265, %v4462, %v4428
      %v4466 = vsel %vm3268, %v4464, %v4430
      %v4468 = vsel %vm3271, %v4466, %v4432
      %v4470 = vsel %vm3274, %v4468, %v4439
      %v4472 = vsel %vm3277, %v4470, %v4451
      %v4474 = vsel %vm3280, %v4472, %v4457
      %v4475 = vsel %vm3316, %v4474, 0
      %4477 = vmatprep.subr.bf16.mxu0 0
      %4478 = vmatpush1.bf16.msra.mxu0 %v3307
      %4479 = vmatprep.subr.bf16.mxu0 0
      %4480 = vmatpush1.bf16.msra.mxu0 %v3308
      %4481 = vmatprep.subr.bf16.mxu0 0
      %4482 = vmatpush1.bf16.msra.mxu0 %v3309
      %4483 = vmatprep.subr.bf16.mxu0 0
      %4484 = vmatpush1.bf16.msra.mxu0 %v3310
      %4485 = vmatprep.subr.bf16.mxu0 0
      %4486 = vmatpush1.bf16.msra.mxu0 %v3321
      %4487 = vmatprep.subr.bf16.mxu0 0
      %4488 = vmatpush1.bf16.msra.mxu0 0
      %4489 = vmatprep.subr.bf16.mxu0 0
      %4490 = vmatpush1.bf16.msra.mxu0 0
      %4491 = vmatprep.subr.bf16.mxu0 0
      %4492 = vmatpush1.bf16.msra.mxu0 0
      %4493 = vmatprep.subr.bf16.mxu0 0
      %4494 = vmatpush1.bf16.msra.mxu0 0
      %4495 = vmatprep.subr.bf16.mxu0 0
      %4496 = vmatpush1.bf16.msra.mxu0 0
      %4497 = vmatprep.subr.bf16.mxu0 0
      %4498 = vmatpush1.bf16.msra.mxu0 0
      %4499 = vmatprep.subr.bf16.mxu0 0
      %4500 = vmatpush1.bf16.msra.mxu0 0
      %4501 = vmatprep.subr.bf16.mxu0 0
      %4502 = vmatpush1.bf16.msra.mxu0 0
      %4503 = vmatprep.subr.bf16.mxu0 0
      %4504 = vmatpush1.bf16.msra.mxu0 0
      %4505 = vmatprep.subr.bf16.mxu0 0
      %4506 = vmatpush1.bf16.msra.mxu0 0
      %4507 = vmatprep.subr.bf16.mxu0 0
      %4508 = vmatpush1.bf16.msra.mxu0 0
      %4509 = vmatprep.mubr.bf16.mxu0 0
      %4510 = vmatmul.mubr.bf16.gmra.mrb[0].mxu0 %v4475
      %v4511 = vpop.f32.mrb[0].mxu0
      %v4512 = vadd.f32 %v3287, %v4511
      %v4513 = vpop.f32.mrb[0].mxu0
      %v4514 = vpop.f32.mrb[0].mxu0
      %v4515 = vadd.f32 %v3287, %v4514
      %v4516 = vpop.f32.mrb[0].mxu0
      %4517 = vdwg.mxu0
      %v4518 = vmax.f32 %v4512, 0.0
      %v4519 = vmax.f32 %v4515, 0.0
      %v4520 = vmax.f32 %v4416, %v4518
      %v4521 = vmax.f32 %v4417, %v4519
      %4522 = vst.msk [vmem:[#allocation10] sm:$0xff] %vm3262, %v4520
      %4523 = vst.msk [vmem:[#allocation10 + $0x8] sm:$0x3] %vm3471, %v4521
      %v4524 = vld [vmem:[#allocation10] ss:$2 sm:$0x1f]
      %v4525 = vld [vmem:[%s3474] ss:$2 sm:$0x1f]
      %v4526 = vmax.f32 %v4524, %v4525
      %v4527 = vpack.c.bf16 %v4526, %v4526
      %s4528 = scalar_lea.vmem [#allocation5], 16
      %v4529 = vld [vmem:[%s4528] sm:$0x7]
      %v4530 = vsel %vm3480, %v4527, %v4529
      %4531 = vst [vmem:[%s4528] sm:$0x7] %v4530
      %v4532 = vld [vmem:[%s9] sm:$0xf]
      %v4533 = vld [vmem:[%s9 + $0x4] sm:$0xf]
      %v4534 = vld [vmem:[%s9 + $0x8] sm:$0xf]
      %v4535 = vld [vmem:[%s9 + $0xc] sm:$0xf]
      %v4536 = vld [vmem:[%s9 + $0x10] sm:$0xf]
      %v4537 = vld [vmem:[%s9 + $0x14] sm:$0xf]
      %v4538 = vld [vmem:[%s9 + $0x18] sm:$0xf]
      %v4539 = vld [vmem:[%s9 + $0x1c] sm:$0xf]
      %v4540 = vld [vmem:[%s9 + $0x20] sm:$0xf]
      %v4541 = vld [vmem:[%s9 + $0x24] sm:$0xf]
      %v4542 = vld [vmem:[%s9 + $0x28] sm:$0xf]
      %v4543 = vld [vmem:[%s9 + $0x2c] sm:$0xf]
      %v4544 = vld [vmem:[%s9 + $0x30] sm:$0xf]
      %v4545 = vld [vmem:[%s9 + $0x34] sm:$0xf]
      %v4546 = vld [vmem:[%s9 + $0x38] sm:$0xf]
      %v4547 = vld [vmem:[%s9 + $0x3c] sm:$0xf]
      %v4548 = vld [vmem:[%s9 + $0x40] sm:$0xf]
      %v4549 = vld [vmem:[%s9 + $0x44] sm:$0xf]
      %v4550 = vld [vmem:[%s10] sm:$0x1]
      %v4551 = vld [vmem:[#allocation5] sm:$0x3]
      %v4552 = vld [vmem:[#allocation5] sm:$0x6]
      %v4553 = vld [vmem:[%s3742] sm:$0x3]
      %v4554 = vld [vmem:[%s3742] sm:$0x6]
      %v4555 = vld [vmem:[%s4004] sm:$0x3]
      %v4556 = vld [vmem:[%s4004] sm:$0x6]
      %v4558 = vunpack.c.l.b16 %v4551
      %v4559 = vpack.c.b16 %v4558, %v4558
      %v4561 = vshrl.u32 %v4559, 16
      %v4563 = vshll.u32 %v4559, 16
      %v4565 = vrot.slane %v4563, 1
      %v4566 = vor.u32 %v4561, %v4565
      %4567 = vrot.lane.b32.xlu0 %v4566, 16
      %v4568 = vpop.permute.xlu0 %4567
      %v4570 = vunpack.c.l.b16 %v4552
      %v4571 = vpack.c.b16 %v4570, %v4570
      %v4572 = vrot.slane %v4571, 1
      %4573 = vrot.lane.b32.xlu0 %v4572, 32
      %v4574 = vpop.permute.xlu0 %4573
      %v4576 = vunpack.c.l.b16 %v4553
      %v4577 = vpack.c.b16 %v4576, %v4576
      %4578 = vrot.lane.b32.xlu0 %v4577, 48
      %v4579 = vpop.permute.xlu0 %4578
      %v4581 = vshrl.u32 %v4577, 16
      %v4583 = vshll.u32 %v4577, 16
      %v4585 = vrot.slane %v4583, 1
      %v4586 = vor.u32 %v4581, %v4585
      %4587 = vrot.lane.b32.xlu0 %v4586, 64
      %v4588 = vpop.permute.xlu0 %4587
      %v4590 = vunpack.c.l.b16 %v4554
      %v4591 = vpack.c.b16 %v4590, %v4590
      %v4592 = vrot.slane %v4591, 1
      %4593 = vrot.lane.b32.xlu0 %v4592, 80
      %v4594 = vpop.permute.xlu0 %4593
      %v4596 = vunpack.c.l.b16 %v4555
      %v4597 = vpack.c.b16 %v4596, %v4596
      %4598 = vrot.lane.b32.xlu0 %v4597, 96
      %v4599 = vpop.permute.xlu0 %4598
      %v4601 = vshrl.u32 %v4597, 16
      %v4603 = vshll.u32 %v4597, 16
      %v4605 = vrot.slane %v4603, 1
      %v4606 = vor.u32 %v4601, %v4605
      %4607 = vrot.lane.b32.xlu0 %v4606, 112
      %v4608 = vpop.permute.xlu0 %4607
      %v4610 = vunpack.c.l.b16 %v4556
      %v4611 = vpack.c.b16 %v4610, %v4610
      %v4612 = vrot.slane %v4611, 1
      %v4615 = vsel %vm3262, %v4551, %v4568
      %v4617 = vsel %vm3268, %v4615, %v4574
      %v4619 = vsel %vm3274, %v4617, %v4579
      %v4621 = vsel %vm3280, %v4619, %v4588
      %vm4622 = vcmask 654336
      %v4624 = vsel %vm4622, %v4621, %v4594
      %vm4625 = vcmask 785408
      %v4627 = vsel %vm4625, %v4624, %v4599
      %vm4628 = vcmask 916480
      %v4630 = vsel %vm4628, %v4627, %v4608
      %v4633 = vlaneseq
      %v4634 = vshrl.u32 %v4633, 7
      %v4635 = vsub.s32 0, %v4634
      %v4636 = vrot.slane %v4550, %v4635
      %v4656 = vunpack.c.l.b16 %v4532
      %v4657 = vunpack.c.l.b16 %v4533
      %v4658 = vunpack.c.l.b16 %v4534
      %v4659 = vunpack.c.l.b16 %v4535
      %v4660 = vunpack.c.l.b16 %v4536
      %v4661 = vunpack.c.l.b16 %v4537
      %v4662 = vunpack.c.l.b16 %v4538
      %v4663 = vunpack.c.l.b16 %v4539
      %v4664 = vunpack.c.l.b16 %v4540
      %v4665 = vunpack.c.l.b16 %v4541
      %v4666 = vunpack.c.l.b16 %v4542
      %v4667 = vunpack.c.l.b16 %v4543
      %v4668 = vunpack.c.l.b16 %v4544
      %v4669 = vunpack.c.l.b16 %v4545
      %v4670 = vunpack.c.l.b16 %v4546
      %v4671 = vunpack.c.l.b16 %v4547
      %v4672 = vunpack.c.l.b16 %v4548
      %v4673 = vunpack.c.l.b16 %v4549
      %v4674 = vpack.c.b16 %v4657, %v4656
      %v4675 = vpack.c.b16 %v4659, %v4658
      %v4676 = vpack.c.b16 %v4661, %v4660
      %v4677 = vpack.c.b16 %v4663, %v4662
      %v4678 = vpack.c.b16 %v4665, %v4664
      %v4679 = vpack.c.b16 %v4667, %v4666
      %v4680 = vpack.c.b16 %v4669, %v4668
      %v4681 = vpack.c.b16 %v4671, %v4670
      %v4682 = vpack.c.b16 %v4673, %v4672
      %v4693 = vsel %vm3262, %v4612, 0
      %4695 = vmatprep.subr.bf16.mxu0 0
      %4696 = vmatpush1.bf16.msra.mxu0 %v4674
      %4697 = vmatprep.subr.bf16.mxu0 0
      %4698 = vmatpush1.bf16.msra.mxu0 %v4675
      %4699 = vmatprep.subr.bf16.mxu0 0
      %4700 = vmatpush1.bf16.msra.mxu0 %v4676
      %4701 = vmatprep.subr.bf16.mxu0 0
      %4702 = vmatpush1.bf16.msra.mxu0 %v4677
      %4703 = vmatprep.subr.bf16.mxu0 0
      %4704 = vmatpush1.bf16.msra.mxu0 %v4678
      %4705 = vmatprep.subr.bf16.mxu0 0
      %4706 = vmatpush1.bf16.msra.mxu0 %v4679
      %4707 = vmatprep.subr.bf16.mxu0 0
      %4708 = vmatpush1.bf16.msra.mxu0 %v4680
      %4709 = vmatprep.subr.bf16.mxu0 0
      %4710 = vmatpush1.bf16.msra.mxu0 %v4681
      %4711 = vmatprep.subr.bf16.mxu0 0
      %4712 = vmatpush1.bf16.msra.mxu0 %v4682
      %4713 = vmatprep.subr.bf16.mxu0 0
      %4714 = vmatpush1.bf16.msra.mxu0 0
      %4715 = vmatprep.subr.bf16.mxu0 0
      %4716 = vmatpush1.bf16.msra.mxu0 0
      %4717 = vmatprep.subr.bf16.mxu0 0
      %4718 = vmatpush1.bf16.msra.mxu0 0
      %4719 = vmatprep.subr.bf16.mxu0 0
      %4720 = vmatpush1.bf16.msra.mxu0 0
      %4721 = vmatprep.subr.bf16.mxu0 0
      %4722 = vmatpush1.bf16.msra.mxu0 0
      %4723 = vmatprep.subr.bf16.mxu0 0
      %4724 = vmatpush1.bf16.msra.mxu0 0
      %4725 = vmatprep.subr.bf16.mxu0 0
      %4726 = vmatpush1.bf16.msra.mxu0 0
      %4727 = vmatprep.mubr.bf16.mxu0 %v4693
      %4728 = vmatmul.mubr.bf16.gmra.mrb[0].mxu0 %v4630
      %v4729 = vpop.f32.mrb[0].mxu0
      %v4730 = vadd.f32 %v4636, %v4729
      %v4731 = vpop.f32.mrb[0].mxu0
      %v4732 = vpop.f32.mrb[0].mxu0
      %v4733 = vpop.f32.mrb[0].mxu0
      %4734 = vdwg.mxu0
      %v4735 = vmax.f32 %v4730, 0.0
      %v4736 = vld [vmem:[%s4266] sm:$0x3]
      %v4737 = vld [vmem:[%s4266] sm:$0x6]
      %4738 = vrot.lane.b32.xlu0 %v4586, 16
      %v4739 = vpop.permute.xlu0 %4738
      %4740 = vrot.lane.b32.xlu0 %v4592, 32
      %v4741 = vpop.permute.xlu0 %4740
      %4742 = vrot.lane.b32.xlu0 %v4597, 48
      %v4743 = vpop.permute.xlu0 %4742
      %4744 = vrot.lane.b32.xlu0 %v4606, 64
      %v4745 = vpop.permute.xlu0 %4744
      %4746 = vrot.lane.b32.xlu0 %v4612, 80
      %v4747 = vpop.permute.xlu0 %4746
      %v4749 = vunpack.c.l.b16 %v4736
      %v4750 = vpack.c.b16 %v4749, %v4749
      %4751 = vrot.lane.b32.xlu0 %v4750, 96
      %v4752 = vpop.permute.xlu0 %4751
      %v4754 = vshrl.u32 %v4750, 16
      %v4756 = vshll.u32 %v4750, 16
      %v4758 = vrot.slane %v4756, 1
      %v4759 = vor.u32 %v4754, %v4758
      %4760 = vrot.lane.b32.xlu0 %v4759, 112
      %v4761 = vpop.permute.xlu0 %4760
      %v4763 = vunpack.c.l.b16 %v4737
      %v4764 = vpack.c.b16 %v4763, %v4763
      %v4765 = vrot.slane %v4764, 1
      %v4768 = vsel %vm3262, %v4553, %v4739
      %v4770 = vsel %vm3268, %v4768, %v4741
      %v4772 = vsel %vm3274, %v4770, %v4743
      %v4774 = vsel %vm3280, %v4772, %v4745
      %v4776 = vsel %vm4622, %v4774, %v4747
      %v4778 = vsel %vm4625, %v4776, %v4752
      %v4780 = vsel %vm4628, %v4778, %v4761
      %v4783 = vsel %vm3262, %v4765, 0
      %4785 = vmatprep.subr.bf16.mxu0 0
      %4786 = vmatpush1.bf16.msra.mxu0 %v4674
      %4787 = vmatprep.subr.bf16.mxu0 0
      %4788 = vmatpush1.bf16.msra.mxu0 %v4675
      %4789 = vmatprep.subr.bf16.mxu0 0
      %4790 = vmatpush1.bf16.msra.mxu0 %v4676
      %4791 = vmatprep.subr.bf16.mxu0 0
      %4792 = vmatpush1.bf16.msra.mxu0 %v4677
      %4793 = vmatprep.subr.bf16.mxu0 0
      %4794 = vmatpush1.bf16.msra.mxu0 %v4678
      %4795 = vmatprep.subr.bf16.mxu0 0
      %4796 = vmatpush1.bf16.msra.mxu0 %v4679
      %4797 = vmatprep.subr.bf16.mxu0 0
      %4798 = vmatpush1.bf16.msra.mxu0 %v4680
      %4799 = vmatprep.subr.bf16.mxu0 0
      %4800 = vmatpush1.bf16.msra.mxu0 %v4681
      %4801 = vmatprep.subr.bf16.mxu0 0
      %4802 = vmatpush1.bf16.msra.mxu0 %v4682
      %4803 = vmatprep.subr.bf16.mxu0 0
      %4804 = vmatpush1.bf16.msra.mxu0 0
      %4805 = vmatprep.subr.bf16.mxu0 0
      %4806 = vmatpush1.bf16.msra.mxu0 0
      %4807 = vmatprep.subr.bf16.mxu0 0
      %4808 = vmatpush1.bf16.msra.mxu0 0
      %4809 = vmatprep.subr.bf16.mxu0 0
      %4810 = vmatpush1.bf16.msra.mxu0 0
      %4811 = vmatprep.subr.bf16.mxu0 0
      %4812 = vmatpush1.bf16.msra.mxu0 0
      %4813 = vmatprep.subr.bf16.mxu0 0
      %4814 = vmatpush1.bf16.msra.mxu0 0
      %4815 = vmatprep.subr.bf16.mxu0 0
      %4816 = vmatpush1.bf16.msra.mxu0 0
      %4817 = vmatprep.mubr.bf16.mxu0 %v4783
      %4818 = vmatmul.mubr.bf16.gmra.mrb[0].mxu0 %v4780
      %v4819 = vpop.f32.mrb[0].mxu0
      %v4820 = vadd.f32 %v4636, %v4819
      %v4821 = vpop.f32.mrb[0].mxu0
      %v4822 = vpop.f32.mrb[0].mxu0
      %v4823 = vpop.f32.mrb[0].mxu0
      %4824 = vdwg.mxu0
      %v4825 = vmax.f32 %v4820, 0.0
      %v4826 = vmax.f32 %v4735, %v4825
      %v4827 = vld [vmem:[%s4528] sm:$0x3]
      %v4828 = vld [vmem:[%s4528] sm:$0x6]
      %4829 = vrot.lane.b32.xlu0 %v4606, 16
      %v4830 = vpop.permute.xlu0 %4829
      %4831 = vrot.lane.b32.xlu0 %v4612, 32
      %v4832 = vpop.permute.xlu0 %4831
      %4833 = vrot.lane.b32.xlu0 %v4750, 48
      %v4834 = vpop.permute.xlu0 %4833
      %4835 = vrot.lane.b32.xlu0 %v4759, 64
      %v4836 = vpop.permute.xlu0 %4835
      %4837 = vrot.lane.b32.xlu0 %v4765, 80
      %v4838 = vpop.permute.xlu0 %4837
      %v4840 = vunpack.c.l.b16 %v4827
      %v4841 = vpack.c.b16 %v4840, %v4840
      %4842 = vrot.lane.b32.xlu0 %v4841, 96
      %v4843 = vpop.permute.xlu0 %4842
      %v4845 = vshrl.u32 %v4841, 16
      %v4847 = vshll.u32 %v4841, 16
      %v4849 = vrot.slane %v4847, 1
      %v4850 = vor.u32 %v4845, %v4849
      %4851 = vrot.lane.b32.xlu0 %v4850, 112
      %v4852 = vpop.permute.xlu0 %4851
      %v4854 = vunpack.c.l.b16 %v4828
      %v4855 = vpack.c.b16 %v4854, %v4854
      %v4856 = vrot.slane %v4855, 1
      %v4859 = vsel %vm3262, %v4555, %v4830
      %v4861 = vsel %vm3268, %v4859, %v4832
      %v4863 = vsel %vm3274, %v4861, %v4834
      %v4865 = vsel %vm3280, %v4863, %v4836
      %v4867 = vsel %vm4622, %v4865, %v4838
      %v4869 = vsel %vm4625, %v4867, %v4843
      %v4871 = vsel %vm4628, %v4869, %v4852
      %v4874 = vsel %vm3262, %v4856, 0
      %4876 = vmatprep.subr.bf16.mxu0 0
      %4877 = vmatpush1.bf16.msra.mxu0 %v4674
      %4878 = vmatprep.subr.bf16.mxu0 0
      %4879 = vmatpush1.bf16.msra.mxu0 %v4675
      %4880 = vmatprep.subr.bf16.mxu0 0
      %4881 = vmatpush1.bf16.msra.mxu0 %v4676
      %4882 = vmatprep.subr.bf16.mxu0 0
      %4883 = vmatpush1.bf16.msra.mxu0 %v4677
      %4884 = vmatprep.subr.bf16.mxu0 0
      %4885 = vmatpush1.bf16.msra.mxu0 %v4678
      %4886 = vmatprep.subr.bf16.mxu0 0
      %4887 = vmatpush1.bf16.msra.mxu0 %v4679
      %4888 = vmatprep.subr.bf16.mxu0 0
      %4889 = vmatpush1.bf16.msra.mxu0 %v4680
      %4890 = vmatprep.subr.bf16.mxu0 0
      %4891 = vmatpush1.bf16.msra.mxu0 %v4681
      %4892 = vmatprep.subr.bf16.mxu0 0
      %4893 = vmatpush1.bf16.msra.mxu0 %v4682
      %4894 = vmatprep.subr.bf16.mxu0 0
      %4895 = vmatpush1.bf16.msra.mxu0 0
      %4896 = vmatprep.subr.bf16.mxu0 0
      %4897 = vmatpush1.bf16.msra.mxu0 0
      %4898 = vmatprep.subr.bf16.mxu0 0
      %4899 = vmatpush1.bf16.msra.mxu0 0
      %4900 = vmatprep.subr.bf16.mxu0 0
      %4901 = vmatpush1.bf16.msra.mxu0 0
      %4902 = vmatprep.subr.bf16.mxu0 0
      %4903 = vmatpush1.bf16.msra.mxu0 0
      %4904 = vmatprep.subr.bf16.mxu0 0
      %4905 = vmatpush1.bf16.msra.mxu0 0
      %4906 = vmatprep.subr.bf16.mxu0 0
      %4907 = vmatpush1.bf16.msra.mxu0 0
      %4908 = vmatprep.mubr.bf16.mxu0 %v4874
      %4909 = vmatmul.mubr.bf16.gmra.mrb[0].mxu0 %v4871
      %v4910 = vpop.f32.mrb[0].mxu0
      %v4911 = vadd.f32 %v4636, %v4910
      %v4912 = vpop.f32.mrb[0].mxu0
      %v4913 = vpop.f32.mrb[0].mxu0
      %v4914 = vpop.f32.mrb[0].mxu0
      %4915 = vdwg.mxu0
      %v4916 = vmax.f32 %v4911, 0.0
      %v4917 = vmax.f32 %v4826, %v4916
      %vm4918 = vcmask 124928
      %4919 = vst.msk [vmem:[#allocation11] sm:$0x7] %vm4918, %v4917
      %v4920 = vld [vmem:[#allocation11] sm:$0x1]
      %v4921 = vld [vmem:[#allocation11 + $0x1] sm:$0x1]
      %v4922 = vmax.f32 %v4920, %v4921
      %v4923 = vld [vmem:[#allocation11 + $0x2] sm:$0x1]
      %v4924 = vmax.f32 %v4922, %v4923
      %v4925 = vpack.c.bf16 %v4924, %v4924
      %vm4926 = vcmask 122880
      %vm4927 = vsmask.f32 256
      %vm4928 = vmand %vm4926, %vm4927
      %v4929 = vld [vmem:[#allocation6] sm:$0x1]
      %v4930 = vsel %vm4928, %v4925, %v4929
      %4931 = vst [vmem:[#allocation6] sm:$0x1] %v4930
      %v4932 = vld [vmem:[#allocation6] sm:$0x1]
      %v4933 = vunpack.c.l.bf16 %v4932
      %v4934 = vld [vmem:[%s11] sm:$0xff]
      %v4935 = vld [vmem:[%s11 + $0x8] sm:$0xff]
      %v4936 = vld [vmem:[%s11 + $0x10] sm:$0xff]
      %v4937 = vld [vmem:[%s11 + $0x18] sm:$0xff]
      %v4938 = vld [vmem:[%s11 + $0x20] sm:$0xff]
      %v4939 = vld [vmem:[%s11 + $0x28] sm:$0xff]
      %v4940 = vld [vmem:[%s11 + $0x30] sm:$0xff]
      %v4941 = vld [vmem:[%s11 + $0x38] sm:$0xff]
      %v4942 = vld [vmem:[%s12] sm:$0xf]
      %v4944 = vlaneseq
      %v4945 = vshrl.u32 %v4944, 7
      %v4946 = vsub.s32 0, %v4945
      %v4947 = vrot.slane %v4942, %v4946
      %v4948 = vlaneseq
      %v4949 = vshrl.u32 %v4948, 7
      %v4950 = vsub.s32 1, %v4949
      %v4951 = vrot.slane %v4942, %v4950
      %v4952 = vlaneseq
      %v4953 = vshrl.u32 %v4952, 7
      %v4954 = vsub.s32 2, %v4953
      %v4955 = vrot.slane %v4942, %v4954
      %v4956 = vlaneseq
      %v4957 = vshrl.u32 %v4956, 7
      %v4958 = vsub.s32 3, %v4957
      %v4959 = vrot.slane %v4942, %v4958
      %v4965 = vsel %vm3262, %v4933, 0
      %4967 = vmatprep.subr.mxu0 %v4935
      %4968 = vmatpush1.msra.mxu0 %v4934
      %4969 = vmatprep.subr.mxu0 %v4939
      %4970 = vmatpush1.msra.mxu0 %v4938
      %4971 = vmatprep.subr.mxu0 0.0
      %4972 = vmatpush1.msra.mxu0 0.0
      %4973 = vmatprep.subr.mxu0 0.0
      %4974 = vmatpush1.msra.mxu0 0.0
      %4975 = vmatprep.subr.mxu0 0.0
      %4976 = vmatpush1.msra.mxu0 0.0
      %4977 = vmatprep.subr.mxu0 0.0
      %4978 = vmatpush1.msra.mxu0 0.0
      %4979 = vmatprep.subr.mxu0 0.0
      %4980 = vmatpush1.msra.mxu0 0.0
      %4981 = vmatprep.subr.mxu0 0.0
      %4982 = vmatpush1.msra.mxu0 0.0
      %4983 = vmatprep.subr.mxu0 0.0
      %4984 = vmatpush1.msra.mxu0 0.0
      %4985 = vmatprep.subr.mxu0 0.0
      %4986 = vmatpush1.msra.mxu0 0.0
      %4987 = vmatprep.subr.mxu0 0.0
      %4988 = vmatpush1.msra.mxu0 0.0
      %4989 = vmatprep.subr.mxu0 0.0
      %4990 = vmatpush1.msra.mxu0 0.0
      %4991 = vmatprep.subr.mxu0 0.0
      %4992 = vmatpush1.msra.mxu0 0.0
      %4993 = vmatprep.subr.mxu0 0.0
      %4994 = vmatpush1.msra.mxu0 0.0
      %4995 = vmatprep.subr.mxu0 0.0
      %4996 = vmatpush1.msra.mxu0 0.0
      %4997 = vmatprep.subr.mxu0 0.0
      %4998 = vmatpush1.msra.mxu0 0.0
      %4999 = vmatprep.subr.mxu0 0.0
      %5000 = vmatpush1.msra.mxu0 0.0
      %5001 = vmatprep.subr.mxu0 0.0
      %5002 = vmatpush1.msra.mxu0 0.0
      %5003 = vmatprep.subr.mxu0 0.0
      %5004 = vmatpush1.msra.mxu0 0.0
      %5005 = vmatprep.subr.mxu0 0.0
      %5006 = vmatpush1.msra.mxu0 0.0
      %5007 = vmatprep.subr.mxu0 0.0
      %5008 = vmatpush1.msra.mxu0 0.0
      %5009 = vmatprep.subr.mxu0 0.0
      %5010 = vmatpush1.msra.mxu0 0.0
      %5011 = vmatprep.subr.mxu0 0.0
      %5012 = vmatpush1.msra.mxu0 0.0
      %5013 = vmatprep.subr.mxu0 0.0
      %5014 = vmatpush1.msra.mxu0 0.0
      %5015 = vmatprep.subr.mxu0 0.0
      %5016 = vmatpush1.msra.mxu0 0.0
      %5017 = vmatprep.subr.mxu0 0.0
      %5018 = vmatpush1.msra.mxu0 0.0
      %5019 = vmatprep.subr.mxu0 0.0
      %5020 = vmatpush1.msra.mxu0 0.0
      %5021 = vmatprep.subr.mxu0 0.0
      %5022 = vmatpush1.msra.mxu0 0.0
      %5023 = vmatprep.subr.mxu0 0.0
      %5024 = vmatpush1.msra.mxu0 0.0
      %5025 = vmatprep.subr.mxu0 0.0
      %5026 = vmatpush1.msra.mxu0 0.0
      %5027 = vmatprep.subr.mxu0 0.0
      %5028 = vmatpush1.msra.mxu0 0.0
      %5029 = vmatprep.subr.mxu0 0.0
      %5030 = vmatpush1.msra.mxu0 0.0
      %5031 = vmatprep.mubr.f32.mxu0 0.0
      %5032 = vmatmul.mubr.f32.gmra.mrb[0].mxu0 %v4965
      %v5033 = vpop.f32.mrb[0].mxu0
      %v5034 = vadd.f32 %v4947, %v5033
      %v5035 = vpop.f32.mrb[0].mxu0
      %v5036 = vadd.f32 %v4951, %v5035
      %5037 = vdwg.mxu0
      %5038 = vmatprep.subr.mxu0 %v4937
      %5039 = vmatpush1.msra.mxu0 %v4936
      %5040 = vmatprep.subr.mxu0 %v4941
      %5041 = vmatpush1.msra.mxu0 %v4940
      %5042 = vmatprep.subr.mxu0 0.0
      %5043 = vmatpush1.msra.mxu0 0.0
      %5044 = vmatprep.subr.mxu0 0.0
      %5045 = vmatpush1.msra.mxu0 0.0
      %5046 = vmatprep.subr.mxu0 0.0
      %5047 = vmatpush1.msra.mxu0 0.0
      %5048 = vmatprep.subr.mxu0 0.0
      %5049 = vmatpush1.msra.mxu0 0.0
      %5050 = vmatprep.subr.mxu0 0.0
      %5051 = vmatpush1.msra.mxu0 0.0
      %5052 = vmatprep.subr.mxu0 0.0
      %5053 = vmatpush1.msra.mxu0 0.0
      %5054 = vmatprep.subr.mxu0 0.0
      %5055 = vmatpush1.msra.mxu0 0.0
      %5056 = vmatprep.subr.mxu0 0.0
      %5057 = vmatpush1.msra.mxu0 0.0
      %5058 = vmatprep.subr.mxu0 0.0
      %5059 = vmatpush1.msra.mxu0 0.0
      %5060 = vmatprep.subr.mxu0 0.0
      %5061 = vmatpush1.msra.mxu0 0.0
      %5062 = vmatprep.subr.mxu0 0.0
      %5063 = vmatpush1.msra.mxu0 0.0
      %5064 = vmatprep.subr.mxu0 0.0
      %5065 = vmatpush1.msra.mxu0 0.0
      %5066 = vmatprep.subr.mxu0 0.0
      %5067 = vmatpush1.msra.mxu0 0.0
      %5068 = vmatprep.subr.mxu0 0.0
      %5069 = vmatpush1.msra.mxu0 0.0
      %5070 = vmatprep.subr.mxu0 0.0
      %5071 = vmatpush1.msra.mxu0 0.0
      %5072 = vmatprep.subr.mxu0 0.0
      %5073 = vmatpush1.msra.mxu0 0.0
      %5074 = vmatprep.subr.mxu0 0.0
      %5075 = vmatpush1.msra.mxu0 0.0
      %5076 = vmatprep.subr.mxu0 0.0
      %5077 = vmatpush1.msra.mxu0 0.0
      %5078 = vmatprep.subr.mxu0 0.0
      %5079 = vmatpush1.msra.mxu0 0.0
      %5080 = vmatprep.subr.mxu0 0.0
      %5081 = vmatpush1.msra.mxu0 0.0
      %5082 = vmatprep.subr.mxu0 0.0
      %5083 = vmatpush1.msra.mxu0 0.0
      %5084 = vmatprep.subr.mxu0 0.0
      %5085 = vmatpush1.msra.mxu0 0.0
      %5086 = vmatprep.subr.mxu0 0.0
      %5087 = vmatpush1.msra.mxu0 0.0
      %5088 = vmatprep.subr.mxu0 0.0
      %5089 = vmatpush1.msra.mxu0 0.0
      %5090 = vmatprep.subr.mxu0 0.0
      %5091 = vmatpush1.msra.mxu0 0.0
      %5092 = vmatprep.subr.mxu0 0.0
      %5093 = vmatpush1.msra.mxu0 0.0
      %5094 = vmatprep.subr.mxu0 0.0
      %5095 = vmatpush1.msra.mxu0 0.0
      %5096 = vmatprep.subr.mxu0 0.0
      %5097 = vmatpush1.msra.mxu0 0.0
      %5098 = vmatprep.subr.mxu0 0.0
      %5099 = vmatpush1.msra.mxu0 0.0
      %5100 = vmatprep.subr.mxu0 0.0
      %5101 = vmatpush1.msra.mxu0 0.0
      %5102 = vmatprep.mubr.f32.mxu0 0.0
      %5103 = vmatmul.mubr.f32.gmra.mrb[0].mxu0 %v4965
      %v5104 = vpop.f32.mrb[0].mxu0
      %v5105 = vadd.f32 %v4955, %v5104
      %v5106 = vpop.f32.mrb[0].mxu0
      %v5107 = vadd.f32 %v4959, %v5106
      %5108 = vdwg.mxu0
      %v5109 = vmax.f32 %v5034, 0.0
      %v5110 = vmax.f32 %v5036, 0.0
      %v5111 = vmax.f32 %v5105, 0.0
      %v5112 = vmax.f32 %v5107, 0.0
      %v5113 = vld [vmem:[%s13] sm:$0xff]
      %v5114 = vld [vmem:[%s13 + $0x8] sm:$0xff]
      %v5115 = vld [vmem:[%s13 + $0x10] sm:$0xff]
      %v5116 = vld [vmem:[%s13 + $0x18] sm:$0xff]
      %v5117 = vld [vmem:[%s13 + $0x20] sm:$0xff]
      %v5118 = vld [vmem:[%s13 + $0x28] sm:$0xff]
      %v5119 = vld [vmem:[%s13 + $0x30] sm:$0xff]
      %v5120 = vld [vmem:[%s13 + $0x38] sm:$0xff]
      %v5121 = vld [vmem:[%s13 + $0x40] sm:$0xff]
      %v5122 = vld [vmem:[%s13 + $0x48] sm:$0xff]
      %v5123 = vld [vmem:[%s13 + $0x50] sm:$0xff]
      %v5124 = vld [vmem:[%s13 + $0x58] sm:$0xff]
      %v5125 = vld [vmem:[%s13 + $0x60] sm:$0xff]
      %v5126 = vld [vmem:[%s13 + $0x68] sm:$0xff]
      %v5127 = vld [vmem:[%s13 + $0x70] sm:$0xff]
      %v5128 = vld [vmem:[%s13 + $0x78] sm:$0xff]
      %v5129 = vld [vmem:[%s13 + $0x80] sm:$0xff]
      %v5130 = vld [vmem:[%s13 + $0x88] sm:$0xff]
      %v5131 = vld [vmem:[%s13 + $0x90] sm:$0xff]
      %v5132 = vld [vmem:[%s13 + $0x98] sm:$0xff]
      %v5133 = vld [vmem:[%s13 + $0xa0] sm:$0xff]
      %v5134 = vld [vmem:[%s13 + $0xa8] sm:$0xff]
      %v5135 = vld [vmem:[%s13 + $0xb0] sm:$0xff]
      %v5136 = vld [vmem:[%s13 + $0xb8] sm:$0xff]
      %v5137 = vld [vmem:[%s13 + $0xc0] sm:$0xff]
      %v5138 = vld [vmem:[%s13 + $0xc8] sm:$0xff]
      %v5139 = vld [vmem:[%s13 + $0xd0] sm:$0xff]
      %v5140 = vld [vmem:[%s13 + $0xd8] sm:$0xff]
      %v5141 = vld [vmem:[%s13 + $0xe0] sm:$0xff]
      %v5142 = vld [vmem:[%s13 + $0xe8] sm:$0xff]
      %v5143 = vld [vmem:[%s13 + $0xf0] sm:$0xff]
      %v5144 = vld [vmem:[%s13 + $0xf8] sm:$0xff]
      %v5145 = vld [vmem:[%s13 + $0x100] sm:$0xff]
      %v5146 = vld [vmem:[%s13 + $0x108] sm:$0xff]
      %v5147 = vld [vmem:[%s13 + $0x110] sm:$0xff]
      %v5148 = vld [vmem:[%s13 + $0x118] sm:$0xff]
      %v5149 = vld [vmem:[%s13 + $0x120] sm:$0xff]
      %v5150 = vld [vmem:[%s13 + $0x128] sm:$0xff]
      %v5151 = vld [vmem:[%s13 + $0x130] sm:$0xff]
      %v5152 = vld [vmem:[%s13 + $0x138] sm:$0xff]
      %v5153 = vld [vmem:[%s13 + $0x140] sm:$0xff]
      %v5154 = vld [vmem:[%s13 + $0x148] sm:$0xff]
      %v5155 = vld [vmem:[%s13 + $0x150] sm:$0xff]
      %v5156 = vld [vmem:[%s13 + $0x158] sm:$0xff]
      %v5157 = vld [vmem:[%s13 + $0x160] sm:$0xff]
      %v5158 = vld [vmem:[%s13 + $0x168] sm:$0xff]
      %v5159 = vld [vmem:[%s13 + $0x170] sm:$0xff]
      %v5160 = vld [vmem:[%s13 + $0x178] sm:$0xff]
      %v5161 = vld [vmem:[%s13 + $0x180] sm:$0xff]
      %v5162 = vld [vmem:[%s13 + $0x188] sm:$0xff]
      %v5163 = vld [vmem:[%s13 + $0x190] sm:$0xff]
      %v5164 = vld [vmem:[%s13 + $0x198] sm:$0xff]
      %v5165 = vld [vmem:[%s13 + $0x1a0] sm:$0xff]
      %v5166 = vld [vmem:[%s13 + $0x1a8] sm:$0xff]
      %v5167 = vld [vmem:[%s13 + $0x1b0] sm:$0xff]
      %v5168 = vld [vmem:[%s13 + $0x1b8] sm:$0xff]
      %v5169 = vld [vmem:[%s13 + $0x1c0] sm:$0xff]
      %v5170 = vld [vmem:[%s13 + $0x1c8] sm:$0xff]
      %v5171 = vld [vmem:[%s13 + $0x1d0] sm:$0xff]
      %v5172 = vld [vmem:[%s13 + $0x1d8] sm:$0xff]
      %v5173 = vld [vmem:[%s13 + $0x1e0] sm:$0xff]
      %v5174 = vld [vmem:[%s13 + $0x1e8] sm:$0xff]
      %v5175 = vld [vmem:[%s13 + $0x1f0] sm:$0xff]
      %v5176 = vld [vmem:[%s13 + $0x1f8] sm:$0xff]
      %v5177 = vld [vmem:[#allocation12] sm:$0x1]
      %5178 = vmatprep.subr.mxu0 0.0
      %5179 = vmatpush1.msra.mxu0 %v5113
      %5180 = vmatprep.subr.mxu0 0.0
      %5181 = vmatpush1.msra.mxu0 %v5114
      %5182 = vmatprep.subr.mxu0 0.0
      %5183 = vmatpush1.msra.mxu0 %v5115
      %5184 = vmatprep.subr.mxu0 0.0
      %5185 = vmatpush1.msra.mxu0 %v5116
      %5186 = vmatprep.subr.mxu0 0.0
      %5187 = vmatpush1.msra.mxu0 %v5117
      %5188 = vmatprep.subr.mxu0 0.0
      %5189 = vmatpush1.msra.mxu0 %v5118
      %5190 = vmatprep.subr.mxu0 0.0
      %5191 = vmatpush1.msra.mxu0 %v5119
      %5192 = vmatprep.subr.mxu0 0.0
      %5193 = vmatpush1.msra.mxu0 %v5120
      %5194 = vmatprep.subr.mxu0 0.0
      %5195 = vmatpush1.msra.mxu0 %v5121
      %5196 = vmatprep.subr.mxu0 0.0
      %5197 = vmatpush1.msra.mxu0 %v5122
      %5198 = vmatprep.subr.mxu0 0.0
      %5199 = vmatpush1.msra.mxu0 %v5123
      %5200 = vmatprep.subr.mxu0 0.0
      %5201 = vmatpush1.msra.mxu0 %v5124
      %5202 = vmatprep.subr.mxu0 0.0
      %5203 = vmatpush1.msra.mxu0 %v5125
      %5204 = vmatprep.subr.mxu0 0.0
      %5205 = vmatpush1.msra.mxu0 %v5126
      %5206 = vmatprep.subr.mxu0 0.0
      %5207 = vmatpush1.msra.mxu0 %v5127
      %5208 = vmatprep.subr.mxu0 0.0
      %5209 = vmatpush1.msra.mxu0 %v5128
      %5210 = vmatprep.subr.mxu0 0.0
      %5211 = vmatpush1.msra.mxu0 %v5129
      %5212 = vmatprep.subr.mxu0 0.0
      %5213 = vmatpush1.msra.mxu0 %v5130
      %5214 = vmatprep.subr.mxu0 0.0
      %5215 = vmatpush1.msra.mxu0 %v5131
      %5216 = vmatprep.subr.mxu0 0.0
      %5217 = vmatpush1.msra.mxu0 %v5132
      %5218 = vmatprep.subr.mxu0 0.0
      %5219 = vmatpush1.msra.mxu0 %v5133
      %5220 = vmatprep.subr.mxu0 0.0
      %5221 = vmatpush1.msra.mxu0 %v5134
      %5222 = vmatprep.subr.mxu0 0.0
      %5223 = vmatpush1.msra.mxu0 %v5135
      %5224 = vmatprep.subr.mxu0 0.0
      %5225 = vmatpush1.msra.mxu0 %v5136
      %5226 = vmatprep.subr.mxu0 0.0
      %5227 = vmatpush1.msra.mxu0 %v5137
      %5228 = vmatprep.subr.mxu0 0.0
      %5229 = vmatpush1.msra.mxu0 %v5138
      %5230 = vmatprep.subr.mxu0 0.0
      %5231 = vmatpush1.msra.mxu0 %v5139
      %5232 = vmatprep.subr.mxu0 0.0
      %5233 = vmatpush1.msra.mxu0 %v5140
      %5234 = vmatprep.subr.mxu0 0.0
      %5235 = vmatpush1.msra.mxu0 %v5141
      %5236 = vmatprep.subr.mxu0 0.0
      %5237 = vmatpush1.msra.mxu0 %v5142
      %5238 = vmatprep.subr.mxu0 0.0
      %5239 = vmatpush1.msra.mxu0 %v5143
      %5240 = vmatprep.subr.mxu0 0.0
      %5241 = vmatpush1.msra.mxu0 %v5144
      %5242 = vmatprep.mubr.f32.mxu0 %v5110
      %5243 = vmatmul.mubr.f32.gmra.mrb[0].mxu0 %v5109
      %v5244 = vpop.f32.mrb[0].mxu0
      %v5245 = vadd.f32 %v5177, %v5244
      %v5246 = vpop.f32.mrb[0].mxu0
      %5247 = vdwg.mxu0
      %5248 = vmatprep.subr.mxu0 0.0
      %5249 = vmatpush1.msra.mxu0 %v5145
      %5250 = vmatprep.subr.mxu0 0.0
      %5251 = vmatpush1.msra.mxu0 %v5146
      %5252 = vmatprep.subr.mxu0 0.0
      %5253 = vmatpush1.msra.mxu0 %v5147
      %5254 = vmatprep.subr.mxu0 0.0
      %5255 = vmatpush1.msra.mxu0 %v5148
      %5256 = vmatprep.subr.mxu0 0.0
      %5257 = vmatpush1.msra.mxu0 %v5149
      %5258 = vmatprep.subr.mxu0 0.0
      %5259 = vmatpush1.msra.mxu0 %v5150
      %5260 = vmatprep.subr.mxu0 0.0
      %5261 = vmatpush1.msra.mxu0 %v5151
      %5262 = vmatprep.subr.mxu0 0.0
      %5263 = vmatpush1.msra.mxu0 %v5152
      %5264 = vmatprep.subr.mxu0 0.0
      %5265 = vmatpush1.msra.mxu0 %v5153
      %5266 = vmatprep.subr.mxu0 0.0
      %5267 = vmatpush1.msra.mxu0 %v5154
      %5268 = vmatprep.subr.mxu0 0.0
      %5269 = vmatpush1.msra.mxu0 %v5155
      %5270 = vmatprep.subr.mxu0 0.0
      %5271 = vmatpush1.msra.mxu0 %v5156
      %5272 = vmatprep.subr.mxu0 0.0
      %5273 = vmatpush1.msra.mxu0 %v5157
      %5274 = vmatprep.subr.mxu0 0.0
      %5275 = vmatpush1.msra.mxu0 %v5158
      %5276 = vmatprep.subr.mxu0 0.0
      %5277 = vmatpush1.msra.mxu0 %v5159
      %5278 = vmatprep.subr.mxu0 0.0
      %5279 = vmatpush1.msra.mxu0 %v5160
      %5280 = vmatprep.subr.mxu0 0.0
      %5281 = vmatpush1.msra.mxu0 %v5161
      %5282 = vmatprep.subr.mxu0 0.0
      %5283 = vmatpush1.msra.mxu0 %v5162
      %5284 = vmatprep.subr.mxu0 0.0
      %5285 = vmatpush1.msra.mxu0 %v5163
      %5286 = vmatprep.subr.mxu0 0.0
      %5287 = vmatpush1.msra.mxu0 %v5164
      %5288 = vmatprep.subr.mxu0 0.0
      %5289 = vmatpush1.msra.mxu0 %v5165
      %5290 = vmatprep.subr.mxu0 0.0
      %5291 = vmatpush1.msra.mxu0 %v5166
      %5292 = vmatprep.subr.mxu0 0.0
      %5293 = vmatpush1.msra.mxu0 %v5167
      %5294 = vmatprep.subr.mxu0 0.0
      %5295 = vmatpush1.msra.mxu0 %v5168
      %5296 = vmatprep.subr.mxu0 0.0
      %5297 = vmatpush1.msra.mxu0 %v5169
      %5298 = vmatprep.subr.mxu0 0.0
      %5299 = vmatpush1.msra.mxu0 %v5170
      %5300 = vmatprep.subr.mxu0 0.0
      %5301 = vmatpush1.msra.mxu0 %v5171
      %5302 = vmatprep.subr.mxu0 0.0
      %5303 = vmatpush1.msra.mxu0 %v5172
      %5304 = vmatprep.subr.mxu0 0.0
      %5305 = vmatpush1.msra.mxu0 %v5173
      %5306 = vmatprep.subr.mxu0 0.0
      %5307 = vmatpush1.msra.mxu0 %v5174
      %5308 = vmatprep.subr.mxu0 0.0
      %5309 = vmatpush1.msra.mxu0 %v5175
      %5310 = vmatprep.subr.mxu0 0.0
      %5311 = vmatpush1.msra.mxu0 %v5176
      %5312 = vmatprep.mubr.f32.mxu0 %v5112
      %5313 = vmatmul.mubr.f32.gmra.mrb[0].mxu0 %v5111
      %v5314 = vpop.f32.mrb[0].mxu0
      %v5315 = vadd.f32 %v5245, %v5314
      %v5316 = vpop.f32.mrb[0].mxu0
      %5317 = vdwg.mxu0
      %v5318 = vxor.u32 %v5315, 2147483648
      %v5319 = vmul.f32 %v5318, 1.442695
      %v5320 = vpow.pop %v5319
      %v5321 = vadd.f32 %v5320, 1.0
      %v5322 = vrcp.pop %v5321
      %v5323 = vmul.f32 1.0, %v5322
      %5325 = vset.pattern.permute.xlu0 0
      %5326 = vperm.xlu0 %5325, %v5323
      %v5327 = vpop.permute.xlu0 %5326
      %5329 = vst [vmem:[%s492] sm:$0x1] %v5327
      %p5330 = scmp.lt.s32.totalorder %s28, 1
      %s5331 = scalar_select %p5330, %s28, 1
      %s5332 = scalar_lea.vmem %s15, %s5331
      // Predicated region
      $region102: #{neural_network_forward.1} parent=79 // pred_check
        %p5333 = pneg %p366
      $region103: #{neural_network_forward.1} parent=79 // pred_check_branch
        %5335 = sbr.rel (%p5333) target = $region105
      $region104: #{neural_network_forward.1} parent=79 // pred_region
        _
      $region105: #{neural_network_forward.1} parent=79 // pred_fallthru
        _
    $region80: #{neural_network_forward.1} parent=5 // pred_fallthru
      _
    %p5336 = scmp.le.s32.totalorder 2, %s23
    // Predicated region
    $region106: #{neural_network_forward.1} parent=5 // pred_check
      %p5337 = pneg %p5336
    $region107: #{neural_network_forward.1} parent=5 // pred_check_branch
      %5339 = sbr.rel (%p5337) target = $region109
    $region108: #{neural_network_forward.1} parent=5 // pred_region
      %s5340 = ssub.s32 %s23, 2
      // Predicated region
      $region110: #{neural_network_forward.1} parent=108 // pred_check
        %p5341 = pneg %p372
      $region111: #{neural_network_forward.1} parent=108 // pred_check_branch
        %5343 = sbr.rel (%p5341) target = $region113
      $region112: #{neural_network_forward.1} parent=108 // pred_region
        %p5344 = scmp.lt.s32.totalorder %s29, 1
        %s5345 = scalar_select %p5344, %s29, 1
        %s5346 = scalar_lea.vmem %s15, %s5345
      $region113: #{neural_network_forward.1} parent=108 // pred_fallthru
        _
    $region109: #{neural_network_forward.1} parent=5 // pred_fallthru
      _
  $region6: #{neural_network_forward.1} parent=0 // loop_footer
    %s27 = sadd.s32 1, %s23
  $region7: #{neural_network_forward.1} parent=0 // loop_footer_branch
    %22 = sbr.rel target = $region3
  $region8: #{neural_network_forward.1} parent=0 // loop_exit
    _

</llo_original>
